<compile_context>
chip_gen: v6e
topology: v6e:2x2x1
jax: 0.10.0
libtpu: 0.0.40
codegen_flags: <defaults>
</compile_context>

<pallas_src>
import jax
import jax.numpy as jnp
from jax.experimental import pallas as pl
from jax.experimental.pallas import tpu as pltpu


# ------------------------------ fused kernel --------------------------------

def _lenet_kernel(x_ref, w1_ref, b1_ref, p1w_ref, s2_ref, w2_ref, b2_ref,
                  m1_ref, fb1_ref, fc2_ref, fb2_ref, fc3_ref, fb3_ref,
                  out_ref, patch_ref):
    bf16 = jnp.bfloat16

    def mm(a, b):
        return jnp.dot(a, b, preferred_element_type=jnp.float32)

    # ---- conv1 (1->6, k=5, pad=2) as an in-kernel im2col GEMM --------------
    # x_ref holds the zero-padded 32x32 image flattened row-major into a
    # 1152-lane row.  Patch row t = input row shifted by ky*32 + kx; output
    # column j = oy*32 + ox addresses conv-output pixel (oy, ox).  Columns
    # with ox >= 28 are junk and get zeroed by the pooling matrix below.
    for ky in range(5):
        for kx in range(5):
            t = ky * 5 + kx
            off = ky * 32 + kx
            patch_ref[t:t + 1, :] = x_ref[0, :, off:off + 896]
    patches = patch_ref[...].astype(bf16)                       # [25, 896]
    c1 = mm(w1_ref[...], patches) + b1_ref[...]                 # [6, 896] f32
    c1 = jnp.maximum(c1, 0.0)

    # ---- pool1: 2x2 avg over the 28x28 maps (drops junk lanes) -------------
    p1 = mm(c1.astype(bf16), p1w_ref[...]).astype(bf16)         # [6, 196]

    # ---- conv2 (6->16, k=5, valid): per-tap window gather + GEMM -----------
    acc = None
    for t in range(25):
        window = mm(p1, s2_ref[t]).astype(bf16)                 # [6, 100]
        part = mm(w2_ref[t], window)                            # [16, 100]
        acc = part if acc is None else acc + part
    c2 = jnp.maximum(acc + b2_ref[...], 0.0)                    # [16, 100] f32

    # ---- pool2 + flatten + fc1 (avg-pool folded into fc1 weights) ----------
    h = None
    for c in range(16):
        part = mm(c2[c:c + 1, :].astype(bf16), m1_ref[c])       # [1, 120]
        h = part if h is None else h + part
    h1 = jnp.maximum(h + fb1_ref[...], 0.0).astype(bf16)        # [1, 120]

    # ---- fc2 / fc3 ----------------------------------------------------------
    h2 = jnp.maximum(mm(h1, fc2_ref[...]) + fb2_ref[...], 0.0).astype(bf16)
    logits = mm(h2, fc3_ref[...]) + fb3_ref[...]                # [1, 10] f32
    out_ref[0] = logits.astype(out_ref.dtype)


# --------------------------- weight / constant prep --------------------------

def _prepare_constants(params):
    (w1, b1, w2, b2, fw1, fb1, fw2, fb2, fw3, fb3) = params
    bf16 = jnp.bfloat16
    f32 = jnp.float32

    # conv1 weights -> [6, 25] (taps ordered ky*5+kx); bias as column vector.
    w1m = w1.reshape(6, 25).astype(bf16)
    b1c = b1.reshape(6, 1).astype(f32)

    # pool1 matrix [896, 196]: column (py*14+px) averages the 2x2 block of
    # conv1 output pixels (and zeroes the 4 junk lanes of each 32-wide row).
    j = jnp.arange(896)
    oy, ox = j // 32, j % 32
    k = jnp.arange(196)
    py, px = k // 14, k % 14
    p1w = ((oy[:, None] // 2 == py[None, :])
           & (ox[:, None] // 2 == px[None, :])
           & (ox[:, None] < 28))
    p1w = (0.25 * p1w.astype(f32)).astype(bf16)

    # conv2 window-selection matrices [25, 196, 100] (0/1) and per-tap
    # [16, 6] weight slices; bias as column vector.
    i = jnp.arange(196)
    iy, ix = i // 14, i % 14
    o = jnp.arange(100)
    oy2, ox2 = o // 10, o % 10
    tt = jnp.arange(25)
    ky, kx = tt // 5, tt % 5
    s2 = ((iy[None, :, None] == oy2[None, None, :] + ky[:, None, None])
          & (ix[None, :, None] == ox2[None, None, :] + kx[:, None, None]))
    s2 = s2.astype(bf16)
    w2t = w2.reshape(16, 6, 25).transpose(2, 0, 1).astype(bf16)   # [25, 16, 6]
    b2c = b2.reshape(16, 1).astype(f32)

    # fc1 with the 2x2 avg-pool folded in (exact; pool is linear):
    # m1[c, s, o] = 0.25 * fc1_w[o, c*25 + (y//2)*5 + x//2] for s = y*10 + x.
    s = jnp.arange(100)
    q = (s // 10 // 2) * 5 + (s % 10) // 2
    m1 = 0.25 * fw1.reshape(120, 16, 25)[:, :, q]                 # [120, 16, 100]
    m1 = m1.transpose(1, 2, 0).astype(bf16)                       # [16, 100, 120]
    fb1r = fb1.reshape(1, 120).astype(f32)

    fc2t = fw2.T.astype(bf16)                                     # [120, 84]
    fb2r = fb2.reshape(1, 84).astype(f32)
    fc3t = fw3.T.astype(bf16)                                     # [84, 10]
    fb3r = fb3.reshape(1, 10).astype(f32)

    return (w1m, b1c, p1w, s2, w2t, b2c, m1, fb1r, fc2t, fb2r, fc3t, fb3r)


# --------------------------------- forward -----------------------------------

def lenet_forward(x, params):
    N = x.shape[0]
    consts = _prepare_constants(params)

    # Zero-pad (padding=2) and flatten each image to one lane-aligned
    # 1152-wide row (32*32 = 1024 values + zero tail to 9*128 lanes).
    xp = jnp.pad(x[:, 0], ((0, 0), (2, 2), (2, 2)))                     # [N, 32, 32]
    xflat = jnp.pad(xp.reshape(N, 1, 1024), ((0, 0), (0, 0), (0, 128)))  # [N, 1, 1152]

    const_specs = [
        pl.BlockSpec(c.shape, lambda i, nd=c.ndim: (0,) * nd) for c in consts
    ]

    out = pl.pallas_call(
        _lenet_kernel,
        out_shape=jax.ShapeDtypeStruct((N, 1, 10), jnp.float32),
        grid=(N,),
        in_specs=[pl.BlockSpec((1, 1, 1152), lambda i: (i, 0, 0))] + const_specs,
        out_specs=pl.BlockSpec((1, 1, 10), lambda i: (i, 0, 0)),
        scratch_shapes=[pltpu.VMEM((25, 896), jnp.float32)],
        compiler_params=pltpu.CompilerParams(
            dimension_semantics=("parallel",)),
    )(xflat, *consts)
    return out.reshape(N, 10)


# --------------------------- reference (pure JAX) ----------------------------

def lenet_reference(x, params):
    (w1, b1, w2, b2, fw1, fb1, fw2, fb2, fw3, fb3) = params
    hi = jax.lax.Precision.HIGHEST

    def conv(a, w, pad):
        dn = jax.lax.conv_dimension_numbers(a.shape, w.shape,
                                            ("NCHW", "OIHW", "NCHW"))
        return jax.lax.conv_general_dilated(a, w, (1, 1),
                                            ((pad, pad), (pad, pad)),
                                            dimension_numbers=dn, precision=hi)

    def pool(a):
        n, c, h, w = a.shape
        return a.reshape(n, c, h // 2, 2, w // 2, 2).mean(axis=(3, 5))

    c1 = jnp.maximum(conv(x, w1, 2) + b1[None, :, None, None], 0.0)
    p1 = pool(c1)
    c2 = jnp.maximum(conv(p1, w2, 0) + b2[None, :, None, None], 0.0)
    p2 = pool(c2).reshape(x.shape[0], -1)
    h = jnp.maximum(jnp.dot(p2, fw1.T, precision=hi) + fb1, 0.0)
    h = jnp.maximum(jnp.dot(h, fw2.T, precision=hi) + fb2, 0.0)
    return jnp.dot(h, fw3.T, precision=hi) + fb3


# --------------------------------- params ------------------------------------

def init_params(key):
    def dense_like(key, shape, fan_in):
        bound = 1.0 / jnp.sqrt(fan_in)
        return jax.random.uniform(key, shape, jnp.float32, -bound, bound)

    ks = jax.random.split(key, 10)
    w1 = dense_like(ks[0], (6, 1, 5, 5), 1 * 5 * 5)
    b1 = dense_like(ks[1], (6,), 1 * 5 * 5)
    w2 = dense_like(ks[2], (16, 6, 5, 5), 6 * 5 * 5)
    b2 = dense_like(ks[3], (16,), 6 * 5 * 5)
    fw1 = dense_like(ks[4], (120, 400), 400)
    fb1 = dense_like(ks[5], (120,), 400)
    fw2 = dense_like(ks[6], (84, 120), 120)
    fb2 = dense_like(ks[7], (84,), 120)
    fw3 = dense_like(ks[8], (10, 84), 84)
    fb3 = dense_like(ks[9], (10,), 84)
    return (w1, b1, w2, b2, fw1, fb1, fw2, fb2, fw3, fb3)


if __name__ == "__main__":
    key = jax.random.PRNGKey(0)
    k_x, k_p = jax.random.split(key)
    # LeNet's 16*5*5 flatten implies 1x28x28 inputs; batch=2.
    x = jax.random.normal(k_x, (2, 1, 28, 28), jnp.float32)
    params = init_params(k_p)

    out = jax.block_until_ready(jax.jit(lenet_forward)(x, params))
    assert out.shape == (2, 10), out.shape

    ref = jax.block_until_ready(lenet_reference(x, params))
    # Kernel matmuls run with bf16 operands + f32 accumulation -> compare
    # against the f32 reference with a bf16-level tolerance.
    max_err = float(jnp.max(jnp.abs(out - ref)))
    assert jnp.allclose(out, ref, atol=1e-2, rtol=1e-2), ("mismatch", max_err)

    print("KERNEL_OK")
</pallas_src>

<mosaic_0001>
module attributes {stable_mosaic.version = 11 : i64} {
  func.func @_lenet_kernel(%arg0: i32, %arg1: memref<1x1x1152xf32, #tpu.memory_space<vmem>>, %arg2: memref<6x25xbf16, #tpu.memory_space<vmem>>, %arg3: memref<6x1xf32, #tpu.memory_space<vmem>>, %arg4: memref<896x196xbf16, #tpu.memory_space<vmem>>, %arg5: memref<25x196x100xbf16, #tpu.memory_space<vmem>>, %arg6: memref<25x16x6xbf16, #tpu.memory_space<vmem>>, %arg7: memref<16x1xf32, #tpu.memory_space<vmem>>, %arg8: memref<16x100x120xbf16, #tpu.memory_space<vmem>>, %arg9: memref<1x120xf32, #tpu.memory_space<vmem>>, %arg10: memref<120x84xbf16, #tpu.memory_space<vmem>>, %arg11: memref<1x84xf32, #tpu.memory_space<vmem>>, %arg12: memref<84x10xbf16, #tpu.memory_space<vmem>>, %arg13: memref<1x10xf32, #tpu.memory_space<vmem>>, %arg14: memref<1x1x10xf32, #tpu.memory_space<vmem>>, %arg15: memref<25x896xf32, #tpu.memory_space<vmem>>) attributes {dimension_semantics = [#tpu.dimension_semantics<parallel>], iteration_bounds = array<i64: 2>, scalar_prefetch = 0 : i64, scratch_operands = 1 : i64, tpu.core_type = #tpu.core_type<tc>, window_params = [{transform_indices = @transform_0, window_bounds = array<i64: 1, 1, 1152>}, {pipeline_mode = #tpu.pipeline_mode<synchronous>, transform_indices = @transform_1, window_bounds = array<i64: 6, 25>}, {pipeline_mode = #tpu.pipeline_mode<synchronous>, transform_indices = @transform_2, window_bounds = array<i64: 6, 1>}, {pipeline_mode = #tpu.pipeline_mode<synchronous>, transform_indices = @transform_3, window_bounds = array<i64: 896, 196>}, {pipeline_mode = #tpu.pipeline_mode<synchronous>, transform_indices = @transform_4, window_bounds = array<i64: 25, 196, 100>}, {pipeline_mode = #tpu.pipeline_mode<synchronous>, transform_indices = @transform_5, window_bounds = array<i64: 25, 16, 6>}, {pipeline_mode = #tpu.pipeline_mode<synchronous>, transform_indices = @transform_6, window_bounds = array<i64: 16, 1>}, {pipeline_mode = #tpu.pipeline_mode<synchronous>, transform_indices = @transform_7, window_bounds = array<i64: 16, 100, 120>}, {pipeline_mode = #tpu.pipeline_mode<synchronous>, transform_indices = @transform_8, window_bounds = array<i64: 1, 120>}, {pipeline_mode = #tpu.pipeline_mode<synchronous>, transform_indices = @transform_9, window_bounds = array<i64: 120, 84>}, {pipeline_mode = #tpu.pipeline_mode<synchronous>, transform_indices = @transform_10, window_bounds = array<i64: 1, 84>}, {pipeline_mode = #tpu.pipeline_mode<synchronous>, transform_indices = @transform_11, window_bounds = array<i64: 84, 10>}, {pipeline_mode = #tpu.pipeline_mode<synchronous>, transform_indices = @transform_12, window_bounds = array<i64: 1, 10>}, {transform_indices = @transform_13, window_bounds = array<i64: 1, 1, 10>}]} {
    %c0 = arith.constant 0 : index
    %c0_0 = arith.constant 0 : index
    %c0_1 = arith.constant 0 : index
    %0 = vector.load %arg1[%c0, %c0_0, %c0_1] : memref<1x1x1152xf32, #tpu.memory_space<vmem>>, vector<1x1x896xf32>
    %1 = vector.shape_cast %0 : vector<1x1x896xf32> to vector<1x896xf32>
    %c0_2 = arith.constant 0 : index
    %c0_3 = arith.constant 0 : index
    %2 = vector.load %arg15[%c0_2, %c0_3] : memref<25x896xf32, #tpu.memory_space<vmem>>, vector<1x896xf32>
    tpu.vector_store %arg15[%c0_2, %c0_3], %1 {strides = array<i32>} : memref<25x896xf32, #tpu.memory_space<vmem>>, vector<1x896xf32>,
    %c0_4 = arith.constant 0 : index
    %c0_5 = arith.constant 0 : index
    %c1 = arith.constant 1 : index
    %3 = vector.load %arg1[%c0_4, %c0_5, %c1] : memref<1x1x1152xf32, #tpu.memory_space<vmem>>, vector<1x1x896xf32>
    %4 = vector.shape_cast %3 : vector<1x1x896xf32> to vector<1x896xf32>
    %c1_6 = arith.constant 1 : index
    %c0_7 = arith.constant 0 : index
    %5 = vector.load %arg15[%c1_6, %c0_7] : memref<25x896xf32, #tpu.memory_space<vmem>>, vector<1x896xf32>
    tpu.vector_store %arg15[%c1_6, %c0_7], %4 {strides = array<i32>} : memref<25x896xf32, #tpu.memory_space<vmem>>, vector<1x896xf32>,
    %c0_8 = arith.constant 0 : index
    %c0_9 = arith.constant 0 : index
    %c2 = arith.constant 2 : index
    %6 = vector.load %arg1[%c0_8, %c0_9, %c2] : memref<1x1x1152xf32, #tpu.memory_space<vmem>>, vector<1x1x896xf32>
    %7 = vector.shape_cast %6 : vector<1x1x896xf32> to vector<1x896xf32>
    %c2_10 = arith.constant 2 : index
    %c0_11 = arith.constant 0 : index
    %8 = vector.load %arg15[%c2_10, %c0_11] : memref<25x896xf32, #tpu.memory_space<vmem>>, vector<1x896xf32>
    tpu.vector_store %arg15[%c2_10, %c0_11], %7 {strides = array<i32>} : memref<25x896xf32, #tpu.memory_space<vmem>>, vector<1x896xf32>,
    %c0_12 = arith.constant 0 : index
    %c0_13 = arith.constant 0 : index
    %c3 = arith.constant 3 : index
    %9 = vector.load %arg1[%c0_12, %c0_13, %c3] : memref<1x1x1152xf32, #tpu.memory_space<vmem>>, vector<1x1x896xf32>
    %10 = vector.shape_cast %9 : vector<1x1x896xf32> to vector<1x896xf32>
    %c3_14 = arith.constant 3 : index
    %c0_15 = arith.constant 0 : index
    %11 = vector.load %arg15[%c3_14, %c0_15] : memref<25x896xf32, #tpu.memory_space<vmem>>, vector<1x896xf32>
    tpu.vector_store %arg15[%c3_14, %c0_15], %10 {strides = array<i32>} : memref<25x896xf32, #tpu.memory_space<vmem>>, vector<1x896xf32>,
    %c0_16 = arith.constant 0 : index
    %c0_17 = arith.constant 0 : index
    %c4 = arith.constant 4 : index
    %12 = vector.load %arg1[%c0_16, %c0_17, %c4] : memref<1x1x1152xf32, #tpu.memory_space<vmem>>, vector<1x1x896xf32>
    %13 = vector.shape_cast %12 : vector<1x1x896xf32> to vector<1x896xf32>
    %c4_18 = arith.constant 4 : index
    %c0_19 = arith.constant 0 : index
    %14 = vector.load %arg15[%c4_18, %c0_19] : memref<25x896xf32, #tpu.memory_space<vmem>>, vector<1x896xf32>
    tpu.vector_store %arg15[%c4_18, %c0_19], %13 {strides = array<i32>} : memref<25x896xf32, #tpu.memory_space<vmem>>, vector<1x896xf32>,
    %c0_20 = arith.constant 0 : index
    %c0_21 = arith.constant 0 : index
    %c32 = arith.constant 32 : index
    %15 = vector.load %arg1[%c0_20, %c0_21, %c32] : memref<1x1x1152xf32, #tpu.memory_space<vmem>>, vector<1x1x896xf32>
    %16 = vector.shape_cast %15 : vector<1x1x896xf32> to vector<1x896xf32>
    %c5 = arith.constant 5 : index
    %c0_22 = arith.constant 0 : index
    %17 = vector.load %arg15[%c5, %c0_22] : memref<25x896xf32, #tpu.memory_space<vmem>>, vector<1x896xf32>
    tpu.vector_store %arg15[%c5, %c0_22], %16 {strides = array<i32>} : memref<25x896xf32, #tpu.memory_space<vmem>>, vector<1x896xf32>,
    %c0_23 = arith.constant 0 : index
    %c0_24 = arith.constant 0 : index
    %c33 = arith.constant 33 : index
    %18 = vector.load %arg1[%c0_23, %c0_24, %c33] : memref<1x1x1152xf32, #tpu.memory_space<vmem>>, vector<1x1x896xf32>
    %19 = vector.shape_cast %18 : vector<1x1x896xf32> to vector<1x896xf32>
    %c6 = arith.constant 6 : index
    %c0_25 = arith.constant 0 : index
    %20 = vector.load %arg15[%c6, %c0_25] : memref<25x896xf32, #tpu.memory_space<vmem>>, vector<1x896xf32>
    tpu.vector_store %arg15[%c6, %c0_25], %19 {strides = array<i32>} : memref<25x896xf32, #tpu.memory_space<vmem>>, vector<1x896xf32>,
    %c0_26 = arith.constant 0 : index
    %c0_27 = arith.constant 0 : index
    %c34 = arith.constant 34 : index
    %21 = vector.load %arg1[%c0_26, %c0_27, %c34] : memref<1x1x1152xf32, #tpu.memory_space<vmem>>, vector<1x1x896xf32>
    %22 = vector.shape_cast %21 : vector<1x1x896xf32> to vector<1x896xf32>
    %c7 = arith.constant 7 : index
    %c0_28 = arith.constant 0 : index
    %23 = vector.load %arg15[%c7, %c0_28] : memref<25x896xf32, #tpu.memory_space<vmem>>, vector<1x896xf32>
    tpu.vector_store %arg15[%c7, %c0_28], %22 {strides = array<i32>} : memref<25x896xf32, #tpu.memory_space<vmem>>, vector<1x896xf32>,
    %c0_29 = arith.constant 0 : index
    %c0_30 = arith.constant 0 : index
    %c35 = arith.constant 35 : index
    %24 = vector.load %arg1[%c0_29, %c0_30, %c35] : memref<1x1x1152xf32, #tpu.memory_space<vmem>>, vector<1x1x896xf32>
    %25 = vector.shape_cast %24 : vector<1x1x896xf32> to vector<1x896xf32>
    %c8 = arith.constant 8 : index
    %c0_31 = arith.constant 0 : index
    %26 = vector.load %arg15[%c8, %c0_31] : memref<25x896xf32, #tpu.memory_space<vmem>>, vector<1x896xf32>
    tpu.vector_store %arg15[%c8, %c0_31], %25 {strides = array<i32>} : memref<25x896xf32, #tpu.memory_space<vmem>>, vector<1x896xf32>,
    %c0_32 = arith.constant 0 : index
    %c0_33 = arith.constant 0 : index
    %c36 = arith.constant 36 : index
    %27 = vector.load %arg1[%c0_32, %c0_33, %c36] : memref<1x1x1152xf32, #tpu.memory_space<vmem>>, vector<1x1x896xf32>
    %28 = vector.shape_cast %27 : vector<1x1x896xf32> to vector<1x896xf32>
    %c9 = arith.constant 9 : index
    %c0_34 = arith.constant 0 : index
    %29 = vector.load %arg15[%c9, %c0_34] : memref<25x896xf32, #tpu.memory_space<vmem>>, vector<1x896xf32>
    tpu.vector_store %arg15[%c9, %c0_34], %28 {strides = array<i32>} : memref<25x896xf32, #tpu.memory_space<vmem>>, vector<1x896xf32>,
    %c0_35 = arith.constant 0 : index
    %c0_36 = arith.constant 0 : index
    %c64 = arith.constant 64 : index
    %30 = vector.load %arg1[%c0_35, %c0_36, %c64] : memref<1x1x1152xf32, #tpu.memory_space<vmem>>, vector<1x1x896xf32>
    %31 = vector.shape_cast %30 : vector<1x1x896xf32> to vector<1x896xf32>
    %c10 = arith.constant 10 : index
    %c0_37 = arith.constant 0 : index
    %32 = vector.load %arg15[%c10, %c0_37] : memref<25x896xf32, #tpu.memory_space<vmem>>, vector<1x896xf32>
    tpu.vector_store %arg15[%c10, %c0_37], %31 {strides = array<i32>} : memref<25x896xf32, #tpu.memory_space<vmem>>, vector<1x896xf32>,
    %c0_38 = arith.constant 0 : index
    %c0_39 = arith.constant 0 : index
    %c65 = arith.constant 65 : index
    %33 = vector.load %arg1[%c0_38, %c0_39, %c65] : memref<1x1x1152xf32, #tpu.memory_space<vmem>>, vector<1x1x896xf32>
    %34 = vector.shape_cast %33 : vector<1x1x896xf32> to vector<1x896xf32>
    %c11 = arith.constant 11 : index
    %c0_40 = arith.constant 0 : index
    %35 = vector.load %arg15[%c11, %c0_40] : memref<25x896xf32, #tpu.memory_space<vmem>>, vector<1x896xf32>
    tpu.vector_store %arg15[%c11, %c0_40], %34 {strides = array<i32>} : memref<25x896xf32, #tpu.memory_space<vmem>>, vector<1x896xf32>,
    %c0_41 = arith.constant 0 : index
    %c0_42 = arith.constant 0 : index
    %c66 = arith.constant 66 : index
    %36 = vector.load %arg1[%c0_41, %c0_42, %c66] : memref<1x1x1152xf32, #tpu.memory_space<vmem>>, vector<1x1x896xf32>
    %37 = vector.shape_cast %36 : vector<1x1x896xf32> to vector<1x896xf32>
    %c12 = arith.constant 12 : index
    %c0_43 = arith.constant 0 : index
    %38 = vector.load %arg15[%c12, %c0_43] : memref<25x896xf32, #tpu.memory_space<vmem>>, vector<1x896xf32>
    tpu.vector_store %arg15[%c12, %c0_43], %37 {strides = array<i32>} : memref<25x896xf32, #tpu.memory_space<vmem>>, vector<1x896xf32>,
    %c0_44 = arith.constant 0 : index
    %c0_45 = arith.constant 0 : index
    %c67 = arith.constant 67 : index
    %39 = vector.load %arg1[%c0_44, %c0_45, %c67] : memref<1x1x1152xf32, #tpu.memory_space<vmem>>, vector<1x1x896xf32>
    %40 = vector.shape_cast %39 : vector<1x1x896xf32> to vector<1x896xf32>
    %c13 = arith.constant 13 : index
    %c0_46 = arith.constant 0 : index
    %41 = vector.load %arg15[%c13, %c0_46] : memref<25x896xf32, #tpu.memory_space<vmem>>, vector<1x896xf32>
    tpu.vector_store %arg15[%c13, %c0_46], %40 {strides = array<i32>} : memref<25x896xf32, #tpu.memory_space<vmem>>, vector<1x896xf32>,
    %c0_47 = arith.constant 0 : index
    %c0_48 = arith.constant 0 : index
    %c68 = arith.constant 68 : index
    %42 = vector.load %arg1[%c0_47, %c0_48, %c68] : memref<1x1x1152xf32, #tpu.memory_space<vmem>>, vector<1x1x896xf32>
    %43 = vector.shape_cast %42 : vector<1x1x896xf32> to vector<1x896xf32>
    %c14 = arith.constant 14 : index
    %c0_49 = arith.constant 0 : index
    %44 = vector.load %arg15[%c14, %c0_49] : memref<25x896xf32, #tpu.memory_space<vmem>>, vector<1x896xf32>
    tpu.vector_store %arg15[%c14, %c0_49], %43 {strides = array<i32>} : memref<25x896xf32, #tpu.memory_space<vmem>>, vector<1x896xf32>,
    %c0_50 = arith.constant 0 : index
    %c0_51 = arith.constant 0 : index
    %c96 = arith.constant 96 : index
    %45 = vector.load %arg1[%c0_50, %c0_51, %c96] : memref<1x1x1152xf32, #tpu.memory_space<vmem>>, vector<1x1x896xf32>
    %46 = vector.shape_cast %45 : vector<1x1x896xf32> to vector<1x896xf32>
    %c15 = arith.constant 15 : index
    %c0_52 = arith.constant 0 : index
    %47 = vector.load %arg15[%c15, %c0_52] : memref<25x896xf32, #tpu.memory_space<vmem>>, vector<1x896xf32>
    tpu.vector_store %arg15[%c15, %c0_52], %46 {strides = array<i32>} : memref<25x896xf32, #tpu.memory_space<vmem>>, vector<1x896xf32>,
    %c0_53 = arith.constant 0 : index
    %c0_54 = arith.constant 0 : index
    %c97 = arith.constant 97 : index
    %48 = vector.load %arg1[%c0_53, %c0_54, %c97] : memref<1x1x1152xf32, #tpu.memory_space<vmem>>, vector<1x1x896xf32>
    %49 = vector.shape_cast %48 : vector<1x1x896xf32> to vector<1x896xf32>
    %c16 = arith.constant 16 : index
    %c0_55 = arith.constant 0 : index
    %50 = vector.load %arg15[%c16, %c0_55] : memref<25x896xf32, #tpu.memory_space<vmem>>, vector<1x896xf32>
    tpu.vector_store %arg15[%c16, %c0_55], %49 {strides = array<i32>} : memref<25x896xf32, #tpu.memory_space<vmem>>, vector<1x896xf32>,
    %c0_56 = arith.constant 0 : index
    %c0_57 = arith.constant 0 : index
    %c98 = arith.constant 98 : index
    %51 = vector.load %arg1[%c0_56, %c0_57, %c98] : memref<1x1x1152xf32, #tpu.memory_space<vmem>>, vector<1x1x896xf32>
    %52 = vector.shape_cast %51 : vector<1x1x896xf32> to vector<1x896xf32>
    %c17 = arith.constant 17 : index
    %c0_58 = arith.constant 0 : index
    %53 = vector.load %arg15[%c17, %c0_58] : memref<25x896xf32, #tpu.memory_space<vmem>>, vector<1x896xf32>
    tpu.vector_store %arg15[%c17, %c0_58], %52 {strides = array<i32>} : memref<25x896xf32, #tpu.memory_space<vmem>>, vector<1x896xf32>,
    %c0_59 = arith.constant 0 : index
    %c0_60 = arith.constant 0 : index
    %c99 = arith.constant 99 : index
    %54 = vector.load %arg1[%c0_59, %c0_60, %c99] : memref<1x1x1152xf32, #tpu.memory_space<vmem>>, vector<1x1x896xf32>
    %55 = vector.shape_cast %54 : vector<1x1x896xf32> to vector<1x896xf32>
    %c18 = arith.constant 18 : index
    %c0_61 = arith.constant 0 : index
    %56 = vector.load %arg15[%c18, %c0_61] : memref<25x896xf32, #tpu.memory_space<vmem>>, vector<1x896xf32>
    tpu.vector_store %arg15[%c18, %c0_61], %55 {strides = array<i32>} : memref<25x896xf32, #tpu.memory_space<vmem>>, vector<1x896xf32>,
    %c0_62 = arith.constant 0 : index
    %c0_63 = arith.constant 0 : index
    %c100 = arith.constant 100 : index
    %57 = vector.load %arg1[%c0_62, %c0_63, %c100] : memref<1x1x1152xf32, #tpu.memory_space<vmem>>, vector<1x1x896xf32>
    %58 = vector.shape_cast %57 : vector<1x1x896xf32> to vector<1x896xf32>
    %c19 = arith.constant 19 : index
    %c0_64 = arith.constant 0 : index
    %59 = vector.load %arg15[%c19, %c0_64] : memref<25x896xf32, #tpu.memory_space<vmem>>, vector<1x896xf32>
    tpu.vector_store %arg15[%c19, %c0_64], %58 {strides = array<i32>} : memref<25x896xf32, #tpu.memory_space<vmem>>, vector<1x896xf32>,
    %c0_65 = arith.constant 0 : index
    %c0_66 = arith.constant 0 : index
    %c128 = arith.constant 128 : index
    %60 = vector.load %arg1[%c0_65, %c0_66, %c128] : memref<1x1x1152xf32, #tpu.memory_space<vmem>>, vector<1x1x896xf32>
    %61 = vector.shape_cast %60 : vector<1x1x896xf32> to vector<1x896xf32>
    %c20 = arith.constant 20 : index
    %c0_67 = arith.constant 0 : index
    %62 = vector.load %arg15[%c20, %c0_67] : memref<25x896xf32, #tpu.memory_space<vmem>>, vector<1x896xf32>
    tpu.vector_store %arg15[%c20, %c0_67], %61 {strides = array<i32>} : memref<25x896xf32, #tpu.memory_space<vmem>>, vector<1x896xf32>,
    %c0_68 = arith.constant 0 : index
    %c0_69 = arith.constant 0 : index
    %c129 = arith.constant 129 : index
    %63 = vector.load %arg1[%c0_68, %c0_69, %c129] : memref<1x1x1152xf32, #tpu.memory_space<vmem>>, vector<1x1x896xf32>
    %64 = vector.shape_cast %63 : vector<1x1x896xf32> to vector<1x896xf32>
    %c21 = arith.constant 21 : index
    %c0_70 = arith.constant 0 : index
    %65 = vector.load %arg15[%c21, %c0_70] : memref<25x896xf32, #tpu.memory_space<vmem>>, vector<1x896xf32>
    tpu.vector_store %arg15[%c21, %c0_70], %64 {strides = array<i32>} : memref<25x896xf32, #tpu.memory_space<vmem>>, vector<1x896xf32>,
    %c0_71 = arith.constant 0 : index
    %c0_72 = arith.constant 0 : index
    %c130 = arith.constant 130 : index
    %66 = vector.load %arg1[%c0_71, %c0_72, %c130] : memref<1x1x1152xf32, #tpu.memory_space<vmem>>, vector<1x1x896xf32>
    %67 = vector.shape_cast %66 : vector<1x1x896xf32> to vector<1x896xf32>
    %c22 = arith.constant 22 : index
    %c0_73 = arith.constant 0 : index
    %68 = vector.load %arg15[%c22, %c0_73] : memref<25x896xf32, #tpu.memory_space<vmem>>, vector<1x896xf32>
    tpu.vector_store %arg15[%c22, %c0_73], %67 {strides = array<i32>} : memref<25x896xf32, #tpu.memory_space<vmem>>, vector<1x896xf32>,
    %c0_74 = arith.constant 0 : index
    %c0_75 = arith.constant 0 : index
    %c131 = arith.constant 131 : index
    %69 = vector.load %arg1[%c0_74, %c0_75, %c131] : memref<1x1x1152xf32, #tpu.memory_space<vmem>>, vector<1x1x896xf32>
    %70 = vector.shape_cast %69 : vector<1x1x896xf32> to vector<1x896xf32>
    %c23 = arith.constant 23 : index
    %c0_76 = arith.constant 0 : index
    %71 = vector.load %arg15[%c23, %c0_76] : memref<25x896xf32, #tpu.memory_space<vmem>>, vector<1x896xf32>
    tpu.vector_store %arg15[%c23, %c0_76], %70 {strides = array<i32>} : memref<25x896xf32, #tpu.memory_space<vmem>>, vector<1x896xf32>,
    %c0_77 = arith.constant 0 : index
    %c0_78 = arith.constant 0 : index
    %c132 = arith.constant 132 : index
    %72 = vector.load %arg1[%c0_77, %c0_78, %c132] : memref<1x1x1152xf32, #tpu.memory_space<vmem>>, vector<1x1x896xf32>
    %73 = vector.shape_cast %72 : vector<1x1x896xf32> to vector<1x896xf32>
    %c24 = arith.constant 24 : index
    %c0_79 = arith.constant 0 : index
    %74 = vector.load %arg15[%c24, %c0_79] : memref<25x896xf32, #tpu.memory_space<vmem>>, vector<1x896xf32>
    tpu.vector_store %arg15[%c24, %c0_79], %73 {strides = array<i32>} : memref<25x896xf32, #tpu.memory_space<vmem>>, vector<1x896xf32>,
    %c0_80 = arith.constant 0 : index
    %c0_81 = arith.constant 0 : index
    %75 = vector.load %arg15[%c0_80, %c0_81] : memref<25x896xf32, #tpu.memory_space<vmem>>, vector<25x896xf32>
    %76 = arith.truncf %75 : vector<25x896xf32> to vector<25x896xbf16>
    %c0_82 = arith.constant 0 : index
    %c0_83 = arith.constant 0 : index
    %77 = vector.load %arg2[%c0_82, %c0_83] : memref<6x25xbf16, #tpu.memory_space<vmem>>, vector<6x25xbf16>
    %cst = arith.constant dense<0.000000e+00> : vector<6x896xf32>
    %78 = tpu.matmul %77, %76, %cst {dimension_numbers = #tpu.dot_dimension_numbers<[1], [0], [0], [1], [0, 0, 1, 1], [], []>} : vector<6x25xbf16>, vector<25x896xbf16>, vector<6x896xf32> -> vector<6x896xf32>
    %c0_84 = arith.constant 0 : index
    %c0_85 = arith.constant 0 : index
    %79 = vector.load %arg3[%c0_84, %c0_85] : memref<6x1xf32, #tpu.memory_space<vmem>>, vector<6x1xf32>
    %80 = vector.broadcast %79 : vector<6x1xf32> to vector<6x896xf32>
    %81 = arith.addf %78, %80 : vector<6x896xf32>
    %cst_86 = arith.constant 0.000000e+00 : f32
    %82 = vector.broadcast %cst_86 : f32 to vector<6x896xf32>
    %83 = arith.maximumf %81, %82 : vector<6x896xf32>
    %84 = arith.truncf %83 : vector<6x896xf32> to vector<6x896xbf16>
    %c0_87 = arith.constant 0 : index
    %c0_88 = arith.constant 0 : index
    %85 = vector.load %arg4[%c0_87, %c0_88] : memref<896x196xbf16, #tpu.memory_space<vmem>>, vector<896x196xbf16>
    %cst_89 = arith.constant dense<0.000000e+00> : vector<6x196xf32>
    %86 = tpu.matmul %84, %85, %cst_89 {dimension_numbers = #tpu.dot_dimension_numbers<[1], [0], [0], [1], [0, 0, 1, 1], [], []>} : vector<6x896xbf16>, vector<896x196xbf16>, vector<6x196xf32> -> vector<6x196xf32>
    %87 = arith.truncf %86 : vector<6x196xf32> to vector<6x196xbf16>
    %c0_90 = arith.constant 0 : index
    %c0_91 = arith.constant 0 : index
    %c0_92 = arith.constant 0 : index
    %88 = vector.load %arg5[%c0_90, %c0_91, %c0_92] : memref<25x196x100xbf16, #tpu.memory_space<vmem>>, vector<1x196x100xbf16>
    %89 = vector.shape_cast %88 : vector<1x196x100xbf16> to vector<196x100xbf16>
    %cst_93 = arith.constant dense<0.000000e+00> : vector<6x100xf32>
    %90 = tpu.matmul %87, %89, %cst_93 {dimension_numbers = #tpu.dot_dimension_numbers<[1], [0], [0], [1], [0, 0, 1, 1], [], []>} : vector<6x196xbf16>, vector<196x100xbf16>, vector<6x100xf32> -> vector<6x100xf32>
    %91 = arith.truncf %90 : vector<6x100xf32> to vector<6x100xbf16>
    %c0_94 = arith.constant 0 : index
    %c0_95 = arith.constant 0 : index
    %c0_96 = arith.constant 0 : index
    %92 = vector.load %arg6[%c0_94, %c0_95, %c0_96] : memref<25x16x6xbf16, #tpu.memory_space<vmem>>, vector<1x16x6xbf16>
    %93 = vector.shape_cast %92 : vector<1x16x6xbf16> to vector<16x6xbf16>
    %cst_97 = arith.constant dense<0.000000e+00> : vector<16x100xf32>
    %94 = tpu.matmul %93, %91, %cst_97 {dimension_numbers = #tpu.dot_dimension_numbers<[1], [0], [0], [1], [0, 0, 1, 1], [], []>} : vector<16x6xbf16>, vector<6x100xbf16>, vector<16x100xf32> -> vector<16x100xf32>
    %c1_98 = arith.constant 1 : index
    %c0_99 = arith.constant 0 : index
    %c0_100 = arith.constant 0 : index
    %95 = vector.load %arg5[%c1_98, %c0_99, %c0_100] : memref<25x196x100xbf16, #tpu.memory_space<vmem>>, vector<1x196x100xbf16>
    %96 = vector.shape_cast %95 : vector<1x196x100xbf16> to vector<196x100xbf16>
    %cst_101 = arith.constant dense<0.000000e+00> : vector<6x100xf32>
    %97 = tpu.matmul %87, %96, %cst_101 {dimension_numbers = #tpu.dot_dimension_numbers<[1], [0], [0], [1], [0, 0, 1, 1], [], []>} : vector<6x196xbf16>, vector<196x100xbf16>, vector<6x100xf32> -> vector<6x100xf32>
    %98 = arith.truncf %97 : vector<6x100xf32> to vector<6x100xbf16>
    %c1_102 = arith.constant 1 : index
    %c0_103 = arith.constant 0 : index
    %c0_104 = arith.constant 0 : index
    %99 = vector.load %arg6[%c1_102, %c0_103, %c0_104] : memref<25x16x6xbf16, #tpu.memory_space<vmem>>, vector<1x16x6xbf16>
    %100 = vector.shape_cast %99 : vector<1x16x6xbf16> to vector<16x6xbf16>
    %cst_105 = arith.constant dense<0.000000e+00> : vector<16x100xf32>
    %101 = tpu.matmul %100, %98, %cst_105 {dimension_numbers = #tpu.dot_dimension_numbers<[1], [0], [0], [1], [0, 0, 1, 1], [], []>} : vector<16x6xbf16>, vector<6x100xbf16>, vector<16x100xf32> -> vector<16x100xf32>
    %102 = arith.addf %94, %101 : vector<16x100xf32>
    %c2_106 = arith.constant 2 : index
    %c0_107 = arith.constant 0 : index
    %c0_108 = arith.constant 0 : index
    %103 = vector.load %arg5[%c2_106, %c0_107, %c0_108] : memref<25x196x100xbf16, #tpu.memory_space<vmem>>, vector<1x196x100xbf16>
    %104 = vector.shape_cast %103 : vector<1x196x100xbf16> to vector<196x100xbf16>
    %cst_109 = arith.constant dense<0.000000e+00> : vector<6x100xf32>
    %105 = tpu.matmul %87, %104, %cst_109 {dimension_numbers = #tpu.dot_dimension_numbers<[1], [0], [0], [1], [0, 0, 1, 1], [], []>} : vector<6x196xbf16>, vector<196x100xbf16>, vector<6x100xf32> -> vector<6x100xf32>
    %106 = arith.truncf %105 : vector<6x100xf32> to vector<6x100xbf16>
    %c2_110 = arith.constant 2 : index
    %c0_111 = arith.constant 0 : index
    %c0_112 = arith.constant 0 : index
    %107 = vector.load %arg6[%c2_110, %c0_111, %c0_112] : memref<25x16x6xbf16, #tpu.memory_space<vmem>>, vector<1x16x6xbf16>
    %108 = vector.shape_cast %107 : vector<1x16x6xbf16> to vector<16x6xbf16>
    %cst_113 = arith.constant dense<0.000000e+00> : vector<16x100xf32>
    %109 = tpu.matmul %108, %106, %cst_113 {dimension_numbers = #tpu.dot_dimension_numbers<[1], [0], [0], [1], [0, 0, 1, 1], [], []>} : vector<16x6xbf16>, vector<6x100xbf16>, vector<16x100xf32> -> vector<16x100xf32>
    %110 = arith.addf %102, %109 : vector<16x100xf32>
    %c3_114 = arith.constant 3 : index
    %c0_115 = arith.constant 0 : index
    %c0_116 = arith.constant 0 : index
    %111 = vector.load %arg5[%c3_114, %c0_115, %c0_116] : memref<25x196x100xbf16, #tpu.memory_space<vmem>>, vector<1x196x100xbf16>
    %112 = vector.shape_cast %111 : vector<1x196x100xbf16> to vector<196x100xbf16>
    %cst_117 = arith.constant dense<0.000000e+00> : vector<6x100xf32>
    %113 = tpu.matmul %87, %112, %cst_117 {dimension_numbers = #tpu.dot_dimension_numbers<[1], [0], [0], [1], [0, 0, 1, 1], [], []>} : vector<6x196xbf16>, vector<196x100xbf16>, vector<6x100xf32> -> vector<6x100xf32>
    %114 = arith.truncf %113 : vector<6x100xf32> to vector<6x100xbf16>
    %c3_118 = arith.constant 3 : index
    %c0_119 = arith.constant 0 : index
    %c0_120 = arith.constant 0 : index
    %115 = vector.load %arg6[%c3_118, %c0_119, %c0_120] : memref<25x16x6xbf16, #tpu.memory_space<vmem>>, vector<1x16x6xbf16>
    %116 = vector.shape_cast %115 : vector<1x16x6xbf16> to vector<16x6xbf16>
    %cst_121 = arith.constant dense<0.000000e+00> : vector<16x100xf32>
    %117 = tpu.matmul %116, %114, %cst_121 {dimension_numbers = #tpu.dot_dimension_numbers<[1], [0], [0], [1], [0, 0, 1, 1], [], []>} : vector<16x6xbf16>, vector<6x100xbf16>, vector<16x100xf32> -> vector<16x100xf32>
    %118 = arith.addf %110, %117 : vector<16x100xf32>
    %c4_122 = arith.constant 4 : index
    %c0_123 = arith.constant 0 : index
    %c0_124 = arith.constant 0 : index
    %119 = vector.load %arg5[%c4_122, %c0_123, %c0_124] : memref<25x196x100xbf16, #tpu.memory_space<vmem>>, vector<1x196x100xbf16>
    %120 = vector.shape_cast %119 : vector<1x196x100xbf16> to vector<196x100xbf16>
    %cst_125 = arith.constant dense<0.000000e+00> : vector<6x100xf32>
    %121 = tpu.matmul %87, %120, %cst_125 {dimension_numbers = #tpu.dot_dimension_numbers<[1], [0], [0], [1], [0, 0, 1, 1], [], []>} : vector<6x196xbf16>, vector<196x100xbf16>, vector<6x100xf32> -> vector<6x100xf32>
    %122 = arith.truncf %121 : vector<6x100xf32> to vector<6x100xbf16>
    %c4_126 = arith.constant 4 : index
    %c0_127 = arith.constant 0 : index
    %c0_128 = arith.constant 0 : index
    %123 = vector.load %arg6[%c4_126, %c0_127, %c0_128] : memref<25x16x6xbf16, #tpu.memory_space<vmem>>, vector<1x16x6xbf16>
    %124 = vector.shape_cast %123 : vector<1x16x6xbf16> to vector<16x6xbf16>
    %cst_129 = arith.constant dense<0.000000e+00> : vector<16x100xf32>
    %125 = tpu.matmul %124, %122, %cst_129 {dimension_numbers = #tpu.dot_dimension_numbers<[1], [0], [0], [1], [0, 0, 1, 1], [], []>} : vector<16x6xbf16>, vector<6x100xbf16>, vector<16x100xf32> -> vector<16x100xf32>
    %126 = arith.addf %118, %125 : vector<16x100xf32>
    %c5_130 = arith.constant 5 : index
    %c0_131 = arith.constant 0 : index
    %c0_132 = arith.constant 0 : index
    %127 = vector.load %arg5[%c5_130, %c0_131, %c0_132] : memref<25x196x100xbf16, #tpu.memory_space<vmem>>, vector<1x196x100xbf16>
    %128 = vector.shape_cast %127 : vector<1x196x100xbf16> to vector<196x100xbf16>
    %cst_133 = arith.constant dense<0.000000e+00> : vector<6x100xf32>
    %129 = tpu.matmul %87, %128, %cst_133 {dimension_numbers = #tpu.dot_dimension_numbers<[1], [0], [0], [1], [0, 0, 1, 1], [], []>} : vector<6x196xbf16>, vector<196x100xbf16>, vector<6x100xf32> -> vector<6x100xf32>
    %130 = arith.truncf %129 : vector<6x100xf32> to vector<6x100xbf16>
    %c5_134 = arith.constant 5 : index
    %c0_135 = arith.constant 0 : index
    %c0_136 = arith.constant 0 : index
    %131 = vector.load %arg6[%c5_134, %c0_135, %c0_136] : memref<25x16x6xbf16, #tpu.memory_space<vmem>>, vector<1x16x6xbf16>
    %132 = vector.shape_cast %131 : vector<1x16x6xbf16> to vector<16x6xbf16>
    %cst_137 = arith.constant dense<0.000000e+00> : vector<16x100xf32>
    %133 = tpu.matmul %132, %130, %cst_137 {dimension_numbers = #tpu.dot_dimension_numbers<[1], [0], [0], [1], [0, 0, 1, 1], [], []>} : vector<16x6xbf16>, vector<6x100xbf16>, vector<16x100xf32> -> vector<16x100xf32>
    %134 = arith.addf %126, %133 : vector<16x100xf32>
    %c6_138 = arith.constant 6 : index
    %c0_139 = arith.constant 0 : index
    %c0_140 = arith.constant 0 : index
    %135 = vector.load %arg5[%c6_138, %c0_139, %c0_140] : memref<25x196x100xbf16, #tpu.memory_space<vmem>>, vector<1x196x100xbf16>
    %136 = vector.shape_cast %135 : vector<1x196x100xbf16> to vector<196x100xbf16>
    %cst_141 = arith.constant dense<0.000000e+00> : vector<6x100xf32>
    %137 = tpu.matmul %87, %136, %cst_141 {dimension_numbers = #tpu.dot_dimension_numbers<[1], [0], [0], [1], [0, 0, 1, 1], [], []>} : vector<6x196xbf16>, vector<196x100xbf16>, vector<6x100xf32> -> vector<6x100xf32>
    %138 = arith.truncf %137 : vector<6x100xf32> to vector<6x100xbf16>
    %c6_142 = arith.constant 6 : index
    %c0_143 = arith.constant 0 : index
    %c0_144 = arith.constant 0 : index
    %139 = vector.load %arg6[%c6_142, %c0_143, %c0_144] : memref<25x16x6xbf16, #tpu.memory_space<vmem>>, vector<1x16x6xbf16>
    %140 = vector.shape_cast %139 : vector<1x16x6xbf16> to vector<16x6xbf16>
    %cst_145 = arith.constant dense<0.000000e+00> : vector<16x100xf32>
    %141 = tpu.matmul %140, %138, %cst_145 {dimension_numbers = #tpu.dot_dimension_numbers<[1], [0], [0], [1], [0, 0, 1, 1], [], []>} : vector<16x6xbf16>, vector<6x100xbf16>, vector<16x100xf32> -> vector<16x100xf32>
    %142 = arith.addf %134, %141 : vector<16x100xf32>
    %c7_146 = arith.constant 7 : index
    %c0_147 = arith.constant 0 : index
    %c0_148 = arith.constant 0 : index
    %143 = vector.load %arg5[%c7_146, %c0_147, %c0_148] : memref<25x196x100xbf16, #tpu.memory_space<vmem>>, vector<1x196x100xbf16>
    %144 = vector.shape_cast %143 : vector<1x196x100xbf16> to vector<196x100xbf16>
    %cst_149 = arith.constant dense<0.000000e+00> : vector<6x100xf32>
    %145 = tpu.matmul %87, %144, %cst_149 {dimension_numbers = #tpu.dot_dimension_numbers<[1], [0], [0], [1], [0, 0, 1, 1], [], []>} : vector<6x196xbf16>, vector<196x100xbf16>, vector<6x100xf32> -> vector<6x100xf32>
    %146 = arith.truncf %145 : vector<6x100xf32> to vector<6x100xbf16>
    %c7_150 = arith.constant 7 : index
    %c0_151 = arith.constant 0 : index
    %c0_152 = arith.constant 0 : index
    %147 = vector.load %arg6[%c7_150, %c0_151, %c0_152] : memref<25x16x6xbf16, #tpu.memory_space<vmem>>, vector<1x16x6xbf16>
    %148 = vector.shape_cast %147 : vector<1x16x6xbf16> to vector<16x6xbf16>
    %cst_153 = arith.constant dense<0.000000e+00> : vector<16x100xf32>
    %149 = tpu.matmul %148, %146, %cst_153 {dimension_numbers = #tpu.dot_dimension_numbers<[1], [0], [0], [1], [0, 0, 1, 1], [], []>} : vector<16x6xbf16>, vector<6x100xbf16>, vector<16x100xf32> -> vector<16x100xf32>
    %150 = arith.addf %142, %149 : vector<16x100xf32>
    %c8_154 = arith.constant 8 : index
    %c0_155 = arith.constant 0 : index
    %c0_156 = arith.constant 0 : index
    %151 = vector.load %arg5[%c8_154, %c0_155, %c0_156] : memref<25x196x100xbf16, #tpu.memory_space<vmem>>, vector<1x196x100xbf16>
    %152 = vector.shape_cast %151 : vector<1x196x100xbf16> to vector<196x100xbf16>
    %cst_157 = arith.constant dense<0.000000e+00> : vector<6x100xf32>
    %153 = tpu.matmul %87, %152, %cst_157 {dimension_numbers = #tpu.dot_dimension_numbers<[1], [0], [0], [1], [0, 0, 1, 1], [], []>} : vector<6x196xbf16>, vector<196x100xbf16>, vector<6x100xf32> -> vector<6x100xf32>
    %154 = arith.truncf %153 : vector<6x100xf32> to vector<6x100xbf16>
    %c8_158 = arith.constant 8 : index
    %c0_159 = arith.constant 0 : index
    %c0_160 = arith.constant 0 : index
    %155 = vector.load %arg6[%c8_158, %c0_159, %c0_160] : memref<25x16x6xbf16, #tpu.memory_space<vmem>>, vector<1x16x6xbf16>
    %156 = vector.shape_cast %155 : vector<1x16x6xbf16> to vector<16x6xbf16>
    %cst_161 = arith.constant dense<0.000000e+00> : vector<16x100xf32>
    %157 = tpu.matmul %156, %154, %cst_161 {dimension_numbers = #tpu.dot_dimension_numbers<[1], [0], [0], [1], [0, 0, 1, 1], [], []>} : vector<16x6xbf16>, vector<6x100xbf16>, vector<16x100xf32> -> vector<16x100xf32>
    %158 = arith.addf %150, %157 : vector<16x100xf32>
    %c9_162 = arith.constant 9 : index
    %c0_163 = arith.constant 0 : index
    %c0_164 = arith.constant 0 : index
    %159 = vector.load %arg5[%c9_162, %c0_163, %c0_164] : memref<25x196x100xbf16, #tpu.memory_space<vmem>>, vector<1x196x100xbf16>
    %160 = vector.shape_cast %159 : vector<1x196x100xbf16> to vector<196x100xbf16>
    %cst_165 = arith.constant dense<0.000000e+00> : vector<6x100xf32>
    %161 = tpu.matmul %87, %160, %cst_165 {dimension_numbers = #tpu.dot_dimension_numbers<[1], [0], [0], [1], [0, 0, 1, 1], [], []>} : vector<6x196xbf16>, vector<196x100xbf16>, vector<6x100xf32> -> vector<6x100xf32>
    %162 = arith.truncf %161 : vector<6x100xf32> to vector<6x100xbf16>
    %c9_166 = arith.constant 9 : index
    %c0_167 = arith.constant 0 : index
    %c0_168 = arith.constant 0 : index
    %163 = vector.load %arg6[%c9_166, %c0_167, %c0_168] : memref<25x16x6xbf16, #tpu.memory_space<vmem>>, vector<1x16x6xbf16>
    %164 = vector.shape_cast %163 : vector<1x16x6xbf16> to vector<16x6xbf16>
    %cst_169 = arith.constant dense<0.000000e+00> : vector<16x100xf32>
    %165 = tpu.matmul %164, %162, %cst_169 {dimension_numbers = #tpu.dot_dimension_numbers<[1], [0], [0], [1], [0, 0, 1, 1], [], []>} : vector<16x6xbf16>, vector<6x100xbf16>, vector<16x100xf32> -> vector<16x100xf32>
    %166 = arith.addf %158, %165 : vector<16x100xf32>
    %c10_170 = arith.constant 10 : index
    %c0_171 = arith.constant 0 : index
    %c0_172 = arith.constant 0 : index
    %167 = vector.load %arg5[%c10_170, %c0_171, %c0_172] : memref<25x196x100xbf16, #tpu.memory_space<vmem>>, vector<1x196x100xbf16>
    %168 = vector.shape_cast %167 : vector<1x196x100xbf16> to vector<196x100xbf16>
    %cst_173 = arith.constant dense<0.000000e+00> : vector<6x100xf32>
    %169 = tpu.matmul %87, %168, %cst_173 {dimension_numbers = #tpu.dot_dimension_numbers<[1], [0], [0], [1], [0, 0, 1, 1], [], []>} : vector<6x196xbf16>, vector<196x100xbf16>, vector<6x100xf32> -> vector<6x100xf32>
    %170 = arith.truncf %169 : vector<6x100xf32> to vector<6x100xbf16>
    %c10_174 = arith.constant 10 : index
    %c0_175 = arith.constant 0 : index
    %c0_176 = arith.constant 0 : index
    %171 = vector.load %arg6[%c10_174, %c0_175, %c0_176] : memref<25x16x6xbf16, #tpu.memory_space<vmem>>, vector<1x16x6xbf16>
    %172 = vector.shape_cast %171 : vector<1x16x6xbf16> to vector<16x6xbf16>
    %cst_177 = arith.constant dense<0.000000e+00> : vector<16x100xf32>
    %173 = tpu.matmul %172, %170, %cst_177 {dimension_numbers = #tpu.dot_dimension_numbers<[1], [0], [0], [1], [0, 0, 1, 1], [], []>} : vector<16x6xbf16>, vector<6x100xbf16>, vector<16x100xf32> -> vector<16x100xf32>
    %174 = arith.addf %166, %173 : vector<16x100xf32>
    %c11_178 = arith.constant 11 : index
    %c0_179 = arith.constant 0 : index
    %c0_180 = arith.constant 0 : index
    %175 = vector.load %arg5[%c11_178, %c0_179, %c0_180] : memref<25x196x100xbf16, #tpu.memory_space<vmem>>, vector<1x196x100xbf16>
    %176 = vector.shape_cast %175 : vector<1x196x100xbf16> to vector<196x100xbf16>
    %cst_181 = arith.constant dense<0.000000e+00> : vector<6x100xf32>
    %177 = tpu.matmul %87, %176, %cst_181 {dimension_numbers = #tpu.dot_dimension_numbers<[1], [0], [0], [1], [0, 0, 1, 1], [], []>} : vector<6x196xbf16>, vector<196x100xbf16>, vector<6x100xf32> -> vector<6x100xf32>
    %178 = arith.truncf %177 : vector<6x100xf32> to vector<6x100xbf16>
    %c11_182 = arith.constant 11 : index
    %c0_183 = arith.constant 0 : index
    %c0_184 = arith.constant 0 : index
    %179 = vector.load %arg6[%c11_182, %c0_183, %c0_184] : memref<25x16x6xbf16, #tpu.memory_space<vmem>>, vector<1x16x6xbf16>
    %180 = vector.shape_cast %179 : vector<1x16x6xbf16> to vector<16x6xbf16>
    %cst_185 = arith.constant dense<0.000000e+00> : vector<16x100xf32>
    %181 = tpu.matmul %180, %178, %cst_185 {dimension_numbers = #tpu.dot_dimension_numbers<[1], [0], [0], [1], [0, 0, 1, 1], [], []>} : vector<16x6xbf16>, vector<6x100xbf16>, vector<16x100xf32> -> vector<16x100xf32>
    %182 = arith.addf %174, %181 : vector<16x100xf32>
    %c12_186 = arith.constant 12 : index
    %c0_187 = arith.constant 0 : index
    %c0_188 = arith.constant 0 : index
    %183 = vector.load %arg5[%c12_186, %c0_187, %c0_188] : memref<25x196x100xbf16, #tpu.memory_space<vmem>>, vector<1x196x100xbf16>
    %184 = vector.shape_cast %183 : vector<1x196x100xbf16> to vector<196x100xbf16>
    %cst_189 = arith.constant dense<0.000000e+00> : vector<6x100xf32>
    %185 = tpu.matmul %87, %184, %cst_189 {dimension_numbers = #tpu.dot_dimension_numbers<[1], [0], [0], [1], [0, 0, 1, 1], [], []>} : vector<6x196xbf16>, vector<196x100xbf16>, vector<6x100xf32> -> vector<6x100xf32>
    %186 = arith.truncf %185 : vector<6x100xf32> to vector<6x100xbf16>
    %c12_190 = arith.constant 12 : index
    %c0_191 = arith.constant 0 : index
    %c0_192 = arith.constant 0 : index
    %187 = vector.load %arg6[%c12_190, %c0_191, %c0_192] : memref<25x16x6xbf16, #tpu.memory_space<vmem>>, vector<1x16x6xbf16>
    %188 = vector.shape_cast %187 : vector<1x16x6xbf16> to vector<16x6xbf16>
    %cst_193 = arith.constant dense<0.000000e+00> : vector<16x100xf32>
    %189 = tpu.matmul %188, %186, %cst_193 {dimension_numbers = #tpu.dot_dimension_numbers<[1], [0], [0], [1], [0, 0, 1, 1], [], []>} : vector<16x6xbf16>, vector<6x100xbf16>, vector<16x100xf32> -> vector<16x100xf32>
    %190 = arith.addf %182, %189 : vector<16x100xf32>
    %c13_194 = arith.constant 13 : index
    %c0_195 = arith.constant 0 : index
    %c0_196 = arith.constant 0 : index
    %191 = vector.load %arg5[%c13_194, %c0_195, %c0_196] : memref<25x196x100xbf16, #tpu.memory_space<vmem>>, vector<1x196x100xbf16>
    %192 = vector.shape_cast %191 : vector<1x196x100xbf16> to vector<196x100xbf16>
    %cst_197 = arith.constant dense<0.000000e+00> : vector<6x100xf32>
    %193 = tpu.matmul %87, %192, %cst_197 {dimension_numbers = #tpu.dot_dimension_numbers<[1], [0], [0], [1], [0, 0, 1, 1], [], []>} : vector<6x196xbf16>, vector<196x100xbf16>, vector<6x100xf32> -> vector<6x100xf32>
    %194 = arith.truncf %193 : vector<6x100xf32> to vector<6x100xbf16>
    %c13_198 = arith.constant 13 : index
    %c0_199 = arith.constant 0 : index
    %c0_200 = arith.constant 0 : index
    %195 = vector.load %arg6[%c13_198, %c0_199, %c0_200] : memref<25x16x6xbf16, #tpu.memory_space<vmem>>, vector<1x16x6xbf16>
    %196 = vector.shape_cast %195 : vector<1x16x6xbf16> to vector<16x6xbf16>
    %cst_201 = arith.constant dense<0.000000e+00> : vector<16x100xf32>
    %197 = tpu.matmul %196, %194, %cst_201 {dimension_numbers = #tpu.dot_dimension_numbers<[1], [0], [0], [1], [0, 0, 1, 1], [], []>} : vector<16x6xbf16>, vector<6x100xbf16>, vector<16x100xf32> -> vector<16x100xf32>
    %198 = arith.addf %190, %197 : vector<16x100xf32>
    %c14_202 = arith.constant 14 : index
    %c0_203 = arith.constant 0 : index
    %c0_204 = arith.constant 0 : index
    %199 = vector.load %arg5[%c14_202, %c0_203, %c0_204] : memref<25x196x100xbf16, #tpu.memory_space<vmem>>, vector<1x196x100xbf16>
    %200 = vector.shape_cast %199 : vector<1x196x100xbf16> to vector<196x100xbf16>
    %cst_205 = arith.constant dense<0.000000e+00> : vector<6x100xf32>
    %201 = tpu.matmul %87, %200, %cst_205 {dimension_numbers = #tpu.dot_dimension_numbers<[1], [0], [0], [1], [0, 0, 1, 1], [], []>} : vector<6x196xbf16>, vector<196x100xbf16>, vector<6x100xf32> -> vector<6x100xf32>
    %202 = arith.truncf %201 : vector<6x100xf32> to vector<6x100xbf16>
    %c14_206 = arith.constant 14 : index
    %c0_207 = arith.constant 0 : index
    %c0_208 = arith.constant 0 : index
    %203 = vector.load %arg6[%c14_206, %c0_207, %c0_208] : memref<25x16x6xbf16, #tpu.memory_space<vmem>>, vector<1x16x6xbf16>
    %204 = vector.shape_cast %203 : vector<1x16x6xbf16> to vector<16x6xbf16>
    %cst_209 = arith.constant dense<0.000000e+00> : vector<16x100xf32>
    %205 = tpu.matmul %204, %202, %cst_209 {dimension_numbers = #tpu.dot_dimension_numbers<[1], [0], [0], [1], [0, 0, 1, 1], [], []>} : vector<16x6xbf16>, vector<6x100xbf16>, vector<16x100xf32> -> vector<16x100xf32>
    %206 = arith.addf %198, %205 : vector<16x100xf32>
    %c15_210 = arith.constant 15 : index
    %c0_211 = arith.constant 0 : index
    %c0_212 = arith.constant 0 : index
    %207 = vector.load %arg5[%c15_210, %c0_211, %c0_212] : memref<25x196x100xbf16, #tpu.memory_space<vmem>>, vector<1x196x100xbf16>
    %208 = vector.shape_cast %207 : vector<1x196x100xbf16> to vector<196x100xbf16>
    %cst_213 = arith.constant dense<0.000000e+00> : vector<6x100xf32>
    %209 = tpu.matmul %87, %208, %cst_213 {dimension_numbers = #tpu.dot_dimension_numbers<[1], [0], [0], [1], [0, 0, 1, 1], [], []>} : vector<6x196xbf16>, vector<196x100xbf16>, vector<6x100xf32> -> vector<6x100xf32>
    %210 = arith.truncf %209 : vector<6x100xf32> to vector<6x100xbf16>
    %c15_214 = arith.constant 15 : index
    %c0_215 = arith.constant 0 : index
    %c0_216 = arith.constant 0 : index
    %211 = vector.load %arg6[%c15_214, %c0_215, %c0_216] : memref<25x16x6xbf16, #tpu.memory_space<vmem>>, vector<1x16x6xbf16>
    %212 = vector.shape_cast %211 : vector<1x16x6xbf16> to vector<16x6xbf16>
    %cst_217 = arith.constant dense<0.000000e+00> : vector<16x100xf32>
    %213 = tpu.matmul %212, %210, %cst_217 {dimension_numbers = #tpu.dot_dimension_numbers<[1], [0], [0], [1], [0, 0, 1, 1], [], []>} : vector<16x6xbf16>, vector<6x100xbf16>, vector<16x100xf32> -> vector<16x100xf32>
    %214 = arith.addf %206, %213 : vector<16x100xf32>
    %c16_218 = arith.constant 16 : index
    %c0_219 = arith.constant 0 : index
    %c0_220 = arith.constant 0 : index
    %215 = vector.load %arg5[%c16_218, %c0_219, %c0_220] : memref<25x196x100xbf16, #tpu.memory_space<vmem>>, vector<1x196x100xbf16>
    %216 = vector.shape_cast %215 : vector<1x196x100xbf16> to vector<196x100xbf16>
    %cst_221 = arith.constant dense<0.000000e+00> : vector<6x100xf32>
    %217 = tpu.matmul %87, %216, %cst_221 {dimension_numbers = #tpu.dot_dimension_numbers<[1], [0], [0], [1], [0, 0, 1, 1], [], []>} : vector<6x196xbf16>, vector<196x100xbf16>, vector<6x100xf32> -> vector<6x100xf32>
    %218 = arith.truncf %217 : vector<6x100xf32> to vector<6x100xbf16>
    %c16_222 = arith.constant 16 : index
    %c0_223 = arith.constant 0 : index
    %c0_224 = arith.constant 0 : index
    %219 = vector.load %arg6[%c16_222, %c0_223, %c0_224] : memref<25x16x6xbf16, #tpu.memory_space<vmem>>, vector<1x16x6xbf16>
    %220 = vector.shape_cast %219 : vector<1x16x6xbf16> to vector<16x6xbf16>
    %cst_225 = arith.constant dense<0.000000e+00> : vector<16x100xf32>
    %221 = tpu.matmul %220, %218, %cst_225 {dimension_numbers = #tpu.dot_dimension_numbers<[1], [0], [0], [1], [0, 0, 1, 1], [], []>} : vector<16x6xbf16>, vector<6x100xbf16>, vector<16x100xf32> -> vector<16x100xf32>
    %222 = arith.addf %214, %221 : vector<16x100xf32>
    %c17_226 = arith.constant 17 : index
    %c0_227 = arith.constant 0 : index
    %c0_228 = arith.constant 0 : index
    %223 = vector.load %arg5[%c17_226, %c0_227, %c0_228] : memref<25x196x100xbf16, #tpu.memory_space<vmem>>, vector<1x196x100xbf16>
    %224 = vector.shape_cast %223 : vector<1x196x100xbf16> to vector<196x100xbf16>
    %cst_229 = arith.constant dense<0.000000e+00> : vector<6x100xf32>
    %225 = tpu.matmul %87, %224, %cst_229 {dimension_numbers = #tpu.dot_dimension_numbers<[1], [0], [0], [1], [0, 0, 1, 1], [], []>} : vector<6x196xbf16>, vector<196x100xbf16>, vector<6x100xf32> -> vector<6x100xf32>
    %226 = arith.truncf %225 : vector<6x100xf32> to vector<6x100xbf16>
    %c17_230 = arith.constant 17 : index
    %c0_231 = arith.constant 0 : index
    %c0_232 = arith.constant 0 : index
    %227 = vector.load %arg6[%c17_230, %c0_231, %c0_232] : memref<25x16x6xbf16, #tpu.memory_space<vmem>>, vector<1x16x6xbf16>
    %228 = vector.shape_cast %227 : vector<1x16x6xbf16> to vector<16x6xbf16>
    %cst_233 = arith.constant dense<0.000000e+00> : vector<16x100xf32>
    %229 = tpu.matmul %228, %226, %cst_233 {dimension_numbers = #tpu.dot_dimension_numbers<[1], [0], [0], [1], [0, 0, 1, 1], [], []>} : vector<16x6xbf16>, vector<6x100xbf16>, vector<16x100xf32> -> vector<16x100xf32>
    %230 = arith.addf %222, %229 : vector<16x100xf32>
    %c18_234 = arith.constant 18 : index
    %c0_235 = arith.constant 0 : index
    %c0_236 = arith.constant 0 : index
    %231 = vector.load %arg5[%c18_234, %c0_235, %c0_236] : memref<25x196x100xbf16, #tpu.memory_space<vmem>>, vector<1x196x100xbf16>
    %232 = vector.shape_cast %231 : vector<1x196x100xbf16> to vector<196x100xbf16>
    %cst_237 = arith.constant dense<0.000000e+00> : vector<6x100xf32>
    %233 = tpu.matmul %87, %232, %cst_237 {dimension_numbers = #tpu.dot_dimension_numbers<[1], [0], [0], [1], [0, 0, 1, 1], [], []>} : vector<6x196xbf16>, vector<196x100xbf16>, vector<6x100xf32> -> vector<6x100xf32>
    %234 = arith.truncf %233 : vector<6x100xf32> to vector<6x100xbf16>
    %c18_238 = arith.constant 18 : index
    %c0_239 = arith.constant 0 : index
    %c0_240 = arith.constant 0 : index
    %235 = vector.load %arg6[%c18_238, %c0_239, %c0_240] : memref<25x16x6xbf16, #tpu.memory_space<vmem>>, vector<1x16x6xbf16>
    %236 = vector.shape_cast %235 : vector<1x16x6xbf16> to vector<16x6xbf16>
    %cst_241 = arith.constant dense<0.000000e+00> : vector<16x100xf32>
    %237 = tpu.matmul %236, %234, %cst_241 {dimension_numbers = #tpu.dot_dimension_numbers<[1], [0], [0], [1], [0, 0, 1, 1], [], []>} : vector<16x6xbf16>, vector<6x100xbf16>, vector<16x100xf32> -> vector<16x100xf32>
    %238 = arith.addf %230, %237 : vector<16x100xf32>
    %c19_242 = arith.constant 19 : index
    %c0_243 = arith.constant 0 : index
    %c0_244 = arith.constant 0 : index
    %239 = vector.load %arg5[%c19_242, %c0_243, %c0_244] : memref<25x196x100xbf16, #tpu.memory_space<vmem>>, vector<1x196x100xbf16>
    %240 = vector.shape_cast %239 : vector<1x196x100xbf16> to vector<196x100xbf16>
    %cst_245 = arith.constant dense<0.000000e+00> : vector<6x100xf32>
    %241 = tpu.matmul %87, %240, %cst_245 {dimension_numbers = #tpu.dot_dimension_numbers<[1], [0], [0], [1], [0, 0, 1, 1], [], []>} : vector<6x196xbf16>, vector<196x100xbf16>, vector<6x100xf32> -> vector<6x100xf32>
    %242 = arith.truncf %241 : vector<6x100xf32> to vector<6x100xbf16>
    %c19_246 = arith.constant 19 : index
    %c0_247 = arith.constant 0 : index
    %c0_248 = arith.constant 0 : index
    %243 = vector.load %arg6[%c19_246, %c0_247, %c0_248] : memref<25x16x6xbf16, #tpu.memory_space<vmem>>, vector<1x16x6xbf16>
    %244 = vector.shape_cast %243 : vector<1x16x6xbf16> to vector<16x6xbf16>
    %cst_249 = arith.constant dense<0.000000e+00> : vector<16x100xf32>
    %245 = tpu.matmul %244, %242, %cst_249 {dimension_numbers = #tpu.dot_dimension_numbers<[1], [0], [0], [1], [0, 0, 1, 1], [], []>} : vector<16x6xbf16>, vector<6x100xbf16>, vector<16x100xf32> -> vector<16x100xf32>
    %246 = arith.addf %238, %245 : vector<16x100xf32>
    %c20_250 = arith.constant 20 : index
    %c0_251 = arith.constant 0 : index
    %c0_252 = arith.constant 0 : index
    %247 = vector.load %arg5[%c20_250, %c0_251, %c0_252] : memref<25x196x100xbf16, #tpu.memory_space<vmem>>, vector<1x196x100xbf16>
    %248 = vector.shape_cast %247 : vector<1x196x100xbf16> to vector<196x100xbf16>
    %cst_253 = arith.constant dense<0.000000e+00> : vector<6x100xf32>
    %249 = tpu.matmul %87, %248, %cst_253 {dimension_numbers = #tpu.dot_dimension_numbers<[1], [0], [0], [1], [0, 0, 1, 1], [], []>} : vector<6x196xbf16>, vector<196x100xbf16>, vector<6x100xf32> -> vector<6x100xf32>
    %250 = arith.truncf %249 : vector<6x100xf32> to vector<6x100xbf16>
    %c20_254 = arith.constant 20 : index
    %c0_255 = arith.constant 0 : index
    %c0_256 = arith.constant 0 : index
    %251 = vector.load %arg6[%c20_254, %c0_255, %c0_256] : memref<25x16x6xbf16, #tpu.memory_space<vmem>>, vector<1x16x6xbf16>
    %252 = vector.shape_cast %251 : vector<1x16x6xbf16> to vector<16x6xbf16>
    %cst_257 = arith.constant dense<0.000000e+00> : vector<16x100xf32>
    %253 = tpu.matmul %252, %250, %cst_257 {dimension_numbers = #tpu.dot_dimension_numbers<[1], [0], [0], [1], [0, 0, 1, 1], [], []>} : vector<16x6xbf16>, vector<6x100xbf16>, vector<16x100xf32> -> vector<16x100xf32>
    %254 = arith.addf %246, %253 : vector<16x100xf32>
    %c21_258 = arith.constant 21 : index
    %c0_259 = arith.constant 0 : index
    %c0_260 = arith.constant 0 : index
    %255 = vector.load %arg5[%c21_258, %c0_259, %c0_260] : memref<25x196x100xbf16, #tpu.memory_space<vmem>>, vector<1x196x100xbf16>
    %256 = vector.shape_cast %255 : vector<1x196x100xbf16> to vector<196x100xbf16>
    %cst_261 = arith.constant dense<0.000000e+00> : vector<6x100xf32>
    %257 = tpu.matmul %87, %256, %cst_261 {dimension_numbers = #tpu.dot_dimension_numbers<[1], [0], [0], [1], [0, 0, 1, 1], [], []>} : vector<6x196xbf16>, vector<196x100xbf16>, vector<6x100xf32> -> vector<6x100xf32>
    %258 = arith.truncf %257 : vector<6x100xf32> to vector<6x100xbf16>
    %c21_262 = arith.constant 21 : index
    %c0_263 = arith.constant 0 : index
    %c0_264 = arith.constant 0 : index
    %259 = vector.load %arg6[%c21_262, %c0_263, %c0_264] : memref<25x16x6xbf16, #tpu.memory_space<vmem>>, vector<1x16x6xbf16>
    %260 = vector.shape_cast %259 : vector<1x16x6xbf16> to vector<16x6xbf16>
    %cst_265 = arith.constant dense<0.000000e+00> : vector<16x100xf32>
    %261 = tpu.matmul %260, %258, %cst_265 {dimension_numbers = #tpu.dot_dimension_numbers<[1], [0], [0], [1], [0, 0, 1, 1], [], []>} : vector<16x6xbf16>, vector<6x100xbf16>, vector<16x100xf32> -> vector<16x100xf32>
    %262 = arith.addf %254, %261 : vector<16x100xf32>
    %c22_266 = arith.constant 22 : index
    %c0_267 = arith.constant 0 : index
    %c0_268 = arith.constant 0 : index
    %263 = vector.load %arg5[%c22_266, %c0_267, %c0_268] : memref<25x196x100xbf16, #tpu.memory_space<vmem>>, vector<1x196x100xbf16>
    %264 = vector.shape_cast %263 : vector<1x196x100xbf16> to vector<196x100xbf16>
    %cst_269 = arith.constant dense<0.000000e+00> : vector<6x100xf32>
    %265 = tpu.matmul %87, %264, %cst_269 {dimension_numbers = #tpu.dot_dimension_numbers<[1], [0], [0], [1], [0, 0, 1, 1], [], []>} : vector<6x196xbf16>, vector<196x100xbf16>, vector<6x100xf32> -> vector<6x100xf32>
    %266 = arith.truncf %265 : vector<6x100xf32> to vector<6x100xbf16>
    %c22_270 = arith.constant 22 : index
    %c0_271 = arith.constant 0 : index
    %c0_272 = arith.constant 0 : index
    %267 = vector.load %arg6[%c22_270, %c0_271, %c0_272] : memref<25x16x6xbf16, #tpu.memory_space<vmem>>, vector<1x16x6xbf16>
    %268 = vector.shape_cast %267 : vector<1x16x6xbf16> to vector<16x6xbf16>
    %cst_273 = arith.constant dense<0.000000e+00> : vector<16x100xf32>
    %269 = tpu.matmul %268, %266, %cst_273 {dimension_numbers = #tpu.dot_dimension_numbers<[1], [0], [0], [1], [0, 0, 1, 1], [], []>} : vector<16x6xbf16>, vector<6x100xbf16>, vector<16x100xf32> -> vector<16x100xf32>
    %270 = arith.addf %262, %269 : vector<16x100xf32>
    %c23_274 = arith.constant 23 : index
    %c0_275 = arith.constant 0 : index
    %c0_276 = arith.constant 0 : index
    %271 = vector.load %arg5[%c23_274, %c0_275, %c0_276] : memref<25x196x100xbf16, #tpu.memory_space<vmem>>, vector<1x196x100xbf16>
    %272 = vector.shape_cast %271 : vector<1x196x100xbf16> to vector<196x100xbf16>
    %cst_277 = arith.constant dense<0.000000e+00> : vector<6x100xf32>
    %273 = tpu.matmul %87, %272, %cst_277 {dimension_numbers = #tpu.dot_dimension_numbers<[1], [0], [0], [1], [0, 0, 1, 1], [], []>} : vector<6x196xbf16>, vector<196x100xbf16>, vector<6x100xf32> -> vector<6x100xf32>
    %274 = arith.truncf %273 : vector<6x100xf32> to vector<6x100xbf16>
    %c23_278 = arith.constant 23 : index
    %c0_279 = arith.constant 0 : index
    %c0_280 = arith.constant 0 : index
    %275 = vector.load %arg6[%c23_278, %c0_279, %c0_280] : memref<25x16x6xbf16, #tpu.memory_space<vmem>>, vector<1x16x6xbf16>
    %276 = vector.shape_cast %275 : vector<1x16x6xbf16> to vector<16x6xbf16>
    %cst_281 = arith.constant dense<0.000000e+00> : vector<16x100xf32>
    %277 = tpu.matmul %276, %274, %cst_281 {dimension_numbers = #tpu.dot_dimension_numbers<[1], [0], [0], [1], [0, 0, 1, 1], [], []>} : vector<16x6xbf16>, vector<6x100xbf16>, vector<16x100xf32> -> vector<16x100xf32>
    %278 = arith.addf %270, %277 : vector<16x100xf32>
    %c24_282 = arith.constant 24 : index
    %c0_283 = arith.constant 0 : index
    %c0_284 = arith.constant 0 : index
    %279 = vector.load %arg5[%c24_282, %c0_283, %c0_284] : memref<25x196x100xbf16, #tpu.memory_space<vmem>>, vector<1x196x100xbf16>
    %280 = vector.shape_cast %279 : vector<1x196x100xbf16> to vector<196x100xbf16>
    %cst_285 = arith.constant dense<0.000000e+00> : vector<6x100xf32>
    %281 = tpu.matmul %87, %280, %cst_285 {dimension_numbers = #tpu.dot_dimension_numbers<[1], [0], [0], [1], [0, 0, 1, 1], [], []>} : vector<6x196xbf16>, vector<196x100xbf16>, vector<6x100xf32> -> vector<6x100xf32>
    %282 = arith.truncf %281 : vector<6x100xf32> to vector<6x100xbf16>
    %c24_286 = arith.constant 24 : index
    %c0_287 = arith.constant 0 : index
    %c0_288 = arith.constant 0 : index
    %283 = vector.load %arg6[%c24_286, %c0_287, %c0_288] : memref<25x16x6xbf16, #tpu.memory_space<vmem>>, vector<1x16x6xbf16>
    %284 = vector.shape_cast %283 : vector<1x16x6xbf16> to vector<16x6xbf16>
    %cst_289 = arith.constant dense<0.000000e+00> : vector<16x100xf32>
    %285 = tpu.matmul %284, %282, %cst_289 {dimension_numbers = #tpu.dot_dimension_numbers<[1], [0], [0], [1], [0, 0, 1, 1], [], []>} : vector<16x6xbf16>, vector<6x100xbf16>, vector<16x100xf32> -> vector<16x100xf32>
    %286 = arith.addf %278, %285 : vector<16x100xf32>
    %c0_290 = arith.constant 0 : index
    %c0_291 = arith.constant 0 : index
    %287 = vector.load %arg7[%c0_290, %c0_291] : memref<16x1xf32, #tpu.memory_space<vmem>>, vector<16x1xf32>
    %288 = vector.broadcast %287 : vector<16x1xf32> to vector<16x100xf32>
    %289 = arith.addf %286, %288 : vector<16x100xf32>
    %cst_292 = arith.constant 0.000000e+00 : f32
    %290 = vector.broadcast %cst_292 : f32 to vector<16x100xf32>
    %291 = arith.maximumf %289, %290 : vector<16x100xf32>
    %292 = vector.extract_strided_slice %291 {offsets = [0, 0], sizes = [1, 100], strides = [1, 1]} : vector<16x100xf32> to vector<1x100xf32>
    %293 = arith.truncf %292 : vector<1x100xf32> to vector<1x100xbf16>
    %c0_293 = arith.constant 0 : index
    %c0_294 = arith.constant 0 : index
    %c0_295 = arith.constant 0 : index
    %294 = vector.load %arg8[%c0_293, %c0_294, %c0_295] : memref<16x100x120xbf16, #tpu.memory_space<vmem>>, vector<1x100x120xbf16>
    %295 = vector.shape_cast %294 : vector<1x100x120xbf16> to vector<100x120xbf16>
    %cst_296 = arith.constant dense<0.000000e+00> : vector<1x120xf32>
    %296 = tpu.matmul %293, %295, %cst_296 {dimension_numbers = #tpu.dot_dimension_numbers<[1], [0], [0], [1], [0, 0, 1, 1], [], []>} : vector<1x100xbf16>, vector<100x120xbf16>, vector<1x120xf32> -> vector<1x120xf32>
    %297 = vector.extract_strided_slice %291 {offsets = [1, 0], sizes = [1, 100], strides = [1, 1]} : vector<16x100xf32> to vector<1x100xf32>
    %298 = arith.truncf %297 : vector<1x100xf32> to vector<1x100xbf16>
    %c1_297 = arith.constant 1 : index
    %c0_298 = arith.constant 0 : index
    %c0_299 = arith.constant 0 : index
    %299 = vector.load %arg8[%c1_297, %c0_298, %c0_299] : memref<16x100x120xbf16, #tpu.memory_space<vmem>>, vector<1x100x120xbf16>
    %300 = vector.shape_cast %299 : vector<1x100x120xbf16> to vector<100x120xbf16>
    %cst_300 = arith.constant dense<0.000000e+00> : vector<1x120xf32>
    %301 = tpu.matmul %298, %300, %cst_300 {dimension_numbers = #tpu.dot_dimension_numbers<[1], [0], [0], [1], [0, 0, 1, 1], [], []>} : vector<1x100xbf16>, vector<100x120xbf16>, vector<1x120xf32> -> vector<1x120xf32>
    %302 = arith.addf %296, %301 : vector<1x120xf32>
    %303 = vector.extract_strided_slice %291 {offsets = [2, 0], sizes = [1, 100], strides = [1, 1]} : vector<16x100xf32> to vector<1x100xf32>
    %304 = arith.truncf %303 : vector<1x100xf32> to vector<1x100xbf16>
    %c2_301 = arith.constant 2 : index
    %c0_302 = arith.constant 0 : index
    %c0_303 = arith.constant 0 : index
    %305 = vector.load %arg8[%c2_301, %c0_302, %c0_303] : memref<16x100x120xbf16, #tpu.memory_space<vmem>>, vector<1x100x120xbf16>
    %306 = vector.shape_cast %305 : vector<1x100x120xbf16> to vector<100x120xbf16>
    %cst_304 = arith.constant dense<0.000000e+00> : vector<1x120xf32>
    %307 = tpu.matmul %304, %306, %cst_304 {dimension_numbers = #tpu.dot_dimension_numbers<[1], [0], [0], [1], [0, 0, 1, 1], [], []>} : vector<1x100xbf16>, vector<100x120xbf16>, vector<1x120xf32> -> vector<1x120xf32>
    %308 = arith.addf %302, %307 : vector<1x120xf32>
    %309 = vector.extract_strided_slice %291 {offsets = [3, 0], sizes = [1, 100], strides = [1, 1]} : vector<16x100xf32> to vector<1x100xf32>
    %310 = arith.truncf %309 : vector<1x100xf32> to vector<1x100xbf16>
    %c3_305 = arith.constant 3 : index
    %c0_306 = arith.constant 0 : index
    %c0_307 = arith.constant 0 : index
    %311 = vector.load %arg8[%c3_305, %c0_306, %c0_307] : memref<16x100x120xbf16, #tpu.memory_space<vmem>>, vector<1x100x120xbf16>
    %312 = vector.shape_cast %311 : vector<1x100x120xbf16> to vector<100x120xbf16>
    %cst_308 = arith.constant dense<0.000000e+00> : vector<1x120xf32>
    %313 = tpu.matmul %310, %312, %cst_308 {dimension_numbers = #tpu.dot_dimension_numbers<[1], [0], [0], [1], [0, 0, 1, 1], [], []>} : vector<1x100xbf16>, vector<100x120xbf16>, vector<1x120xf32> -> vector<1x120xf32>
    %314 = arith.addf %308, %313 : vector<1x120xf32>
    %315 = vector.extract_strided_slice %291 {offsets = [4, 0], sizes = [1, 100], strides = [1, 1]} : vector<16x100xf32> to vector<1x100xf32>
    %316 = arith.truncf %315 : vector<1x100xf32> to vector<1x100xbf16>
    %c4_309 = arith.constant 4 : index
    %c0_310 = arith.constant 0 : index
    %c0_311 = arith.constant 0 : index
    %317 = vector.load %arg8[%c4_309, %c0_310, %c0_311] : memref<16x100x120xbf16, #tpu.memory_space<vmem>>, vector<1x100x120xbf16>
    %318 = vector.shape_cast %317 : vector<1x100x120xbf16> to vector<100x120xbf16>
    %cst_312 = arith.constant dense<0.000000e+00> : vector<1x120xf32>
    %319 = tpu.matmul %316, %318, %cst_312 {dimension_numbers = #tpu.dot_dimension_numbers<[1], [0], [0], [1], [0, 0, 1, 1], [], []>} : vector<1x100xbf16>, vector<100x120xbf16>, vector<1x120xf32> -> vector<1x120xf32>
    %320 = arith.addf %314, %319 : vector<1x120xf32>
    %321 = vector.extract_strided_slice %291 {offsets = [5, 0], sizes = [1, 100], strides = [1, 1]} : vector<16x100xf32> to vector<1x100xf32>
    %322 = arith.truncf %321 : vector<1x100xf32> to vector<1x100xbf16>
    %c5_313 = arith.constant 5 : index
    %c0_314 = arith.constant 0 : index
    %c0_315 = arith.constant 0 : index
    %323 = vector.load %arg8[%c5_313, %c0_314, %c0_315] : memref<16x100x120xbf16, #tpu.memory_space<vmem>>, vector<1x100x120xbf16>
    %324 = vector.shape_cast %323 : vector<1x100x120xbf16> to vector<100x120xbf16>
    %cst_316 = arith.constant dense<0.000000e+00> : vector<1x120xf32>
    %325 = tpu.matmul %322, %324, %cst_316 {dimension_numbers = #tpu.dot_dimension_numbers<[1], [0], [0], [1], [0, 0, 1, 1], [], []>} : vector<1x100xbf16>, vector<100x120xbf16>, vector<1x120xf32> -> vector<1x120xf32>
    %326 = arith.addf %320, %325 : vector<1x120xf32>
    %327 = vector.extract_strided_slice %291 {offsets = [6, 0], sizes = [1, 100], strides = [1, 1]} : vector<16x100xf32> to vector<1x100xf32>
    %328 = arith.truncf %327 : vector<1x100xf32> to vector<1x100xbf16>
    %c6_317 = arith.constant 6 : index
    %c0_318 = arith.constant 0 : index
    %c0_319 = arith.constant 0 : index
    %329 = vector.load %arg8[%c6_317, %c0_318, %c0_319] : memref<16x100x120xbf16, #tpu.memory_space<vmem>>, vector<1x100x120xbf16>
    %330 = vector.shape_cast %329 : vector<1x100x120xbf16> to vector<100x120xbf16>
    %cst_320 = arith.constant dense<0.000000e+00> : vector<1x120xf32>
    %331 = tpu.matmul %328, %330, %cst_320 {dimension_numbers = #tpu.dot_dimension_numbers<[1], [0], [0], [1], [0, 0, 1, 1], [], []>} : vector<1x100xbf16>, vector<100x120xbf16>, vector<1x120xf32> -> vector<1x120xf32>
    %332 = arith.addf %326, %331 : vector<1x120xf32>
    %333 = vector.extract_strided_slice %291 {offsets = [7, 0], sizes = [1, 100], strides = [1, 1]} : vector<16x100xf32> to vector<1x100xf32>
    %334 = arith.truncf %333 : vector<1x100xf32> to vector<1x100xbf16>
    %c7_321 = arith.constant 7 : index
    %c0_322 = arith.constant 0 : index
    %c0_323 = arith.constant 0 : index
    %335 = vector.load %arg8[%c7_321, %c0_322, %c0_323] : memref<16x100x120xbf16, #tpu.memory_space<vmem>>, vector<1x100x120xbf16>
    %336 = vector.shape_cast %335 : vector<1x100x120xbf16> to vector<100x120xbf16>
    %cst_324 = arith.constant dense<0.000000e+00> : vector<1x120xf32>
    %337 = tpu.matmul %334, %336, %cst_324 {dimension_numbers = #tpu.dot_dimension_numbers<[1], [0], [0], [1], [0, 0, 1, 1], [], []>} : vector<1x100xbf16>, vector<100x120xbf16>, vector<1x120xf32> -> vector<1x120xf32>
    %338 = arith.addf %332, %337 : vector<1x120xf32>
    %339 = vector.extract_strided_slice %291 {offsets = [8, 0], sizes = [1, 100], strides = [1, 1]} : vector<16x100xf32> to vector<1x100xf32>
    %340 = arith.truncf %339 : vector<1x100xf32> to vector<1x100xbf16>
    %c8_325 = arith.constant 8 : index
    %c0_326 = arith.constant 0 : index
    %c0_327 = arith.constant 0 : index
    %341 = vector.load %arg8[%c8_325, %c0_326, %c0_327] : memref<16x100x120xbf16, #tpu.memory_space<vmem>>, vector<1x100x120xbf16>
    %342 = vector.shape_cast %341 : vector<1x100x120xbf16> to vector<100x120xbf16>
    %cst_328 = arith.constant dense<0.000000e+00> : vector<1x120xf32>
    %343 = tpu.matmul %340, %342, %cst_328 {dimension_numbers = #tpu.dot_dimension_numbers<[1], [0], [0], [1], [0, 0, 1, 1], [], []>} : vector<1x100xbf16>, vector<100x120xbf16>, vector<1x120xf32> -> vector<1x120xf32>
    %344 = arith.addf %338, %343 : vector<1x120xf32>
    %345 = vector.extract_strided_slice %291 {offsets = [9, 0], sizes = [1, 100], strides = [1, 1]} : vector<16x100xf32> to vector<1x100xf32>
    %346 = arith.truncf %345 : vector<1x100xf32> to vector<1x100xbf16>
    %c9_329 = arith.constant 9 : index
    %c0_330 = arith.constant 0 : index
    %c0_331 = arith.constant 0 : index
    %347 = vector.load %arg8[%c9_329, %c0_330, %c0_331] : memref<16x100x120xbf16, #tpu.memory_space<vmem>>, vector<1x100x120xbf16>
    %348 = vector.shape_cast %347 : vector<1x100x120xbf16> to vector<100x120xbf16>
    %cst_332 = arith.constant dense<0.000000e+00> : vector<1x120xf32>
    %349 = tpu.matmul %346, %348, %cst_332 {dimension_numbers = #tpu.dot_dimension_numbers<[1], [0], [0], [1], [0, 0, 1, 1], [], []>} : vector<1x100xbf16>, vector<100x120xbf16>, vector<1x120xf32> -> vector<1x120xf32>
    %350 = arith.addf %344, %349 : vector<1x120xf32>
    %351 = vector.extract_strided_slice %291 {offsets = [10, 0], sizes = [1, 100], strides = [1, 1]} : vector<16x100xf32> to vector<1x100xf32>
    %352 = arith.truncf %351 : vector<1x100xf32> to vector<1x100xbf16>
    %c10_333 = arith.constant 10 : index
    %c0_334 = arith.constant 0 : index
    %c0_335 = arith.constant 0 : index
    %353 = vector.load %arg8[%c10_333, %c0_334, %c0_335] : memref<16x100x120xbf16, #tpu.memory_space<vmem>>, vector<1x100x120xbf16>
    %354 = vector.shape_cast %353 : vector<1x100x120xbf16> to vector<100x120xbf16>
    %cst_336 = arith.constant dense<0.000000e+00> : vector<1x120xf32>
    %355 = tpu.matmul %352, %354, %cst_336 {dimension_numbers = #tpu.dot_dimension_numbers<[1], [0], [0], [1], [0, 0, 1, 1], [], []>} : vector<1x100xbf16>, vector<100x120xbf16>, vector<1x120xf32> -> vector<1x120xf32>
    %356 = arith.addf %350, %355 : vector<1x120xf32>
    %357 = vector.extract_strided_slice %291 {offsets = [11, 0], sizes = [1, 100], strides = [1, 1]} : vector<16x100xf32> to vector<1x100xf32>
    %358 = arith.truncf %357 : vector<1x100xf32> to vector<1x100xbf16>
    %c11_337 = arith.constant 11 : index
    %c0_338 = arith.constant 0 : index
    %c0_339 = arith.constant 0 : index
    %359 = vector.load %arg8[%c11_337, %c0_338, %c0_339] : memref<16x100x120xbf16, #tpu.memory_space<vmem>>, vector<1x100x120xbf16>
    %360 = vector.shape_cast %359 : vector<1x100x120xbf16> to vector<100x120xbf16>
    %cst_340 = arith.constant dense<0.000000e+00> : vector<1x120xf32>
    %361 = tpu.matmul %358, %360, %cst_340 {dimension_numbers = #tpu.dot_dimension_numbers<[1], [0], [0], [1], [0, 0, 1, 1], [], []>} : vector<1x100xbf16>, vector<100x120xbf16>, vector<1x120xf32> -> vector<1x120xf32>
    %362 = arith.addf %356, %361 : vector<1x120xf32>
    %363 = vector.extract_strided_slice %291 {offsets = [12, 0], sizes = [1, 100], strides = [1, 1]} : vector<16x100xf32> to vector<1x100xf32>
    %364 = arith.truncf %363 : vector<1x100xf32> to vector<1x100xbf16>
    %c12_341 = arith.constant 12 : index
    %c0_342 = arith.constant 0 : index
    %c0_343 = arith.constant 0 : index
    %365 = vector.load %arg8[%c12_341, %c0_342, %c0_343] : memref<16x100x120xbf16, #tpu.memory_space<vmem>>, vector<1x100x120xbf16>
    %366 = vector.shape_cast %365 : vector<1x100x120xbf16> to vector<100x120xbf16>
    %cst_344 = arith.constant dense<0.000000e+00> : vector<1x120xf32>
    %367 = tpu.matmul %364, %366, %cst_344 {dimension_numbers = #tpu.dot_dimension_numbers<[1], [0], [0], [1], [0, 0, 1, 1], [], []>} : vector<1x100xbf16>, vector<100x120xbf16>, vector<1x120xf32> -> vector<1x120xf32>
    %368 = arith.addf %362, %367 : vector<1x120xf32>
    %369 = vector.extract_strided_slice %291 {offsets = [13, 0], sizes = [1, 100], strides = [1, 1]} : vector<16x100xf32> to vector<1x100xf32>
    %370 = arith.truncf %369 : vector<1x100xf32> to vector<1x100xbf16>
    %c13_345 = arith.constant 13 : index
    %c0_346 = arith.constant 0 : index
    %c0_347 = arith.constant 0 : index
    %371 = vector.load %arg8[%c13_345, %c0_346, %c0_347] : memref<16x100x120xbf16, #tpu.memory_space<vmem>>, vector<1x100x120xbf16>
    %372 = vector.shape_cast %371 : vector<1x100x120xbf16> to vector<100x120xbf16>
    %cst_348 = arith.constant dense<0.000000e+00> : vector<1x120xf32>
    %373 = tpu.matmul %370, %372, %cst_348 {dimension_numbers = #tpu.dot_dimension_numbers<[1], [0], [0], [1], [0, 0, 1, 1], [], []>} : vector<1x100xbf16>, vector<100x120xbf16>, vector<1x120xf32> -> vector<1x120xf32>
    %374 = arith.addf %368, %373 : vector<1x120xf32>
    %375 = vector.extract_strided_slice %291 {offsets = [14, 0], sizes = [1, 100], strides = [1, 1]} : vector<16x100xf32> to vector<1x100xf32>
    %376 = arith.truncf %375 : vector<1x100xf32> to vector<1x100xbf16>
    %c14_349 = arith.constant 14 : index
    %c0_350 = arith.constant 0 : index
    %c0_351 = arith.constant 0 : index
    %377 = vector.load %arg8[%c14_349, %c0_350, %c0_351] : memref<16x100x120xbf16, #tpu.memory_space<vmem>>, vector<1x100x120xbf16>
    %378 = vector.shape_cast %377 : vector<1x100x120xbf16> to vector<100x120xbf16>
    %cst_352 = arith.constant dense<0.000000e+00> : vector<1x120xf32>
    %379 = tpu.matmul %376, %378, %cst_352 {dimension_numbers = #tpu.dot_dimension_numbers<[1], [0], [0], [1], [0, 0, 1, 1], [], []>} : vector<1x100xbf16>, vector<100x120xbf16>, vector<1x120xf32> -> vector<1x120xf32>
    %380 = arith.addf %374, %379 : vector<1x120xf32>
    %381 = vector.extract_strided_slice %291 {offsets = [15, 0], sizes = [1, 100], strides = [1, 1]} : vector<16x100xf32> to vector<1x100xf32>
    %382 = arith.truncf %381 : vector<1x100xf32> to vector<1x100xbf16>
    %c15_353 = arith.constant 15 : index
    %c0_354 = arith.constant 0 : index
    %c0_355 = arith.constant 0 : index
    %383 = vector.load %arg8[%c15_353, %c0_354, %c0_355] : memref<16x100x120xbf16, #tpu.memory_space<vmem>>, vector<1x100x120xbf16>
    %384 = vector.shape_cast %383 : vector<1x100x120xbf16> to vector<100x120xbf16>
    %cst_356 = arith.constant dense<0.000000e+00> : vector<1x120xf32>
    %385 = tpu.matmul %382, %384, %cst_356 {dimension_numbers = #tpu.dot_dimension_numbers<[1], [0], [0], [1], [0, 0, 1, 1], [], []>} : vector<1x100xbf16>, vector<100x120xbf16>, vector<1x120xf32> -> vector<1x120xf32>
    %386 = arith.addf %380, %385 : vector<1x120xf32>
    %c0_357 = arith.constant 0 : index
    %c0_358 = arith.constant 0 : index
    %387 = vector.load %arg9[%c0_357, %c0_358] : memref<1x120xf32, #tpu.memory_space<vmem>>, vector<1x120xf32>
    %388 = arith.addf %386, %387 : vector<1x120xf32>
    %cst_359 = arith.constant 0.000000e+00 : f32
    %389 = vector.broadcast %cst_359 : f32 to vector<1x120xf32>
    %390 = arith.maximumf %388, %389 : vector<1x120xf32>
    %391 = arith.truncf %390 : vector<1x120xf32> to vector<1x120xbf16>
    %c0_360 = arith.constant 0 : index
    %c0_361 = arith.constant 0 : index
    %392 = vector.load %arg10[%c0_360, %c0_361] : memref<120x84xbf16, #tpu.memory_space<vmem>>, vector<120x84xbf16>
    %cst_362 = arith.constant dense<0.000000e+00> : vector<1x84xf32>
    %393 = tpu.matmul %391, %392, %cst_362 {dimension_numbers = #tpu.dot_dimension_numbers<[1], [0], [0], [1], [0, 0, 1, 1], [], []>} : vector<1x120xbf16>, vector<120x84xbf16>, vector<1x84xf32> -> vector<1x84xf32>
    %c0_363 = arith.constant 0 : index
    %c0_364 = arith.constant 0 : index
    %394 = vector.load %arg11[%c0_363, %c0_364] : memref<1x84xf32, #tpu.memory_space<vmem>>, vector<1x84xf32>
    %395 = arith.addf %393, %394 : vector<1x84xf32>
    %cst_365 = arith.constant 0.000000e+00 : f32
    %396 = vector.broadcast %cst_365 : f32 to vector<1x84xf32>
    %397 = arith.maximumf %395, %396 : vector<1x84xf32>
    %398 = arith.truncf %397 : vector<1x84xf32> to vector<1x84xbf16>
    %c0_366 = arith.constant 0 : index
    %c0_367 = arith.constant 0 : index
    %399 = vector.load %arg12[%c0_366, %c0_367] : memref<84x10xbf16, #tpu.memory_space<vmem>>, vector<84x10xbf16>
    %cst_368 = arith.constant dense<0.000000e+00> : vector<1x10xf32>
    %400 = tpu.matmul %398, %399, %cst_368 {dimension_numbers = #tpu.dot_dimension_numbers<[1], [0], [0], [1], [0, 0, 1, 1], [], []>} : vector<1x84xbf16>, vector<84x10xbf16>, vector<1x10xf32> -> vector<1x10xf32>
    %c0_369 = arith.constant 0 : index
    %c0_370 = arith.constant 0 : index
    %401 = vector.load %arg13[%c0_369, %c0_370] : memref<1x10xf32, #tpu.memory_space<vmem>>, vector<1x10xf32>
    %402 = arith.addf %400, %401 : vector<1x10xf32>
    %c0_371 = arith.constant 0 : index
    %c0_372 = arith.constant 0 : index
    %c0_373 = arith.constant 0 : index
    %403 = vector.load %arg14[%c0_371, %c0_372, %c0_373] : memref<1x1x10xf32, #tpu.memory_space<vmem>>, vector<1x1x10xf32>
    %404 = vector.shape_cast %403 : vector<1x1x10xf32> to vector<1x10xf32>
    %405 = vector.shape_cast %402 : vector<1x10xf32> to vector<1x1x10xf32>
    tpu.vector_store %arg14[%c0_371, %c0_372, %c0_373], %405 {strides = array<i32>} : memref<1x1x10xf32, #tpu.memory_space<vmem>>, vector<1x1x10xf32>,
    return
  }
  func.func @transform_0(%arg0: i32) -> (i32, i32, i32) {
    %c0_i32 = arith.constant 0 : i32
    %c0_i32_0 = arith.constant 0 : i32
    %c0_i32_1 = arith.constant 0 : i32
    return %arg0, %c0_i32, %c0_i32_0 : i32, i32, i32
  }
  func.func @transform_1(%arg0: i32) -> (i32, i32) {
    %c0_i32 = arith.constant 0 : i32
    %c0_i32_0 = arith.constant 0 : i32
    %c0_i32_1 = arith.constant 0 : i32
    return %c0_i32, %c0_i32_0 : i32, i32
  }
  func.func @transform_2(%arg0: i32) -> (i32, i32) {
    %c0_i32 = arith.constant 0 : i32
    %c0_i32_0 = arith.constant 0 : i32
    %c0_i32_1 = arith.constant 0 : i32
    return %c0_i32, %c0_i32_0 : i32, i32
  }
  func.func @transform_3(%arg0: i32) -> (i32, i32) {
    %c0_i32 = arith.constant 0 : i32
    %c0_i32_0 = arith.constant 0 : i32
    %c0_i32_1 = arith.constant 0 : i32
    return %c0_i32, %c0_i32_0 : i32, i32
  }
  func.func @transform_4(%arg0: i32) -> (i32, i32, i32) {
    %c0_i32 = arith.constant 0 : i32
    %c0_i32_0 = arith.constant 0 : i32
    %c0_i32_1 = arith.constant 0 : i32
    %c0_i32_2 = arith.constant 0 : i32
    return %c0_i32, %c0_i32_0, %c0_i32_1 : i32, i32, i32
  }
  func.func @transform_5(%arg0: i32) -> (i32, i32, i32) {
    %c0_i32 = arith.constant 0 : i32
    %c0_i32_0 = arith.constant 0 : i32
    %c0_i32_1 = arith.constant 0 : i32
    %c0_i32_2 = arith.constant 0 : i32
    return %c0_i32, %c0_i32_0, %c0_i32_1 : i32, i32, i32
  }
  func.func @transform_6(%arg0: i32) -> (i32, i32) {
    %c0_i32 = arith.constant 0 : i32
    %c0_i32_0 = arith.constant 0 : i32
    %c0_i32_1 = arith.constant 0 : i32
    return %c0_i32, %c0_i32_0 : i32, i32
  }
  func.func @transform_7(%arg0: i32) -> (i32, i32, i32) {
    %c0_i32 = arith.constant 0 : i32
    %c0_i32_0 = arith.constant 0 : i32
    %c0_i32_1 = arith.constant 0 : i32
    %c0_i32_2 = arith.constant 0 : i32
    return %c0_i32, %c0_i32_0, %c0_i32_1 : i32, i32, i32
  }
  func.func @transform_8(%arg0: i32) -> (i32, i32) {
    %c0_i32 = arith.constant 0 : i32
    %c0_i32_0 = arith.constant 0 : i32
    %c0_i32_1 = arith.constant 0 : i32
    return %c0_i32, %c0_i32_0 : i32, i32
  }
  func.func @transform_9(%arg0: i32) -> (i32, i32) {
    %c0_i32 = arith.constant 0 : i32
    %c0_i32_0 = arith.constant 0 : i32
    %c0_i32_1 = arith.constant 0 : i32
    return %c0_i32, %c0_i32_0 : i32, i32
  }
  func.func @transform_10(%arg0: i32) -> (i32, i32) {
    %c0_i32 = arith.constant 0 : i32
    %c0_i32_0 = arith.constant 0 : i32
    %c0_i32_1 = arith.constant 0 : i32
    return %c0_i32, %c0_i32_0 : i32, i32
  }
  func.func @transform_11(%arg0: i32) -> (i32, i32) {
    %c0_i32 = arith.constant 0 : i32
    %c0_i32_0 = arith.constant 0 : i32
    %c0_i32_1 = arith.constant 0 : i32
    return %c0_i32, %c0_i32_0 : i32, i32
  }
  func.func @transform_12(%arg0: i32) -> (i32, i32) {
    %c0_i32 = arith.constant 0 : i32
    %c0_i32_0 = arith.constant 0 : i32
    %c0_i32_1 = arith.constant 0 : i32
    return %c0_i32, %c0_i32_0 : i32, i32
  }
  func.func @transform_13(%arg0: i32) -> (i32, i32, i32) {
    %c0_i32 = arith.constant 0 : i32
    %c0_i32_0 = arith.constant 0 : i32
    %c0_i32_1 = arith.constant 0 : i32
    return %arg0, %c0_i32, %c0_i32_0 : i32, i32, i32
  }
}

</mosaic_0001>

<llo_original>
// kernel: lenet_forward.1
$region0: #{lenet_forward.1}
  #allocation0 [shape = 'u32[]', space=smem, size = 0x4, offset = 0x4, fixed_abs, tag = 'smem constant byte address 0x4 - core index']
  #allocation1 [shape = 'u32[144,128]{1,0:T(1,128)}', space=vmem, size = 0x12000, scoped, tag = 'internal scratch']
  #allocation2 [shape = 'f32[25,896]{1,0:T(8,128)}', space=vmem, size = 0x1c000, scoped, tag = 'scratch operand']
  %s0 = inlined_call_operand.vmem [shape: f32[2,1,1152], index: 0, kind: input, shape index: {}]
  %s1 = inlined_call_operand.vmem [shape: bf16[6,25], index: 1, kind: input, shape index: {}]
  %s2 = inlined_call_operand.vmem [shape: f32[6,1], index: 2, kind: input, shape index: {}]
  %s3 = inlined_call_operand.vmem [shape: bf16[896,196], index: 3, kind: input, shape index: {}]
  %s4 = inlined_call_operand.vmem [shape: bf16[25,196,100], index: 4, kind: input, shape index: {}]
  %s5 = inlined_call_operand.vmem [shape: bf16[25,16,6], index: 5, kind: input, shape index: {}]
  %s6 = inlined_call_operand.vmem [shape: f32[16,1], index: 6, kind: input, shape index: {}]
  %s7 = inlined_call_operand.vmem [shape: bf16[16,100,120], index: 7, kind: input, shape index: {}]
  %s8 = inlined_call_operand.vmem [shape: f32[1,120], index: 8, kind: input, shape index: {}]
  %s9 = inlined_call_operand.vmem [shape: bf16[120,84], index: 9, kind: input, shape index: {}]
  %s10 = inlined_call_operand.vmem [shape: f32[1,84], index: 10, kind: input, shape index: {}]
  %s11 = inlined_call_operand.vmem [shape: bf16[84,10], index: 11, kind: input, shape index: {}]
  %s12 = inlined_call_operand.vmem [shape: f32[1,10], index: 12, kind: input, shape index: {}]
  %s13 = inlined_call_operand.hbm [shape: f32[2,1,10], index: 13, kind: output, shape index: {}]
  %s14 = sld [smem:[#allocation0]]
  $region85: #{lenet_forward.1} parent=0
    _
  %s16 = ssub.s32 1, %s14
  %s17 = scalar_select 0, %s16, %s14
  $region1: #{lenet_forward.1} parent=0
    #allocation3 [shape = 'u8[1024]{0}', space=vmem, size = 0x400, scoped, tag = 'output window, operand 0']
    #allocation4 [shape = 's32[2]{0}', space=sflag, size = 0x8, scoped, tag = 'scoped memory for lenet_forward.1']
    %18 = vsyncpa [#allocation4], 0
    %s19 = scalar_lea.sflag [#allocation4], 1
    %20 = vsyncpa %s19, 0
    loop: start=0, step=1, limit=4
    $region2: #{lenet_forward.1} parent=1 // loop_pre_header
      _
    $region3: #{lenet_forward.1} parent=1 // loop_header
      %s22 = sphi 0, %s26
      %p23 = scmp.ge.s32.totalorder %s22, 4
      %s32 = sphi 0, %s34
      %s35 = sphi 0, %s32
      %s36 = sphi 0, %s35
      %s52 = sphi 0, %s36
      %s56 = sphi 0, %s56
      %s58 = sphi 0, %s56
      %s59 = sphi 0, %s58
      %s73 = sphi 0, %s59
      %s77 = sphi 0, %s77
      %s79 = sphi 0, %s77
      %s80 = sphi 0, %s79
      %s94 = sphi 0, %s80
      %s98 = sphi 0, %s98
      %s100 = sphi 0, %s98
      %s101 = sphi 0, %s100
      %s115 = sphi 0, %s101
      %s119 = sphi 0, %s119
      %s121 = sphi 0, %s119
      %s122 = sphi 0, %s121
      %s136 = sphi 0, %s122
      %s140 = sphi 0, %s140
      %s142 = sphi 0, %s140
      %s143 = sphi 0, %s142
      %s157 = sphi 0, %s143
      %s161 = sphi 0, %s161
      %s163 = sphi 0, %s161
      %s164 = sphi 0, %s163
      %s178 = sphi 0, %s164
      %s182 = sphi 0, %s182
      %s184 = sphi 0, %s182
      %s185 = sphi 0, %s184
      %s199 = sphi 0, %s185
      %s203 = sphi 0, %s203
      %s205 = sphi 0, %s203
      %s206 = sphi 0, %s205
      %s220 = sphi 0, %s206
      %s224 = sphi 0, %s224
      %s226 = sphi 0, %s224
      %s227 = sphi 0, %s226
      %s241 = sphi 0, %s227
      %s245 = sphi 0, %s245
      %s247 = sphi 0, %s245
      %s248 = sphi 0, %s247
      %s262 = sphi 0, %s248
      %s266 = sphi 0, %s266
      %s268 = sphi 0, %s266
      %s269 = sphi 0, %s268
      %s283 = sphi 0, %s269
      %s287 = sphi 0, %s287
      %s289 = sphi 0, %s287
      %s290 = sphi 0, %s289
      %s304 = sphi 0, %s290
      %s310 = sphi 0, %s312
      %s313 = sphi 0, %s310
      %s314 = sphi 0, %s313
      %s330 = sphi 0, %s314
    $region4: #{lenet_forward.1} parent=1 // loop_header_branch
      %25 = sbr.rel (%p23) target = $region8
    $region5: #{lenet_forward.1} parent=1 // loop_body
      %s27 = ssub.s32 %s22, 1
      %s28 = ssub.s32 %s22, 2
      %s29 = sadd.s32 %s22, 1
      %s30 = ssub.s32 %s22, %s29
      %p31 = scmp.eq.s32.totalorder %s30, 0
      %s33 = sadd.s32 %s32, 1
      %s34 = scalar_select %p31, %s32, %s33
      %p37 = pneg %p31
      %p38 = scmp.eq.s32.totalorder %s22, 1
      %p39 = por %p37, %p38
      %p40 = scmp.ne.s32.totalorder %s32, %s35
      %p41 = scmp.eq.s32.totalorder %s22, 0
      %p42 = por %p40, %p41
      %p43 = scmp.ne.s32.totalorder %s32, %s35
      %p44 = scmp.eq.s32.totalorder %s27, 1
      %p45 = por %p43, %p44
      %p46 = scmp.ne.s32.totalorder %s35, %s36
      %p47 = scmp.eq.s32.totalorder %s27, 0
      %p48 = por %p46, %p47
      %p49 = scmp.ne.s32.totalorder %s35, %s36
      %p50 = scmp.eq.s32.totalorder %s28, 1
      %p51 = por %p49, %p50
      %p53 = scmp.ne.s32.totalorder %s36, %s52
      %p54 = scmp.eq.s32.totalorder %s28, 0
      %p55 = por %p53, %p54
      %s57 = sadd.s32 %s56, 1
      %p60 = scmp.eq.s32.totalorder %s22, 1
      %p61 = scmp.ne.s32.totalorder %s56, %s58
      %p62 = scmp.eq.s32.totalorder %s22, 0
      %p63 = por %p61, %p62
      %p64 = scmp.ne.s32.totalorder %s56, %s58
      %p65 = scmp.eq.s32.totalorder %s27, 1
      %p66 = por %p64, %p65
      %p67 = scmp.ne.s32.totalorder %s58, %s59
      %p68 = scmp.eq.s32.totalorder %s27, 0
      %p69 = por %p67, %p68
      %p70 = scmp.ne.s32.totalorder %s58, %s59
      %p71 = scmp.eq.s32.totalorder %s28, 1
      %p72 = por %p70, %p71
      %p74 = scmp.ne.s32.totalorder %s59, %s73
      %p75 = scmp.eq.s32.totalorder %s28, 0
      %p76 = por %p74, %p75
      %s78 = sadd.s32 %s77, 1
      %p81 = scmp.eq.s32.totalorder %s22, 1
      %p82 = scmp.ne.s32.totalorder %s77, %s79
      %p83 = scmp.eq.s32.totalorder %s22, 0
      %p84 = por %p82, %p83
      %p85 = scmp.ne.s32.totalorder %s77, %s79
      %p86 = scmp.eq.s32.totalorder %s27, 1
      %p87 = por %p85, %p86
      %p88 = scmp.ne.s32.totalorder %s79, %s80
      %p89 = scmp.eq.s32.totalorder %s27, 0
      %p90 = por %p88, %p89
      %p91 = scmp.ne.s32.totalorder %s79, %s80
      %p92 = scmp.eq.s32.totalorder %s28, 1
      %p93 = por %p91, %p92
      %p95 = scmp.ne.s32.totalorder %s80, %s94
      %p96 = scmp.eq.s32.totalorder %s28, 0
      %p97 = por %p95, %p96
      %s99 = sadd.s32 %s98, 1
      %p102 = scmp.eq.s32.totalorder %s22, 1
      %p103 = scmp.ne.s32.totalorder %s98, %s100
      %p104 = scmp.eq.s32.totalorder %s22, 0
      %p105 = por %p103, %p104
      %p106 = scmp.ne.s32.totalorder %s98, %s100
      %p107 = scmp.eq.s32.totalorder %s27, 1
      %p108 = por %p106, %p107
      %p109 = scmp.ne.s32.totalorder %s100, %s101
      %p110 = scmp.eq.s32.totalorder %s27, 0
      %p111 = por %p109, %p110
      %p112 = scmp.ne.s32.totalorder %s100, %s101
      %p113 = scmp.eq.s32.totalorder %s28, 1
      %p114 = por %p112, %p113
      %p116 = scmp.ne.s32.totalorder %s101, %s115
      %p117 = scmp.eq.s32.totalorder %s28, 0
      %p118 = por %p116, %p117
      %s120 = sadd.s32 %s119, 1
      %p123 = scmp.eq.s32.totalorder %s22, 1
      %p124 = scmp.ne.s32.totalorder %s119, %s121
      %p125 = scmp.eq.s32.totalorder %s22, 0
      %p126 = por %p124, %p125
      %p127 = scmp.ne.s32.totalorder %s119, %s121
      %p128 = scmp.eq.s32.totalorder %s27, 1
      %p129 = por %p127, %p128
      %p130 = scmp.ne.s32.totalorder %s121, %s122
      %p131 = scmp.eq.s32.totalorder %s27, 0
      %p132 = por %p130, %p131
      %p133 = scmp.ne.s32.totalorder %s121, %s122
      %p134 = scmp.eq.s32.totalorder %s28, 1
      %p135 = por %p133, %p134
      %p137 = scmp.ne.s32.totalorder %s122, %s136
      %p138 = scmp.eq.s32.totalorder %s28, 0
      %p139 = por %p137, %p138
      %s141 = sadd.s32 %s140, 1
      %p144 = scmp.eq.s32.totalorder %s22, 1
      %p145 = scmp.ne.s32.totalorder %s140, %s142
      %p146 = scmp.eq.s32.totalorder %s22, 0
      %p147 = por %p145, %p146
      %p148 = scmp.ne.s32.totalorder %s140, %s142
      %p149 = scmp.eq.s32.totalorder %s27, 1
      %p150 = por %p148, %p149
      %p151 = scmp.ne.s32.totalorder %s142, %s143
      %p152 = scmp.eq.s32.totalorder %s27, 0
      %p153 = por %p151, %p152
      %p154 = scmp.ne.s32.totalorder %s142, %s143
      %p155 = scmp.eq.s32.totalorder %s28, 1
      %p156 = por %p154, %p155
      %p158 = scmp.ne.s32.totalorder %s143, %s157
      %p159 = scmp.eq.s32.totalorder %s28, 0
      %p160 = por %p158, %p159
      %s162 = sadd.s32 %s161, 1
      %p165 = scmp.eq.s32.totalorder %s22, 1
      %p166 = scmp.ne.s32.totalorder %s161, %s163
      %p167 = scmp.eq.s32.totalorder %s22, 0
      %p168 = por %p166, %p167
      %p169 = scmp.ne.s32.totalorder %s161, %s163
      %p170 = scmp.eq.s32.totalorder %s27, 1
      %p171 = por %p169, %p170
      %p172 = scmp.ne.s32.totalorder %s163, %s164
      %p173 = scmp.eq.s32.totalorder %s27, 0
      %p174 = por %p172, %p173
      %p175 = scmp.ne.s32.totalorder %s163, %s164
      %p176 = scmp.eq.s32.totalorder %s28, 1
      %p177 = por %p175, %p176
      %p179 = scmp.ne.s32.totalorder %s164, %s178
      %p180 = scmp.eq.s32.totalorder %s28, 0
      %p181 = por %p179, %p180
      %s183 = sadd.s32 %s182, 1
      %p186 = scmp.eq.s32.totalorder %s22, 1
      %p187 = scmp.ne.s32.totalorder %s182, %s184
      %p188 = scmp.eq.s32.totalorder %s22, 0
      %p189 = por %p187, %p188
      %p190 = scmp.ne.s32.totalorder %s182, %s184
      %p191 = scmp.eq.s32.totalorder %s27, 1
      %p192 = por %p190, %p191
      %p193 = scmp.ne.s32.totalorder %s184, %s185
      %p194 = scmp.eq.s32.totalorder %s27, 0
      %p195 = por %p193, %p194
      %p196 = scmp.ne.s32.totalorder %s184, %s185
      %p197 = scmp.eq.s32.totalorder %s28, 1
      %p198 = por %p196, %p197
      %p200 = scmp.ne.s32.totalorder %s185, %s199
      %p201 = scmp.eq.s32.totalorder %s28, 0
      %p202 = por %p200, %p201
      %s204 = sadd.s32 %s203, 1
      %p207 = scmp.eq.s32.totalorder %s22, 1
      %p208 = scmp.ne.s32.totalorder %s203, %s205
      %p209 = scmp.eq.s32.totalorder %s22, 0
      %p210 = por %p208, %p209
      %p211 = scmp.ne.s32.totalorder %s203, %s205
      %p212 = scmp.eq.s32.totalorder %s27, 1
      %p213 = por %p211, %p212
      %p214 = scmp.ne.s32.totalorder %s205, %s206
      %p215 = scmp.eq.s32.totalorder %s27, 0
      %p216 = por %p214, %p215
      %p217 = scmp.ne.s32.totalorder %s205, %s206
      %p218 = scmp.eq.s32.totalorder %s28, 1
      %p219 = por %p217, %p218
      %p221 = scmp.ne.s32.totalorder %s206, %s220
      %p222 = scmp.eq.s32.totalorder %s28, 0
      %p223 = por %p221, %p222
      %s225 = sadd.s32 %s224, 1
      %p228 = scmp.eq.s32.totalorder %s22, 1
      %p229 = scmp.ne.s32.totalorder %s224, %s226
      %p230 = scmp.eq.s32.totalorder %s22, 0
      %p231 = por %p229, %p230
      %p232 = scmp.ne.s32.totalorder %s224, %s226
      %p233 = scmp.eq.s32.totalorder %s27, 1
      %p234 = por %p232, %p233
      %p235 = scmp.ne.s32.totalorder %s226, %s227
      %p236 = scmp.eq.s32.totalorder %s27, 0
      %p237 = por %p235, %p236
      %p238 = scmp.ne.s32.totalorder %s226, %s227
      %p239 = scmp.eq.s32.totalorder %s28, 1
      %p240 = por %p238, %p239
      %p242 = scmp.ne.s32.totalorder %s227, %s241
      %p243 = scmp.eq.s32.totalorder %s28, 0
      %p244 = por %p242, %p243
      %s246 = sadd.s32 %s245, 1
      %p249 = scmp.eq.s32.totalorder %s22, 1
      %p250 = scmp.ne.s32.totalorder %s245, %s247
      %p251 = scmp.eq.s32.totalorder %s22, 0
      %p252 = por %p250, %p251
      %p253 = scmp.ne.s32.totalorder %s245, %s247
      %p254 = scmp.eq.s32.totalorder %s27, 1
      %p255 = por %p253, %p254
      %p256 = scmp.ne.s32.totalorder %s247, %s248
      %p257 = scmp.eq.s32.totalorder %s27, 0
      %p258 = por %p256, %p257
      %p259 = scmp.ne.s32.totalorder %s247, %s248
      %p260 = scmp.eq.s32.totalorder %s28, 1
      %p261 = por %p259, %p260
      %p263 = scmp.ne.s32.totalorder %s248, %s262
      %p264 = scmp.eq.s32.totalorder %s28, 0
      %p265 = por %p263, %p264
      %s267 = sadd.s32 %s266, 1
      %p270 = scmp.eq.s32.totalorder %s22, 1
      %p271 = scmp.ne.s32.totalorder %s266, %s268
      %p272 = scmp.eq.s32.totalorder %s22, 0
      %p273 = por %p271, %p272
      %p274 = scmp.ne.s32.totalorder %s266, %s268
      %p275 = scmp.eq.s32.totalorder %s27, 1
      %p276 = por %p274, %p275
      %p277 = scmp.ne.s32.totalorder %s268, %s269
      %p278 = scmp.eq.s32.totalorder %s27, 0
      %p279 = por %p277, %p278
      %p280 = scmp.ne.s32.totalorder %s268, %s269
      %p281 = scmp.eq.s32.totalorder %s28, 1
      %p282 = por %p280, %p281
      %p284 = scmp.ne.s32.totalorder %s269, %s283
      %p285 = scmp.eq.s32.totalorder %s28, 0
      %p286 = por %p284, %p285
      %s288 = sadd.s32 %s287, 1
      %p291 = scmp.eq.s32.totalorder %s22, 1
      %p292 = scmp.ne.s32.totalorder %s287, %s289
      %p293 = scmp.eq.s32.totalorder %s22, 0
      %p294 = por %p292, %p293
      %p295 = scmp.ne.s32.totalorder %s287, %s289
      %p296 = scmp.eq.s32.totalorder %s27, 1
      %p297 = por %p295, %p296
      %p298 = scmp.ne.s32.totalorder %s289, %s290
      %p299 = scmp.eq.s32.totalorder %s27, 0
      %p300 = por %p298, %p299
      %p301 = scmp.ne.s32.totalorder %s289, %s290
      %p302 = scmp.eq.s32.totalorder %s28, 1
      %p303 = por %p301, %p302
      %p305 = scmp.ne.s32.totalorder %s290, %s304
      %p306 = scmp.eq.s32.totalorder %s28, 0
      %p307 = por %p305, %p306
      %s308 = ssub.s32 %s22, %s29
      %p309 = scmp.eq.s32.totalorder %s308, 0
      %s311 = sadd.s32 %s310, 1
      %s312 = scalar_select %p309, %s310, %s311
      %p315 = pneg %p309
      %p316 = scmp.eq.s32.totalorder %s22, 1
      %p317 = por %p315, %p316
      %p318 = scmp.ne.s32.totalorder %s310, %s313
      %p319 = scmp.eq.s32.totalorder %s22, 0
      %p320 = por %p318, %p319
      %p321 = scmp.ne.s32.totalorder %s310, %s313
      %p322 = scmp.eq.s32.totalorder %s27, 1
      %p323 = por %p321, %p322
      %p324 = scmp.ne.s32.totalorder %s313, %s314
      %p325 = scmp.eq.s32.totalorder %s27, 0
      %p326 = por %p324, %p325
      %p327 = scmp.ne.s32.totalorder %s313, %s314
      %p328 = scmp.eq.s32.totalorder %s28, 1
      %p329 = por %p327, %p328
      %p331 = scmp.ne.s32.totalorder %s314, %s330
      %p332 = scmp.eq.s32.totalorder %s28, 0
      %p333 = por %p331, %p332
      %p334 = scmp.le.s32.totalorder 1, %s22
      %p335 = scmp.lt.s32.totalorder %s22, 3
      %p336 = pnand %p334, %p335
      %p337 = pneg %p336
      // Predicated region
      $region9: #{lenet_forward.1} parent=5 // pred_check
        _
      $region10: #{lenet_forward.1} parent=5 // pred_check_branch
        %339 = sbr.rel (%p336) target = $region12
      $region11: #{lenet_forward.1} parent=5 // pred_region
        %s340 = ssub.s32 %s22, 1
        // Predicated region
        $region13: #{lenet_forward.1} parent=11 // pred_check
          %p341 = pneg %p69
        $region14: #{lenet_forward.1} parent=11 // pred_check_branch
          %343 = sbr.rel (%p341) target = $region16
        $region15: #{lenet_forward.1} parent=11 // pred_region
          _
        $region16: #{lenet_forward.1} parent=11 // pred_fallthru
          _
        // Predicated region
        $region17: #{lenet_forward.1} parent=11 // pred_check
          %p344 = pneg %p90
        $region18: #{lenet_forward.1} parent=11 // pred_check_branch
          %346 = sbr.rel (%p344) target = $region20
        $region19: #{lenet_forward.1} parent=11 // pred_region
          _
        $region20: #{lenet_forward.1} parent=11 // pred_fallthru
          _
        // Predicated region
        $region21: #{lenet_forward.1} parent=11 // pred_check
          %p347 = pneg %p111
        $region22: #{lenet_forward.1} parent=11 // pred_check_branch
          %349 = sbr.rel (%p347) target = $region24
        $region23: #{lenet_forward.1} parent=11 // pred_region
          _
        $region24: #{lenet_forward.1} parent=11 // pred_fallthru
          _
        // Predicated region
        $region25: #{lenet_forward.1} parent=11 // pred_check
          %p350 = pneg %p132
        $region26: #{lenet_forward.1} parent=11 // pred_check_branch
          %352 = sbr.rel (%p350) target = $region28
        $region27: #{lenet_forward.1} parent=11 // pred_region
          _
        $region28: #{lenet_forward.1} parent=11 // pred_fallthru
          _
        // Predicated region
        $region29: #{lenet_forward.1} parent=11 // pred_check
          %p353 = pneg %p153
        $region30: #{lenet_forward.1} parent=11 // pred_check_branch
          %355 = sbr.rel (%p353) target = $region32
        $region31: #{lenet_forward.1} parent=11 // pred_region
          _
        $region32: #{lenet_forward.1} parent=11 // pred_fallthru
          _
        // Predicated region
        $region33: #{lenet_forward.1} parent=11 // pred_check
          %p356 = pneg %p174
        $region34: #{lenet_forward.1} parent=11 // pred_check_branch
          %358 = sbr.rel (%p356) target = $region36
        $region35: #{lenet_forward.1} parent=11 // pred_region
          _
        $region36: #{lenet_forward.1} parent=11 // pred_fallthru
          _
        // Predicated region
        $region37: #{lenet_forward.1} parent=11 // pred_check
          %p359 = pneg %p195
        $region38: #{lenet_forward.1} parent=11 // pred_check_branch
          %361 = sbr.rel (%p359) target = $region40
        $region39: #{lenet_forward.1} parent=11 // pred_region
          _
        $region40: #{lenet_forward.1} parent=11 // pred_fallthru
          _
        // Predicated region
        $region41: #{lenet_forward.1} parent=11 // pred_check
          %p362 = pneg %p216
        $region42: #{lenet_forward.1} parent=11 // pred_check_branch
          %364 = sbr.rel (%p362) target = $region44
        $region43: #{lenet_forward.1} parent=11 // pred_region
          _
        $region44: #{lenet_forward.1} parent=11 // pred_fallthru
          _
        // Predicated region
        $region45: #{lenet_forward.1} parent=11 // pred_check
          %p365 = pneg %p237
        $region46: #{lenet_forward.1} parent=11 // pred_check_branch
          %367 = sbr.rel (%p365) target = $region48
        $region47: #{lenet_forward.1} parent=11 // pred_region
          _
        $region48: #{lenet_forward.1} parent=11 // pred_fallthru
          _
        // Predicated region
        $region49: #{lenet_forward.1} parent=11 // pred_check
          %p368 = pneg %p258
        $region50: #{lenet_forward.1} parent=11 // pred_check_branch
          %370 = sbr.rel (%p368) target = $region52
        $region51: #{lenet_forward.1} parent=11 // pred_region
          _
        $region52: #{lenet_forward.1} parent=11 // pred_fallthru
          _
        // Predicated region
        $region53: #{lenet_forward.1} parent=11 // pred_check
          %p371 = pneg %p279
        $region54: #{lenet_forward.1} parent=11 // pred_check_branch
          %373 = sbr.rel (%p371) target = $region56
        $region55: #{lenet_forward.1} parent=11 // pred_region
          _
        $region56: #{lenet_forward.1} parent=11 // pred_fallthru
          _
        // Predicated region
        $region57: #{lenet_forward.1} parent=11 // pred_check
          %p374 = pneg %p300
        $region58: #{lenet_forward.1} parent=11 // pred_check_branch
          %376 = sbr.rel (%p374) target = $region60
        $region59: #{lenet_forward.1} parent=11 // pred_region
          _
        $region60: #{lenet_forward.1} parent=11 // pred_fallthru
          _
      $region12: #{lenet_forward.1} parent=5 // pred_fallthru
        _
      %p377 = scmp.lt.s32.totalorder %s22, 2
      // Predicated region
      $region61: #{lenet_forward.1} parent=5 // pred_check
        %p378 = pneg %p377
      $region62: #{lenet_forward.1} parent=5 // pred_check_branch
        %380 = sbr.rel (%p378) target = $region64
      $region63: #{lenet_forward.1} parent=5 // pred_region
        // Predicated region
        $region65: #{lenet_forward.1} parent=63 // pred_check
          %p381 = pneg %p42
        $region66: #{lenet_forward.1} parent=63 // pred_check_branch
          %383 = sbr.rel (%p381) target = $region68
        $region67: #{lenet_forward.1} parent=63 // pred_region
          %p384 = scmp.lt.s32.totalorder %s22, 1
          %s385 = scalar_select %p384, %s22, 1
          %s386 = smul.addr %s385, 9
          %s387 = scalar_lea.vmem %s0, %s386
        $region68: #{lenet_forward.1} parent=63 // pred_fallthru
          _
      $region64: #{lenet_forward.1} parent=5 // pred_fallthru
        _
      %p388 = scmp.le.s32.totalorder 1, %s22
      %p389 = scmp.lt.s32.totalorder %s22, 3
      %p390 = pnand %p388, %p389
      %p391 = pneg %p390
      // Predicated region
      $region69: #{lenet_forward.1} parent=5 // pred_check
        _
      $region70: #{lenet_forward.1} parent=5 // pred_check_branch
        %393 = sbr.rel (%p390) target = $region72
      $region71: #{lenet_forward.1} parent=5 // pred_region
        %s394 = ssub.s32 %s22, 1
        %p395 = scmp.lt.s32.totalorder %s27, 1
        %s396 = scalar_select %p395, %s27, 1
        %s397 = smul.addr %s396, 9
        %s398 = scalar_lea.vmem %s0, %s397
        %p399 = pneg %p48
        %p400 = pneg %p45
        %p401 = pneg %p69
        %p402 = pneg %p66
        %p403 = pneg %p90
        %p404 = pneg %p87
        %p405 = pneg %p111
        %p406 = pneg %p108
        %p407 = pneg %p132
        %p408 = pneg %p129
        %p409 = pneg %p153
        %p410 = pneg %p150
        %p411 = pneg %p174
        %p412 = pneg %p171
        %p413 = pneg %p195
        %p414 = pneg %p192
        %p415 = pneg %p216
        %p416 = pneg %p213
        %p417 = pneg %p237
        %p418 = pneg %p234
        %p419 = pneg %p258
        %p420 = pneg %p255
        %p421 = pneg %p279
        %p422 = pneg %p276
        %p423 = pneg %p300
        %p424 = pneg %p297
        %p425 = pneg %p326
        %p426 = pneg %p323
        %s427 = sand.u32 %s313, 1
        %s428 = scalar_lea.sflag [#allocation4], %s427
        %s429 = sand.u32 %s313, 1
        %s430 = scalar_lea.vmem [#allocation3], %s429
        %p431 = scmp.lt.s32.totalorder %s27, 1
        %s432 = scalar_select %p431, %s27, 1
        %s433 = smul.addr %s432, 9
        %s434 = scalar_lea.vmem %s0, %s433
        %v436 = vld [vmem:[%s434] sm:$0xff]
        %v437 = vlaneseq
        %vm438 = vcmp.ge.s32.totalorder %v437, 0
        %vm439 = vcmp.lt.s32.totalorder %v437, 896
        %vm440 = vmand %vm438, %vm439
        %441 = vst.msk [vmem:[#allocation2] ss:$8 sm:$0xf] %vm440, %v436
        %442 = vst.msk [vmem:[#allocation2] ss:$8 sm:$0x70] %vm440, %v436
        %v443 = vld [vmem:[%s434] sm:$0xff]
        %445 = vrot.lane.b32.xlu0 %v443, 127
        %v446 = vpop.permute.xlu0 %445
        %v447 = vrot.slane %v446, 1
        %vm448 = vcmask 1039360
        %v449 = vsel %vm448, %v446, %v447
        %s451 = scalar_lea.vmem [#allocation2], 1
        %452 = vst.msk [vmem:[%s451] ss:$8 sm:$0xf] %vm440, %v449
        %453 = vst.msk [vmem:[%s451] ss:$8 sm:$0x70] %vm440, %v449
        %v454 = vld [vmem:[%s434] sm:$0xff]
        %456 = vrot.lane.b32.xlu0 %v454, 126
        %v457 = vpop.permute.xlu0 %456
        %v458 = vrot.slane %v457, 1
        %vm459 = vcmask 1031168
        %v460 = vsel %vm459, %v457, %v458
        %s462 = scalar_lea.vmem [#allocation2], 2
        %463 = vst.msk [vmem:[%s462] ss:$8 sm:$0xf] %vm440, %v460
        %464 = vst.msk [vmem:[%s462] ss:$8 sm:$0x70] %vm440, %v460
        %v465 = vld [vmem:[%s434] sm:$0xff]
        %467 = vrot.lane.b32.xlu0 %v465, 125
        %v468 = vpop.permute.xlu0 %467
        %v469 = vrot.slane %v468, 1
        %vm470 = vcmask 1022976
        %v471 = vsel %vm470, %v468, %v469
        %s473 = scalar_lea.vmem [#allocation2], 3
        %474 = vst.msk [vmem:[%s473] ss:$8 sm:$0xf] %vm440, %v471
        %475 = vst.msk [vmem:[%s473] ss:$8 sm:$0x70] %vm440, %v471
        %v476 = vld [vmem:[%s434] sm:$0xff]
        %478 = vrot.lane.b32.xlu0 %v476, 124
        %v479 = vpop.permute.xlu0 %478
        %v480 = vrot.slane %v479, 1
        %vm481 = vcmask 1014784
        %v482 = vsel %vm481, %v479, %v480
        %s484 = scalar_lea.vmem [#allocation2], 4
        %485 = vst.msk [vmem:[%s484] ss:$8 sm:$0xf] %vm440, %v482
        %486 = vst.msk [vmem:[%s484] ss:$8 sm:$0x70] %vm440, %v482
        %v487 = vld [vmem:[%s434] sm:$0xff]
        %489 = vrot.lane.b32.xlu0 %v487, 96
        %v490 = vpop.permute.xlu0 %489
        %v491 = vrot.slane %v490, 1
        %vm492 = vcmask 785408
        %v493 = vsel %vm492, %v490, %v491
        %s495 = scalar_lea.vmem [#allocation2], 5
        %496 = vst.msk [vmem:[%s495] ss:$8 sm:$0xf] %vm440, %v493
        %497 = vst.msk [vmem:[%s495] ss:$8 sm:$0x70] %vm440, %v493
        %v498 = vld [vmem:[%s434] sm:$0xff]
        %500 = vrot.lane.b32.xlu0 %v498, 95
        %v501 = vpop.permute.xlu0 %500
        %v502 = vrot.slane %v501, 1
        %vm503 = vcmask 777216
        %v504 = vsel %vm503, %v501, %v502
        %s506 = scalar_lea.vmem [#allocation2], 6
        %507 = vst.msk [vmem:[%s506] ss:$8 sm:$0xf] %vm440, %v504
        %508 = vst.msk [vmem:[%s506] ss:$8 sm:$0x70] %vm440, %v504
        %v509 = vld [vmem:[%s434] sm:$0xff]
        %511 = vrot.lane.b32.xlu0 %v509, 94
        %v512 = vpop.permute.xlu0 %511
        %v513 = vrot.slane %v512, 1
        %vm514 = vcmask 769024
        %v515 = vsel %vm514, %v512, %v513
        %s517 = scalar_lea.vmem [#allocation2], 7
        %518 = vst.msk [vmem:[%s517] ss:$8 sm:$0xf] %vm440, %v515
        %519 = vst.msk [vmem:[%s517] ss:$8 sm:$0x70] %vm440, %v515
        %v520 = vld [vmem:[%s434] sm:$0xff]
        %522 = vrot.lane.b32.xlu0 %v520, 93
        %v523 = vpop.permute.xlu0 %522
        %v524 = vrot.slane %v523, 1
        %vm525 = vcmask 760832
        %v526 = vsel %vm525, %v523, %v524
        %s528 = scalar_lea.vmem [#allocation2], 56
        %529 = vst.msk [vmem:[%s528] ss:$8 sm:$0xf] %vm440, %v526
        %530 = vst.msk [vmem:[%s528] ss:$8 sm:$0x70] %vm440, %v526
        %v531 = vld [vmem:[%s434] sm:$0xff]
        %533 = vrot.lane.b32.xlu0 %v531, 92
        %v534 = vpop.permute.xlu0 %533
        %v535 = vrot.slane %v534, 1
        %vm536 = vcmask 752640
        %v537 = vsel %vm536, %v534, %v535
        %s539 = scalar_lea.vmem [#allocation2], 57
        %540 = vst.msk [vmem:[%s539] ss:$8 sm:$0xf] %vm440, %v537
        %541 = vst.msk [vmem:[%s539] ss:$8 sm:$0x70] %vm440, %v537
        %v542 = vld [vmem:[%s434] sm:$0xff]
        %544 = vrot.lane.b32.xlu0 %v542, 64
        %v545 = vpop.permute.xlu0 %544
        %v546 = vrot.slane %v545, 1
        %vm547 = vcmask 523264
        %v548 = vsel %vm547, %v545, %v546
        %s550 = scalar_lea.vmem [#allocation2], 58
        %551 = vst.msk [vmem:[%s550] ss:$8 sm:$0xf] %vm440, %v548
        %552 = vst.msk [vmem:[%s550] ss:$8 sm:$0x70] %vm440, %v548
        %v553 = vld [vmem:[%s434] sm:$0xff]
        %555 = vrot.lane.b32.xlu0 %v553, 63
        %v556 = vpop.permute.xlu0 %555
        %v557 = vrot.slane %v556, 1
        %vm558 = vcmask 515072
        %v559 = vsel %vm558, %v556, %v557
        %s561 = scalar_lea.vmem [#allocation2], 59
        %562 = vst.msk [vmem:[%s561] ss:$8 sm:$0xf] %vm440, %v559
        %563 = vst.msk [vmem:[%s561] ss:$8 sm:$0x70] %vm440, %v559
        %v564 = vld [vmem:[%s434] sm:$0xff]
        %566 = vrot.lane.b32.xlu0 %v564, 62
        %v567 = vpop.permute.xlu0 %566
        %v568 = vrot.slane %v567, 1
        %vm569 = vcmask 506880
        %v570 = vsel %vm569, %v567, %v568
        %s572 = scalar_lea.vmem [#allocation2], 60
        %573 = vst.msk [vmem:[%s572] ss:$8 sm:$0xf] %vm440, %v570
        %574 = vst.msk [vmem:[%s572] ss:$8 sm:$0x70] %vm440, %v570
        %v575 = vld [vmem:[%s434] sm:$0xff]
        %577 = vrot.lane.b32.xlu0 %v575, 61
        %v578 = vpop.permute.xlu0 %577
        %v579 = vrot.slane %v578, 1
        %vm580 = vcmask 498688
        %v581 = vsel %vm580, %v578, %v579
        %s583 = scalar_lea.vmem [#allocation2], 61
        %584 = vst.msk [vmem:[%s583] ss:$8 sm:$0xf] %vm440, %v581
        %585 = vst.msk [vmem:[%s583] ss:$8 sm:$0x70] %vm440, %v581
        %v586 = vld [vmem:[%s434] sm:$0xff]
        %588 = vrot.lane.b32.xlu0 %v586, 60
        %v589 = vpop.permute.xlu0 %588
        %v590 = vrot.slane %v589, 1
        %vm591 = vcmask 490496
        %v592 = vsel %vm591, %v589, %v590
        %s594 = scalar_lea.vmem [#allocation2], 62
        %595 = vst.msk [vmem:[%s594] ss:$8 sm:$0xf] %vm440, %v592
        %596 = vst.msk [vmem:[%s594] ss:$8 sm:$0x70] %vm440, %v592
        %v597 = vld [vmem:[%s434] sm:$0xff]
        %599 = vrot.lane.b32.xlu0 %v597, 32
        %v600 = vpop.permute.xlu0 %599
        %v601 = vrot.slane %v600, 1
        %vm602 = vcmask 261120
        %v603 = vsel %vm602, %v600, %v601
        %s605 = scalar_lea.vmem [#allocation2], 63
        %606 = vst.msk [vmem:[%s605] ss:$8 sm:$0xf] %vm440, %v603
        %607 = vst.msk [vmem:[%s605] ss:$8 sm:$0x70] %vm440, %v603
        %v608 = vld [vmem:[%s434] sm:$0xff]
        %610 = vrot.lane.b32.xlu0 %v608, 31
        %v611 = vpop.permute.xlu0 %610
        %v612 = vrot.slane %v611, 1
        %vm613 = vcmask 252928
        %v614 = vsel %vm613, %v611, %v612
        %s616 = scalar_lea.vmem [#allocation2], 112
        %617 = vst.msk [vmem:[%s616] ss:$8 sm:$0xf] %vm440, %v614
        %618 = vst.msk [vmem:[%s616] ss:$8 sm:$0x70] %vm440, %v614
        %v619 = vld [vmem:[%s434] sm:$0xff]
        %621 = vrot.lane.b32.xlu0 %v619, 30
        %v622 = vpop.permute.xlu0 %621
        %v623 = vrot.slane %v622, 1
        %vm624 = vcmask 244736
        %v625 = vsel %vm624, %v622, %v623
        %s627 = scalar_lea.vmem [#allocation2], 113
        %628 = vst.msk [vmem:[%s627] ss:$8 sm:$0xf] %vm440, %v625
        %629 = vst.msk [vmem:[%s627] ss:$8 sm:$0x70] %vm440, %v625
        %v630 = vld [vmem:[%s434] sm:$0xff]
        %632 = vrot.lane.b32.xlu0 %v630, 29
        %v633 = vpop.permute.xlu0 %632
        %v634 = vrot.slane %v633, 1
        %vm635 = vcmask 236544
        %v636 = vsel %vm635, %v633, %v634
        %s638 = scalar_lea.vmem [#allocation2], 114
        %639 = vst.msk [vmem:[%s638] ss:$8 sm:$0xf] %vm440, %v636
        %640 = vst.msk [vmem:[%s638] ss:$8 sm:$0x70] %vm440, %v636
        %v641 = vld [vmem:[%s434] sm:$0xff]
        %643 = vrot.lane.b32.xlu0 %v641, 28
        %v644 = vpop.permute.xlu0 %643
        %v645 = vrot.slane %v644, 1
        %vm646 = vcmask 228352
        %v647 = vsel %vm646, %v644, %v645
        %s649 = scalar_lea.vmem [#allocation2], 115
        %650 = vst.msk [vmem:[%s649] ss:$8 sm:$0xf] %vm440, %v647
        %651 = vst.msk [vmem:[%s649] ss:$8 sm:$0x70] %vm440, %v647
        %v652 = vld [vmem:[%s434 + $0x1] sm:$0xff]
        %s653 = scalar_lea.vmem [#allocation2], 116
        %654 = vst.msk [vmem:[%s653] ss:$8 sm:$0xf] %vm440, %v652
        %655 = vst.msk [vmem:[%s653] ss:$8 sm:$0x70] %vm440, %v652
        %v656 = vld [vmem:[%s434 + $0x1] sm:$0xff]
        %658 = vrot.lane.b32.xlu0 %v656, 127
        %v659 = vpop.permute.xlu0 %658
        %v660 = vrot.slane %v659, 1
        %v661 = vsel %vm448, %v659, %v660
        %s663 = scalar_lea.vmem [#allocation2], 117
        %664 = vst.msk [vmem:[%s663] ss:$8 sm:$0xf] %vm440, %v661
        %665 = vst.msk [vmem:[%s663] ss:$8 sm:$0x70] %vm440, %v661
        %v666 = vld [vmem:[%s434 + $0x1] sm:$0xff]
        %668 = vrot.lane.b32.xlu0 %v666, 126
        %v669 = vpop.permute.xlu0 %668
        %v670 = vrot.slane %v669, 1
        %v671 = vsel %vm459, %v669, %v670
        %s673 = scalar_lea.vmem [#allocation2], 118
        %674 = vst.msk [vmem:[%s673] ss:$8 sm:$0xf] %vm440, %v671
        %675 = vst.msk [vmem:[%s673] ss:$8 sm:$0x70] %vm440, %v671
        %v676 = vld [vmem:[%s434 + $0x1] sm:$0xff]
        %678 = vrot.lane.b32.xlu0 %v676, 125
        %v679 = vpop.permute.xlu0 %678
        %v680 = vrot.slane %v679, 1
        %v681 = vsel %vm470, %v679, %v680
        %s683 = scalar_lea.vmem [#allocation2], 119
        %684 = vst.msk [vmem:[%s683] ss:$8 sm:$0xf] %vm440, %v681
        %685 = vst.msk [vmem:[%s683] ss:$8 sm:$0x70] %vm440, %v681
        %v686 = vld [vmem:[%s434 + $0x1] sm:$0xff]
        %688 = vrot.lane.b32.xlu0 %v686, 124
        %v689 = vpop.permute.xlu0 %688
        %v690 = vrot.slane %v689, 1
        %v691 = vsel %vm481, %v689, %v690
        %s693 = scalar_lea.vmem [#allocation2], 168
        %694 = vst.msk [vmem:[%s693] ss:$8 sm:$0xf] %vm440, %v691
        %695 = vst.msk [vmem:[%s693] ss:$8 sm:$0x70] %vm440, %v691
        %v696 = vld [vmem:[#allocation2] sm:$0xff]
        %v697 = vld [vmem:[#allocation2 + $0x8] sm:$0xff]
        %v698 = vld [vmem:[#allocation2 + $0x10] sm:$0xff]
        %v699 = vld [vmem:[#allocation2 + $0x18] sm:$0xff]
        %v700 = vld [vmem:[#allocation2 + $0x20] sm:$0xff]
        %v701 = vld [vmem:[#allocation2 + $0x28] sm:$0xff]
        %v702 = vld [vmem:[#allocation2 + $0x30] sm:$0xff]
        %v703 = vld [vmem:[#allocation2 + $0x38] sm:$0xff]
        %v704 = vld [vmem:[#allocation2 + $0x40] sm:$0xff]
        %v705 = vld [vmem:[#allocation2 + $0x48] sm:$0xff]
        %v706 = vld [vmem:[#allocation2 + $0x50] sm:$0xff]
        %v707 = vld [vmem:[#allocation2 + $0x58] sm:$0xff]
        %v708 = vld [vmem:[#allocation2 + $0x60] sm:$0xff]
        %v709 = vld [vmem:[#allocation2 + $0x68] sm:$0xff]
        %v710 = vld [vmem:[#allocation2 + $0x70] sm:$0xff]
        %v711 = vld [vmem:[#allocation2 + $0x78] sm:$0xff]
        %v712 = vld [vmem:[#allocation2 + $0x80] sm:$0xff]
        %v713 = vld [vmem:[#allocation2 + $0x88] sm:$0xff]
        %v714 = vld [vmem:[#allocation2 + $0x90] sm:$0xff]
        %v715 = vld [vmem:[#allocation2 + $0x98] sm:$0xff]
        %v716 = vld [vmem:[#allocation2 + $0xa0] sm:$0xff]
        %v717 = vld [vmem:[#allocation2 + $0xa8] sm:$0x1]
        %v718 = vld [vmem:[#allocation2 + $0xb0] sm:$0x1]
        %v719 = vld [vmem:[#allocation2 + $0xb8] sm:$0x1]
        %v720 = vld [vmem:[#allocation2 + $0xc0] sm:$0x1]
        %v721 = vld [vmem:[#allocation2 + $0xc8] sm:$0x1]
        %v722 = vld [vmem:[#allocation2 + $0xd0] sm:$0x1]
        %v723 = vld [vmem:[#allocation2 + $0xd8] sm:$0x1]
        %v724 = vpack.c.bf16 %v703, %v696
        %v725 = vpack.c.bf16 %v704, %v697
        %v726 = vpack.c.bf16 %v705, %v698
        %v727 = vpack.c.bf16 %v706, %v699
        %v728 = vpack.c.bf16 %v707, %v700
        %v729 = vpack.c.bf16 %v708, %v701
        %v730 = vpack.c.bf16 %v709, %v702
        %v731 = vpack.c.bf16 %v717, %v710
        %v732 = vpack.c.bf16 %v718, %v711
        %v733 = vpack.c.bf16 %v719, %v712
        %v734 = vpack.c.bf16 %v720, %v713
        %v735 = vpack.c.bf16 %v721, %v714
        %v736 = vpack.c.bf16 %v722, %v715
        %v737 = vpack.c.bf16 %v723, %v716
        %v738 = vld [vmem:[%s1] sm:$0x7]
        %v739 = vld [vmem:[%s2] sm:$0x3f]
        %741 = vset.pattern.permute.xlu0 0
        %742 = vperm.xlu0 %741, %v739
        %v743 = vpop.permute.xlu0 %742
        %vm745 = vcmask 203776
        %v747 = vsel %vm745, %v738, 0
        %vm749 = vcmask 1043456
        %vm750 = vcmask 1044480
        %v751 = vsel %vm749, 4294967295, 65535
        %v752 = vsel %vm750, %v751, 0
        %v754 = vand.u32 %v731, %v752
        %v757 = vand.u32 %v732, %v752
        %v760 = vand.u32 %v733, %v752
        %v763 = vand.u32 %v734, %v752
        %v766 = vand.u32 %v735, %v752
        %v769 = vand.u32 %v736, %v752
        %v772 = vand.u32 %v737, %v752
        %774 = vmatprep.subr.bf16.mxu0 0
        %775 = vmatpush1.bf16.msra.mxu0 0
        %776 = vmatprep.subr.bf16.mxu0 0
        %777 = vmatpush1.bf16.msra.mxu0 0
        %778 = vmatprep.subr.bf16.mxu0 0
        %779 = vmatpush1.bf16.msra.mxu0 0
        %780 = vmatprep.subr.bf16.mxu0 0
        %781 = vmatpush1.bf16.msra.mxu0 0
        %782 = vmatprep.subr.bf16.mxu0 0
        %783 = vmatpush1.bf16.msra.mxu0 0
        %784 = vmatprep.subr.bf16.mxu0 0
        %785 = vmatpush1.bf16.msra.mxu0 0
        %786 = vmatprep.subr.bf16.mxu0 %v757
        %787 = vmatpush1.bf16.msra.mxu0 %v754
        %788 = vmatprep.subr.bf16.mxu0 %v725
        %789 = vmatpush1.bf16.msra.mxu0 %v724
        %790 = vmatprep.subr.bf16.mxu0 0
        %791 = vmatpush2.bf16.msra.mxu0 0
        %792 = vmatprep.subr.bf16.mxu0 0
        %793 = vmatpush2.bf16.msra.mxu0 0
        %794 = vmatprep.subr.bf16.mxu0 0
        %795 = vmatpush2.bf16.msra.mxu0 0
        %796 = vmatprep.subr.bf16.mxu0 0
        %797 = vmatpush2.bf16.msra.mxu0 0
        %798 = vmatprep.subr.bf16.mxu0 0
        %799 = vmatpush2.bf16.msra.mxu0 0
        %800 = vmatprep.subr.bf16.mxu0 0
        %801 = vmatpush2.bf16.msra.mxu0 0
        %802 = vmatprep.subr.bf16.mxu0 0
        %803 = vmatpush2.bf16.msra.mxu0 0
        %804 = vmatprep.subr.bf16.mxu0 0
        %805 = vmatpush2.bf16.msra.mxu0 0
        %806 = vmatprep.mubr.bf16.mxu0 0
        %807 = vmatmul.mubr.bf16.gmra.mxu0 %v747
        %v808 = vpop.f32.mrf.mxu0
        %v809 = vadd.f32 %v743, %v808
        %v810 = vpop.f32.mrf.mxu0
        %v811 = vadd.f32 %v743, %v810
        %v812 = vpop.f32.mrf.mxu0
        %v813 = vpop.f32.mrf.mxu0
        %814 = vdwg.mxu0
        %815 = vmatprep.subr.bf16.mxu0 0
        %816 = vmatpush1.bf16.msra.mxu0 0
        %817 = vmatprep.subr.bf16.mxu0 0
        %818 = vmatpush1.bf16.msra.mxu0 0
        %819 = vmatprep.subr.bf16.mxu0 0
        %820 = vmatpush1.bf16.msra.mxu0 0
        %821 = vmatprep.subr.bf16.mxu0 0
        %822 = vmatpush1.bf16.msra.mxu0 0
        %823 = vmatprep.subr.bf16.mxu0 0
        %824 = vmatpush1.bf16.msra.mxu0 0
        %825 = vmatprep.subr.bf16.mxu0 0
        %826 = vmatpush1.bf16.msra.mxu0 0
        %827 = vmatprep.subr.bf16.mxu0 %v763
        %828 = vmatpush1.bf16.msra.mxu0 %v760
        %829 = vmatprep.subr.bf16.mxu0 %v727
        %830 = vmatpush1.bf16.msra.mxu0 %v726
        %831 = vmatprep.subr.bf16.mxu0 0
        %832 = vmatpush2.bf16.msra.mxu0 0
        %833 = vmatprep.subr.bf16.mxu0 0
        %834 = vmatpush2.bf16.msra.mxu0 0
        %835 = vmatprep.subr.bf16.mxu0 0
        %836 = vmatpush2.bf16.msra.mxu0 0
        %837 = vmatprep.subr.bf16.mxu0 0
        %838 = vmatpush2.bf16.msra.mxu0 0
        %839 = vmatprep.subr.bf16.mxu0 0
        %840 = vmatpush2.bf16.msra.mxu0 0
        %841 = vmatprep.subr.bf16.mxu0 0
        %842 = vmatpush2.bf16.msra.mxu0 0
        %843 = vmatprep.subr.bf16.mxu0 0
        %844 = vmatpush2.bf16.msra.mxu0 0
        %845 = vmatprep.subr.bf16.mxu0 0
        %846 = vmatpush2.bf16.msra.mxu0 0
        %847 = vmatprep.mubr.bf16.mxu0 0
        %848 = vmatmul.mubr.bf16.gmra.mxu0 %v747
        %v849 = vpop.f32.mrf.mxu0
        %v850 = vadd.f32 %v743, %v849
        %v851 = vpop.f32.mrf.mxu0
        %v852 = vadd.f32 %v743, %v851
        %v853 = vpop.f32.mrf.mxu0
        %v854 = vpop.f32.mrf.mxu0
        %855 = vdwg.mxu0
        %856 = vmatprep.subr.bf16.mxu0 0
        %857 = vmatpush1.bf16.msra.mxu0 0
        %858 = vmatprep.subr.bf16.mxu0 0
        %859 = vmatpush1.bf16.msra.mxu0 0
        %860 = vmatprep.subr.bf16.mxu0 0
        %861 = vmatpush1.bf16.msra.mxu0 0
        %862 = vmatprep.subr.bf16.mxu0 0
        %863 = vmatpush1.bf16.msra.mxu0 0
        %864 = vmatprep.subr.bf16.mxu0 0
        %865 = vmatpush1.bf16.msra.mxu0 0
        %866 = vmatprep.subr.bf16.mxu0 0
        %867 = vmatpush1.bf16.msra.mxu0 0
        %868 = vmatprep.subr.bf16.mxu0 %v769
        %869 = vmatpush1.bf16.msra.mxu0 %v766
        %870 = vmatprep.subr.bf16.mxu0 %v729
        %871 = vmatpush1.bf16.msra.mxu0 %v728
        %872 = vmatprep.subr.bf16.mxu0 0
        %873 = vmatpush2.bf16.msra.mxu0 0
        %874 = vmatprep.subr.bf16.mxu0 0
        %875 = vmatpush2.bf16.msra.mxu0 0
        %876 = vmatprep.subr.bf16.mxu0 0
        %877 = vmatpush2.bf16.msra.mxu0 0
        %878 = vmatprep.subr.bf16.mxu0 0
        %879 = vmatpush2.bf16.msra.mxu0 0
        %880 = vmatprep.subr.bf16.mxu0 0
        %881 = vmatpush2.bf16.msra.mxu0 0
        %882 = vmatprep.subr.bf16.mxu0 0
        %883 = vmatpush2.bf16.msra.mxu0 0
        %884 = vmatprep.subr.bf16.mxu0 0
        %885 = vmatpush2.bf16.msra.mxu0 0
        %886 = vmatprep.subr.bf16.mxu0 0
        %887 = vmatpush2.bf16.msra.mxu0 0
        %888 = vmatprep.mubr.bf16.mxu0 0
        %889 = vmatmul.mubr.bf16.gmra.mxu0 %v747
        %v890 = vpop.f32.mrf.mxu0
        %v891 = vadd.f32 %v743, %v890
        %v892 = vpop.f32.mrf.mxu0
        %v893 = vadd.f32 %v743, %v892
        %v894 = vpop.f32.mrf.mxu0
        %v895 = vpop.f32.mrf.mxu0
        %896 = vdwg.mxu0
        %897 = vmatprep.subr.bf16.mxu0 0
        %898 = vmatpush1.bf16.msra.mxu0 0
        %899 = vmatprep.subr.bf16.mxu0 0
        %900 = vmatpush1.bf16.msra.mxu0 0
        %901 = vmatprep.subr.bf16.mxu0 0
        %902 = vmatpush1.bf16.msra.mxu0 0
        %903 = vmatprep.subr.bf16.mxu0 0
        %904 = vmatpush1.bf16.msra.mxu0 0
        %905 = vmatprep.subr.bf16.mxu0 0
        %906 = vmatpush1.bf16.msra.mxu0 0
        %907 = vmatprep.subr.bf16.mxu0 0
        %908 = vmatpush1.bf16.msra.mxu0 0
        %909 = vmatprep.subr.bf16.mxu0 0
        %910 = vmatpush1.bf16.msra.mxu0 %v772
        %911 = vmatprep.subr.bf16.mxu0 0
        %912 = vmatpush1.bf16.msra.mxu0 %v730
        %913 = vmatprep.subr.bf16.mxu0 0
        %914 = vmatpush2.bf16.msra.mxu0 0
        %915 = vmatprep.subr.bf16.mxu0 0
        %916 = vmatpush2.bf16.msra.mxu0 0
        %917 = vmatprep.subr.bf16.mxu0 0
        %918 = vmatpush2.bf16.msra.mxu0 0
        %919 = vmatprep.subr.bf16.mxu0 0
        %920 = vmatpush2.bf16.msra.mxu0 0
        %921 = vmatprep.subr.bf16.mxu0 0
        %922 = vmatpush2.bf16.msra.mxu0 0
        %923 = vmatprep.subr.bf16.mxu0 0
        %924 = vmatpush2.bf16.msra.mxu0 0
        %925 = vmatprep.subr.bf16.mxu0 0
        %926 = vmatpush2.bf16.msra.mxu0 0
        %927 = vmatprep.subr.bf16.mxu0 0
        %928 = vmatpush2.bf16.msra.mxu0 0
        %929 = vmatprep.mubr.bf16.mxu0 0
        %930 = vmatmul.mubr.bf16.gmra.mxu0 %v747
        %v931 = vpop.f32.mrf.mxu0
        %v932 = vadd.f32 %v743, %v931
        %v933 = vpop.f32.mrf.mxu0
        %v934 = vpop.f32.mrf.mxu0
        %v935 = vpop.f32.mrf.mxu0
        %936 = vdwg.mxu0
        %v937 = vmax.f32 %v809, 0.0
        %v938 = vmax.f32 %v811, 0.0
        %v939 = vmax.f32 %v850, 0.0
        %v940 = vmax.f32 %v852, 0.0
        %v941 = vmax.f32 %v891, 0.0
        %v942 = vmax.f32 %v893, 0.0
        %v943 = vmax.f32 %v932, 0.0
        %v944 = vpack.c.bf16 %v937, %v937
        %v945 = vpack.c.bf16 %v938, %v938
        %v946 = vpack.c.bf16 %v939, %v939
        %v947 = vpack.c.bf16 %v940, %v940
        %v948 = vpack.c.bf16 %v941, %v941
        %v949 = vpack.c.bf16 %v942, %v942
        %v950 = vpack.c.bf16 %v943, %v943
        %v951 = vld [vmem:[%s3] sm:$0xff]
        %v952 = vld [vmem:[%s3 + $0x8] sm:$0xff]
        %v953 = vld [vmem:[%s3 + $0x10] sm:$0xff]
        %v954 = vld [vmem:[%s3 + $0x18] sm:$0xff]
        %v955 = vld [vmem:[%s3 + $0x20] sm:$0xff]
        %v956 = vld [vmem:[%s3 + $0x28] sm:$0xff]
        %v957 = vld [vmem:[%s3 + $0x30] sm:$0xff]
        %v958 = vld [vmem:[%s3 + $0x38] sm:$0xff]
        %v959 = vld [vmem:[%s3 + $0x40] sm:$0xff]
        %v960 = vld [vmem:[%s3 + $0x48] sm:$0xff]
        %v961 = vld [vmem:[%s3 + $0x50] sm:$0xff]
        %v962 = vld [vmem:[%s3 + $0x58] sm:$0xff]
        %v963 = vld [vmem:[%s3 + $0x60] sm:$0xff]
        %v964 = vld [vmem:[%s3 + $0x68] sm:$0xff]
        %v965 = vld [vmem:[%s3 + $0x70] sm:$0xff]
        %v966 = vld [vmem:[%s3 + $0x78] sm:$0xff]
        %v967 = vld [vmem:[%s3 + $0x80] sm:$0xff]
        %v968 = vld [vmem:[%s3 + $0x88] sm:$0xff]
        %v969 = vld [vmem:[%s3 + $0x90] sm:$0xff]
        %v970 = vld [vmem:[%s3 + $0x98] sm:$0xff]
        %v971 = vld [vmem:[%s3 + $0xa0] sm:$0xff]
        %v972 = vld [vmem:[%s3 + $0xa8] sm:$0xff]
        %v973 = vld [vmem:[%s3 + $0xb0] sm:$0xff]
        %v974 = vld [vmem:[%s3 + $0xb8] sm:$0xff]
        %v975 = vld [vmem:[%s3 + $0xc0] sm:$0xff]
        %v976 = vld [vmem:[%s3 + $0xc8] sm:$0xff]
        %v977 = vld [vmem:[%s3 + $0xd0] sm:$0xff]
        %v978 = vld [vmem:[%s3 + $0xd8] sm:$0xff]
        %v979 = vld [vmem:[%s3 + $0xe0] sm:$0xff]
        %v980 = vld [vmem:[%s3 + $0xe8] sm:$0xff]
        %v981 = vld [vmem:[%s3 + $0xf0] sm:$0xff]
        %v982 = vld [vmem:[%s3 + $0xf8] sm:$0xff]
        %v983 = vld [vmem:[%s3 + $0x100] sm:$0xff]
        %v984 = vld [vmem:[%s3 + $0x108] sm:$0xff]
        %v985 = vld [vmem:[%s3 + $0x110] sm:$0xff]
        %v986 = vld [vmem:[%s3 + $0x118] sm:$0xff]
        %v987 = vld [vmem:[%s3 + $0x120] sm:$0xff]
        %v988 = vld [vmem:[%s3 + $0x128] sm:$0xff]
        %v989 = vld [vmem:[%s3 + $0x130] sm:$0xff]
        %v990 = vld [vmem:[%s3 + $0x138] sm:$0xff]
        %v991 = vld [vmem:[%s3 + $0x140] sm:$0xff]
        %v992 = vld [vmem:[%s3 + $0x148] sm:$0xff]
        %v993 = vld [vmem:[%s3 + $0x150] sm:$0xff]
        %v994 = vld [vmem:[%s3 + $0x158] sm:$0xff]
        %v995 = vld [vmem:[%s3 + $0x160] sm:$0xff]
        %v996 = vld [vmem:[%s3 + $0x168] sm:$0xff]
        %v997 = vld [vmem:[%s3 + $0x170] sm:$0xff]
        %v998 = vld [vmem:[%s3 + $0x178] sm:$0xff]
        %v999 = vld [vmem:[%s3 + $0x180] sm:$0xff]
        %v1000 = vld [vmem:[%s3 + $0x188] sm:$0xff]
        %v1001 = vld [vmem:[%s3 + $0x190] sm:$0xff]
        %v1002 = vld [vmem:[%s3 + $0x198] sm:$0xff]
        %v1003 = vld [vmem:[%s3 + $0x1a0] sm:$0xff]
        %v1004 = vld [vmem:[%s3 + $0x1a8] sm:$0xff]
        %v1005 = vld [vmem:[%s3 + $0x1b0] sm:$0xff]
        %v1006 = vld [vmem:[%s3 + $0x1b8] sm:$0xff]
        %v1007 = vld [vmem:[%s3 + $0x1c0] sm:$0xff]
        %v1008 = vld [vmem:[%s3 + $0x1c8] sm:$0xff]
        %v1009 = vld [vmem:[%s3 + $0x1d0] sm:$0xff]
        %v1010 = vld [vmem:[%s3 + $0x1d8] sm:$0xff]
        %v1011 = vld [vmem:[%s3 + $0x1e0] sm:$0xff]
        %v1012 = vld [vmem:[%s3 + $0x1e8] sm:$0xff]
        %v1013 = vld [vmem:[%s3 + $0x1f0] sm:$0xff]
        %v1014 = vld [vmem:[%s3 + $0x1f8] sm:$0xff]
        %v1015 = vld [vmem:[%s3 + $0x200] sm:$0xff]
        %v1016 = vld [vmem:[%s3 + $0x208] sm:$0xff]
        %v1017 = vld [vmem:[%s3 + $0x210] sm:$0xff]
        %v1018 = vld [vmem:[%s3 + $0x218] sm:$0xff]
        %v1019 = vld [vmem:[%s3 + $0x220] sm:$0xff]
        %v1020 = vld [vmem:[%s3 + $0x228] sm:$0xff]
        %v1021 = vld [vmem:[%s3 + $0x230] sm:$0xff]
        %v1022 = vld [vmem:[%s3 + $0x238] sm:$0xff]
        %v1023 = vld [vmem:[%s3 + $0x240] sm:$0xff]
        %v1024 = vld [vmem:[%s3 + $0x248] sm:$0xff]
        %v1025 = vld [vmem:[%s3 + $0x250] sm:$0xff]
        %v1026 = vld [vmem:[%s3 + $0x258] sm:$0xff]
        %v1027 = vld [vmem:[%s3 + $0x260] sm:$0xff]
        %v1028 = vld [vmem:[%s3 + $0x268] sm:$0xff]
        %v1029 = vld [vmem:[%s3 + $0x270] sm:$0xff]
        %v1030 = vld [vmem:[%s3 + $0x278] sm:$0xff]
        %v1031 = vld [vmem:[%s3 + $0x280] sm:$0xff]
        %v1032 = vld [vmem:[%s3 + $0x288] sm:$0xff]
        %v1033 = vld [vmem:[%s3 + $0x290] sm:$0xff]
        %v1034 = vld [vmem:[%s3 + $0x298] sm:$0xff]
        %v1035 = vld [vmem:[%s3 + $0x2a0] sm:$0xff]
        %v1036 = vld [vmem:[%s3 + $0x2a8] sm:$0xff]
        %v1037 = vld [vmem:[%s3 + $0x2b0] sm:$0xff]
        %v1038 = vld [vmem:[%s3 + $0x2b8] sm:$0xff]
        %v1039 = vld [vmem:[%s3 + $0x2c0] sm:$0xff]
        %v1040 = vld [vmem:[%s3 + $0x2c8] sm:$0xff]
        %v1041 = vld [vmem:[%s3 + $0x2d0] sm:$0xff]
        %v1042 = vld [vmem:[%s3 + $0x2d8] sm:$0xff]
        %v1043 = vld [vmem:[%s3 + $0x2e0] sm:$0xff]
        %v1044 = vld [vmem:[%s3 + $0x2e8] sm:$0xff]
        %v1045 = vld [vmem:[%s3 + $0x2f0] sm:$0xff]
        %v1046 = vld [vmem:[%s3 + $0x2f8] sm:$0xff]
        %v1047 = vld [vmem:[%s3 + $0x300] sm:$0xff]
        %v1048 = vld [vmem:[%s3 + $0x308] sm:$0xff]
        %v1049 = vld [vmem:[%s3 + $0x310] sm:$0xff]
        %v1050 = vld [vmem:[%s3 + $0x318] sm:$0xff]
        %v1051 = vld [vmem:[%s3 + $0x320] sm:$0xff]
        %v1052 = vld [vmem:[%s3 + $0x328] sm:$0xff]
        %v1053 = vld [vmem:[%s3 + $0x330] sm:$0xff]
        %v1054 = vld [vmem:[%s3 + $0x338] sm:$0xff]
        %v1055 = vld [vmem:[%s3 + $0x340] sm:$0xff]
        %v1056 = vld [vmem:[%s3 + $0x348] sm:$0xff]
        %v1057 = vld [vmem:[%s3 + $0x350] sm:$0xff]
        %v1058 = vld [vmem:[%s3 + $0x358] sm:$0xff]
        %v1059 = vld [vmem:[%s3 + $0x360] sm:$0xff]
        %v1060 = vld [vmem:[%s3 + $0x368] sm:$0xff]
        %v1061 = vld [vmem:[%s3 + $0x370] sm:$0xff]
        %v1062 = vld [vmem:[%s3 + $0x378] sm:$0xff]
        %v1175 = vunpack.c.l.b16 %v951
        %v1176 = vunpack.c.h.b16 %v951
        %v1177 = vunpack.c.l.b16 %v952
        %v1178 = vunpack.c.h.b16 %v952
        %v1179 = vunpack.c.l.b16 %v953
        %v1180 = vunpack.c.h.b16 %v953
        %v1181 = vunpack.c.l.b16 %v954
        %v1182 = vunpack.c.h.b16 %v954
        %v1183 = vunpack.c.l.b16 %v955
        %v1184 = vunpack.c.h.b16 %v955
        %v1185 = vunpack.c.l.b16 %v956
        %v1186 = vunpack.c.h.b16 %v956
        %v1187 = vunpack.c.l.b16 %v957
        %v1188 = vunpack.c.h.b16 %v957
        %v1189 = vunpack.c.l.b16 %v958
        %v1190 = vunpack.c.h.b16 %v958
        %v1191 = vunpack.c.l.b16 %v959
        %v1192 = vunpack.c.h.b16 %v959
        %v1193 = vunpack.c.l.b16 %v960
        %v1194 = vunpack.c.h.b16 %v960
        %v1195 = vunpack.c.l.b16 %v961
        %v1196 = vunpack.c.h.b16 %v961
        %v1197 = vunpack.c.l.b16 %v962
        %v1198 = vunpack.c.h.b16 %v962
        %v1199 = vunpack.c.l.b16 %v963
        %v1200 = vunpack.c.h.b16 %v963
        %v1201 = vunpack.c.l.b16 %v964
        %v1202 = vunpack.c.h.b16 %v964
        %v1203 = vunpack.c.l.b16 %v965
        %v1204 = vunpack.c.h.b16 %v965
        %v1205 = vunpack.c.l.b16 %v966
        %v1206 = vunpack.c.h.b16 %v966
        %v1207 = vunpack.c.l.b16 %v967
        %v1208 = vunpack.c.h.b16 %v967
        %v1209 = vunpack.c.l.b16 %v968
        %v1210 = vunpack.c.h.b16 %v968
        %v1211 = vunpack.c.l.b16 %v969
        %v1212 = vunpack.c.h.b16 %v969
        %v1213 = vunpack.c.l.b16 %v970
        %v1214 = vunpack.c.h.b16 %v970
        %v1215 = vunpack.c.l.b16 %v971
        %v1216 = vunpack.c.h.b16 %v971
        %v1217 = vunpack.c.l.b16 %v972
        %v1218 = vunpack.c.h.b16 %v972
        %v1219 = vunpack.c.l.b16 %v973
        %v1220 = vunpack.c.h.b16 %v973
        %v1221 = vunpack.c.l.b16 %v974
        %v1222 = vunpack.c.h.b16 %v974
        %v1223 = vunpack.c.l.b16 %v975
        %v1224 = vunpack.c.h.b16 %v975
        %v1225 = vunpack.c.l.b16 %v976
        %v1226 = vunpack.c.h.b16 %v976
        %v1227 = vunpack.c.l.b16 %v977
        %v1228 = vunpack.c.h.b16 %v977
        %v1229 = vunpack.c.l.b16 %v978
        %v1230 = vunpack.c.h.b16 %v978
        %v1231 = vunpack.c.l.b16 %v979
        %v1232 = vunpack.c.h.b16 %v979
        %v1233 = vunpack.c.l.b16 %v980
        %v1234 = vunpack.c.h.b16 %v980
        %v1235 = vunpack.c.l.b16 %v981
        %v1236 = vunpack.c.h.b16 %v981
        %v1237 = vunpack.c.l.b16 %v982
        %v1238 = vunpack.c.h.b16 %v982
        %v1239 = vunpack.c.l.b16 %v983
        %v1240 = vunpack.c.h.b16 %v983
        %v1241 = vunpack.c.l.b16 %v984
        %v1242 = vunpack.c.h.b16 %v984
        %v1243 = vunpack.c.l.b16 %v985
        %v1244 = vunpack.c.h.b16 %v985
        %v1245 = vunpack.c.l.b16 %v986
        %v1246 = vunpack.c.h.b16 %v986
        %v1247 = vunpack.c.l.b16 %v987
        %v1248 = vunpack.c.h.b16 %v987
        %v1249 = vunpack.c.l.b16 %v988
        %v1250 = vunpack.c.h.b16 %v988
        %v1251 = vunpack.c.l.b16 %v989
        %v1252 = vunpack.c.h.b16 %v989
        %v1253 = vunpack.c.l.b16 %v990
        %v1254 = vunpack.c.h.b16 %v990
        %v1255 = vunpack.c.l.b16 %v991
        %v1256 = vunpack.c.h.b16 %v991
        %v1257 = vunpack.c.l.b16 %v992
        %v1258 = vunpack.c.h.b16 %v992
        %v1259 = vunpack.c.l.b16 %v993
        %v1260 = vunpack.c.h.b16 %v993
        %v1261 = vunpack.c.l.b16 %v994
        %v1262 = vunpack.c.h.b16 %v994
        %v1263 = vunpack.c.l.b16 %v995
        %v1264 = vunpack.c.h.b16 %v995
        %v1265 = vunpack.c.l.b16 %v996
        %v1266 = vunpack.c.h.b16 %v996
        %v1267 = vunpack.c.l.b16 %v997
        %v1268 = vunpack.c.h.b16 %v997
        %v1269 = vunpack.c.l.b16 %v998
        %v1270 = vunpack.c.h.b16 %v998
        %v1271 = vunpack.c.l.b16 %v999
        %v1272 = vunpack.c.h.b16 %v999
        %v1273 = vunpack.c.l.b16 %v1000
        %v1274 = vunpack.c.h.b16 %v1000
        %v1275 = vunpack.c.l.b16 %v1001
        %v1276 = vunpack.c.h.b16 %v1001
        %v1277 = vunpack.c.l.b16 %v1002
        %v1278 = vunpack.c.h.b16 %v1002
        %v1279 = vunpack.c.l.b16 %v1003
        %v1280 = vunpack.c.h.b16 %v1003
        %v1281 = vunpack.c.l.b16 %v1004
        %v1282 = vunpack.c.h.b16 %v1004
        %v1283 = vunpack.c.l.b16 %v1005
        %v1284 = vunpack.c.h.b16 %v1005
        %v1285 = vunpack.c.l.b16 %v1006
        %v1286 = vunpack.c.h.b16 %v1006
        %v1287 = vunpack.c.l.b16 %v1007
        %v1288 = vunpack.c.h.b16 %v1007
        %v1289 = vunpack.c.l.b16 %v1008
        %v1290 = vunpack.c.h.b16 %v1008
        %v1291 = vunpack.c.l.b16 %v1009
        %v1292 = vunpack.c.h.b16 %v1009
        %v1293 = vunpack.c.l.b16 %v1010
        %v1294 = vunpack.c.h.b16 %v1010
        %v1295 = vunpack.c.l.b16 %v1011
        %v1296 = vunpack.c.h.b16 %v1011
        %v1297 = vunpack.c.l.b16 %v1012
        %v1298 = vunpack.c.h.b16 %v1012
        %v1299 = vunpack.c.l.b16 %v1013
        %v1300 = vunpack.c.h.b16 %v1013
        %v1301 = vunpack.c.l.b16 %v1014
        %v1302 = vunpack.c.h.b16 %v1014
        %v1303 = vunpack.c.l.b16 %v1015
        %v1304 = vunpack.c.h.b16 %v1015
        %v1305 = vunpack.c.l.b16 %v1016
        %v1306 = vunpack.c.h.b16 %v1016
        %v1307 = vunpack.c.l.b16 %v1017
        %v1308 = vunpack.c.h.b16 %v1017
        %v1309 = vunpack.c.l.b16 %v1018
        %v1310 = vunpack.c.h.b16 %v1018
        %v1311 = vunpack.c.l.b16 %v1019
        %v1312 = vunpack.c.h.b16 %v1019
        %v1313 = vunpack.c.l.b16 %v1020
        %v1314 = vunpack.c.h.b16 %v1020
        %v1315 = vunpack.c.l.b16 %v1021
        %v1316 = vunpack.c.h.b16 %v1021
        %v1317 = vunpack.c.l.b16 %v1022
        %v1318 = vunpack.c.h.b16 %v1022
        %v1319 = vunpack.c.l.b16 %v1023
        %v1320 = vunpack.c.h.b16 %v1023
        %v1321 = vunpack.c.l.b16 %v1024
        %v1322 = vunpack.c.h.b16 %v1024
        %v1323 = vunpack.c.l.b16 %v1025
        %v1324 = vunpack.c.h.b16 %v1025
        %v1325 = vunpack.c.l.b16 %v1026
        %v1326 = vunpack.c.h.b16 %v1026
        %v1327 = vunpack.c.l.b16 %v1027
        %v1328 = vunpack.c.h.b16 %v1027
        %v1329 = vunpack.c.l.b16 %v1028
        %v1330 = vunpack.c.h.b16 %v1028
        %v1331 = vunpack.c.l.b16 %v1029
        %v1332 = vunpack.c.h.b16 %v1029
        %v1333 = vunpack.c.l.b16 %v1030
        %v1334 = vunpack.c.h.b16 %v1030
        %v1335 = vunpack.c.l.b16 %v1031
        %v1336 = vunpack.c.h.b16 %v1031
        %v1337 = vunpack.c.l.b16 %v1032
        %v1338 = vunpack.c.h.b16 %v1032
        %v1339 = vunpack.c.l.b16 %v1033
        %v1340 = vunpack.c.h.b16 %v1033
        %v1341 = vunpack.c.l.b16 %v1034
        %v1342 = vunpack.c.h.b16 %v1034
        %v1343 = vunpack.c.l.b16 %v1035
        %v1344 = vunpack.c.h.b16 %v1035
        %v1345 = vunpack.c.l.b16 %v1036
        %v1346 = vunpack.c.h.b16 %v1036
        %v1347 = vunpack.c.l.b16 %v1037
        %v1348 = vunpack.c.h.b16 %v1037
        %v1349 = vunpack.c.l.b16 %v1038
        %v1350 = vunpack.c.h.b16 %v1038
        %v1351 = vunpack.c.l.b16 %v1039
        %v1352 = vunpack.c.h.b16 %v1039
        %v1353 = vunpack.c.l.b16 %v1040
        %v1354 = vunpack.c.h.b16 %v1040
        %v1355 = vunpack.c.l.b16 %v1041
        %v1356 = vunpack.c.h.b16 %v1041
        %v1357 = vunpack.c.l.b16 %v1042
        %v1358 = vunpack.c.h.b16 %v1042
        %v1359 = vunpack.c.l.b16 %v1043
        %v1360 = vunpack.c.h.b16 %v1043
        %v1361 = vunpack.c.l.b16 %v1044
        %v1362 = vunpack.c.h.b16 %v1044
        %v1363 = vunpack.c.l.b16 %v1045
        %v1364 = vunpack.c.h.b16 %v1045
        %v1365 = vunpack.c.l.b16 %v1046
        %v1366 = vunpack.c.h.b16 %v1046
        %v1367 = vunpack.c.l.b16 %v1047
        %v1368 = vunpack.c.h.b16 %v1047
        %v1369 = vunpack.c.l.b16 %v1048
        %v1370 = vunpack.c.h.b16 %v1048
        %v1371 = vunpack.c.l.b16 %v1049
        %v1372 = vunpack.c.h.b16 %v1049
        %v1373 = vunpack.c.l.b16 %v1050
        %v1374 = vunpack.c.h.b16 %v1050
        %v1375 = vunpack.c.l.b16 %v1051
        %v1376 = vunpack.c.h.b16 %v1051
        %v1377 = vunpack.c.l.b16 %v1052
        %v1378 = vunpack.c.h.b16 %v1052
        %v1379 = vunpack.c.l.b16 %v1053
        %v1380 = vunpack.c.h.b16 %v1053
        %v1381 = vunpack.c.l.b16 %v1054
        %v1382 = vunpack.c.h.b16 %v1054
        %v1383 = vunpack.c.l.b16 %v1055
        %v1384 = vunpack.c.h.b16 %v1055
        %v1385 = vunpack.c.l.b16 %v1056
        %v1386 = vunpack.c.h.b16 %v1056
        %v1387 = vunpack.c.l.b16 %v1057
        %v1388 = vunpack.c.h.b16 %v1057
        %v1389 = vunpack.c.l.b16 %v1058
        %v1390 = vunpack.c.h.b16 %v1058
        %v1391 = vunpack.c.l.b16 %v1059
        %v1392 = vunpack.c.h.b16 %v1059
        %v1393 = vunpack.c.l.b16 %v1060
        %v1394 = vunpack.c.h.b16 %v1060
        %v1395 = vunpack.c.l.b16 %v1061
        %v1396 = vunpack.c.h.b16 %v1061
        %v1397 = vunpack.c.l.b16 %v1062
        %v1398 = vunpack.c.h.b16 %v1062
        %v1399 = vpack.c.b16 %v1177, %v1175
        %v1400 = vpack.c.b16 %v1178, %v1176
        %v1401 = vpack.c.b16 %v1181, %v1179
        %v1402 = vpack.c.b16 %v1182, %v1180
        %v1403 = vpack.c.b16 %v1185, %v1183
        %v1404 = vpack.c.b16 %v1186, %v1184
        %v1405 = vpack.c.b16 %v1189, %v1187
        %v1406 = vpack.c.b16 %v1190, %v1188
        %v1407 = vpack.c.b16 %v1193, %v1191
        %v1408 = vpack.c.b16 %v1194, %v1192
        %v1409 = vpack.c.b16 %v1197, %v1195
        %v1410 = vpack.c.b16 %v1198, %v1196
        %v1411 = vpack.c.b16 %v1201, %v1199
        %v1412 = vpack.c.b16 %v1202, %v1200
        %v1413 = vpack.c.b16 %v1205, %v1203
        %v1414 = vpack.c.b16 %v1206, %v1204
        %v1415 = vpack.c.b16 %v1209, %v1207
        %v1416 = vpack.c.b16 %v1210, %v1208
        %v1417 = vpack.c.b16 %v1213, %v1211
        %v1418 = vpack.c.b16 %v1214, %v1212
        %v1419 = vpack.c.b16 %v1217, %v1215
        %v1420 = vpack.c.b16 %v1218, %v1216
        %v1421 = vpack.c.b16 %v1221, %v1219
        %v1422 = vpack.c.b16 %v1222, %v1220
        %v1423 = vpack.c.b16 %v1225, %v1223
        %v1424 = vpack.c.b16 %v1226, %v1224
        %v1425 = vpack.c.b16 %v1229, %v1227
        %v1426 = vpack.c.b16 %v1230, %v1228
        %v1427 = vpack.c.b16 %v1233, %v1231
        %v1428 = vpack.c.b16 %v1234, %v1232
        %v1429 = vpack.c.b16 %v1237, %v1235
        %v1430 = vpack.c.b16 %v1238, %v1236
        %v1431 = vpack.c.b16 %v1241, %v1239
        %v1432 = vpack.c.b16 %v1242, %v1240
        %v1433 = vpack.c.b16 %v1245, %v1243
        %v1434 = vpack.c.b16 %v1246, %v1244
        %v1435 = vpack.c.b16 %v1249, %v1247
        %v1436 = vpack.c.b16 %v1250, %v1248
        %v1437 = vpack.c.b16 %v1253, %v1251
        %v1438 = vpack.c.b16 %v1254, %v1252
        %v1439 = vpack.c.b16 %v1257, %v1255
        %v1440 = vpack.c.b16 %v1258, %v1256
        %v1441 = vpack.c.b16 %v1261, %v1259
        %v1442 = vpack.c.b16 %v1262, %v1260
        %v1443 = vpack.c.b16 %v1265, %v1263
        %v1444 = vpack.c.b16 %v1266, %v1264
        %v1445 = vpack.c.b16 %v1269, %v1267
        %v1446 = vpack.c.b16 %v1270, %v1268
        %v1447 = vpack.c.b16 %v1273, %v1271
        %v1448 = vpack.c.b16 %v1274, %v1272
        %v1449 = vpack.c.b16 %v1277, %v1275
        %v1450 = vpack.c.b16 %v1278, %v1276
        %v1451 = vpack.c.b16 %v1281, %v1279
        %v1452 = vpack.c.b16 %v1282, %v1280
        %v1453 = vpack.c.b16 %v1285, %v1283
        %v1454 = vpack.c.b16 %v1286, %v1284
        %v1455 = vpack.c.b16 %v1289, %v1287
        %v1456 = vpack.c.b16 %v1290, %v1288
        %v1457 = vpack.c.b16 %v1293, %v1291
        %v1458 = vpack.c.b16 %v1294, %v1292
        %v1459 = vpack.c.b16 %v1297, %v1295
        %v1460 = vpack.c.b16 %v1298, %v1296
        %v1461 = vpack.c.b16 %v1301, %v1299
        %v1462 = vpack.c.b16 %v1302, %v1300
        %v1463 = vpack.c.b16 %v1305, %v1303
        %v1464 = vpack.c.b16 %v1306, %v1304
        %v1465 = vpack.c.b16 %v1309, %v1307
        %v1466 = vpack.c.b16 %v1310, %v1308
        %v1467 = vpack.c.b16 %v1313, %v1311
        %v1468 = vpack.c.b16 %v1314, %v1312
        %v1469 = vpack.c.b16 %v1317, %v1315
        %v1470 = vpack.c.b16 %v1318, %v1316
        %v1471 = vpack.c.b16 %v1321, %v1319
        %v1472 = vpack.c.b16 %v1322, %v1320
        %v1473 = vpack.c.b16 %v1325, %v1323
        %v1474 = vpack.c.b16 %v1326, %v1324
        %v1475 = vpack.c.b16 %v1329, %v1327
        %v1476 = vpack.c.b16 %v1330, %v1328
        %v1477 = vpack.c.b16 %v1333, %v1331
        %v1478 = vpack.c.b16 %v1334, %v1332
        %v1479 = vpack.c.b16 %v1337, %v1335
        %v1480 = vpack.c.b16 %v1338, %v1336
        %v1481 = vpack.c.b16 %v1341, %v1339
        %v1482 = vpack.c.b16 %v1342, %v1340
        %v1483 = vpack.c.b16 %v1345, %v1343
        %v1484 = vpack.c.b16 %v1346, %v1344
        %v1485 = vpack.c.b16 %v1349, %v1347
        %v1486 = vpack.c.b16 %v1350, %v1348
        %v1487 = vpack.c.b16 %v1353, %v1351
        %v1488 = vpack.c.b16 %v1354, %v1352
        %v1489 = vpack.c.b16 %v1357, %v1355
        %v1490 = vpack.c.b16 %v1358, %v1356
        %v1491 = vpack.c.b16 %v1361, %v1359
        %v1492 = vpack.c.b16 %v1362, %v1360
        %v1493 = vpack.c.b16 %v1365, %v1363
        %v1494 = vpack.c.b16 %v1366, %v1364
        %v1495 = vpack.c.b16 %v1369, %v1367
        %v1496 = vpack.c.b16 %v1370, %v1368
        %v1497 = vpack.c.b16 %v1373, %v1371
        %v1498 = vpack.c.b16 %v1374, %v1372
        %v1499 = vpack.c.b16 %v1377, %v1375
        %v1500 = vpack.c.b16 %v1378, %v1376
        %v1501 = vpack.c.b16 %v1381, %v1379
        %v1502 = vpack.c.b16 %v1382, %v1380
        %v1503 = vpack.c.b16 %v1385, %v1383
        %v1504 = vpack.c.b16 %v1386, %v1384
        %v1505 = vpack.c.b16 %v1389, %v1387
        %v1506 = vpack.c.b16 %v1390, %v1388
        %v1507 = vpack.c.b16 %v1393, %v1391
        %v1508 = vpack.c.b16 %v1394, %v1392
        %v1509 = vpack.c.b16 %v1397, %v1395
        %v1510 = vpack.c.b16 %v1398, %v1396
        %1623 = vmatprep.subr.bf16.mxu0 %v1414
        %1624 = vmatpush1.bf16.msra.mxu0 %v1413
        %1625 = vmatprep.subr.bf16.mxu0 %v1412
        %1626 = vmatpush1.bf16.msra.mxu0 %v1411
        %1627 = vmatprep.subr.bf16.mxu0 %v1410
        %1628 = vmatpush1.bf16.msra.mxu0 %v1409
        %1629 = vmatprep.subr.bf16.mxu0 %v1408
        %1630 = vmatpush1.bf16.msra.mxu0 %v1407
        %1631 = vmatprep.subr.bf16.mxu0 %v1406
        %1632 = vmatpush1.bf16.msra.mxu0 %v1405
        %1633 = vmatprep.subr.bf16.mxu0 %v1404
        %1634 = vmatpush1.bf16.msra.mxu0 %v1403
        %1635 = vmatprep.subr.bf16.mxu0 %v1402
        %1636 = vmatpush1.bf16.msra.mxu0 %v1401
        %1637 = vmatprep.subr.bf16.mxu0 %v1400
        %1638 = vmatpush1.bf16.msra.mxu0 %v1399
        %1639 = vmatprep.subr.bf16.mxu0 %v1430
        %1640 = vmatpush2.bf16.msra.mxu0 %v1429
        %1641 = vmatprep.subr.bf16.mxu0 %v1428
        %1642 = vmatpush2.bf16.msra.mxu0 %v1427
        %1643 = vmatprep.subr.bf16.mxu0 %v1426
        %1644 = vmatpush2.bf16.msra.mxu0 %v1425
        %1645 = vmatprep.subr.bf16.mxu0 %v1424
        %1646 = vmatpush2.bf16.msra.mxu0 %v1423
        %1647 = vmatprep.subr.bf16.mxu0 %v1422
        %1648 = vmatpush2.bf16.msra.mxu0 %v1421
        %1649 = vmatprep.subr.bf16.mxu0 %v1420
        %1650 = vmatpush2.bf16.msra.mxu0 %v1419
        %1651 = vmatprep.subr.bf16.mxu0 %v1418
        %1652 = vmatpush2.bf16.msra.mxu0 %v1417
        %1653 = vmatprep.subr.bf16.mxu0 %v1416
        %1654 = vmatpush2.bf16.msra.mxu0 %v1415
        %1655 = vmatprep.mubr.bf16.mxu0 %v945
        %1656 = vmatmul.mubr.bf16.gmra.mxu0 %v944
        %v1657 = vpop.f32.mrf.mxu0
        %v1658 = vadd.f32 0.0, %v1657
        %v1659 = vpop.f32.mrf.mxu0
        %v1660 = vadd.f32 0.0, %v1659
        %v1661 = vpop.f32.mrf.mxu0
        %v1662 = vpop.f32.mrf.mxu0
        %1663 = vdwg.mxu0
        %1664 = vmatprep.subr.bf16.mxu0 %v1446
        %1665 = vmatpush1.bf16.msra.mxu0 %v1445
        %1666 = vmatprep.subr.bf16.mxu0 %v1444
        %1667 = vmatpush1.bf16.msra.mxu0 %v1443
        %1668 = vmatprep.subr.bf16.mxu0 %v1442
        %1669 = vmatpush1.bf16.msra.mxu0 %v1441
        %1670 = vmatprep.subr.bf16.mxu0 %v1440
        %1671 = vmatpush1.bf16.msra.mxu0 %v1439
        %1672 = vmatprep.subr.bf16.mxu0 %v1438
        %1673 = vmatpush1.bf16.msra.mxu0 %v1437
        %1674 = vmatprep.subr.bf16.mxu0 %v1436
        %1675 = vmatpush1.bf16.msra.mxu0 %v1435
        %1676 = vmatprep.subr.bf16.mxu0 %v1434
        %1677 = vmatpush1.bf16.msra.mxu0 %v1433
        %1678 = vmatprep.subr.bf16.mxu0 %v1432
        %1679 = vmatpush1.bf16.msra.mxu0 %v1431
        %1680 = vmatprep.subr.bf16.mxu0 %v1462
        %1681 = vmatpush2.bf16.msra.mxu0 %v1461
        %1682 = vmatprep.subr.bf16.mxu0 %v1460
        %1683 = vmatpush2.bf16.msra.mxu0 %v1459
        %1684 = vmatprep.subr.bf16.mxu0 %v1458
        %1685 = vmatpush2.bf16.msra.mxu0 %v1457
        %1686 = vmatprep.subr.bf16.mxu0 %v1456
        %1687 = vmatpush2.bf16.msra.mxu0 %v1455
        %1688 = vmatprep.subr.bf16.mxu0 %v1454
        %1689 = vmatpush2.bf16.msra.mxu0 %v1453
        %1690 = vmatprep.subr.bf16.mxu0 %v1452
        %1691 = vmatpush2.bf16.msra.mxu0 %v1451
        %1692 = vmatprep.subr.bf16.mxu0 %v1450
        %1693 = vmatpush2.bf16.msra.mxu0 %v1449
        %1694 = vmatprep.subr.bf16.mxu0 %v1448
        %1695 = vmatpush2.bf16.msra.mxu0 %v1447
        %1696 = vmatprep.mubr.bf16.mxu0 %v947
        %1697 = vmatmul.mubr.bf16.gmra.mxu0 %v946
        %v1698 = vpop.f32.mrf.mxu0
        %v1699 = vadd.f32 %v1658, %v1698
        %v1700 = vpop.f32.mrf.mxu0
        %v1701 = vadd.f32 %v1660, %v1700
        %v1702 = vpop.f32.mrf.mxu0
        %v1703 = vpop.f32.mrf.mxu0
        %1704 = vdwg.mxu0
        %1705 = vmatprep.subr.bf16.mxu0 %v1478
        %1706 = vmatpush1.bf16.msra.mxu0 %v1477
        %1707 = vmatprep.subr.bf16.mxu0 %v1476
        %1708 = vmatpush1.bf16.msra.mxu0 %v1475
        %1709 = vmatprep.subr.bf16.mxu0 %v1474
        %1710 = vmatpush1.bf16.msra.mxu0 %v1473
        %1711 = vmatprep.subr.bf16.mxu0 %v1472
        %1712 = vmatpush1.bf16.msra.mxu0 %v1471
        %1713 = vmatprep.subr.bf16.mxu0 %v1470
        %1714 = vmatpush1.bf16.msra.mxu0 %v1469
        %1715 = vmatprep.subr.bf16.mxu0 %v1468
        %1716 = vmatpush1.bf16.msra.mxu0 %v1467
        %1717 = vmatprep.subr.bf16.mxu0 %v1466
        %1718 = vmatpush1.bf16.msra.mxu0 %v1465
        %1719 = vmatprep.subr.bf16.mxu0 %v1464
        %1720 = vmatpush1.bf16.msra.mxu0 %v1463
        %1721 = vmatprep.subr.bf16.mxu0 %v1494
        %1722 = vmatpush2.bf16.msra.mxu0 %v1493
        %1723 = vmatprep.subr.bf16.mxu0 %v1492
        %1724 = vmatpush2.bf16.msra.mxu0 %v1491
        %1725 = vmatprep.subr.bf16.mxu0 %v1490
        %1726 = vmatpush2.bf16.msra.mxu0 %v1489
        %1727 = vmatprep.subr.bf16.mxu0 %v1488
        %1728 = vmatpush2.bf16.msra.mxu0 %v1487
        %1729 = vmatprep.subr.bf16.mxu0 %v1486
        %1730 = vmatpush2.bf16.msra.mxu0 %v1485
        %1731 = vmatprep.subr.bf16.mxu0 %v1484
        %1732 = vmatpush2.bf16.msra.mxu0 %v1483
        %1733 = vmatprep.subr.bf16.mxu0 %v1482
        %1734 = vmatpush2.bf16.msra.mxu0 %v1481
        %1735 = vmatprep.subr.bf16.mxu0 %v1480
        %1736 = vmatpush2.bf16.msra.mxu0 %v1479
        %1737 = vmatprep.mubr.bf16.mxu0 %v949
        %1738 = vmatmul.mubr.bf16.gmra.mxu0 %v948
        %v1739 = vpop.f32.mrf.mxu0
        %v1740 = vadd.f32 %v1699, %v1739
        %v1741 = vpop.f32.mrf.mxu0
        %v1742 = vadd.f32 %v1701, %v1741
        %v1743 = vpop.f32.mrf.mxu0
        %v1744 = vpop.f32.mrf.mxu0
        %1745 = vdwg.mxu0
        %1746 = vmatprep.subr.bf16.mxu0 %v1510
        %1747 = vmatpush1.bf16.msra.mxu0 %v1509
        %1748 = vmatprep.subr.bf16.mxu0 %v1508
        %1749 = vmatpush1.bf16.msra.mxu0 %v1507
        %1750 = vmatprep.subr.bf16.mxu0 %v1506
        %1751 = vmatpush1.bf16.msra.mxu0 %v1505
        %1752 = vmatprep.subr.bf16.mxu0 %v1504
        %1753 = vmatpush1.bf16.msra.mxu0 %v1503
        %1754 = vmatprep.subr.bf16.mxu0 %v1502
        %1755 = vmatpush1.bf16.msra.mxu0 %v1501
        %1756 = vmatprep.subr.bf16.mxu0 %v1500
        %1757 = vmatpush1.bf16.msra.mxu0 %v1499
        %1758 = vmatprep.subr.bf16.mxu0 %v1498
        %1759 = vmatpush1.bf16.msra.mxu0 %v1497
        %1760 = vmatprep.subr.bf16.mxu0 %v1496
        %1761 = vmatpush1.bf16.msra.mxu0 %v1495
        %1762 = vmatprep.subr.bf16.mxu0 0
        %1763 = vmatpush2.bf16.msra.mxu0 0
        %1764 = vmatprep.subr.bf16.mxu0 0
        %1765 = vmatpush2.bf16.msra.mxu0 0
        %1766 = vmatprep.subr.bf16.mxu0 0
        %1767 = vmatpush2.bf16.msra.mxu0 0
        %1768 = vmatprep.subr.bf16.mxu0 0
        %1769 = vmatpush2.bf16.msra.mxu0 0
        %1770 = vmatprep.subr.bf16.mxu0 0
        %1771 = vmatpush2.bf16.msra.mxu0 0
        %1772 = vmatprep.subr.bf16.mxu0 0
        %1773 = vmatpush2.bf16.msra.mxu0 0
        %1774 = vmatprep.subr.bf16.mxu0 0
        %1775 = vmatpush2.bf16.msra.mxu0 0
        %1776 = vmatprep.subr.bf16.mxu0 0
        %1777 = vmatpush2.bf16.msra.mxu0 0
        %1778 = vmatprep.mubr.bf16.mxu0 0
        %1779 = vmatmul.mubr.bf16.gmra.mxu0 %v950
        %v1780 = vpop.f32.mrf.mxu0
        %v1781 = vadd.f32 %v1740, %v1780
        %v1782 = vpop.f32.mrf.mxu0
        %v1783 = vadd.f32 %v1742, %v1782
        %v1784 = vpop.f32.mrf.mxu0
        %v1785 = vpop.f32.mrf.mxu0
        %1786 = vdwg.mxu0
        %v1787 = vpack.c.bf16 %v1781, %v1781
        %v1788 = vpack.c.bf16 %v1783, %v1783
        %v1789 = vld [vmem:[%s4] sm:$0xf]
        %v1790 = vld [vmem:[%s4 + $0x4] sm:$0xf]
        %v1791 = vld [vmem:[%s4 + $0x8] sm:$0xf]
        %v1792 = vld [vmem:[%s4 + $0xc] sm:$0xf]
        %v1793 = vld [vmem:[%s4 + $0x10] sm:$0xf]
        %v1794 = vld [vmem:[%s4 + $0x14] sm:$0xf]
        %v1795 = vld [vmem:[%s4 + $0x18] sm:$0xf]
        %v1796 = vld [vmem:[%s4 + $0x1c] sm:$0xf]
        %v1797 = vld [vmem:[%s4 + $0x20] sm:$0xf]
        %v1798 = vld [vmem:[%s4 + $0x24] sm:$0xf]
        %v1799 = vld [vmem:[%s4 + $0x28] sm:$0xf]
        %v1800 = vld [vmem:[%s4 + $0x2c] sm:$0xf]
        %v1801 = vld [vmem:[%s4 + $0x30] sm:$0xf]
        %v1802 = vld [vmem:[%s4 + $0x34] sm:$0xf]
        %v1803 = vld [vmem:[%s4 + $0x38] sm:$0xf]
        %v1804 = vld [vmem:[%s4 + $0x3c] sm:$0xf]
        %v1805 = vld [vmem:[%s4 + $0x40] sm:$0xf]
        %v1806 = vld [vmem:[%s4 + $0x44] sm:$0xf]
        %v1807 = vld [vmem:[%s4 + $0x48] sm:$0xf]
        %v1808 = vld [vmem:[%s4 + $0x4c] sm:$0xf]
        %v1809 = vld [vmem:[%s4 + $0x50] sm:$0xf]
        %v1810 = vld [vmem:[%s4 + $0x54] sm:$0xf]
        %v1811 = vld [vmem:[%s4 + $0x58] sm:$0xf]
        %v1812 = vld [vmem:[%s4 + $0x5c] sm:$0xf]
        %v1813 = vld [vmem:[%s4 + $0x60] sm:$0x3]
        %v1839 = vunpack.c.l.b16 %v1789
        %v1840 = vunpack.c.l.b16 %v1790
        %v1841 = vunpack.c.l.b16 %v1791
        %v1842 = vunpack.c.l.b16 %v1792
        %v1843 = vunpack.c.l.b16 %v1793
        %v1844 = vunpack.c.l.b16 %v1794
        %v1845 = vunpack.c.l.b16 %v1795
        %v1846 = vunpack.c.l.b16 %v1796
        %v1847 = vunpack.c.l.b16 %v1797
        %v1848 = vunpack.c.l.b16 %v1798
        %v1849 = vunpack.c.l.b16 %v1799
        %v1850 = vunpack.c.l.b16 %v1800
        %v1851 = vunpack.c.l.b16 %v1801
        %v1852 = vunpack.c.l.b16 %v1802
        %v1853 = vunpack.c.l.b16 %v1803
        %v1854 = vunpack.c.l.b16 %v1804
        %v1855 = vunpack.c.l.b16 %v1805
        %v1856 = vunpack.c.l.b16 %v1806
        %v1857 = vunpack.c.l.b16 %v1807
        %v1858 = vunpack.c.l.b16 %v1808
        %v1859 = vunpack.c.l.b16 %v1809
        %v1860 = vunpack.c.l.b16 %v1810
        %v1861 = vunpack.c.l.b16 %v1811
        %v1862 = vunpack.c.l.b16 %v1812
        %v1863 = vunpack.c.l.b16 %v1813
        %v1864 = vpack.c.b16 %v1840, %v1839
        %v1865 = vpack.c.b16 %v1842, %v1841
        %v1866 = vpack.c.b16 %v1844, %v1843
        %v1867 = vpack.c.b16 %v1846, %v1845
        %v1868 = vpack.c.b16 %v1848, %v1847
        %v1869 = vpack.c.b16 %v1850, %v1849
        %v1870 = vpack.c.b16 %v1852, %v1851
        %v1871 = vpack.c.b16 %v1854, %v1853
        %v1872 = vpack.c.b16 %v1856, %v1855
        %v1873 = vpack.c.b16 %v1858, %v1857
        %v1874 = vpack.c.b16 %v1860, %v1859
        %v1875 = vpack.c.b16 %v1862, %v1861
        %v1876 = vpack.c.b16 %v1863, %v1863
        %vm1889 = vcmask 556032
        %v1891 = vsel %vm1889, %v1788, 0
        %vm1893 = vcmask 1041408
        %v1895 = vsel %vm1893, %v1876, 0
        %1897 = vmatprep.subr.bf16.mxu0 0
        %1898 = vmatpush1.bf16.msra.mxu0 %v1871
        %1899 = vmatprep.subr.bf16.mxu0 0
        %1900 = vmatpush1.bf16.msra.mxu0 %v1870
        %1901 = vmatprep.subr.bf16.mxu0 0
        %1902 = vmatpush1.bf16.msra.mxu0 %v1869
        %1903 = vmatprep.subr.bf16.mxu0 0
        %1904 = vmatpush1.bf16.msra.mxu0 %v1868
        %1905 = vmatprep.subr.bf16.mxu0 0
        %1906 = vmatpush1.bf16.msra.mxu0 %v1867
        %1907 = vmatprep.subr.bf16.mxu0 0
        %1908 = vmatpush1.bf16.msra.mxu0 %v1866
        %1909 = vmatprep.subr.bf16.mxu0 0
        %1910 = vmatpush1.bf16.msra.mxu0 %v1865
        %1911 = vmatprep.subr.bf16.mxu0 0
        %1912 = vmatpush1.bf16.msra.mxu0 %v1864
        %1913 = vmatprep.subr.bf16.mxu0 0
        %1914 = vmatpush2.bf16.msra.mxu0 0
        %1915 = vmatprep.subr.bf16.mxu0 0
        %1916 = vmatpush2.bf16.msra.mxu0 0
        %1917 = vmatprep.subr.bf16.mxu0 0
        %1918 = vmatpush2.bf16.msra.mxu0 0
        %1919 = vmatprep.subr.bf16.mxu0 0
        %1920 = vmatpush2.bf16.msra.mxu0 %v1895
        %1921 = vmatprep.subr.bf16.mxu0 0
        %1922 = vmatpush2.bf16.msra.mxu0 %v1875
        %1923 = vmatprep.subr.bf16.mxu0 0
        %1924 = vmatpush2.bf16.msra.mxu0 %v1874
        %1925 = vmatprep.subr.bf16.mxu0 0
        %1926 = vmatpush2.bf16.msra.mxu0 %v1873
        %1927 = vmatprep.subr.bf16.mxu0 0
        %1928 = vmatpush2.bf16.msra.mxu0 %v1872
        %1929 = vmatprep.mubr.bf16.mxu0 %v1891
        %1930 = vmatmul.mubr.bf16.gmra.mxu0 %v1787
        %v1931 = vpop.f32.mrf.mxu0
        %v1932 = vadd.f32 0.0, %v1931
        %v1933 = vpop.f32.mrf.mxu0
        %v1934 = vpop.f32.mrf.mxu0
        %v1935 = vpop.f32.mrf.mxu0
        %1936 = vdwg.mxu0
        %v1937 = vpack.c.bf16 %v1932, %v1932
        %v1938 = vld [vmem:[%s5] sm:$0xf]
        %v1939 = vld [vmem:[%s5 + $0x4] sm:$0xf]
        %s1940 = scalar_lea.vmem %s4, 100
        %v1941 = vld [vmem:[%s1940] sm:$0xf]
        %v1942 = vld [vmem:[%s1940 + $0x4] sm:$0xf]
        %v1943 = vld [vmem:[%s1940 + $0x8] sm:$0xf]
        %v1944 = vld [vmem:[%s1940 + $0xc] sm:$0xf]
        %v1945 = vld [vmem:[%s1940 + $0x10] sm:$0xf]
        %v1946 = vld [vmem:[%s1940 + $0x14] sm:$0xf]
        %v1947 = vld [vmem:[%s1940 + $0x18] sm:$0xf]
        %v1948 = vld [vmem:[%s1940 + $0x1c] sm:$0xf]
        %v1949 = vld [vmem:[%s1940 + $0x20] sm:$0xf]
        %v1950 = vld [vmem:[%s1940 + $0x24] sm:$0xf]
        %v1951 = vld [vmem:[%s1940 + $0x28] sm:$0xf]
        %v1952 = vld [vmem:[%s1940 + $0x2c] sm:$0xf]
        %v1953 = vld [vmem:[%s1940 + $0x30] sm:$0xf]
        %v1954 = vld [vmem:[%s1940 + $0x34] sm:$0xf]
        %v1955 = vld [vmem:[%s1940 + $0x38] sm:$0xf]
        %v1956 = vld [vmem:[%s1940 + $0x3c] sm:$0xf]
        %v1957 = vld [vmem:[%s1940 + $0x40] sm:$0xf]
        %v1958 = vld [vmem:[%s1940 + $0x44] sm:$0xf]
        %v1959 = vld [vmem:[%s1940 + $0x48] sm:$0xf]
        %v1960 = vld [vmem:[%s1940 + $0x4c] sm:$0xf]
        %v1961 = vld [vmem:[%s1940 + $0x50] sm:$0xf]
        %v1962 = vld [vmem:[%s1940 + $0x54] sm:$0xf]
        %v1963 = vld [vmem:[%s1940 + $0x58] sm:$0xf]
        %v1964 = vld [vmem:[%s1940 + $0x5c] sm:$0xf]
        %v1965 = vld [vmem:[%s1940 + $0x60] sm:$0x3]
        %v1991 = vunpack.c.l.b16 %v1941
        %v1992 = vunpack.c.l.b16 %v1942
        %v1993 = vunpack.c.l.b16 %v1943
        %v1994 = vunpack.c.l.b16 %v1944
        %v1995 = vunpack.c.l.b16 %v1945
        %v1996 = vunpack.c.l.b16 %v1946
        %v1997 = vunpack.c.l.b16 %v1947
        %v1998 = vunpack.c.l.b16 %v1948
        %v1999 = vunpack.c.l.b16 %v1949
        %v2000 = vunpack.c.l.b16 %v1950
        %v2001 = vunpack.c.l.b16 %v1951
        %v2002 = vunpack.c.l.b16 %v1952
        %v2003 = vunpack.c.l.b16 %v1953
        %v2004 = vunpack.c.l.b16 %v1954
        %v2005 = vunpack.c.l.b16 %v1955
        %v2006 = vunpack.c.l.b16 %v1956
        %v2007 = vunpack.c.l.b16 %v1957
        %v2008 = vunpack.c.l.b16 %v1958
        %v2009 = vunpack.c.l.b16 %v1959
        %v2010 = vunpack.c.l.b16 %v1960
        %v2011 = vunpack.c.l.b16 %v1961
        %v2012 = vunpack.c.l.b16 %v1962
        %v2013 = vunpack.c.l.b16 %v1963
        %v2014 = vunpack.c.l.b16 %v1964
        %v2015 = vunpack.c.l.b16 %v1965
        %v2016 = vpack.c.b16 %v1992, %v1991
        %v2017 = vpack.c.b16 %v1994, %v1993
        %v2018 = vpack.c.b16 %v1996, %v1995
        %v2019 = vpack.c.b16 %v1998, %v1997
        %v2020 = vpack.c.b16 %v2000, %v1999
        %v2021 = vpack.c.b16 %v2002, %v2001
        %v2022 = vpack.c.b16 %v2004, %v2003
        %v2023 = vpack.c.b16 %v2006, %v2005
        %v2024 = vpack.c.b16 %v2008, %v2007
        %v2025 = vpack.c.b16 %v2010, %v2009
        %v2026 = vpack.c.b16 %v2012, %v2011
        %v2027 = vpack.c.b16 %v2014, %v2013
        %v2028 = vpack.c.b16 %v2015, %v2015
        %v2042 = vsel %vm1893, %v2028, 0
        %2044 = vmatprep.subr.bf16.mxu0 0
        %2045 = vmatpush1.bf16.msra.mxu0 %v2023
        %2046 = vmatprep.subr.bf16.mxu0 0
        %2047 = vmatpush1.bf16.msra.mxu0 %v2022
        %2048 = vmatprep.subr.bf16.mxu0 0
        %2049 = vmatpush1.bf16.msra.mxu0 %v2021
        %2050 = vmatprep.subr.bf16.mxu0 0
        %2051 = vmatpush1.bf16.msra.mxu0 %v2020
        %2052 = vmatprep.subr.bf16.mxu0 0
        %2053 = vmatpush1.bf16.msra.mxu0 %v2019
        %2054 = vmatprep.subr.bf16.mxu0 0
        %2055 = vmatpush1.bf16.msra.mxu0 %v2018
        %2056 = vmatprep.subr.bf16.mxu0 0
        %2057 = vmatpush1.bf16.msra.mxu0 %v2017
        %2058 = vmatprep.subr.bf16.mxu0 0
        %2059 = vmatpush1.bf16.msra.mxu0 %v2016
        %2060 = vmatprep.subr.bf16.mxu0 0
        %2061 = vmatpush2.bf16.msra.mxu0 0
        %2062 = vmatprep.subr.bf16.mxu0 0
        %2063 = vmatpush2.bf16.msra.mxu0 0
        %2064 = vmatprep.subr.bf16.mxu0 0
        %2065 = vmatpush2.bf16.msra.mxu0 0
        %2066 = vmatprep.subr.bf16.mxu0 0
        %2067 = vmatpush2.bf16.msra.mxu0 %v2042
        %2068 = vmatprep.subr.bf16.mxu0 0
        %2069 = vmatpush2.bf16.msra.mxu0 %v2027
        %2070 = vmatprep.subr.bf16.mxu0 0
        %2071 = vmatpush2.bf16.msra.mxu0 %v2026
        %2072 = vmatprep.subr.bf16.mxu0 0
        %2073 = vmatpush2.bf16.msra.mxu0 %v2025
        %2074 = vmatprep.subr.bf16.mxu0 0
        %2075 = vmatpush2.bf16.msra.mxu0 %v2024
        %2076 = vmatprep.mubr.bf16.mxu0 %v1891
        %2077 = vmatmul.mubr.bf16.gmra.mxu0 %v1787
        %v2078 = vpop.f32.mrf.mxu0
        %v2079 = vadd.f32 0.0, %v2078
        %v2080 = vpop.f32.mrf.mxu0
        %v2081 = vpop.f32.mrf.mxu0
        %v2082 = vpop.f32.mrf.mxu0
        %2083 = vdwg.mxu0
        %v2084 = vpack.c.bf16 %v2079, %v2079
        %s2085 = scalar_lea.vmem %s5, 8
        %v2086 = vld [vmem:[%s2085] sm:$0xf]
        %v2087 = vld [vmem:[%s2085 + $0x4] sm:$0xf]
        %v2090 = vunpack.c.l.b16 %v2086
        %v2091 = vunpack.c.l.b16 %v2087
        %v2092 = vpack.c.b16 %v2091, %v2090
        %vm2093 = vcmask 48128
        %v2095 = vsel %vm2093, %v2092, 0
        %vm2097 = vcmask 1042432
        %v2099 = vsel %vm2097, %v2084, 0
        %2101 = vmatprep.subr.bf16.mxu0 0
        %2102 = vmatpush1.bf16.msra.mxu0 0
        %2103 = vmatprep.subr.bf16.mxu0 0
        %2104 = vmatpush1.bf16.msra.mxu0 0
        %2105 = vmatprep.subr.bf16.mxu0 0
        %2106 = vmatpush1.bf16.msra.mxu0 0
        %2107 = vmatprep.subr.bf16.mxu0 0
        %2108 = vmatpush1.bf16.msra.mxu0 0
        %2109 = vmatprep.subr.bf16.mxu0 0
        %2110 = vmatpush1.bf16.msra.mxu0 0
        %2111 = vmatprep.subr.bf16.mxu0 0
        %2112 = vmatpush1.bf16.msra.mxu0 0
        %2113 = vmatprep.subr.bf16.mxu0 0
        %2114 = vmatpush1.bf16.msra.mxu0 0
        %2115 = vmatprep.subr.bf16.mxu0 0
        %2116 = vmatpush1.bf16.msra.mxu0 %v2099
        %2117 = vmatprep.subr.bf16.mxu0 0
        %2118 = vmatpush2.bf16.msra.mxu0 0
        %2119 = vmatprep.subr.bf16.mxu0 0
        %2120 = vmatpush2.bf16.msra.mxu0 0
        %2121 = vmatprep.subr.bf16.mxu0 0
        %2122 = vmatpush2.bf16.msra.mxu0 0
        %2123 = vmatprep.subr.bf16.mxu0 0
        %2124 = vmatpush2.bf16.msra.mxu0 0
        %2125 = vmatprep.subr.bf16.mxu0 0
        %2126 = vmatpush2.bf16.msra.mxu0 0
        %2127 = vmatprep.subr.bf16.mxu0 0
        %2128 = vmatpush2.bf16.msra.mxu0 0
        %2129 = vmatprep.subr.bf16.mxu0 0
        %2130 = vmatpush2.bf16.msra.mxu0 0
        %2131 = vmatprep.subr.bf16.mxu0 0
        %2132 = vmatpush2.bf16.msra.mxu0 0
        %2133 = vmatprep.mubr.bf16.mxu0 0
        %2134 = vmatmul.mubr.bf16.gmra.mxu0 %v2095
        %v2135 = vpop.f32.mrf.mxu0
        %v2136 = vadd.f32 0.0, %v2135
        %v2137 = vpop.f32.mrf.mxu0
        %v2138 = vpop.f32.mrf.mxu0
        %v2139 = vadd.f32 0.0, %v2138
        %v2140 = vpop.f32.mrf.mxu0
        %2141 = vdwg.mxu0
        %v2144 = vunpack.c.l.b16 %v1938
        %v2145 = vunpack.c.l.b16 %v1939
        %v2146 = vpack.c.b16 %v2145, %v2144
        %v2148 = vsel %vm2093, %v2146, 0
        %v2151 = vsel %vm2097, %v1937, 0
        %2153 = vmatprep.subr.bf16.mxu0 0
        %2154 = vmatpush1.bf16.msra.mxu0 0
        %2155 = vmatprep.subr.bf16.mxu0 0
        %2156 = vmatpush1.bf16.msra.mxu0 0
        %2157 = vmatprep.subr.bf16.mxu0 0
        %2158 = vmatpush1.bf16.msra.mxu0 0
        %2159 = vmatprep.subr.bf16.mxu0 0
        %2160 = vmatpush1.bf16.msra.mxu0 0
        %2161 = vmatprep.subr.bf16.mxu0 0
        %2162 = vmatpush1.bf16.msra.mxu0 0
        %2163 = vmatprep.subr.bf16.mxu0 0
        %2164 = vmatpush1.bf16.msra.mxu0 0
        %2165 = vmatprep.subr.bf16.mxu0 0
        %2166 = vmatpush1.bf16.msra.mxu0 0
        %2167 = vmatprep.subr.bf16.mxu0 0
        %2168 = vmatpush1.bf16.msra.mxu0 %v2151
        %2169 = vmatprep.subr.bf16.mxu0 0
        %2170 = vmatpush2.bf16.msra.mxu0 0
        %2171 = vmatprep.subr.bf16.mxu0 0
        %2172 = vmatpush2.bf16.msra.mxu0 0
        %2173 = vmatprep.subr.bf16.mxu0 0
        %2174 = vmatpush2.bf16.msra.mxu0 0
        %2175 = vmatprep.subr.bf16.mxu0 0
        %2176 = vmatpush2.bf16.msra.mxu0 0
        %2177 = vmatprep.subr.bf16.mxu0 0
        %2178 = vmatpush2.bf16.msra.mxu0 0
        %2179 = vmatprep.subr.bf16.mxu0 0
        %2180 = vmatpush2.bf16.msra.mxu0 0
        %2181 = vmatprep.subr.bf16.mxu0 0
        %2182 = vmatpush2.bf16.msra.mxu0 0
        %2183 = vmatprep.subr.bf16.mxu0 0
        %2184 = vmatpush2.bf16.msra.mxu0 0
        %2185 = vmatprep.mubr.bf16.mxu0 0
        %2186 = vmatmul.mubr.bf16.gmra.mxu0 %v2148
        %v2187 = vpop.f32.mrf.mxu0
        %v2188 = vadd.f32 %v2136, %v2187
        %v2189 = vpop.f32.mrf.mxu0
        %v2190 = vpop.f32.mrf.mxu0
        %v2191 = vadd.f32 %v2139, %v2190
        %v2192 = vpop.f32.mrf.mxu0
        %2193 = vdwg.mxu0
        %s2194 = scalar_lea.vmem %s4, 200
        %v2195 = vld [vmem:[%s2194] sm:$0xf]
        %v2196 = vld [vmem:[%s2194 + $0x4] sm:$0xf]
        %v2197 = vld [vmem:[%s2194 + $0x8] sm:$0xf]
        %v2198 = vld [vmem:[%s2194 + $0xc] sm:$0xf]
        %v2199 = vld [vmem:[%s2194 + $0x10] sm:$0xf]
        %v2200 = vld [vmem:[%s2194 + $0x14] sm:$0xf]
        %v2201 = vld [vmem:[%s2194 + $0x18] sm:$0xf]
        %v2202 = vld [vmem:[%s2194 + $0x1c] sm:$0xf]
        %v2203 = vld [vmem:[%s2194 + $0x20] sm:$0xf]
        %v2204 = vld [vmem:[%s2194 + $0x24] sm:$0xf]
        %v2205 = vld [vmem:[%s2194 + $0x28] sm:$0xf]
        %v2206 = vld [vmem:[%s2194 + $0x2c] sm:$0xf]
        %v2207 = vld [vmem:[%s2194 + $0x30] sm:$0xf]
        %v2208 = vld [vmem:[%s2194 + $0x34] sm:$0xf]
        %v2209 = vld [vmem:[%s2194 + $0x38] sm:$0xf]
        %v2210 = vld [vmem:[%s2194 + $0x3c] sm:$0xf]
        %v2211 = vld [vmem:[%s2194 + $0x40] sm:$0xf]
        %v2212 = vld [vmem:[%s2194 + $0x44] sm:$0xf]
        %v2213 = vld [vmem:[%s2194 + $0x48] sm:$0xf]
        %v2214 = vld [vmem:[%s2194 + $0x4c] sm:$0xf]
        %v2215 = vld [vmem:[%s2194 + $0x50] sm:$0xf]
        %v2216 = vld [vmem:[%s2194 + $0x54] sm:$0xf]
        %v2217 = vld [vmem:[%s2194 + $0x58] sm:$0xf]
        %v2218 = vld [vmem:[%s2194 + $0x5c] sm:$0xf]
        %v2219 = vld [vmem:[%s2194 + $0x60] sm:$0x3]
        %v2245 = vunpack.c.l.b16 %v2195
        %v2246 = vunpack.c.l.b16 %v2196
        %v2247 = vunpack.c.l.b16 %v2197
        %v2248 = vunpack.c.l.b16 %v2198
        %v2249 = vunpack.c.l.b16 %v2199
        %v2250 = vunpack.c.l.b16 %v2200
        %v2251 = vunpack.c.l.b16 %v2201
        %v2252 = vunpack.c.l.b16 %v2202
        %v2253 = vunpack.c.l.b16 %v2203
        %v2254 = vunpack.c.l.b16 %v2204
        %v2255 = vunpack.c.l.b16 %v2205
        %v2256 = vunpack.c.l.b16 %v2206
        %v2257 = vunpack.c.l.b16 %v2207
        %v2258 = vunpack.c.l.b16 %v2208
        %v2259 = vunpack.c.l.b16 %v2209
        %v2260 = vunpack.c.l.b16 %v2210
        %v2261 = vunpack.c.l.b16 %v2211
        %v2262 = vunpack.c.l.b16 %v2212
        %v2263 = vunpack.c.l.b16 %v2213
        %v2264 = vunpack.c.l.b16 %v2214
        %v2265 = vunpack.c.l.b16 %v2215
        %v2266 = vunpack.c.l.b16 %v2216
        %v2267 = vunpack.c.l.b16 %v2217
        %v2268 = vunpack.c.l.b16 %v2218
        %v2269 = vunpack.c.l.b16 %v2219
        %v2270 = vpack.c.b16 %v2246, %v2245
        %v2271 = vpack.c.b16 %v2248, %v2247
        %v2272 = vpack.c.b16 %v2250, %v2249
        %v2273 = vpack.c.b16 %v2252, %v2251
        %v2274 = vpack.c.b16 %v2254, %v2253
        %v2275 = vpack.c.b16 %v2256, %v2255
        %v2276 = vpack.c.b16 %v2258, %v2257
        %v2277 = vpack.c.b16 %v2260, %v2259
        %v2278 = vpack.c.b16 %v2262, %v2261
        %v2279 = vpack.c.b16 %v2264, %v2263
        %v2280 = vpack.c.b16 %v2266, %v2265
        %v2281 = vpack.c.b16 %v2268, %v2267
        %v2282 = vpack.c.b16 %v2269, %v2269
        %v2296 = vsel %vm1893, %v2282, 0
        %2298 = vmatprep.subr.bf16.mxu0 0
        %2299 = vmatpush1.bf16.msra.mxu0 %v2277
        %2300 = vmatprep.subr.bf16.mxu0 0
        %2301 = vmatpush1.bf16.msra.mxu0 %v2276
        %2302 = vmatprep.subr.bf16.mxu0 0
        %2303 = vmatpush1.bf16.msra.mxu0 %v2275
        %2304 = vmatprep.subr.bf16.mxu0 0
        %2305 = vmatpush1.bf16.msra.mxu0 %v2274
        %2306 = vmatprep.subr.bf16.mxu0 0
        %2307 = vmatpush1.bf16.msra.mxu0 %v2273
        %2308 = vmatprep.subr.bf16.mxu0 0
        %2309 = vmatpush1.bf16.msra.mxu0 %v2272
        %2310 = vmatprep.subr.bf16.mxu0 0
        %2311 = vmatpush1.bf16.msra.mxu0 %v2271
        %2312 = vmatprep.subr.bf16.mxu0 0
        %2313 = vmatpush1.bf16.msra.mxu0 %v2270
        %2314 = vmatprep.subr.bf16.mxu0 0
        %2315 = vmatpush2.bf16.msra.mxu0 0
        %2316 = vmatprep.subr.bf16.mxu0 0
        %2317 = vmatpush2.bf16.msra.mxu0 0
        %2318 = vmatprep.subr.bf16.mxu0 0
        %2319 = vmatpush2.bf16.msra.mxu0 0
        %2320 = vmatprep.subr.bf16.mxu0 0
        %2321 = vmatpush2.bf16.msra.mxu0 %v2296
        %2322 = vmatprep.subr.bf16.mxu0 0
        %2323 = vmatpush2.bf16.msra.mxu0 %v2281
        %2324 = vmatprep.subr.bf16.mxu0 0
        %2325 = vmatpush2.bf16.msra.mxu0 %v2280
        %2326 = vmatprep.subr.bf16.mxu0 0
        %2327 = vmatpush2.bf16.msra.mxu0 %v2279
        %2328 = vmatprep.subr.bf16.mxu0 0
        %2329 = vmatpush2.bf16.msra.mxu0 %v2278
        %2330 = vmatprep.mubr.bf16.mxu0 %v1891
        %2331 = vmatmul.mubr.bf16.gmra.mxu0 %v1787
        %v2332 = vpop.f32.mrf.mxu0
        %v2333 = vadd.f32 0.0, %v2332
        %v2334 = vpop.f32.mrf.mxu0
        %v2335 = vpop.f32.mrf.mxu0
        %v2336 = vpop.f32.mrf.mxu0
        %2337 = vdwg.mxu0
        %v2338 = vpack.c.bf16 %v2333, %v2333
        %s2339 = scalar_lea.vmem %s5, 16
        %v2340 = vld [vmem:[%s2339] sm:$0xf]
        %v2341 = vld [vmem:[%s2339 + $0x4] sm:$0xf]
        %v2344 = vunpack.c.l.b16 %v2340
        %v2345 = vunpack.c.l.b16 %v2341
        %v2346 = vpack.c.b16 %v2345, %v2344
        %v2348 = vsel %vm2093, %v2346, 0
        %v2351 = vsel %vm2097, %v2338, 0
        %2353 = vmatprep.subr.bf16.mxu0 0
        %2354 = vmatpush1.bf16.msra.mxu0 0
        %2355 = vmatprep.subr.bf16.mxu0 0
        %2356 = vmatpush1.bf16.msra.mxu0 0
        %2357 = vmatprep.subr.bf16.mxu0 0
        %2358 = vmatpush1.bf16.msra.mxu0 0
        %2359 = vmatprep.subr.bf16.mxu0 0
        %2360 = vmatpush1.bf16.msra.mxu0 0
        %2361 = vmatprep.subr.bf16.mxu0 0
        %2362 = vmatpush1.bf16.msra.mxu0 0
        %2363 = vmatprep.subr.bf16.mxu0 0
        %2364 = vmatpush1.bf16.msra.mxu0 0
        %2365 = vmatprep.subr.bf16.mxu0 0
        %2366 = vmatpush1.bf16.msra.mxu0 0
        %2367 = vmatprep.subr.bf16.mxu0 0
        %2368 = vmatpush1.bf16.msra.mxu0 %v2351
        %2369 = vmatprep.subr.bf16.mxu0 0
        %2370 = vmatpush2.bf16.msra.mxu0 0
        %2371 = vmatprep.subr.bf16.mxu0 0
        %2372 = vmatpush2.bf16.msra.mxu0 0
        %2373 = vmatprep.subr.bf16.mxu0 0
        %2374 = vmatpush2.bf16.msra.mxu0 0
        %2375 = vmatprep.subr.bf16.mxu0 0
        %2376 = vmatpush2.bf16.msra.mxu0 0
        %2377 = vmatprep.subr.bf16.mxu0 0
        %2378 = vmatpush2.bf16.msra.mxu0 0
        %2379 = vmatprep.subr.bf16.mxu0 0
        %2380 = vmatpush2.bf16.msra.mxu0 0
        %2381 = vmatprep.subr.bf16.mxu0 0
        %2382 = vmatpush2.bf16.msra.mxu0 0
        %2383 = vmatprep.subr.bf16.mxu0 0
        %2384 = vmatpush2.bf16.msra.mxu0 0
        %2385 = vmatprep.mubr.bf16.mxu0 0
        %2386 = vmatmul.mubr.bf16.gmra.mxu0 %v2348
        %v2387 = vpop.f32.mrf.mxu0
        %v2388 = vadd.f32 0.0, %v2387
        %v2389 = vpop.f32.mrf.mxu0
        %v2390 = vpop.f32.mrf.mxu0
        %v2391 = vadd.f32 0.0, %v2390
        %v2392 = vpop.f32.mrf.mxu0
        %2393 = vdwg.mxu0
        %v2394 = vadd.f32 %v2188, %v2388
        %v2395 = vadd.f32 %v2191, %v2391
        %s2396 = scalar_lea.vmem %s4, 300
        %v2397 = vld [vmem:[%s2396] sm:$0xf]
        %v2398 = vld [vmem:[%s2396 + $0x4] sm:$0xf]
        %v2399 = vld [vmem:[%s2396 + $0x8] sm:$0xf]
        %v2400 = vld [vmem:[%s2396 + $0xc] sm:$0xf]
        %v2401 = vld [vmem:[%s2396 + $0x10] sm:$0xf]
        %v2402 = vld [vmem:[%s2396 + $0x14] sm:$0xf]
        %v2403 = vld [vmem:[%s2396 + $0x18] sm:$0xf]
        %v2404 = vld [vmem:[%s2396 + $0x1c] sm:$0xf]
        %v2405 = vld [vmem:[%s2396 + $0x20] sm:$0xf]
        %v2406 = vld [vmem:[%s2396 + $0x24] sm:$0xf]
        %v2407 = vld [vmem:[%s2396 + $0x28] sm:$0xf]
        %v2408 = vld [vmem:[%s2396 + $0x2c] sm:$0xf]
        %v2409 = vld [vmem:[%s2396 + $0x30] sm:$0xf]
        %v2410 = vld [vmem:[%s2396 + $0x34] sm:$0xf]
        %v2411 = vld [vmem:[%s2396 + $0x38] sm:$0xf]
        %v2412 = vld [vmem:[%s2396 + $0x3c] sm:$0xf]
        %v2413 = vld [vmem:[%s2396 + $0x40] sm:$0xf]
        %v2414 = vld [vmem:[%s2396 + $0x44] sm:$0xf]
        %v2415 = vld [vmem:[%s2396 + $0x48] sm:$0xf]
        %v2416 = vld [vmem:[%s2396 + $0x4c] sm:$0xf]
        %v2417 = vld [vmem:[%s2396 + $0x50] sm:$0xf]
        %v2418 = vld [vmem:[%s2396 + $0x54] sm:$0xf]
        %v2419 = vld [vmem:[%s2396 + $0x58] sm:$0xf]
        %v2420 = vld [vmem:[%s2396 + $0x5c] sm:$0xf]
        %v2421 = vld [vmem:[%s2396 + $0x60] sm:$0x3]
        %v2447 = vunpack.c.l.b16 %v2397
        %v2448 = vunpack.c.l.b16 %v2398
        %v2449 = vunpack.c.l.b16 %v2399
        %v2450 = vunpack.c.l.b16 %v2400
        %v2451 = vunpack.c.l.b16 %v2401
        %v2452 = vunpack.c.l.b16 %v2402
        %v2453 = vunpack.c.l.b16 %v2403
        %v2454 = vunpack.c.l.b16 %v2404
        %v2455 = vunpack.c.l.b16 %v2405
        %v2456 = vunpack.c.l.b16 %v2406
        %v2457 = vunpack.c.l.b16 %v2407
        %v2458 = vunpack.c.l.b16 %v2408
        %v2459 = vunpack.c.l.b16 %v2409
        %v2460 = vunpack.c.l.b16 %v2410
        %v2461 = vunpack.c.l.b16 %v2411
        %v2462 = vunpack.c.l.b16 %v2412
        %v2463 = vunpack.c.l.b16 %v2413
        %v2464 = vunpack.c.l.b16 %v2414
        %v2465 = vunpack.c.l.b16 %v2415
        %v2466 = vunpack.c.l.b16 %v2416
        %v2467 = vunpack.c.l.b16 %v2417
        %v2468 = vunpack.c.l.b16 %v2418
        %v2469 = vunpack.c.l.b16 %v2419
        %v2470 = vunpack.c.l.b16 %v2420
        %v2471 = vunpack.c.l.b16 %v2421
        %v2472 = vpack.c.b16 %v2448, %v2447
        %v2473 = vpack.c.b16 %v2450, %v2449
        %v2474 = vpack.c.b16 %v2452, %v2451
        %v2475 = vpack.c.b16 %v2454, %v2453
        %v2476 = vpack.c.b16 %v2456, %v2455
        %v2477 = vpack.c.b16 %v2458, %v2457
        %v2478 = vpack.c.b16 %v2460, %v2459
        %v2479 = vpack.c.b16 %v2462, %v2461
        %v2480 = vpack.c.b16 %v2464, %v2463
        %v2481 = vpack.c.b16 %v2466, %v2465
        %v2482 = vpack.c.b16 %v2468, %v2467
        %v2483 = vpack.c.b16 %v2470, %v2469
        %v2484 = vpack.c.b16 %v2471, %v2471
        %v2498 = vsel %vm1893, %v2484, 0
        %2500 = vmatprep.subr.bf16.mxu0 0
        %2501 = vmatpush1.bf16.msra.mxu0 %v2479
        %2502 = vmatprep.subr.bf16.mxu0 0
        %2503 = vmatpush1.bf16.msra.mxu0 %v2478
        %2504 = vmatprep.subr.bf16.mxu0 0
        %2505 = vmatpush1.bf16.msra.mxu0 %v2477
        %2506 = vmatprep.subr.bf16.mxu0 0
        %2507 = vmatpush1.bf16.msra.mxu0 %v2476
        %2508 = vmatprep.subr.bf16.mxu0 0
        %2509 = vmatpush1.bf16.msra.mxu0 %v2475
        %2510 = vmatprep.subr.bf16.mxu0 0
        %2511 = vmatpush1.bf16.msra.mxu0 %v2474
        %2512 = vmatprep.subr.bf16.mxu0 0
        %2513 = vmatpush1.bf16.msra.mxu0 %v2473
        %2514 = vmatprep.subr.bf16.mxu0 0
        %2515 = vmatpush1.bf16.msra.mxu0 %v2472
        %2516 = vmatprep.subr.bf16.mxu0 0
        %2517 = vmatpush2.bf16.msra.mxu0 0
        %2518 = vmatprep.subr.bf16.mxu0 0
        %2519 = vmatpush2.bf16.msra.mxu0 0
        %2520 = vmatprep.subr.bf16.mxu0 0
        %2521 = vmatpush2.bf16.msra.mxu0 0
        %2522 = vmatprep.subr.bf16.mxu0 0
        %2523 = vmatpush2.bf16.msra.mxu0 %v2498
        %2524 = vmatprep.subr.bf16.mxu0 0
        %2525 = vmatpush2.bf16.msra.mxu0 %v2483
        %2526 = vmatprep.subr.bf16.mxu0 0
        %2527 = vmatpush2.bf16.msra.mxu0 %v2482
        %2528 = vmatprep.subr.bf16.mxu0 0
        %2529 = vmatpush2.bf16.msra.mxu0 %v2481
        %2530 = vmatprep.subr.bf16.mxu0 0
        %2531 = vmatpush2.bf16.msra.mxu0 %v2480
        %2532 = vmatprep.mubr.bf16.mxu0 %v1891
        %2533 = vmatmul.mubr.bf16.gmra.mxu0 %v1787
        %v2534 = vpop.f32.mrf.mxu0
        %v2535 = vadd.f32 0.0, %v2534
        %v2536 = vpop.f32.mrf.mxu0
        %v2537 = vpop.f32.mrf.mxu0
        %v2538 = vpop.f32.mrf.mxu0
        %2539 = vdwg.mxu0
        %v2540 = vpack.c.bf16 %v2535, %v2535
        %s2541 = scalar_lea.vmem %s5, 24
        %v2542 = vld [vmem:[%s2541] sm:$0xf]
        %v2543 = vld [vmem:[%s2541 + $0x4] sm:$0xf]
        %v2546 = vunpack.c.l.b16 %v2542
        %v2547 = vunpack.c.l.b16 %v2543
        %v2548 = vpack.c.b16 %v2547, %v2546
        %v2550 = vsel %vm2093, %v2548, 0
        %v2553 = vsel %vm2097, %v2540, 0
        %2555 = vmatprep.subr.bf16.mxu0 0
        %2556 = vmatpush1.bf16.msra.mxu0 0
        %2557 = vmatprep.subr.bf16.mxu0 0
        %2558 = vmatpush1.bf16.msra.mxu0 0
        %2559 = vmatprep.subr.bf16.mxu0 0
        %2560 = vmatpush1.bf16.msra.mxu0 0
        %2561 = vmatprep.subr.bf16.mxu0 0
        %2562 = vmatpush1.bf16.msra.mxu0 0
        %2563 = vmatprep.subr.bf16.mxu0 0
        %2564 = vmatpush1.bf16.msra.mxu0 0
        %2565 = vmatprep.subr.bf16.mxu0 0
        %2566 = vmatpush1.bf16.msra.mxu0 0
        %2567 = vmatprep.subr.bf16.mxu0 0
        %2568 = vmatpush1.bf16.msra.mxu0 0
        %2569 = vmatprep.subr.bf16.mxu0 0
        %2570 = vmatpush1.bf16.msra.mxu0 %v2553
        %2571 = vmatprep.subr.bf16.mxu0 0
        %2572 = vmatpush2.bf16.msra.mxu0 0
        %2573 = vmatprep.subr.bf16.mxu0 0
        %2574 = vmatpush2.bf16.msra.mxu0 0
        %2575 = vmatprep.subr.bf16.mxu0 0
        %2576 = vmatpush2.bf16.msra.mxu0 0
        %2577 = vmatprep.subr.bf16.mxu0 0
        %2578 = vmatpush2.bf16.msra.mxu0 0
        %2579 = vmatprep.subr.bf16.mxu0 0
        %2580 = vmatpush2.bf16.msra.mxu0 0
        %2581 = vmatprep.subr.bf16.mxu0 0
        %2582 = vmatpush2.bf16.msra.mxu0 0
        %2583 = vmatprep.subr.bf16.mxu0 0
        %2584 = vmatpush2.bf16.msra.mxu0 0
        %2585 = vmatprep.subr.bf16.mxu0 0
        %2586 = vmatpush2.bf16.msra.mxu0 0
        %2587 = vmatprep.mubr.bf16.mxu0 0
        %2588 = vmatmul.mubr.bf16.gmra.mxu0 %v2550
        %v2589 = vpop.f32.mrf.mxu0
        %v2590 = vadd.f32 0.0, %v2589
        %v2591 = vpop.f32.mrf.mxu0
        %v2592 = vpop.f32.mrf.mxu0
        %v2593 = vadd.f32 0.0, %v2592
        %v2594 = vpop.f32.mrf.mxu0
        %2595 = vdwg.mxu0
        %v2596 = vadd.f32 %v2394, %v2590
        %v2597 = vadd.f32 %v2395, %v2593
        %s2598 = scalar_lea.vmem %s4, 400
        %v2599 = vld [vmem:[%s2598] sm:$0xf]
        %v2600 = vld [vmem:[%s2598 + $0x4] sm:$0xf]
        %v2601 = vld [vmem:[%s2598 + $0x8] sm:$0xf]
        %v2602 = vld [vmem:[%s2598 + $0xc] sm:$0xf]
        %v2603 = vld [vmem:[%s2598 + $0x10] sm:$0xf]
        %v2604 = vld [vmem:[%s2598 + $0x14] sm:$0xf]
        %v2605 = vld [vmem:[%s2598 + $0x18] sm:$0xf]
        %v2606 = vld [vmem:[%s2598 + $0x1c] sm:$0xf]
        %v2607 = vld [vmem:[%s2598 + $0x20] sm:$0xf]
        %v2608 = vld [vmem:[%s2598 + $0x24] sm:$0xf]
        %v2609 = vld [vmem:[%s2598 + $0x28] sm:$0xf]
        %v2610 = vld [vmem:[%s2598 + $0x2c] sm:$0xf]
        %v2611 = vld [vmem:[%s2598 + $0x30] sm:$0xf]
        %v2612 = vld [vmem:[%s2598 + $0x34] sm:$0xf]
        %v2613 = vld [vmem:[%s2598 + $0x38] sm:$0xf]
        %v2614 = vld [vmem:[%s2598 + $0x3c] sm:$0xf]
        %v2615 = vld [vmem:[%s2598 + $0x40] sm:$0xf]
        %v2616 = vld [vmem:[%s2598 + $0x44] sm:$0xf]
        %v2617 = vld [vmem:[%s2598 + $0x48] sm:$0xf]
        %v2618 = vld [vmem:[%s2598 + $0x4c] sm:$0xf]
        %v2619 = vld [vmem:[%s2598 + $0x50] sm:$0xf]
        %v2620 = vld [vmem:[%s2598 + $0x54] sm:$0xf]
        %v2621 = vld [vmem:[%s2598 + $0x58] sm:$0xf]
        %v2622 = vld [vmem:[%s2598 + $0x5c] sm:$0xf]
        %v2623 = vld [vmem:[%s2598 + $0x60] sm:$0x3]
        %v2649 = vunpack.c.l.b16 %v2599
        %v2650 = vunpack.c.l.b16 %v2600
        %v2651 = vunpack.c.l.b16 %v2601
        %v2652 = vunpack.c.l.b16 %v2602
        %v2653 = vunpack.c.l.b16 %v2603
        %v2654 = vunpack.c.l.b16 %v2604
        %v2655 = vunpack.c.l.b16 %v2605
        %v2656 = vunpack.c.l.b16 %v2606
        %v2657 = vunpack.c.l.b16 %v2607
        %v2658 = vunpack.c.l.b16 %v2608
        %v2659 = vunpack.c.l.b16 %v2609
        %v2660 = vunpack.c.l.b16 %v2610
        %v2661 = vunpack.c.l.b16 %v2611
        %v2662 = vunpack.c.l.b16 %v2612
        %v2663 = vunpack.c.l.b16 %v2613
        %v2664 = vunpack.c.l.b16 %v2614
        %v2665 = vunpack.c.l.b16 %v2615
        %v2666 = vunpack.c.l.b16 %v2616
        %v2667 = vunpack.c.l.b16 %v2617
        %v2668 = vunpack.c.l.b16 %v2618
        %v2669 = vunpack.c.l.b16 %v2619
        %v2670 = vunpack.c.l.b16 %v2620
        %v2671 = vunpack.c.l.b16 %v2621
        %v2672 = vunpack.c.l.b16 %v2622
        %v2673 = vunpack.c.l.b16 %v2623
        %v2674 = vpack.c.b16 %v2650, %v2649
        %v2675 = vpack.c.b16 %v2652, %v2651
        %v2676 = vpack.c.b16 %v2654, %v2653
        %v2677 = vpack.c.b16 %v2656, %v2655
        %v2678 = vpack.c.b16 %v2658, %v2657
        %v2679 = vpack.c.b16 %v2660, %v2659
        %v2680 = vpack.c.b16 %v2662, %v2661
        %v2681 = vpack.c.b16 %v2664, %v2663
        %v2682 = vpack.c.b16 %v2666, %v2665
        %v2683 = vpack.c.b16 %v2668, %v2667
        %v2684 = vpack.c.b16 %v2670, %v2669
        %v2685 = vpack.c.b16 %v2672, %v2671
        %v2686 = vpack.c.b16 %v2673, %v2673
        %v2700 = vsel %vm1893, %v2686, 0
        %2702 = vmatprep.subr.bf16.mxu0 0
        %2703 = vmatpush1.bf16.msra.mxu0 %v2681
        %2704 = vmatprep.subr.bf16.mxu0 0
        %2705 = vmatpush1.bf16.msra.mxu0 %v2680
        %2706 = vmatprep.subr.bf16.mxu0 0
        %2707 = vmatpush1.bf16.msra.mxu0 %v2679
        %2708 = vmatprep.subr.bf16.mxu0 0
        %2709 = vmatpush1.bf16.msra.mxu0 %v2678
        %2710 = vmatprep.subr.bf16.mxu0 0
        %2711 = vmatpush1.bf16.msra.mxu0 %v2677
        %2712 = vmatprep.subr.bf16.mxu0 0
        %2713 = vmatpush1.bf16.msra.mxu0 %v2676
        %2714 = vmatprep.subr.bf16.mxu0 0
        %2715 = vmatpush1.bf16.msra.mxu0 %v2675
        %2716 = vmatprep.subr.bf16.mxu0 0
        %2717 = vmatpush1.bf16.msra.mxu0 %v2674
        %2718 = vmatprep.subr.bf16.mxu0 0
        %2719 = vmatpush2.bf16.msra.mxu0 0
        %2720 = vmatprep.subr.bf16.mxu0 0
        %2721 = vmatpush2.bf16.msra.mxu0 0
        %2722 = vmatprep.subr.bf16.mxu0 0
        %2723 = vmatpush2.bf16.msra.mxu0 0
        %2724 = vmatprep.subr.bf16.mxu0 0
        %2725 = vmatpush2.bf16.msra.mxu0 %v2700
        %2726 = vmatprep.subr.bf16.mxu0 0
        %2727 = vmatpush2.bf16.msra.mxu0 %v2685
        %2728 = vmatprep.subr.bf16.mxu0 0
        %2729 = vmatpush2.bf16.msra.mxu0 %v2684
        %2730 = vmatprep.subr.bf16.mxu0 0
        %2731 = vmatpush2.bf16.msra.mxu0 %v2683
        %2732 = vmatprep.subr.bf16.mxu0 0
        %2733 = vmatpush2.bf16.msra.mxu0 %v2682
        %2734 = vmatprep.mubr.bf16.mxu0 %v1891
        %2735 = vmatmul.mubr.bf16.gmra.mxu0 %v1787
        %v2736 = vpop.f32.mrf.mxu0
        %v2737 = vadd.f32 0.0, %v2736
        %v2738 = vpop.f32.mrf.mxu0
        %v2739 = vpop.f32.mrf.mxu0
        %v2740 = vpop.f32.mrf.mxu0
        %2741 = vdwg.mxu0
        %v2742 = vpack.c.bf16 %v2737, %v2737
        %s2743 = scalar_lea.vmem %s5, 32
        %v2744 = vld [vmem:[%s2743] sm:$0xf]
        %v2745 = vld [vmem:[%s2743 + $0x4] sm:$0xf]
        %v2748 = vunpack.c.l.b16 %v2744
        %v2749 = vunpack.c.l.b16 %v2745
        %v2750 = vpack.c.b16 %v2749, %v2748
        %v2752 = vsel %vm2093, %v2750, 0
        %v2755 = vsel %vm2097, %v2742, 0
        %2757 = vmatprep.subr.bf16.mxu0 0
        %2758 = vmatpush1.bf16.msra.mxu0 0
        %2759 = vmatprep.subr.bf16.mxu0 0
        %2760 = vmatpush1.bf16.msra.mxu0 0
        %2761 = vmatprep.subr.bf16.mxu0 0
        %2762 = vmatpush1.bf16.msra.mxu0 0
        %2763 = vmatprep.subr.bf16.mxu0 0
        %2764 = vmatpush1.bf16.msra.mxu0 0
        %2765 = vmatprep.subr.bf16.mxu0 0
        %2766 = vmatpush1.bf16.msra.mxu0 0
        %2767 = vmatprep.subr.bf16.mxu0 0
        %2768 = vmatpush1.bf16.msra.mxu0 0
        %2769 = vmatprep.subr.bf16.mxu0 0
        %2770 = vmatpush1.bf16.msra.mxu0 0
        %2771 = vmatprep.subr.bf16.mxu0 0
        %2772 = vmatpush1.bf16.msra.mxu0 %v2755
        %2773 = vmatprep.subr.bf16.mxu0 0
        %2774 = vmatpush2.bf16.msra.mxu0 0
        %2775 = vmatprep.subr.bf16.mxu0 0
        %2776 = vmatpush2.bf16.msra.mxu0 0
        %2777 = vmatprep.subr.bf16.mxu0 0
        %2778 = vmatpush2.bf16.msra.mxu0 0
        %2779 = vmatprep.subr.bf16.mxu0 0
        %2780 = vmatpush2.bf16.msra.mxu0 0
        %2781 = vmatprep.subr.bf16.mxu0 0
        %2782 = vmatpush2.bf16.msra.mxu0 0
        %2783 = vmatprep.subr.bf16.mxu0 0
        %2784 = vmatpush2.bf16.msra.mxu0 0
        %2785 = vmatprep.subr.bf16.mxu0 0
        %2786 = vmatpush2.bf16.msra.mxu0 0
        %2787 = vmatprep.subr.bf16.mxu0 0
        %2788 = vmatpush2.bf16.msra.mxu0 0
        %2789 = vmatprep.mubr.bf16.mxu0 0
        %2790 = vmatmul.mubr.bf16.gmra.mxu0 %v2752
        %v2791 = vpop.f32.mrf.mxu0
        %v2792 = vadd.f32 0.0, %v2791
        %v2793 = vpop.f32.mrf.mxu0
        %v2794 = vpop.f32.mrf.mxu0
        %v2795 = vadd.f32 0.0, %v2794
        %v2796 = vpop.f32.mrf.mxu0
        %2797 = vdwg.mxu0
        %v2798 = vadd.f32 %v2596, %v2792
        %v2799 = vadd.f32 %v2597, %v2795
        %s2800 = scalar_lea.vmem %s4, 500
        %v2801 = vld [vmem:[%s2800] sm:$0xf]
        %v2802 = vld [vmem:[%s2800 + $0x4] sm:$0xf]
        %v2803 = vld [vmem:[%s2800 + $0x8] sm:$0xf]
        %v2804 = vld [vmem:[%s2800 + $0xc] sm:$0xf]
        %v2805 = vld [vmem:[%s2800 + $0x10] sm:$0xf]
        %v2806 = vld [vmem:[%s2800 + $0x14] sm:$0xf]
        %v2807 = vld [vmem:[%s2800 + $0x18] sm:$0xf]
        %v2808 = vld [vmem:[%s2800 + $0x1c] sm:$0xf]
        %v2809 = vld [vmem:[%s2800 + $0x20] sm:$0xf]
        %v2810 = vld [vmem:[%s2800 + $0x24] sm:$0xf]
        %v2811 = vld [vmem:[%s2800 + $0x28] sm:$0xf]
        %v2812 = vld [vmem:[%s2800 + $0x2c] sm:$0xf]
        %v2813 = vld [vmem:[%s2800 + $0x30] sm:$0xf]
        %v2814 = vld [vmem:[%s2800 + $0x34] sm:$0xf]
        %v2815 = vld [vmem:[%s2800 + $0x38] sm:$0xf]
        %v2816 = vld [vmem:[%s2800 + $0x3c] sm:$0xf]
        %v2817 = vld [vmem:[%s2800 + $0x40] sm:$0xf]
        %v2818 = vld [vmem:[%s2800 + $0x44] sm:$0xf]
        %v2819 = vld [vmem:[%s2800 + $0x48] sm:$0xf]
        %v2820 = vld [vmem:[%s2800 + $0x4c] sm:$0xf]
        %v2821 = vld [vmem:[%s2800 + $0x50] sm:$0xf]
        %v2822 = vld [vmem:[%s2800 + $0x54] sm:$0xf]
        %v2823 = vld [vmem:[%s2800 + $0x58] sm:$0xf]
        %v2824 = vld [vmem:[%s2800 + $0x5c] sm:$0xf]
        %v2825 = vld [vmem:[%s2800 + $0x60] sm:$0x3]
        %v2851 = vunpack.c.l.b16 %v2801
        %v2852 = vunpack.c.l.b16 %v2802
        %v2853 = vunpack.c.l.b16 %v2803
        %v2854 = vunpack.c.l.b16 %v2804
        %v2855 = vunpack.c.l.b16 %v2805
        %v2856 = vunpack.c.l.b16 %v2806
        %v2857 = vunpack.c.l.b16 %v2807
        %v2858 = vunpack.c.l.b16 %v2808
        %v2859 = vunpack.c.l.b16 %v2809
        %v2860 = vunpack.c.l.b16 %v2810
        %v2861 = vunpack.c.l.b16 %v2811
        %v2862 = vunpack.c.l.b16 %v2812
        %v2863 = vunpack.c.l.b16 %v2813
        %v2864 = vunpack.c.l.b16 %v2814
        %v2865 = vunpack.c.l.b16 %v2815
        %v2866 = vunpack.c.l.b16 %v2816
        %v2867 = vunpack.c.l.b16 %v2817
        %v2868 = vunpack.c.l.b16 %v2818
        %v2869 = vunpack.c.l.b16 %v2819
        %v2870 = vunpack.c.l.b16 %v2820
        %v2871 = vunpack.c.l.b16 %v2821
        %v2872 = vunpack.c.l.b16 %v2822
        %v2873 = vunpack.c.l.b16 %v2823
        %v2874 = vunpack.c.l.b16 %v2824
        %v2875 = vunpack.c.l.b16 %v2825
        %v2876 = vpack.c.b16 %v2852, %v2851
        %v2877 = vpack.c.b16 %v2854, %v2853
        %v2878 = vpack.c.b16 %v2856, %v2855
        %v2879 = vpack.c.b16 %v2858, %v2857
        %v2880 = vpack.c.b16 %v2860, %v2859
        %v2881 = vpack.c.b16 %v2862, %v2861
        %v2882 = vpack.c.b16 %v2864, %v2863
        %v2883 = vpack.c.b16 %v2866, %v2865
        %v2884 = vpack.c.b16 %v2868, %v2867
        %v2885 = vpack.c.b16 %v2870, %v2869
        %v2886 = vpack.c.b16 %v2872, %v2871
        %v2887 = vpack.c.b16 %v2874, %v2873
        %v2888 = vpack.c.b16 %v2875, %v2875
        %v2902 = vsel %vm1893, %v2888, 0
        %2904 = vmatprep.subr.bf16.mxu0 0
        %2905 = vmatpush1.bf16.msra.mxu0 %v2883
        %2906 = vmatprep.subr.bf16.mxu0 0
        %2907 = vmatpush1.bf16.msra.mxu0 %v2882
        %2908 = vmatprep.subr.bf16.mxu0 0
        %2909 = vmatpush1.bf16.msra.mxu0 %v2881
        %2910 = vmatprep.subr.bf16.mxu0 0
        %2911 = vmatpush1.bf16.msra.mxu0 %v2880
        %2912 = vmatprep.subr.bf16.mxu0 0
        %2913 = vmatpush1.bf16.msra.mxu0 %v2879
        %2914 = vmatprep.subr.bf16.mxu0 0
        %2915 = vmatpush1.bf16.msra.mxu0 %v2878
        %2916 = vmatprep.subr.bf16.mxu0 0
        %2917 = vmatpush1.bf16.msra.mxu0 %v2877
        %2918 = vmatprep.subr.bf16.mxu0 0
        %2919 = vmatpush1.bf16.msra.mxu0 %v2876
        %2920 = vmatprep.subr.bf16.mxu0 0
        %2921 = vmatpush2.bf16.msra.mxu0 0
        %2922 = vmatprep.subr.bf16.mxu0 0
        %2923 = vmatpush2.bf16.msra.mxu0 0
        %2924 = vmatprep.subr.bf16.mxu0 0
        %2925 = vmatpush2.bf16.msra.mxu0 0
        %2926 = vmatprep.subr.bf16.mxu0 0
        %2927 = vmatpush2.bf16.msra.mxu0 %v2902
        %2928 = vmatprep.subr.bf16.mxu0 0
        %2929 = vmatpush2.bf16.msra.mxu0 %v2887
        %2930 = vmatprep.subr.bf16.mxu0 0
        %2931 = vmatpush2.bf16.msra.mxu0 %v2886
        %2932 = vmatprep.subr.bf16.mxu0 0
        %2933 = vmatpush2.bf16.msra.mxu0 %v2885
        %2934 = vmatprep.subr.bf16.mxu0 0
        %2935 = vmatpush2.bf16.msra.mxu0 %v2884
        %2936 = vmatprep.mubr.bf16.mxu0 %v1891
        %2937 = vmatmul.mubr.bf16.gmra.mxu0 %v1787
        %v2938 = vpop.f32.mrf.mxu0
        %v2939 = vadd.f32 0.0, %v2938
        %v2940 = vpop.f32.mrf.mxu0
        %v2941 = vpop.f32.mrf.mxu0
        %v2942 = vpop.f32.mrf.mxu0
        %2943 = vdwg.mxu0
        %v2944 = vpack.c.bf16 %v2939, %v2939
        %s2945 = scalar_lea.vmem %s5, 40
        %v2946 = vld [vmem:[%s2945] sm:$0xf]
        %v2947 = vld [vmem:[%s2945 + $0x4] sm:$0xf]
        %v2950 = vunpack.c.l.b16 %v2946
        %v2951 = vunpack.c.l.b16 %v2947
        %v2952 = vpack.c.b16 %v2951, %v2950
        %v2954 = vsel %vm2093, %v2952, 0
        %v2957 = vsel %vm2097, %v2944, 0
        %2959 = vmatprep.subr.bf16.mxu0 0
        %2960 = vmatpush1.bf16.msra.mxu0 0
        %2961 = vmatprep.subr.bf16.mxu0 0
        %2962 = vmatpush1.bf16.msra.mxu0 0
        %2963 = vmatprep.subr.bf16.mxu0 0
        %2964 = vmatpush1.bf16.msra.mxu0 0
        %2965 = vmatprep.subr.bf16.mxu0 0
        %2966 = vmatpush1.bf16.msra.mxu0 0
        %2967 = vmatprep.subr.bf16.mxu0 0
        %2968 = vmatpush1.bf16.msra.mxu0 0
        %2969 = vmatprep.subr.bf16.mxu0 0
        %2970 = vmatpush1.bf16.msra.mxu0 0
        %2971 = vmatprep.subr.bf16.mxu0 0
        %2972 = vmatpush1.bf16.msra.mxu0 0
        %2973 = vmatprep.subr.bf16.mxu0 0
        %2974 = vmatpush1.bf16.msra.mxu0 %v2957
        %2975 = vmatprep.subr.bf16.mxu0 0
        %2976 = vmatpush2.bf16.msra.mxu0 0
        %2977 = vmatprep.subr.bf16.mxu0 0
        %2978 = vmatpush2.bf16.msra.mxu0 0
        %2979 = vmatprep.subr.bf16.mxu0 0
        %2980 = vmatpush2.bf16.msra.mxu0 0
        %2981 = vmatprep.subr.bf16.mxu0 0
        %2982 = vmatpush2.bf16.msra.mxu0 0
        %2983 = vmatprep.subr.bf16.mxu0 0
        %2984 = vmatpush2.bf16.msra.mxu0 0
        %2985 = vmatprep.subr.bf16.mxu0 0
        %2986 = vmatpush2.bf16.msra.mxu0 0
        %2987 = vmatprep.subr.bf16.mxu0 0
        %2988 = vmatpush2.bf16.msra.mxu0 0
        %2989 = vmatprep.subr.bf16.mxu0 0
        %2990 = vmatpush2.bf16.msra.mxu0 0
        %2991 = vmatprep.mubr.bf16.mxu0 0
        %2992 = vmatmul.mubr.bf16.gmra.mxu0 %v2954
        %v2993 = vpop.f32.mrf.mxu0
        %v2994 = vadd.f32 0.0, %v2993
        %v2995 = vpop.f32.mrf.mxu0
        %v2996 = vpop.f32.mrf.mxu0
        %v2997 = vadd.f32 0.0, %v2996
        %v2998 = vpop.f32.mrf.mxu0
        %2999 = vdwg.mxu0
        %v3000 = vadd.f32 %v2798, %v2994
        %v3001 = vadd.f32 %v2799, %v2997
        %s3002 = scalar_lea.vmem %s4, 600
        %v3003 = vld [vmem:[%s3002] sm:$0xf]
        %v3004 = vld [vmem:[%s3002 + $0x4] sm:$0xf]
        %v3005 = vld [vmem:[%s3002 + $0x8] sm:$0xf]
        %v3006 = vld [vmem:[%s3002 + $0xc] sm:$0xf]
        %v3007 = vld [vmem:[%s3002 + $0x10] sm:$0xf]
        %v3008 = vld [vmem:[%s3002 + $0x14] sm:$0xf]
        %v3009 = vld [vmem:[%s3002 + $0x18] sm:$0xf]
        %v3010 = vld [vmem:[%s3002 + $0x1c] sm:$0xf]
        %v3011 = vld [vmem:[%s3002 + $0x20] sm:$0xf]
        %v3012 = vld [vmem:[%s3002 + $0x24] sm:$0xf]
        %v3013 = vld [vmem:[%s3002 + $0x28] sm:$0xf]
        %v3014 = vld [vmem:[%s3002 + $0x2c] sm:$0xf]
        %v3015 = vld [vmem:[%s3002 + $0x30] sm:$0xf]
        %v3016 = vld [vmem:[%s3002 + $0x34] sm:$0xf]
        %v3017 = vld [vmem:[%s3002 + $0x38] sm:$0xf]
        %v3018 = vld [vmem:[%s3002 + $0x3c] sm:$0xf]
        %v3019 = vld [vmem:[%s3002 + $0x40] sm:$0xf]
        %v3020 = vld [vmem:[%s3002 + $0x44] sm:$0xf]
        %v3021 = vld [vmem:[%s3002 + $0x48] sm:$0xf]
        %v3022 = vld [vmem:[%s3002 + $0x4c] sm:$0xf]
        %v3023 = vld [vmem:[%s3002 + $0x50] sm:$0xf]
        %v3024 = vld [vmem:[%s3002 + $0x54] sm:$0xf]
        %v3025 = vld [vmem:[%s3002 + $0x58] sm:$0xf]
        %v3026 = vld [vmem:[%s3002 + $0x5c] sm:$0xf]
        %v3027 = vld [vmem:[%s3002 + $0x60] sm:$0x3]
        %v3053 = vunpack.c.l.b16 %v3003
        %v3054 = vunpack.c.l.b16 %v3004
        %v3055 = vunpack.c.l.b16 %v3005
        %v3056 = vunpack.c.l.b16 %v3006
        %v3057 = vunpack.c.l.b16 %v3007
        %v3058 = vunpack.c.l.b16 %v3008
        %v3059 = vunpack.c.l.b16 %v3009
        %v3060 = vunpack.c.l.b16 %v3010
        %v3061 = vunpack.c.l.b16 %v3011
        %v3062 = vunpack.c.l.b16 %v3012
        %v3063 = vunpack.c.l.b16 %v3013
        %v3064 = vunpack.c.l.b16 %v3014
        %v3065 = vunpack.c.l.b16 %v3015
        %v3066 = vunpack.c.l.b16 %v3016
        %v3067 = vunpack.c.l.b16 %v3017
        %v3068 = vunpack.c.l.b16 %v3018
        %v3069 = vunpack.c.l.b16 %v3019
        %v3070 = vunpack.c.l.b16 %v3020
        %v3071 = vunpack.c.l.b16 %v3021
        %v3072 = vunpack.c.l.b16 %v3022
        %v3073 = vunpack.c.l.b16 %v3023
        %v3074 = vunpack.c.l.b16 %v3024
        %v3075 = vunpack.c.l.b16 %v3025
        %v3076 = vunpack.c.l.b16 %v3026
        %v3077 = vunpack.c.l.b16 %v3027
        %v3078 = vpack.c.b16 %v3054, %v3053
        %v3079 = vpack.c.b16 %v3056, %v3055
        %v3080 = vpack.c.b16 %v3058, %v3057
        %v3081 = vpack.c.b16 %v3060, %v3059
        %v3082 = vpack.c.b16 %v3062, %v3061
        %v3083 = vpack.c.b16 %v3064, %v3063
        %v3084 = vpack.c.b16 %v3066, %v3065
        %v3085 = vpack.c.b16 %v3068, %v3067
        %v3086 = vpack.c.b16 %v3070, %v3069
        %v3087 = vpack.c.b16 %v3072, %v3071
        %v3088 = vpack.c.b16 %v3074, %v3073
        %v3089 = vpack.c.b16 %v3076, %v3075
        %v3090 = vpack.c.b16 %v3077, %v3077
        %v3104 = vsel %vm1893, %v3090, 0
        %3106 = vmatprep.subr.bf16.mxu0 0
        %3107 = vmatpush1.bf16.msra.mxu0 %v3085
        %3108 = vmatprep.subr.bf16.mxu0 0
        %3109 = vmatpush1.bf16.msra.mxu0 %v3084
        %3110 = vmatprep.subr.bf16.mxu0 0
        %3111 = vmatpush1.bf16.msra.mxu0 %v3083
        %3112 = vmatprep.subr.bf16.mxu0 0
        %3113 = vmatpush1.bf16.msra.mxu0 %v3082
        %3114 = vmatprep.subr.bf16.mxu0 0
        %3115 = vmatpush1.bf16.msra.mxu0 %v3081
        %3116 = vmatprep.subr.bf16.mxu0 0
        %3117 = vmatpush1.bf16.msra.mxu0 %v3080
        %3118 = vmatprep.subr.bf16.mxu0 0
        %3119 = vmatpush1.bf16.msra.mxu0 %v3079
        %3120 = vmatprep.subr.bf16.mxu0 0
        %3121 = vmatpush1.bf16.msra.mxu0 %v3078
        %3122 = vmatprep.subr.bf16.mxu0 0
        %3123 = vmatpush2.bf16.msra.mxu0 0
        %3124 = vmatprep.subr.bf16.mxu0 0
        %3125 = vmatpush2.bf16.msra.mxu0 0
        %3126 = vmatprep.subr.bf16.mxu0 0
        %3127 = vmatpush2.bf16.msra.mxu0 0
        %3128 = vmatprep.subr.bf16.mxu0 0
        %3129 = vmatpush2.bf16.msra.mxu0 %v3104
        %3130 = vmatprep.subr.bf16.mxu0 0
        %3131 = vmatpush2.bf16.msra.mxu0 %v3089
        %3132 = vmatprep.subr.bf16.mxu0 0
        %3133 = vmatpush2.bf16.msra.mxu0 %v3088
        %3134 = vmatprep.subr.bf16.mxu0 0
        %3135 = vmatpush2.bf16.msra.mxu0 %v3087
        %3136 = vmatprep.subr.bf16.mxu0 0
        %3137 = vmatpush2.bf16.msra.mxu0 %v3086
        %3138 = vmatprep.mubr.bf16.mxu0 %v1891
        %3139 = vmatmul.mubr.bf16.gmra.mxu0 %v1787
        %v3140 = vpop.f32.mrf.mxu0
        %v3141 = vadd.f32 0.0, %v3140
        %v3142 = vpop.f32.mrf.mxu0
        %v3143 = vpop.f32.mrf.mxu0
        %v3144 = vpop.f32.mrf.mxu0
        %3145 = vdwg.mxu0
        %v3146 = vpack.c.bf16 %v3141, %v3141
        %s3147 = scalar_lea.vmem %s5, 48
        %v3148 = vld [vmem:[%s3147] sm:$0xf]
        %v3149 = vld [vmem:[%s3147 + $0x4] sm:$0xf]
        %v3152 = vunpack.c.l.b16 %v3148
        %v3153 = vunpack.c.l.b16 %v3149
        %v3154 = vpack.c.b16 %v3153, %v3152
        %v3156 = vsel %vm2093, %v3154, 0
        %v3159 = vsel %vm2097, %v3146, 0
        %3161 = vmatprep.subr.bf16.mxu0 0
        %3162 = vmatpush1.bf16.msra.mxu0 0
        %3163 = vmatprep.subr.bf16.mxu0 0
        %3164 = vmatpush1.bf16.msra.mxu0 0
        %3165 = vmatprep.subr.bf16.mxu0 0
        %3166 = vmatpush1.bf16.msra.mxu0 0
        %3167 = vmatprep.subr.bf16.mxu0 0
        %3168 = vmatpush1.bf16.msra.mxu0 0
        %3169 = vmatprep.subr.bf16.mxu0 0
        %3170 = vmatpush1.bf16.msra.mxu0 0
        %3171 = vmatprep.subr.bf16.mxu0 0
        %3172 = vmatpush1.bf16.msra.mxu0 0
        %3173 = vmatprep.subr.bf16.mxu0 0
        %3174 = vmatpush1.bf16.msra.mxu0 0
        %3175 = vmatprep.subr.bf16.mxu0 0
        %3176 = vmatpush1.bf16.msra.mxu0 %v3159
        %3177 = vmatprep.subr.bf16.mxu0 0
        %3178 = vmatpush2.bf16.msra.mxu0 0
        %3179 = vmatprep.subr.bf16.mxu0 0
        %3180 = vmatpush2.bf16.msra.mxu0 0
        %3181 = vmatprep.subr.bf16.mxu0 0
        %3182 = vmatpush2.bf16.msra.mxu0 0
        %3183 = vmatprep.subr.bf16.mxu0 0
        %3184 = vmatpush2.bf16.msra.mxu0 0
        %3185 = vmatprep.subr.bf16.mxu0 0
        %3186 = vmatpush2.bf16.msra.mxu0 0
        %3187 = vmatprep.subr.bf16.mxu0 0
        %3188 = vmatpush2.bf16.msra.mxu0 0
        %3189 = vmatprep.subr.bf16.mxu0 0
        %3190 = vmatpush2.bf16.msra.mxu0 0
        %3191 = vmatprep.subr.bf16.mxu0 0
        %3192 = vmatpush2.bf16.msra.mxu0 0
        %3193 = vmatprep.mubr.bf16.mxu0 0
        %3194 = vmatmul.mubr.bf16.gmra.mxu0 %v3156
        %v3195 = vpop.f32.mrf.mxu0
        %v3196 = vadd.f32 0.0, %v3195
        %v3197 = vpop.f32.mrf.mxu0
        %v3198 = vpop.f32.mrf.mxu0
        %v3199 = vadd.f32 0.0, %v3198
        %v3200 = vpop.f32.mrf.mxu0
        %3201 = vdwg.mxu0
        %v3202 = vadd.f32 %v3000, %v3196
        %v3203 = vadd.f32 %v3001, %v3199
        %s3204 = scalar_lea.vmem %s4, 700
        %v3205 = vld [vmem:[%s3204] sm:$0xf]
        %v3206 = vld [vmem:[%s3204 + $0x4] sm:$0xf]
        %v3207 = vld [vmem:[%s3204 + $0x8] sm:$0xf]
        %v3208 = vld [vmem:[%s3204 + $0xc] sm:$0xf]
        %v3209 = vld [vmem:[%s3204 + $0x10] sm:$0xf]
        %v3210 = vld [vmem:[%s3204 + $0x14] sm:$0xf]
        %v3211 = vld [vmem:[%s3204 + $0x18] sm:$0xf]
        %v3212 = vld [vmem:[%s3204 + $0x1c] sm:$0xf]
        %v3213 = vld [vmem:[%s3204 + $0x20] sm:$0xf]
        %v3214 = vld [vmem:[%s3204 + $0x24] sm:$0xf]
        %v3215 = vld [vmem:[%s3204 + $0x28] sm:$0xf]
        %v3216 = vld [vmem:[%s3204 + $0x2c] sm:$0xf]
        %v3217 = vld [vmem:[%s3204 + $0x30] sm:$0xf]
        %v3218 = vld [vmem:[%s3204 + $0x34] sm:$0xf]
        %v3219 = vld [vmem:[%s3204 + $0x38] sm:$0xf]
        %v3220 = vld [vmem:[%s3204 + $0x3c] sm:$0xf]
        %v3221 = vld [vmem:[%s3204 + $0x40] sm:$0xf]
        %v3222 = vld [vmem:[%s3204 + $0x44] sm:$0xf]
        %v3223 = vld [vmem:[%s3204 + $0x48] sm:$0xf]
        %v3224 = vld [vmem:[%s3204 + $0x4c] sm:$0xf]
        %v3225 = vld [vmem:[%s3204 + $0x50] sm:$0xf]
        %v3226 = vld [vmem:[%s3204 + $0x54] sm:$0xf]
        %v3227 = vld [vmem:[%s3204 + $0x58] sm:$0xf]
        %v3228 = vld [vmem:[%s3204 + $0x5c] sm:$0xf]
        %v3229 = vld [vmem:[%s3204 + $0x60] sm:$0x3]
        %v3255 = vunpack.c.l.b16 %v3205
        %v3256 = vunpack.c.l.b16 %v3206
        %v3257 = vunpack.c.l.b16 %v3207
        %v3258 = vunpack.c.l.b16 %v3208
        %v3259 = vunpack.c.l.b16 %v3209
        %v3260 = vunpack.c.l.b16 %v3210
        %v3261 = vunpack.c.l.b16 %v3211
        %v3262 = vunpack.c.l.b16 %v3212
        %v3263 = vunpack.c.l.b16 %v3213
        %v3264 = vunpack.c.l.b16 %v3214
        %v3265 = vunpack.c.l.b16 %v3215
        %v3266 = vunpack.c.l.b16 %v3216
        %v3267 = vunpack.c.l.b16 %v3217
        %v3268 = vunpack.c.l.b16 %v3218
        %v3269 = vunpack.c.l.b16 %v3219
        %v3270 = vunpack.c.l.b16 %v3220
        %v3271 = vunpack.c.l.b16 %v3221
        %v3272 = vunpack.c.l.b16 %v3222
        %v3273 = vunpack.c.l.b16 %v3223
        %v3274 = vunpack.c.l.b16 %v3224
        %v3275 = vunpack.c.l.b16 %v3225
        %v3276 = vunpack.c.l.b16 %v3226
        %v3277 = vunpack.c.l.b16 %v3227
        %v3278 = vunpack.c.l.b16 %v3228
        %v3279 = vunpack.c.l.b16 %v3229
        %v3280 = vpack.c.b16 %v3256, %v3255
        %v3281 = vpack.c.b16 %v3258, %v3257
        %v3282 = vpack.c.b16 %v3260, %v3259
        %v3283 = vpack.c.b16 %v3262, %v3261
        %v3284 = vpack.c.b16 %v3264, %v3263
        %v3285 = vpack.c.b16 %v3266, %v3265
        %v3286 = vpack.c.b16 %v3268, %v3267
        %v3287 = vpack.c.b16 %v3270, %v3269
        %v3288 = vpack.c.b16 %v3272, %v3271
        %v3289 = vpack.c.b16 %v3274, %v3273
        %v3290 = vpack.c.b16 %v3276, %v3275
        %v3291 = vpack.c.b16 %v3278, %v3277
        %v3292 = vpack.c.b16 %v3279, %v3279
        %v3306 = vsel %vm1893, %v3292, 0
        %3308 = vmatprep.subr.bf16.mxu0 0
        %3309 = vmatpush1.bf16.msra.mxu0 %v3287
        %3310 = vmatprep.subr.bf16.mxu0 0
        %3311 = vmatpush1.bf16.msra.mxu0 %v3286
        %3312 = vmatprep.subr.bf16.mxu0 0
        %3313 = vmatpush1.bf16.msra.mxu0 %v3285
        %3314 = vmatprep.subr.bf16.mxu0 0
        %3315 = vmatpush1.bf16.msra.mxu0 %v3284
        %3316 = vmatprep.subr.bf16.mxu0 0
        %3317 = vmatpush1.bf16.msra.mxu0 %v3283
        %3318 = vmatprep.subr.bf16.mxu0 0
        %3319 = vmatpush1.bf16.msra.mxu0 %v3282
        %3320 = vmatprep.subr.bf16.mxu0 0
        %3321 = vmatpush1.bf16.msra.mxu0 %v3281
        %3322 = vmatprep.subr.bf16.mxu0 0
        %3323 = vmatpush1.bf16.msra.mxu0 %v3280
        %3324 = vmatprep.subr.bf16.mxu0 0
        %3325 = vmatpush2.bf16.msra.mxu0 0
        %3326 = vmatprep.subr.bf16.mxu0 0
        %3327 = vmatpush2.bf16.msra.mxu0 0
        %3328 = vmatprep.subr.bf16.mxu0 0
        %3329 = vmatpush2.bf16.msra.mxu0 0
        %3330 = vmatprep.subr.bf16.mxu0 0
        %3331 = vmatpush2.bf16.msra.mxu0 %v3306
        %3332 = vmatprep.subr.bf16.mxu0 0
        %3333 = vmatpush2.bf16.msra.mxu0 %v3291
        %3334 = vmatprep.subr.bf16.mxu0 0
        %3335 = vmatpush2.bf16.msra.mxu0 %v3290
        %3336 = vmatprep.subr.bf16.mxu0 0
        %3337 = vmatpush2.bf16.msra.mxu0 %v3289
        %3338 = vmatprep.subr.bf16.mxu0 0
        %3339 = vmatpush2.bf16.msra.mxu0 %v3288
        %3340 = vmatprep.mubr.bf16.mxu0 %v1891
        %3341 = vmatmul.mubr.bf16.gmra.mxu0 %v1787
        %v3342 = vpop.f32.mrf.mxu0
        %v3343 = vadd.f32 0.0, %v3342
        %v3344 = vpop.f32.mrf.mxu0
        %v3345 = vpop.f32.mrf.mxu0
        %v3346 = vpop.f32.mrf.mxu0
        %3347 = vdwg.mxu0
        %v3348 = vpack.c.bf16 %v3343, %v3343
        %s3349 = scalar_lea.vmem %s5, 56
        %v3350 = vld [vmem:[%s3349] sm:$0xf]
        %v3351 = vld [vmem:[%s3349 + $0x4] sm:$0xf]
        %v3354 = vunpack.c.l.b16 %v3350
        %v3355 = vunpack.c.l.b16 %v3351
        %v3356 = vpack.c.b16 %v3355, %v3354
        %v3358 = vsel %vm2093, %v3356, 0
        %v3361 = vsel %vm2097, %v3348, 0
        %3363 = vmatprep.subr.bf16.mxu0 0
        %3364 = vmatpush1.bf16.msra.mxu0 0
        %3365 = vmatprep.subr.bf16.mxu0 0
        %3366 = vmatpush1.bf16.msra.mxu0 0
        %3367 = vmatprep.subr.bf16.mxu0 0
        %3368 = vmatpush1.bf16.msra.mxu0 0
        %3369 = vmatprep.subr.bf16.mxu0 0
        %3370 = vmatpush1.bf16.msra.mxu0 0
        %3371 = vmatprep.subr.bf16.mxu0 0
        %3372 = vmatpush1.bf16.msra.mxu0 0
        %3373 = vmatprep.subr.bf16.mxu0 0
        %3374 = vmatpush1.bf16.msra.mxu0 0
        %3375 = vmatprep.subr.bf16.mxu0 0
        %3376 = vmatpush1.bf16.msra.mxu0 0
        %3377 = vmatprep.subr.bf16.mxu0 0
        %3378 = vmatpush1.bf16.msra.mxu0 %v3361
        %3379 = vmatprep.subr.bf16.mxu0 0
        %3380 = vmatpush2.bf16.msra.mxu0 0
        %3381 = vmatprep.subr.bf16.mxu0 0
        %3382 = vmatpush2.bf16.msra.mxu0 0
        %3383 = vmatprep.subr.bf16.mxu0 0
        %3384 = vmatpush2.bf16.msra.mxu0 0
        %3385 = vmatprep.subr.bf16.mxu0 0
        %3386 = vmatpush2.bf16.msra.mxu0 0
        %3387 = vmatprep.subr.bf16.mxu0 0
        %3388 = vmatpush2.bf16.msra.mxu0 0
        %3389 = vmatprep.subr.bf16.mxu0 0
        %3390 = vmatpush2.bf16.msra.mxu0 0
        %3391 = vmatprep.subr.bf16.mxu0 0
        %3392 = vmatpush2.bf16.msra.mxu0 0
        %3393 = vmatprep.subr.bf16.mxu0 0
        %3394 = vmatpush2.bf16.msra.mxu0 0
        %3395 = vmatprep.mubr.bf16.mxu0 0
        %3396 = vmatmul.mubr.bf16.gmra.mxu0 %v3358
        %v3397 = vpop.f32.mrf.mxu0
        %v3398 = vadd.f32 0.0, %v3397
        %v3399 = vpop.f32.mrf.mxu0
        %v3400 = vpop.f32.mrf.mxu0
        %v3401 = vadd.f32 0.0, %v3400
        %v3402 = vpop.f32.mrf.mxu0
        %3403 = vdwg.mxu0
        %v3404 = vadd.f32 %v3202, %v3398
        %v3405 = vadd.f32 %v3203, %v3401
        %s3406 = scalar_lea.vmem %s4, 800
        %v3407 = vld [vmem:[%s3406] sm:$0xf]
        %v3408 = vld [vmem:[%s3406 + $0x4] sm:$0xf]
        %v3409 = vld [vmem:[%s3406 + $0x8] sm:$0xf]
        %v3410 = vld [vmem:[%s3406 + $0xc] sm:$0xf]
        %v3411 = vld [vmem:[%s3406 + $0x10] sm:$0xf]
        %v3412 = vld [vmem:[%s3406 + $0x14] sm:$0xf]
        %v3413 = vld [vmem:[%s3406 + $0x18] sm:$0xf]
        %v3414 = vld [vmem:[%s3406 + $0x1c] sm:$0xf]
        %v3415 = vld [vmem:[%s3406 + $0x20] sm:$0xf]
        %v3416 = vld [vmem:[%s3406 + $0x24] sm:$0xf]
        %v3417 = vld [vmem:[%s3406 + $0x28] sm:$0xf]
        %v3418 = vld [vmem:[%s3406 + $0x2c] sm:$0xf]
        %v3419 = vld [vmem:[%s3406 + $0x30] sm:$0xf]
        %v3420 = vld [vmem:[%s3406 + $0x34] sm:$0xf]
        %v3421 = vld [vmem:[%s3406 + $0x38] sm:$0xf]
        %v3422 = vld [vmem:[%s3406 + $0x3c] sm:$0xf]
        %v3423 = vld [vmem:[%s3406 + $0x40] sm:$0xf]
        %v3424 = vld [vmem:[%s3406 + $0x44] sm:$0xf]
        %v3425 = vld [vmem:[%s3406 + $0x48] sm:$0xf]
        %v3426 = vld [vmem:[%s3406 + $0x4c] sm:$0xf]
        %v3427 = vld [vmem:[%s3406 + $0x50] sm:$0xf]
        %v3428 = vld [vmem:[%s3406 + $0x54] sm:$0xf]
        %v3429 = vld [vmem:[%s3406 + $0x58] sm:$0xf]
        %v3430 = vld [vmem:[%s3406 + $0x5c] sm:$0xf]
        %v3431 = vld [vmem:[%s3406 + $0x60] sm:$0x3]
        %v3457 = vunpack.c.l.b16 %v3407
        %v3458 = vunpack.c.l.b16 %v3408
        %v3459 = vunpack.c.l.b16 %v3409
        %v3460 = vunpack.c.l.b16 %v3410
        %v3461 = vunpack.c.l.b16 %v3411
        %v3462 = vunpack.c.l.b16 %v3412
        %v3463 = vunpack.c.l.b16 %v3413
        %v3464 = vunpack.c.l.b16 %v3414
        %v3465 = vunpack.c.l.b16 %v3415
        %v3466 = vunpack.c.l.b16 %v3416
        %v3467 = vunpack.c.l.b16 %v3417
        %v3468 = vunpack.c.l.b16 %v3418
        %v3469 = vunpack.c.l.b16 %v3419
        %v3470 = vunpack.c.l.b16 %v3420
        %v3471 = vunpack.c.l.b16 %v3421
        %v3472 = vunpack.c.l.b16 %v3422
        %v3473 = vunpack.c.l.b16 %v3423
        %v3474 = vunpack.c.l.b16 %v3424
        %v3475 = vunpack.c.l.b16 %v3425
        %v3476 = vunpack.c.l.b16 %v3426
        %v3477 = vunpack.c.l.b16 %v3427
        %v3478 = vunpack.c.l.b16 %v3428
        %v3479 = vunpack.c.l.b16 %v3429
        %v3480 = vunpack.c.l.b16 %v3430
        %v3481 = vunpack.c.l.b16 %v3431
        %v3482 = vpack.c.b16 %v3458, %v3457
        %v3483 = vpack.c.b16 %v3460, %v3459
        %v3484 = vpack.c.b16 %v3462, %v3461
        %v3485 = vpack.c.b16 %v3464, %v3463
        %v3486 = vpack.c.b16 %v3466, %v3465
        %v3487 = vpack.c.b16 %v3468, %v3467
        %v3488 = vpack.c.b16 %v3470, %v3469
        %v3489 = vpack.c.b16 %v3472, %v3471
        %v3490 = vpack.c.b16 %v3474, %v3473
        %v3491 = vpack.c.b16 %v3476, %v3475
        %v3492 = vpack.c.b16 %v3478, %v3477
        %v3493 = vpack.c.b16 %v3480, %v3479
        %v3494 = vpack.c.b16 %v3481, %v3481
        %v3508 = vsel %vm1893, %v3494, 0
        %3510 = vmatprep.subr.bf16.mxu0 0
        %3511 = vmatpush1.bf16.msra.mxu0 %v3489
        %3512 = vmatprep.subr.bf16.mxu0 0
        %3513 = vmatpush1.bf16.msra.mxu0 %v3488
        %3514 = vmatprep.subr.bf16.mxu0 0
        %3515 = vmatpush1.bf16.msra.mxu0 %v3487
        %3516 = vmatprep.subr.bf16.mxu0 0
        %3517 = vmatpush1.bf16.msra.mxu0 %v3486
        %3518 = vmatprep.subr.bf16.mxu0 0
        %3519 = vmatpush1.bf16.msra.mxu0 %v3485
        %3520 = vmatprep.subr.bf16.mxu0 0
        %3521 = vmatpush1.bf16.msra.mxu0 %v3484
        %3522 = vmatprep.subr.bf16.mxu0 0
        %3523 = vmatpush1.bf16.msra.mxu0 %v3483
        %3524 = vmatprep.subr.bf16.mxu0 0
        %3525 = vmatpush1.bf16.msra.mxu0 %v3482
        %3526 = vmatprep.subr.bf16.mxu0 0
        %3527 = vmatpush2.bf16.msra.mxu0 0
        %3528 = vmatprep.subr.bf16.mxu0 0
        %3529 = vmatpush2.bf16.msra.mxu0 0
        %3530 = vmatprep.subr.bf16.mxu0 0
        %3531 = vmatpush2.bf16.msra.mxu0 0
        %3532 = vmatprep.subr.bf16.mxu0 0
        %3533 = vmatpush2.bf16.msra.mxu0 %v3508
        %3534 = vmatprep.subr.bf16.mxu0 0
        %3535 = vmatpush2.bf16.msra.mxu0 %v3493
        %3536 = vmatprep.subr.bf16.mxu0 0
        %3537 = vmatpush2.bf16.msra.mxu0 %v3492
        %3538 = vmatprep.subr.bf16.mxu0 0
        %3539 = vmatpush2.bf16.msra.mxu0 %v3491
        %3540 = vmatprep.subr.bf16.mxu0 0
        %3541 = vmatpush2.bf16.msra.mxu0 %v3490
        %3542 = vmatprep.mubr.bf16.mxu0 %v1891
        %3543 = vmatmul.mubr.bf16.gmra.mxu0 %v1787
        %v3544 = vpop.f32.mrf.mxu0
        %v3545 = vadd.f32 0.0, %v3544
        %v3546 = vpop.f32.mrf.mxu0
        %v3547 = vpop.f32.mrf.mxu0
        %v3548 = vpop.f32.mrf.mxu0
        %3549 = vdwg.mxu0
        %v3550 = vpack.c.bf16 %v3545, %v3545
        %s3551 = scalar_lea.vmem %s5, 64
        %v3552 = vld [vmem:[%s3551] sm:$0xf]
        %v3553 = vld [vmem:[%s3551 + $0x4] sm:$0xf]
        %v3556 = vunpack.c.l.b16 %v3552
        %v3557 = vunpack.c.l.b16 %v3553
        %v3558 = vpack.c.b16 %v3557, %v3556
        %v3560 = vsel %vm2093, %v3558, 0
        %v3563 = vsel %vm2097, %v3550, 0
        %3565 = vmatprep.subr.bf16.mxu0 0
        %3566 = vmatpush1.bf16.msra.mxu0 0
        %3567 = vmatprep.subr.bf16.mxu0 0
        %3568 = vmatpush1.bf16.msra.mxu0 0
        %3569 = vmatprep.subr.bf16.mxu0 0
        %3570 = vmatpush1.bf16.msra.mxu0 0
        %3571 = vmatprep.subr.bf16.mxu0 0
        %3572 = vmatpush1.bf16.msra.mxu0 0
        %3573 = vmatprep.subr.bf16.mxu0 0
        %3574 = vmatpush1.bf16.msra.mxu0 0
        %3575 = vmatprep.subr.bf16.mxu0 0
        %3576 = vmatpush1.bf16.msra.mxu0 0
        %3577 = vmatprep.subr.bf16.mxu0 0
        %3578 = vmatpush1.bf16.msra.mxu0 0
        %3579 = vmatprep.subr.bf16.mxu0 0
        %3580 = vmatpush1.bf16.msra.mxu0 %v3563
        %3581 = vmatprep.subr.bf16.mxu0 0
        %3582 = vmatpush2.bf16.msra.mxu0 0
        %3583 = vmatprep.subr.bf16.mxu0 0
        %3584 = vmatpush2.bf16.msra.mxu0 0
        %3585 = vmatprep.subr.bf16.mxu0 0
        %3586 = vmatpush2.bf16.msra.mxu0 0
        %3587 = vmatprep.subr.bf16.mxu0 0
        %3588 = vmatpush2.bf16.msra.mxu0 0
        %3589 = vmatprep.subr.bf16.mxu0 0
        %3590 = vmatpush2.bf16.msra.mxu0 0
        %3591 = vmatprep.subr.bf16.mxu0 0
        %3592 = vmatpush2.bf16.msra.mxu0 0
        %3593 = vmatprep.subr.bf16.mxu0 0
        %3594 = vmatpush2.bf16.msra.mxu0 0
        %3595 = vmatprep.subr.bf16.mxu0 0
        %3596 = vmatpush2.bf16.msra.mxu0 0
        %3597 = vmatprep.mubr.bf16.mxu0 0
        %3598 = vmatmul.mubr.bf16.gmra.mxu0 %v3560
        %v3599 = vpop.f32.mrf.mxu0
        %v3600 = vadd.f32 0.0, %v3599
        %v3601 = vpop.f32.mrf.mxu0
        %v3602 = vpop.f32.mrf.mxu0
        %v3603 = vadd.f32 0.0, %v3602
        %v3604 = vpop.f32.mrf.mxu0
        %3605 = vdwg.mxu0
        %v3606 = vadd.f32 %v3404, %v3600
        %v3607 = vadd.f32 %v3405, %v3603
        %s3608 = scalar_lea.vmem %s4, 900
        %v3609 = vld [vmem:[%s3608] sm:$0xf]
        %v3610 = vld [vmem:[%s3608 + $0x4] sm:$0xf]
        %v3611 = vld [vmem:[%s3608 + $0x8] sm:$0xf]
        %v3612 = vld [vmem:[%s3608 + $0xc] sm:$0xf]
        %v3613 = vld [vmem:[%s3608 + $0x10] sm:$0xf]
        %v3614 = vld [vmem:[%s3608 + $0x14] sm:$0xf]
        %v3615 = vld [vmem:[%s3608 + $0x18] sm:$0xf]
        %v3616 = vld [vmem:[%s3608 + $0x1c] sm:$0xf]
        %v3617 = vld [vmem:[%s3608 + $0x20] sm:$0xf]
        %v3618 = vld [vmem:[%s3608 + $0x24] sm:$0xf]
        %v3619 = vld [vmem:[%s3608 + $0x28] sm:$0xf]
        %v3620 = vld [vmem:[%s3608 + $0x2c] sm:$0xf]
        %v3621 = vld [vmem:[%s3608 + $0x30] sm:$0xf]
        %v3622 = vld [vmem:[%s3608 + $0x34] sm:$0xf]
        %v3623 = vld [vmem:[%s3608 + $0x38] sm:$0xf]
        %v3624 = vld [vmem:[%s3608 + $0x3c] sm:$0xf]
        %v3625 = vld [vmem:[%s3608 + $0x40] sm:$0xf]
        %v3626 = vld [vmem:[%s3608 + $0x44] sm:$0xf]
        %v3627 = vld [vmem:[%s3608 + $0x48] sm:$0xf]
        %v3628 = vld [vmem:[%s3608 + $0x4c] sm:$0xf]
        %v3629 = vld [vmem:[%s3608 + $0x50] sm:$0xf]
        %v3630 = vld [vmem:[%s3608 + $0x54] sm:$0xf]
        %v3631 = vld [vmem:[%s3608 + $0x58] sm:$0xf]
        %v3632 = vld [vmem:[%s3608 + $0x5c] sm:$0xf]
        %v3633 = vld [vmem:[%s3608 + $0x60] sm:$0x3]
        %v3659 = vunpack.c.l.b16 %v3609
        %v3660 = vunpack.c.l.b16 %v3610
        %v3661 = vunpack.c.l.b16 %v3611
        %v3662 = vunpack.c.l.b16 %v3612
        %v3663 = vunpack.c.l.b16 %v3613
        %v3664 = vunpack.c.l.b16 %v3614
        %v3665 = vunpack.c.l.b16 %v3615
        %v3666 = vunpack.c.l.b16 %v3616
        %v3667 = vunpack.c.l.b16 %v3617
        %v3668 = vunpack.c.l.b16 %v3618
        %v3669 = vunpack.c.l.b16 %v3619
        %v3670 = vunpack.c.l.b16 %v3620
        %v3671 = vunpack.c.l.b16 %v3621
        %v3672 = vunpack.c.l.b16 %v3622
        %v3673 = vunpack.c.l.b16 %v3623
        %v3674 = vunpack.c.l.b16 %v3624
        %v3675 = vunpack.c.l.b16 %v3625
        %v3676 = vunpack.c.l.b16 %v3626
        %v3677 = vunpack.c.l.b16 %v3627
        %v3678 = vunpack.c.l.b16 %v3628
        %v3679 = vunpack.c.l.b16 %v3629
        %v3680 = vunpack.c.l.b16 %v3630
        %v3681 = vunpack.c.l.b16 %v3631
        %v3682 = vunpack.c.l.b16 %v3632
        %v3683 = vunpack.c.l.b16 %v3633
        %v3684 = vpack.c.b16 %v3660, %v3659
        %v3685 = vpack.c.b16 %v3662, %v3661
        %v3686 = vpack.c.b16 %v3664, %v3663
        %v3687 = vpack.c.b16 %v3666, %v3665
        %v3688 = vpack.c.b16 %v3668, %v3667
        %v3689 = vpack.c.b16 %v3670, %v3669
        %v3690 = vpack.c.b16 %v3672, %v3671
        %v3691 = vpack.c.b16 %v3674, %v3673
        %v3692 = vpack.c.b16 %v3676, %v3675
        %v3693 = vpack.c.b16 %v3678, %v3677
        %v3694 = vpack.c.b16 %v3680, %v3679
        %v3695 = vpack.c.b16 %v3682, %v3681
        %v3696 = vpack.c.b16 %v3683, %v3683
        %v3710 = vsel %vm1893, %v3696, 0
        %3712 = vmatprep.subr.bf16.mxu0 0
        %3713 = vmatpush1.bf16.msra.mxu0 %v3691
        %3714 = vmatprep.subr.bf16.mxu0 0
        %3715 = vmatpush1.bf16.msra.mxu0 %v3690
        %3716 = vmatprep.subr.bf16.mxu0 0
        %3717 = vmatpush1.bf16.msra.mxu0 %v3689
        %3718 = vmatprep.subr.bf16.mxu0 0
        %3719 = vmatpush1.bf16.msra.mxu0 %v3688
        %3720 = vmatprep.subr.bf16.mxu0 0
        %3721 = vmatpush1.bf16.msra.mxu0 %v3687
        %3722 = vmatprep.subr.bf16.mxu0 0
        %3723 = vmatpush1.bf16.msra.mxu0 %v3686
        %3724 = vmatprep.subr.bf16.mxu0 0
        %3725 = vmatpush1.bf16.msra.mxu0 %v3685
        %3726 = vmatprep.subr.bf16.mxu0 0
        %3727 = vmatpush1.bf16.msra.mxu0 %v3684
        %3728 = vmatprep.subr.bf16.mxu0 0
        %3729 = vmatpush2.bf16.msra.mxu0 0
        %3730 = vmatprep.subr.bf16.mxu0 0
        %3731 = vmatpush2.bf16.msra.mxu0 0
        %3732 = vmatprep.subr.bf16.mxu0 0
        %3733 = vmatpush2.bf16.msra.mxu0 0
        %3734 = vmatprep.subr.bf16.mxu0 0
        %3735 = vmatpush2.bf16.msra.mxu0 %v3710
        %3736 = vmatprep.subr.bf16.mxu0 0
        %3737 = vmatpush2.bf16.msra.mxu0 %v3695
        %3738 = vmatprep.subr.bf16.mxu0 0
        %3739 = vmatpush2.bf16.msra.mxu0 %v3694
        %3740 = vmatprep.subr.bf16.mxu0 0
        %3741 = vmatpush2.bf16.msra.mxu0 %v3693
        %3742 = vmatprep.subr.bf16.mxu0 0
        %3743 = vmatpush2.bf16.msra.mxu0 %v3692
        %3744 = vmatprep.mubr.bf16.mxu0 %v1891
        %3745 = vmatmul.mubr.bf16.gmra.mxu0 %v1787
        %v3746 = vpop.f32.mrf.mxu0
        %v3747 = vadd.f32 0.0, %v3746
        %v3748 = vpop.f32.mrf.mxu0
        %v3749 = vpop.f32.mrf.mxu0
        %v3750 = vpop.f32.mrf.mxu0
        %3751 = vdwg.mxu0
        %v3752 = vpack.c.bf16 %v3747, %v3747
        %s3753 = scalar_lea.vmem %s5, 72
        %v3754 = vld [vmem:[%s3753] sm:$0xf]
        %v3755 = vld [vmem:[%s3753 + $0x4] sm:$0xf]
        %v3758 = vunpack.c.l.b16 %v3754
        %v3759 = vunpack.c.l.b16 %v3755
        %v3760 = vpack.c.b16 %v3759, %v3758
        %v3762 = vsel %vm2093, %v3760, 0
        %v3765 = vsel %vm2097, %v3752, 0
        %3767 = vmatprep.subr.bf16.mxu0 0
        %3768 = vmatpush1.bf16.msra.mxu0 0
        %3769 = vmatprep.subr.bf16.mxu0 0
        %3770 = vmatpush1.bf16.msra.mxu0 0
        %3771 = vmatprep.subr.bf16.mxu0 0
        %3772 = vmatpush1.bf16.msra.mxu0 0
        %3773 = vmatprep.subr.bf16.mxu0 0
        %3774 = vmatpush1.bf16.msra.mxu0 0
        %3775 = vmatprep.subr.bf16.mxu0 0
        %3776 = vmatpush1.bf16.msra.mxu0 0
        %3777 = vmatprep.subr.bf16.mxu0 0
        %3778 = vmatpush1.bf16.msra.mxu0 0
        %3779 = vmatprep.subr.bf16.mxu0 0
        %3780 = vmatpush1.bf16.msra.mxu0 0
        %3781 = vmatprep.subr.bf16.mxu0 0
        %3782 = vmatpush1.bf16.msra.mxu0 %v3765
        %3783 = vmatprep.subr.bf16.mxu0 0
        %3784 = vmatpush2.bf16.msra.mxu0 0
        %3785 = vmatprep.subr.bf16.mxu0 0
        %3786 = vmatpush2.bf16.msra.mxu0 0
        %3787 = vmatprep.subr.bf16.mxu0 0
        %3788 = vmatpush2.bf16.msra.mxu0 0
        %3789 = vmatprep.subr.bf16.mxu0 0
        %3790 = vmatpush2.bf16.msra.mxu0 0
        %3791 = vmatprep.subr.bf16.mxu0 0
        %3792 = vmatpush2.bf16.msra.mxu0 0
        %3793 = vmatprep.subr.bf16.mxu0 0
        %3794 = vmatpush2.bf16.msra.mxu0 0
        %3795 = vmatprep.subr.bf16.mxu0 0
        %3796 = vmatpush2.bf16.msra.mxu0 0
        %3797 = vmatprep.subr.bf16.mxu0 0
        %3798 = vmatpush2.bf16.msra.mxu0 0
        %3799 = vmatprep.mubr.bf16.mxu0 0
        %3800 = vmatmul.mubr.bf16.gmra.mxu0 %v3762
        %v3801 = vpop.f32.mrf.mxu0
        %v3802 = vadd.f32 0.0, %v3801
        %v3803 = vpop.f32.mrf.mxu0
        %v3804 = vpop.f32.mrf.mxu0
        %v3805 = vadd.f32 0.0, %v3804
        %v3806 = vpop.f32.mrf.mxu0
        %3807 = vdwg.mxu0
        %v3808 = vadd.f32 %v3606, %v3802
        %v3809 = vadd.f32 %v3607, %v3805
        %s3810 = scalar_lea.vmem %s4, 1000
        %v3811 = vld [vmem:[%s3810] sm:$0xf]
        %v3812 = vld [vmem:[%s3810 + $0x4] sm:$0xf]
        %v3813 = vld [vmem:[%s3810 + $0x8] sm:$0xf]
        %v3814 = vld [vmem:[%s3810 + $0xc] sm:$0xf]
        %v3815 = vld [vmem:[%s3810 + $0x10] sm:$0xf]
        %v3816 = vld [vmem:[%s3810 + $0x14] sm:$0xf]
        %v3817 = vld [vmem:[%s3810 + $0x18] sm:$0xf]
        %v3818 = vld [vmem:[%s3810 + $0x1c] sm:$0xf]
        %v3819 = vld [vmem:[%s3810 + $0x20] sm:$0xf]
        %v3820 = vld [vmem:[%s3810 + $0x24] sm:$0xf]
        %v3821 = vld [vmem:[%s3810 + $0x28] sm:$0xf]
        %v3822 = vld [vmem:[%s3810 + $0x2c] sm:$0xf]
        %v3823 = vld [vmem:[%s3810 + $0x30] sm:$0xf]
        %v3824 = vld [vmem:[%s3810 + $0x34] sm:$0xf]
        %v3825 = vld [vmem:[%s3810 + $0x38] sm:$0xf]
        %v3826 = vld [vmem:[%s3810 + $0x3c] sm:$0xf]
        %v3827 = vld [vmem:[%s3810 + $0x40] sm:$0xf]
        %v3828 = vld [vmem:[%s3810 + $0x44] sm:$0xf]
        %v3829 = vld [vmem:[%s3810 + $0x48] sm:$0xf]
        %v3830 = vld [vmem:[%s3810 + $0x4c] sm:$0xf]
        %v3831 = vld [vmem:[%s3810 + $0x50] sm:$0xf]
        %v3832 = vld [vmem:[%s3810 + $0x54] sm:$0xf]
        %v3833 = vld [vmem:[%s3810 + $0x58] sm:$0xf]
        %v3834 = vld [vmem:[%s3810 + $0x5c] sm:$0xf]
        %v3835 = vld [vmem:[%s3810 + $0x60] sm:$0x3]
        %v3861 = vunpack.c.l.b16 %v3811
        %v3862 = vunpack.c.l.b16 %v3812
        %v3863 = vunpack.c.l.b16 %v3813
        %v3864 = vunpack.c.l.b16 %v3814
        %v3865 = vunpack.c.l.b16 %v3815
        %v3866 = vunpack.c.l.b16 %v3816
        %v3867 = vunpack.c.l.b16 %v3817
        %v3868 = vunpack.c.l.b16 %v3818
        %v3869 = vunpack.c.l.b16 %v3819
        %v3870 = vunpack.c.l.b16 %v3820
        %v3871 = vunpack.c.l.b16 %v3821
        %v3872 = vunpack.c.l.b16 %v3822
        %v3873 = vunpack.c.l.b16 %v3823
        %v3874 = vunpack.c.l.b16 %v3824
        %v3875 = vunpack.c.l.b16 %v3825
        %v3876 = vunpack.c.l.b16 %v3826
        %v3877 = vunpack.c.l.b16 %v3827
        %v3878 = vunpack.c.l.b16 %v3828
        %v3879 = vunpack.c.l.b16 %v3829
        %v3880 = vunpack.c.l.b16 %v3830
        %v3881 = vunpack.c.l.b16 %v3831
        %v3882 = vunpack.c.l.b16 %v3832
        %v3883 = vunpack.c.l.b16 %v3833
        %v3884 = vunpack.c.l.b16 %v3834
        %v3885 = vunpack.c.l.b16 %v3835
        %v3886 = vpack.c.b16 %v3862, %v3861
        %v3887 = vpack.c.b16 %v3864, %v3863
        %v3888 = vpack.c.b16 %v3866, %v3865
        %v3889 = vpack.c.b16 %v3868, %v3867
        %v3890 = vpack.c.b16 %v3870, %v3869
        %v3891 = vpack.c.b16 %v3872, %v3871
        %v3892 = vpack.c.b16 %v3874, %v3873
        %v3893 = vpack.c.b16 %v3876, %v3875
        %v3894 = vpack.c.b16 %v3878, %v3877
        %v3895 = vpack.c.b16 %v3880, %v3879
        %v3896 = vpack.c.b16 %v3882, %v3881
        %v3897 = vpack.c.b16 %v3884, %v3883
        %v3898 = vpack.c.b16 %v3885, %v3885
        %v3912 = vsel %vm1893, %v3898, 0
        %3914 = vmatprep.subr.bf16.mxu0 0
        %3915 = vmatpush1.bf16.msra.mxu0 %v3893
        %3916 = vmatprep.subr.bf16.mxu0 0
        %3917 = vmatpush1.bf16.msra.mxu0 %v3892
        %3918 = vmatprep.subr.bf16.mxu0 0
        %3919 = vmatpush1.bf16.msra.mxu0 %v3891
        %3920 = vmatprep.subr.bf16.mxu0 0
        %3921 = vmatpush1.bf16.msra.mxu0 %v3890
        %3922 = vmatprep.subr.bf16.mxu0 0
        %3923 = vmatpush1.bf16.msra.mxu0 %v3889
        %3924 = vmatprep.subr.bf16.mxu0 0
        %3925 = vmatpush1.bf16.msra.mxu0 %v3888
        %3926 = vmatprep.subr.bf16.mxu0 0
        %3927 = vmatpush1.bf16.msra.mxu0 %v3887
        %3928 = vmatprep.subr.bf16.mxu0 0
        %3929 = vmatpush1.bf16.msra.mxu0 %v3886
        %3930 = vmatprep.subr.bf16.mxu0 0
        %3931 = vmatpush2.bf16.msra.mxu0 0
        %3932 = vmatprep.subr.bf16.mxu0 0
        %3933 = vmatpush2.bf16.msra.mxu0 0
        %3934 = vmatprep.subr.bf16.mxu0 0
        %3935 = vmatpush2.bf16.msra.mxu0 0
        %3936 = vmatprep.subr.bf16.mxu0 0
        %3937 = vmatpush2.bf16.msra.mxu0 %v3912
        %3938 = vmatprep.subr.bf16.mxu0 0
        %3939 = vmatpush2.bf16.msra.mxu0 %v3897
        %3940 = vmatprep.subr.bf16.mxu0 0
        %3941 = vmatpush2.bf16.msra.mxu0 %v3896
        %3942 = vmatprep.subr.bf16.mxu0 0
        %3943 = vmatpush2.bf16.msra.mxu0 %v3895
        %3944 = vmatprep.subr.bf16.mxu0 0
        %3945 = vmatpush2.bf16.msra.mxu0 %v3894
        %3946 = vmatprep.mubr.bf16.mxu0 %v1891
        %3947 = vmatmul.mubr.bf16.gmra.mxu0 %v1787
        %v3948 = vpop.f32.mrf.mxu0
        %v3949 = vadd.f32 0.0, %v3948
        %v3950 = vpop.f32.mrf.mxu0
        %v3951 = vpop.f32.mrf.mxu0
        %v3952 = vpop.f32.mrf.mxu0
        %3953 = vdwg.mxu0
        %v3954 = vpack.c.bf16 %v3949, %v3949
        %s3955 = scalar_lea.vmem %s5, 80
        %v3956 = vld [vmem:[%s3955] sm:$0xf]
        %v3957 = vld [vmem:[%s3955 + $0x4] sm:$0xf]
        %v3960 = vunpack.c.l.b16 %v3956
        %v3961 = vunpack.c.l.b16 %v3957
        %v3962 = vpack.c.b16 %v3961, %v3960
        %v3964 = vsel %vm2093, %v3962, 0
        %v3967 = vsel %vm2097, %v3954, 0
        %3969 = vmatprep.subr.bf16.mxu0 0
        %3970 = vmatpush1.bf16.msra.mxu0 0
        %3971 = vmatprep.subr.bf16.mxu0 0
        %3972 = vmatpush1.bf16.msra.mxu0 0
        %3973 = vmatprep.subr.bf16.mxu0 0
        %3974 = vmatpush1.bf16.msra.mxu0 0
        %3975 = vmatprep.subr.bf16.mxu0 0
        %3976 = vmatpush1.bf16.msra.mxu0 0
        %3977 = vmatprep.subr.bf16.mxu0 0
        %3978 = vmatpush1.bf16.msra.mxu0 0
        %3979 = vmatprep.subr.bf16.mxu0 0
        %3980 = vmatpush1.bf16.msra.mxu0 0
        %3981 = vmatprep.subr.bf16.mxu0 0
        %3982 = vmatpush1.bf16.msra.mxu0 0
        %3983 = vmatprep.subr.bf16.mxu0 0
        %3984 = vmatpush1.bf16.msra.mxu0 %v3967
        %3985 = vmatprep.subr.bf16.mxu0 0
        %3986 = vmatpush2.bf16.msra.mxu0 0
        %3987 = vmatprep.subr.bf16.mxu0 0
        %3988 = vmatpush2.bf16.msra.mxu0 0
        %3989 = vmatprep.subr.bf16.mxu0 0
        %3990 = vmatpush2.bf16.msra.mxu0 0
        %3991 = vmatprep.subr.bf16.mxu0 0
        %3992 = vmatpush2.bf16.msra.mxu0 0
        %3993 = vmatprep.subr.bf16.mxu0 0
        %3994 = vmatpush2.bf16.msra.mxu0 0
        %3995 = vmatprep.subr.bf16.mxu0 0
        %3996 = vmatpush2.bf16.msra.mxu0 0
        %3997 = vmatprep.subr.bf16.mxu0 0
        %3998 = vmatpush2.bf16.msra.mxu0 0
        %3999 = vmatprep.subr.bf16.mxu0 0
        %4000 = vmatpush2.bf16.msra.mxu0 0
        %4001 = vmatprep.mubr.bf16.mxu0 0
        %4002 = vmatmul.mubr.bf16.gmra.mxu0 %v3964
        %v4003 = vpop.f32.mrf.mxu0
        %v4004 = vadd.f32 0.0, %v4003
        %v4005 = vpop.f32.mrf.mxu0
        %v4006 = vpop.f32.mrf.mxu0
        %v4007 = vadd.f32 0.0, %v4006
        %v4008 = vpop.f32.mrf.mxu0
        %4009 = vdwg.mxu0
        %v4010 = vadd.f32 %v3808, %v4004
        %v4011 = vadd.f32 %v3809, %v4007
        %s4012 = scalar_lea.vmem %s4, 1100
        %v4013 = vld [vmem:[%s4012] sm:$0xf]
        %v4014 = vld [vmem:[%s4012 + $0x4] sm:$0xf]
        %v4015 = vld [vmem:[%s4012 + $0x8] sm:$0xf]
        %v4016 = vld [vmem:[%s4012 + $0xc] sm:$0xf]
        %v4017 = vld [vmem:[%s4012 + $0x10] sm:$0xf]
        %v4018 = vld [vmem:[%s4012 + $0x14] sm:$0xf]
        %v4019 = vld [vmem:[%s4012 + $0x18] sm:$0xf]
        %v4020 = vld [vmem:[%s4012 + $0x1c] sm:$0xf]
        %v4021 = vld [vmem:[%s4012 + $0x20] sm:$0xf]
        %v4022 = vld [vmem:[%s4012 + $0x24] sm:$0xf]
        %v4023 = vld [vmem:[%s4012 + $0x28] sm:$0xf]
        %v4024 = vld [vmem:[%s4012 + $0x2c] sm:$0xf]
        %v4025 = vld [vmem:[%s4012 + $0x30] sm:$0xf]
        %v4026 = vld [vmem:[%s4012 + $0x34] sm:$0xf]
        %v4027 = vld [vmem:[%s4012 + $0x38] sm:$0xf]
        %v4028 = vld [vmem:[%s4012 + $0x3c] sm:$0xf]
        %v4029 = vld [vmem:[%s4012 + $0x40] sm:$0xf]
        %v4030 = vld [vmem:[%s4012 + $0x44] sm:$0xf]
        %v4031 = vld [vmem:[%s4012 + $0x48] sm:$0xf]
        %v4032 = vld [vmem:[%s4012 + $0x4c] sm:$0xf]
        %v4033 = vld [vmem:[%s4012 + $0x50] sm:$0xf]
        %v4034 = vld [vmem:[%s4012 + $0x54] sm:$0xf]
        %v4035 = vld [vmem:[%s4012 + $0x58] sm:$0xf]
        %v4036 = vld [vmem:[%s4012 + $0x5c] sm:$0xf]
        %v4037 = vld [vmem:[%s4012 + $0x60] sm:$0x3]
        %v4063 = vunpack.c.l.b16 %v4013
        %v4064 = vunpack.c.l.b16 %v4014
        %v4065 = vunpack.c.l.b16 %v4015
        %v4066 = vunpack.c.l.b16 %v4016
        %v4067 = vunpack.c.l.b16 %v4017
        %v4068 = vunpack.c.l.b16 %v4018
        %v4069 = vunpack.c.l.b16 %v4019
        %v4070 = vunpack.c.l.b16 %v4020
        %v4071 = vunpack.c.l.b16 %v4021
        %v4072 = vunpack.c.l.b16 %v4022
        %v4073 = vunpack.c.l.b16 %v4023
        %v4074 = vunpack.c.l.b16 %v4024
        %v4075 = vunpack.c.l.b16 %v4025
        %v4076 = vunpack.c.l.b16 %v4026
        %v4077 = vunpack.c.l.b16 %v4027
        %v4078 = vunpack.c.l.b16 %v4028
        %v4079 = vunpack.c.l.b16 %v4029
        %v4080 = vunpack.c.l.b16 %v4030
        %v4081 = vunpack.c.l.b16 %v4031
        %v4082 = vunpack.c.l.b16 %v4032
        %v4083 = vunpack.c.l.b16 %v4033
        %v4084 = vunpack.c.l.b16 %v4034
        %v4085 = vunpack.c.l.b16 %v4035
        %v4086 = vunpack.c.l.b16 %v4036
        %v4087 = vunpack.c.l.b16 %v4037
        %v4088 = vpack.c.b16 %v4064, %v4063
        %v4089 = vpack.c.b16 %v4066, %v4065
        %v4090 = vpack.c.b16 %v4068, %v4067
        %v4091 = vpack.c.b16 %v4070, %v4069
        %v4092 = vpack.c.b16 %v4072, %v4071
        %v4093 = vpack.c.b16 %v4074, %v4073
        %v4094 = vpack.c.b16 %v4076, %v4075
        %v4095 = vpack.c.b16 %v4078, %v4077
        %v4096 = vpack.c.b16 %v4080, %v4079
        %v4097 = vpack.c.b16 %v4082, %v4081
        %v4098 = vpack.c.b16 %v4084, %v4083
        %v4099 = vpack.c.b16 %v4086, %v4085
        %v4100 = vpack.c.b16 %v4087, %v4087
        %v4114 = vsel %vm1893, %v4100, 0
        %4116 = vmatprep.subr.bf16.mxu0 0
        %4117 = vmatpush1.bf16.msra.mxu0 %v4095
        %4118 = vmatprep.subr.bf16.mxu0 0
        %4119 = vmatpush1.bf16.msra.mxu0 %v4094
        %4120 = vmatprep.subr.bf16.mxu0 0
        %4121 = vmatpush1.bf16.msra.mxu0 %v4093
        %4122 = vmatprep.subr.bf16.mxu0 0
        %4123 = vmatpush1.bf16.msra.mxu0 %v4092
        %4124 = vmatprep.subr.bf16.mxu0 0
        %4125 = vmatpush1.bf16.msra.mxu0 %v4091
        %4126 = vmatprep.subr.bf16.mxu0 0
        %4127 = vmatpush1.bf16.msra.mxu0 %v4090
        %4128 = vmatprep.subr.bf16.mxu0 0
        %4129 = vmatpush1.bf16.msra.mxu0 %v4089
        %4130 = vmatprep.subr.bf16.mxu0 0
        %4131 = vmatpush1.bf16.msra.mxu0 %v4088
        %4132 = vmatprep.subr.bf16.mxu0 0
        %4133 = vmatpush2.bf16.msra.mxu0 0
        %4134 = vmatprep.subr.bf16.mxu0 0
        %4135 = vmatpush2.bf16.msra.mxu0 0
        %4136 = vmatprep.subr.bf16.mxu0 0
        %4137 = vmatpush2.bf16.msra.mxu0 0
        %4138 = vmatprep.subr.bf16.mxu0 0
        %4139 = vmatpush2.bf16.msra.mxu0 %v4114
        %4140 = vmatprep.subr.bf16.mxu0 0
        %4141 = vmatpush2.bf16.msra.mxu0 %v4099
        %4142 = vmatprep.subr.bf16.mxu0 0
        %4143 = vmatpush2.bf16.msra.mxu0 %v4098
        %4144 = vmatprep.subr.bf16.mxu0 0
        %4145 = vmatpush2.bf16.msra.mxu0 %v4097
        %4146 = vmatprep.subr.bf16.mxu0 0
        %4147 = vmatpush2.bf16.msra.mxu0 %v4096
        %4148 = vmatprep.mubr.bf16.mxu0 %v1891
        %4149 = vmatmul.mubr.bf16.gmra.mxu0 %v1787
        %v4150 = vpop.f32.mrf.mxu0
        %v4151 = vadd.f32 0.0, %v4150
        %v4152 = vpop.f32.mrf.mxu0
        %v4153 = vpop.f32.mrf.mxu0
        %v4154 = vpop.f32.mrf.mxu0
        %4155 = vdwg.mxu0
        %v4156 = vpack.c.bf16 %v4151, %v4151
        %s4157 = scalar_lea.vmem %s5, 88
        %v4158 = vld [vmem:[%s4157] sm:$0xf]
        %v4159 = vld [vmem:[%s4157 + $0x4] sm:$0xf]
        %v4162 = vunpack.c.l.b16 %v4158
        %v4163 = vunpack.c.l.b16 %v4159
        %v4164 = vpack.c.b16 %v4163, %v4162
        %v4166 = vsel %vm2093, %v4164, 0
        %v4169 = vsel %vm2097, %v4156, 0
        %4171 = vmatprep.subr.bf16.mxu0 0
        %4172 = vmatpush1.bf16.msra.mxu0 0
        %4173 = vmatprep.subr.bf16.mxu0 0
        %4174 = vmatpush1.bf16.msra.mxu0 0
        %4175 = vmatprep.subr.bf16.mxu0 0
        %4176 = vmatpush1.bf16.msra.mxu0 0
        %4177 = vmatprep.subr.bf16.mxu0 0
        %4178 = vmatpush1.bf16.msra.mxu0 0
        %4179 = vmatprep.subr.bf16.mxu0 0
        %4180 = vmatpush1.bf16.msra.mxu0 0
        %4181 = vmatprep.subr.bf16.mxu0 0
        %4182 = vmatpush1.bf16.msra.mxu0 0
        %4183 = vmatprep.subr.bf16.mxu0 0
        %4184 = vmatpush1.bf16.msra.mxu0 0
        %4185 = vmatprep.subr.bf16.mxu0 0
        %4186 = vmatpush1.bf16.msra.mxu0 %v4169
        %4187 = vmatprep.subr.bf16.mxu0 0
        %4188 = vmatpush2.bf16.msra.mxu0 0
        %4189 = vmatprep.subr.bf16.mxu0 0
        %4190 = vmatpush2.bf16.msra.mxu0 0
        %4191 = vmatprep.subr.bf16.mxu0 0
        %4192 = vmatpush2.bf16.msra.mxu0 0
        %4193 = vmatprep.subr.bf16.mxu0 0
        %4194 = vmatpush2.bf16.msra.mxu0 0
        %4195 = vmatprep.subr.bf16.mxu0 0
        %4196 = vmatpush2.bf16.msra.mxu0 0
        %4197 = vmatprep.subr.bf16.mxu0 0
        %4198 = vmatpush2.bf16.msra.mxu0 0
        %4199 = vmatprep.subr.bf16.mxu0 0
        %4200 = vmatpush2.bf16.msra.mxu0 0
        %4201 = vmatprep.subr.bf16.mxu0 0
        %4202 = vmatpush2.bf16.msra.mxu0 0
        %4203 = vmatprep.mubr.bf16.mxu0 0
        %4204 = vmatmul.mubr.bf16.gmra.mxu0 %v4166
        %v4205 = vpop.f32.mrf.mxu0
        %v4206 = vadd.f32 0.0, %v4205
        %v4207 = vpop.f32.mrf.mxu0
        %v4208 = vpop.f32.mrf.mxu0
        %v4209 = vadd.f32 0.0, %v4208
        %v4210 = vpop.f32.mrf.mxu0
        %4211 = vdwg.mxu0
        %v4212 = vadd.f32 %v4010, %v4206
        %v4213 = vadd.f32 %v4011, %v4209
        %s4214 = scalar_lea.vmem %s4, 1200
        %v4215 = vld [vmem:[%s4214] sm:$0xf]
        %v4216 = vld [vmem:[%s4214 + $0x4] sm:$0xf]
        %v4217 = vld [vmem:[%s4214 + $0x8] sm:$0xf]
        %v4218 = vld [vmem:[%s4214 + $0xc] sm:$0xf]
        %v4219 = vld [vmem:[%s4214 + $0x10] sm:$0xf]
        %v4220 = vld [vmem:[%s4214 + $0x14] sm:$0xf]
        %v4221 = vld [vmem:[%s4214 + $0x18] sm:$0xf]
        %v4222 = vld [vmem:[%s4214 + $0x1c] sm:$0xf]
        %v4223 = vld [vmem:[%s4214 + $0x20] sm:$0xf]
        %v4224 = vld [vmem:[%s4214 + $0x24] sm:$0xf]
        %v4225 = vld [vmem:[%s4214 + $0x28] sm:$0xf]
        %v4226 = vld [vmem:[%s4214 + $0x2c] sm:$0xf]
        %v4227 = vld [vmem:[%s4214 + $0x30] sm:$0xf]
        %v4228 = vld [vmem:[%s4214 + $0x34] sm:$0xf]
        %v4229 = vld [vmem:[%s4214 + $0x38] sm:$0xf]
        %v4230 = vld [vmem:[%s4214 + $0x3c] sm:$0xf]
        %v4231 = vld [vmem:[%s4214 + $0x40] sm:$0xf]
        %v4232 = vld [vmem:[%s4214 + $0x44] sm:$0xf]
        %v4233 = vld [vmem:[%s4214 + $0x48] sm:$0xf]
        %v4234 = vld [vmem:[%s4214 + $0x4c] sm:$0xf]
        %v4235 = vld [vmem:[%s4214 + $0x50] sm:$0xf]
        %v4236 = vld [vmem:[%s4214 + $0x54] sm:$0xf]
        %v4237 = vld [vmem:[%s4214 + $0x58] sm:$0xf]
        %v4238 = vld [vmem:[%s4214 + $0x5c] sm:$0xf]
        %v4239 = vld [vmem:[%s4214 + $0x60] sm:$0x3]
        %v4265 = vunpack.c.l.b16 %v4215
        %v4266 = vunpack.c.l.b16 %v4216
        %v4267 = vunpack.c.l.b16 %v4217
        %v4268 = vunpack.c.l.b16 %v4218
        %v4269 = vunpack.c.l.b16 %v4219
        %v4270 = vunpack.c.l.b16 %v4220
        %v4271 = vunpack.c.l.b16 %v4221
        %v4272 = vunpack.c.l.b16 %v4222
        %v4273 = vunpack.c.l.b16 %v4223
        %v4274 = vunpack.c.l.b16 %v4224
        %v4275 = vunpack.c.l.b16 %v4225
        %v4276 = vunpack.c.l.b16 %v4226
        %v4277 = vunpack.c.l.b16 %v4227
        %v4278 = vunpack.c.l.b16 %v4228
        %v4279 = vunpack.c.l.b16 %v4229
        %v4280 = vunpack.c.l.b16 %v4230
        %v4281 = vunpack.c.l.b16 %v4231
        %v4282 = vunpack.c.l.b16 %v4232
        %v4283 = vunpack.c.l.b16 %v4233
        %v4284 = vunpack.c.l.b16 %v4234
        %v4285 = vunpack.c.l.b16 %v4235
        %v4286 = vunpack.c.l.b16 %v4236
        %v4287 = vunpack.c.l.b16 %v4237
        %v4288 = vunpack.c.l.b16 %v4238
        %v4289 = vunpack.c.l.b16 %v4239
        %v4290 = vpack.c.b16 %v4266, %v4265
        %v4291 = vpack.c.b16 %v4268, %v4267
        %v4292 = vpack.c.b16 %v4270, %v4269
        %v4293 = vpack.c.b16 %v4272, %v4271
        %v4294 = vpack.c.b16 %v4274, %v4273
        %v4295 = vpack.c.b16 %v4276, %v4275
        %v4296 = vpack.c.b16 %v4278, %v4277
        %v4297 = vpack.c.b16 %v4280, %v4279
        %v4298 = vpack.c.b16 %v4282, %v4281
        %v4299 = vpack.c.b16 %v4284, %v4283
        %v4300 = vpack.c.b16 %v4286, %v4285
        %v4301 = vpack.c.b16 %v4288, %v4287
        %v4302 = vpack.c.b16 %v4289, %v4289
        %v4316 = vsel %vm1893, %v4302, 0
        %4318 = vmatprep.subr.bf16.mxu0 0
        %4319 = vmatpush1.bf16.msra.mxu0 %v4297
        %4320 = vmatprep.subr.bf16.mxu0 0
        %4321 = vmatpush1.bf16.msra.mxu0 %v4296
        %4322 = vmatprep.subr.bf16.mxu0 0
        %4323 = vmatpush1.bf16.msra.mxu0 %v4295
        %4324 = vmatprep.subr.bf16.mxu0 0
        %4325 = vmatpush1.bf16.msra.mxu0 %v4294
        %4326 = vmatprep.subr.bf16.mxu0 0
        %4327 = vmatpush1.bf16.msra.mxu0 %v4293
        %4328 = vmatprep.subr.bf16.mxu0 0
        %4329 = vmatpush1.bf16.msra.mxu0 %v4292
        %4330 = vmatprep.subr.bf16.mxu0 0
        %4331 = vmatpush1.bf16.msra.mxu0 %v4291
        %4332 = vmatprep.subr.bf16.mxu0 0
        %4333 = vmatpush1.bf16.msra.mxu0 %v4290
        %4334 = vmatprep.subr.bf16.mxu0 0
        %4335 = vmatpush2.bf16.msra.mxu0 0
        %4336 = vmatprep.subr.bf16.mxu0 0
        %4337 = vmatpush2.bf16.msra.mxu0 0
        %4338 = vmatprep.subr.bf16.mxu0 0
        %4339 = vmatpush2.bf16.msra.mxu0 0
        %4340 = vmatprep.subr.bf16.mxu0 0
        %4341 = vmatpush2.bf16.msra.mxu0 %v4316
        %4342 = vmatprep.subr.bf16.mxu0 0
        %4343 = vmatpush2.bf16.msra.mxu0 %v4301
        %4344 = vmatprep.subr.bf16.mxu0 0
        %4345 = vmatpush2.bf16.msra.mxu0 %v4300
        %4346 = vmatprep.subr.bf16.mxu0 0
        %4347 = vmatpush2.bf16.msra.mxu0 %v4299
        %4348 = vmatprep.subr.bf16.mxu0 0
        %4349 = vmatpush2.bf16.msra.mxu0 %v4298
        %4350 = vmatprep.mubr.bf16.mxu0 %v1891
        %4351 = vmatmul.mubr.bf16.gmra.mxu0 %v1787
        %v4352 = vpop.f32.mrf.mxu0
        %v4353 = vadd.f32 0.0, %v4352
        %v4354 = vpop.f32.mrf.mxu0
        %v4355 = vpop.f32.mrf.mxu0
        %v4356 = vpop.f32.mrf.mxu0
        %4357 = vdwg.mxu0
        %v4358 = vpack.c.bf16 %v4353, %v4353
        %s4359 = scalar_lea.vmem %s5, 96
        %v4360 = vld [vmem:[%s4359] sm:$0xf]
        %v4361 = vld [vmem:[%s4359 + $0x4] sm:$0xf]
        %v4364 = vunpack.c.l.b16 %v4360
        %v4365 = vunpack.c.l.b16 %v4361
        %v4366 = vpack.c.b16 %v4365, %v4364
        %v4368 = vsel %vm2093, %v4366, 0
        %v4371 = vsel %vm2097, %v4358, 0
        %4373 = vmatprep.subr.bf16.mxu0 0
        %4374 = vmatpush1.bf16.msra.mxu0 0
        %4375 = vmatprep.subr.bf16.mxu0 0
        %4376 = vmatpush1.bf16.msra.mxu0 0
        %4377 = vmatprep.subr.bf16.mxu0 0
        %4378 = vmatpush1.bf16.msra.mxu0 0
        %4379 = vmatprep.subr.bf16.mxu0 0
        %4380 = vmatpush1.bf16.msra.mxu0 0
        %4381 = vmatprep.subr.bf16.mxu0 0
        %4382 = vmatpush1.bf16.msra.mxu0 0
        %4383 = vmatprep.subr.bf16.mxu0 0
        %4384 = vmatpush1.bf16.msra.mxu0 0
        %4385 = vmatprep.subr.bf16.mxu0 0
        %4386 = vmatpush1.bf16.msra.mxu0 0
        %4387 = vmatprep.subr.bf16.mxu0 0
        %4388 = vmatpush1.bf16.msra.mxu0 %v4371
        %4389 = vmatprep.subr.bf16.mxu0 0
        %4390 = vmatpush2.bf16.msra.mxu0 0
        %4391 = vmatprep.subr.bf16.mxu0 0
        %4392 = vmatpush2.bf16.msra.mxu0 0
        %4393 = vmatprep.subr.bf16.mxu0 0
        %4394 = vmatpush2.bf16.msra.mxu0 0
        %4395 = vmatprep.subr.bf16.mxu0 0
        %4396 = vmatpush2.bf16.msra.mxu0 0
        %4397 = vmatprep.subr.bf16.mxu0 0
        %4398 = vmatpush2.bf16.msra.mxu0 0
        %4399 = vmatprep.subr.bf16.mxu0 0
        %4400 = vmatpush2.bf16.msra.mxu0 0
        %4401 = vmatprep.subr.bf16.mxu0 0
        %4402 = vmatpush2.bf16.msra.mxu0 0
        %4403 = vmatprep.subr.bf16.mxu0 0
        %4404 = vmatpush2.bf16.msra.mxu0 0
        %4405 = vmatprep.mubr.bf16.mxu0 0
        %4406 = vmatmul.mubr.bf16.gmra.mxu0 %v4368
        %v4407 = vpop.f32.mrf.mxu0
        %v4408 = vadd.f32 0.0, %v4407
        %v4409 = vpop.f32.mrf.mxu0
        %v4410 = vpop.f32.mrf.mxu0
        %v4411 = vadd.f32 0.0, %v4410
        %v4412 = vpop.f32.mrf.mxu0
        %4413 = vdwg.mxu0
        %v4414 = vadd.f32 %v4212, %v4408
        %v4415 = vadd.f32 %v4213, %v4411
        %s4416 = scalar_lea.vmem %s4, 1300
        %v4417 = vld [vmem:[%s4416] sm:$0xf]
        %v4418 = vld [vmem:[%s4416 + $0x4] sm:$0xf]
        %v4419 = vld [vmem:[%s4416 + $0x8] sm:$0xf]
        %v4420 = vld [vmem:[%s4416 + $0xc] sm:$0xf]
        %v4421 = vld [vmem:[%s4416 + $0x10] sm:$0xf]
        %v4422 = vld [vmem:[%s4416 + $0x14] sm:$0xf]
        %v4423 = vld [vmem:[%s4416 + $0x18] sm:$0xf]
        %v4424 = vld [vmem:[%s4416 + $0x1c] sm:$0xf]
        %v4425 = vld [vmem:[%s4416 + $0x20] sm:$0xf]
        %v4426 = vld [vmem:[%s4416 + $0x24] sm:$0xf]
        %v4427 = vld [vmem:[%s4416 + $0x28] sm:$0xf]
        %v4428 = vld [vmem:[%s4416 + $0x2c] sm:$0xf]
        %v4429 = vld [vmem:[%s4416 + $0x30] sm:$0xf]
        %v4430 = vld [vmem:[%s4416 + $0x34] sm:$0xf]
        %v4431 = vld [vmem:[%s4416 + $0x38] sm:$0xf]
        %v4432 = vld [vmem:[%s4416 + $0x3c] sm:$0xf]
        %v4433 = vld [vmem:[%s4416 + $0x40] sm:$0xf]
        %v4434 = vld [vmem:[%s4416 + $0x44] sm:$0xf]
        %v4435 = vld [vmem:[%s4416 + $0x48] sm:$0xf]
        %v4436 = vld [vmem:[%s4416 + $0x4c] sm:$0xf]
        %v4437 = vld [vmem:[%s4416 + $0x50] sm:$0xf]
        %v4438 = vld [vmem:[%s4416 + $0x54] sm:$0xf]
        %v4439 = vld [vmem:[%s4416 + $0x58] sm:$0xf]
        %v4440 = vld [vmem:[%s4416 + $0x5c] sm:$0xf]
        %v4441 = vld [vmem:[%s4416 + $0x60] sm:$0x3]
        %v4467 = vunpack.c.l.b16 %v4417
        %v4468 = vunpack.c.l.b16 %v4418
        %v4469 = vunpack.c.l.b16 %v4419
        %v4470 = vunpack.c.l.b16 %v4420
        %v4471 = vunpack.c.l.b16 %v4421
        %v4472 = vunpack.c.l.b16 %v4422
        %v4473 = vunpack.c.l.b16 %v4423
        %v4474 = vunpack.c.l.b16 %v4424
        %v4475 = vunpack.c.l.b16 %v4425
        %v4476 = vunpack.c.l.b16 %v4426
        %v4477 = vunpack.c.l.b16 %v4427
        %v4478 = vunpack.c.l.b16 %v4428
        %v4479 = vunpack.c.l.b16 %v4429
        %v4480 = vunpack.c.l.b16 %v4430
        %v4481 = vunpack.c.l.b16 %v4431
        %v4482 = vunpack.c.l.b16 %v4432
        %v4483 = vunpack.c.l.b16 %v4433
        %v4484 = vunpack.c.l.b16 %v4434
        %v4485 = vunpack.c.l.b16 %v4435
        %v4486 = vunpack.c.l.b16 %v4436
        %v4487 = vunpack.c.l.b16 %v4437
        %v4488 = vunpack.c.l.b16 %v4438
        %v4489 = vunpack.c.l.b16 %v4439
        %v4490 = vunpack.c.l.b16 %v4440
        %v4491 = vunpack.c.l.b16 %v4441
        %v4492 = vpack.c.b16 %v4468, %v4467
        %v4493 = vpack.c.b16 %v4470, %v4469
        %v4494 = vpack.c.b16 %v4472, %v4471
        %v4495 = vpack.c.b16 %v4474, %v4473
        %v4496 = vpack.c.b16 %v4476, %v4475
        %v4497 = vpack.c.b16 %v4478, %v4477
        %v4498 = vpack.c.b16 %v4480, %v4479
        %v4499 = vpack.c.b16 %v4482, %v4481
        %v4500 = vpack.c.b16 %v4484, %v4483
        %v4501 = vpack.c.b16 %v4486, %v4485
        %v4502 = vpack.c.b16 %v4488, %v4487
        %v4503 = vpack.c.b16 %v4490, %v4489
        %v4504 = vpack.c.b16 %v4491, %v4491
        %v4518 = vsel %vm1893, %v4504, 0
        %4520 = vmatprep.subr.bf16.mxu0 0
        %4521 = vmatpush1.bf16.msra.mxu0 %v4499
        %4522 = vmatprep.subr.bf16.mxu0 0
        %4523 = vmatpush1.bf16.msra.mxu0 %v4498
        %4524 = vmatprep.subr.bf16.mxu0 0
        %4525 = vmatpush1.bf16.msra.mxu0 %v4497
        %4526 = vmatprep.subr.bf16.mxu0 0
        %4527 = vmatpush1.bf16.msra.mxu0 %v4496
        %4528 = vmatprep.subr.bf16.mxu0 0
        %4529 = vmatpush1.bf16.msra.mxu0 %v4495
        %4530 = vmatprep.subr.bf16.mxu0 0
        %4531 = vmatpush1.bf16.msra.mxu0 %v4494
        %4532 = vmatprep.subr.bf16.mxu0 0
        %4533 = vmatpush1.bf16.msra.mxu0 %v4493
        %4534 = vmatprep.subr.bf16.mxu0 0
        %4535 = vmatpush1.bf16.msra.mxu0 %v4492
        %4536 = vmatprep.subr.bf16.mxu0 0
        %4537 = vmatpush2.bf16.msra.mxu0 0
        %4538 = vmatprep.subr.bf16.mxu0 0
        %4539 = vmatpush2.bf16.msra.mxu0 0
        %4540 = vmatprep.subr.bf16.mxu0 0
        %4541 = vmatpush2.bf16.msra.mxu0 0
        %4542 = vmatprep.subr.bf16.mxu0 0
        %4543 = vmatpush2.bf16.msra.mxu0 %v4518
        %4544 = vmatprep.subr.bf16.mxu0 0
        %4545 = vmatpush2.bf16.msra.mxu0 %v4503
        %4546 = vmatprep.subr.bf16.mxu0 0
        %4547 = vmatpush2.bf16.msra.mxu0 %v4502
        %4548 = vmatprep.subr.bf16.mxu0 0
        %4549 = vmatpush2.bf16.msra.mxu0 %v4501
        %4550 = vmatprep.subr.bf16.mxu0 0
        %4551 = vmatpush2.bf16.msra.mxu0 %v4500
        %4552 = vmatprep.mubr.bf16.mxu0 %v1891
        %4553 = vmatmul.mubr.bf16.gmra.mxu0 %v1787
        %v4554 = vpop.f32.mrf.mxu0
        %v4555 = vadd.f32 0.0, %v4554
        %v4556 = vpop.f32.mrf.mxu0
        %v4557 = vpop.f32.mrf.mxu0
        %v4558 = vpop.f32.mrf.mxu0
        %4559 = vdwg.mxu0
        %v4560 = vpack.c.bf16 %v4555, %v4555
        %s4561 = scalar_lea.vmem %s5, 104
        %v4562 = vld [vmem:[%s4561] sm:$0xf]
        %v4563 = vld [vmem:[%s4561 + $0x4] sm:$0xf]
        %v4566 = vunpack.c.l.b16 %v4562
        %v4567 = vunpack.c.l.b16 %v4563
        %v4568 = vpack.c.b16 %v4567, %v4566
        %v4570 = vsel %vm2093, %v4568, 0
        %v4573 = vsel %vm2097, %v4560, 0
        %4575 = vmatprep.subr.bf16.mxu0 0
        %4576 = vmatpush1.bf16.msra.mxu0 0
        %4577 = vmatprep.subr.bf16.mxu0 0
        %4578 = vmatpush1.bf16.msra.mxu0 0
        %4579 = vmatprep.subr.bf16.mxu0 0
        %4580 = vmatpush1.bf16.msra.mxu0 0
        %4581 = vmatprep.subr.bf16.mxu0 0
        %4582 = vmatpush1.bf16.msra.mxu0 0
        %4583 = vmatprep.subr.bf16.mxu0 0
        %4584 = vmatpush1.bf16.msra.mxu0 0
        %4585 = vmatprep.subr.bf16.mxu0 0
        %4586 = vmatpush1.bf16.msra.mxu0 0
        %4587 = vmatprep.subr.bf16.mxu0 0
        %4588 = vmatpush1.bf16.msra.mxu0 0
        %4589 = vmatprep.subr.bf16.mxu0 0
        %4590 = vmatpush1.bf16.msra.mxu0 %v4573
        %4591 = vmatprep.subr.bf16.mxu0 0
        %4592 = vmatpush2.bf16.msra.mxu0 0
        %4593 = vmatprep.subr.bf16.mxu0 0
        %4594 = vmatpush2.bf16.msra.mxu0 0
        %4595 = vmatprep.subr.bf16.mxu0 0
        %4596 = vmatpush2.bf16.msra.mxu0 0
        %4597 = vmatprep.subr.bf16.mxu0 0
        %4598 = vmatpush2.bf16.msra.mxu0 0
        %4599 = vmatprep.subr.bf16.mxu0 0
        %4600 = vmatpush2.bf16.msra.mxu0 0
        %4601 = vmatprep.subr.bf16.mxu0 0
        %4602 = vmatpush2.bf16.msra.mxu0 0
        %4603 = vmatprep.subr.bf16.mxu0 0
        %4604 = vmatpush2.bf16.msra.mxu0 0
        %4605 = vmatprep.subr.bf16.mxu0 0
        %4606 = vmatpush2.bf16.msra.mxu0 0
        %4607 = vmatprep.mubr.bf16.mxu0 0
        %4608 = vmatmul.mubr.bf16.gmra.mxu0 %v4570
        %v4609 = vpop.f32.mrf.mxu0
        %v4610 = vadd.f32 0.0, %v4609
        %v4611 = vpop.f32.mrf.mxu0
        %v4612 = vpop.f32.mrf.mxu0
        %v4613 = vadd.f32 0.0, %v4612
        %v4614 = vpop.f32.mrf.mxu0
        %4615 = vdwg.mxu0
        %v4616 = vadd.f32 %v4414, %v4610
        %v4617 = vadd.f32 %v4415, %v4613
        %s4618 = scalar_lea.vmem %s4, 1400
        %v4619 = vld [vmem:[%s4618] sm:$0xf]
        %v4620 = vld [vmem:[%s4618 + $0x4] sm:$0xf]
        %v4621 = vld [vmem:[%s4618 + $0x8] sm:$0xf]
        %v4622 = vld [vmem:[%s4618 + $0xc] sm:$0xf]
        %v4623 = vld [vmem:[%s4618 + $0x10] sm:$0xf]
        %v4624 = vld [vmem:[%s4618 + $0x14] sm:$0xf]
        %v4625 = vld [vmem:[%s4618 + $0x18] sm:$0xf]
        %v4626 = vld [vmem:[%s4618 + $0x1c] sm:$0xf]
        %v4627 = vld [vmem:[%s4618 + $0x20] sm:$0xf]
        %v4628 = vld [vmem:[%s4618 + $0x24] sm:$0xf]
        %v4629 = vld [vmem:[%s4618 + $0x28] sm:$0xf]
        %v4630 = vld [vmem:[%s4618 + $0x2c] sm:$0xf]
        %v4631 = vld [vmem:[%s4618 + $0x30] sm:$0xf]
        %v4632 = vld [vmem:[%s4618 + $0x34] sm:$0xf]
        %v4633 = vld [vmem:[%s4618 + $0x38] sm:$0xf]
        %v4634 = vld [vmem:[%s4618 + $0x3c] sm:$0xf]
        %v4635 = vld [vmem:[%s4618 + $0x40] sm:$0xf]
        %v4636 = vld [vmem:[%s4618 + $0x44] sm:$0xf]
        %v4637 = vld [vmem:[%s4618 + $0x48] sm:$0xf]
        %v4638 = vld [vmem:[%s4618 + $0x4c] sm:$0xf]
        %v4639 = vld [vmem:[%s4618 + $0x50] sm:$0xf]
        %v4640 = vld [vmem:[%s4618 + $0x54] sm:$0xf]
        %v4641 = vld [vmem:[%s4618 + $0x58] sm:$0xf]
        %v4642 = vld [vmem:[%s4618 + $0x5c] sm:$0xf]
        %v4643 = vld [vmem:[%s4618 + $0x60] sm:$0x3]
        %v4669 = vunpack.c.l.b16 %v4619
        %v4670 = vunpack.c.l.b16 %v4620
        %v4671 = vunpack.c.l.b16 %v4621
        %v4672 = vunpack.c.l.b16 %v4622
        %v4673 = vunpack.c.l.b16 %v4623
        %v4674 = vunpack.c.l.b16 %v4624
        %v4675 = vunpack.c.l.b16 %v4625
        %v4676 = vunpack.c.l.b16 %v4626
        %v4677 = vunpack.c.l.b16 %v4627
        %v4678 = vunpack.c.l.b16 %v4628
        %v4679 = vunpack.c.l.b16 %v4629
        %v4680 = vunpack.c.l.b16 %v4630
        %v4681 = vunpack.c.l.b16 %v4631
        %v4682 = vunpack.c.l.b16 %v4632
        %v4683 = vunpack.c.l.b16 %v4633
        %v4684 = vunpack.c.l.b16 %v4634
        %v4685 = vunpack.c.l.b16 %v4635
        %v4686 = vunpack.c.l.b16 %v4636
        %v4687 = vunpack.c.l.b16 %v4637
        %v4688 = vunpack.c.l.b16 %v4638
        %v4689 = vunpack.c.l.b16 %v4639
        %v4690 = vunpack.c.l.b16 %v4640
        %v4691 = vunpack.c.l.b16 %v4641
        %v4692 = vunpack.c.l.b16 %v4642
        %v4693 = vunpack.c.l.b16 %v4643
        %v4694 = vpack.c.b16 %v4670, %v4669
        %v4695 = vpack.c.b16 %v4672, %v4671
        %v4696 = vpack.c.b16 %v4674, %v4673
        %v4697 = vpack.c.b16 %v4676, %v4675
        %v4698 = vpack.c.b16 %v4678, %v4677
        %v4699 = vpack.c.b16 %v4680, %v4679
        %v4700 = vpack.c.b16 %v4682, %v4681
        %v4701 = vpack.c.b16 %v4684, %v4683
        %v4702 = vpack.c.b16 %v4686, %v4685
        %v4703 = vpack.c.b16 %v4688, %v4687
        %v4704 = vpack.c.b16 %v4690, %v4689
        %v4705 = vpack.c.b16 %v4692, %v4691
        %v4706 = vpack.c.b16 %v4693, %v4693
        %v4720 = vsel %vm1893, %v4706, 0
        %4722 = vmatprep.subr.bf16.mxu0 0
        %4723 = vmatpush1.bf16.msra.mxu0 %v4701
        %4724 = vmatprep.subr.bf16.mxu0 0
        %4725 = vmatpush1.bf16.msra.mxu0 %v4700
        %4726 = vmatprep.subr.bf16.mxu0 0
        %4727 = vmatpush1.bf16.msra.mxu0 %v4699
        %4728 = vmatprep.subr.bf16.mxu0 0
        %4729 = vmatpush1.bf16.msra.mxu0 %v4698
        %4730 = vmatprep.subr.bf16.mxu0 0
        %4731 = vmatpush1.bf16.msra.mxu0 %v4697
        %4732 = vmatprep.subr.bf16.mxu0 0
        %4733 = vmatpush1.bf16.msra.mxu0 %v4696
        %4734 = vmatprep.subr.bf16.mxu0 0
        %4735 = vmatpush1.bf16.msra.mxu0 %v4695
        %4736 = vmatprep.subr.bf16.mxu0 0
        %4737 = vmatpush1.bf16.msra.mxu0 %v4694
        %4738 = vmatprep.subr.bf16.mxu0 0
        %4739 = vmatpush2.bf16.msra.mxu0 0
        %4740 = vmatprep.subr.bf16.mxu0 0
        %4741 = vmatpush2.bf16.msra.mxu0 0
        %4742 = vmatprep.subr.bf16.mxu0 0
        %4743 = vmatpush2.bf16.msra.mxu0 0
        %4744 = vmatprep.subr.bf16.mxu0 0
        %4745 = vmatpush2.bf16.msra.mxu0 %v4720
        %4746 = vmatprep.subr.bf16.mxu0 0
        %4747 = vmatpush2.bf16.msra.mxu0 %v4705
        %4748 = vmatprep.subr.bf16.mxu0 0
        %4749 = vmatpush2.bf16.msra.mxu0 %v4704
        %4750 = vmatprep.subr.bf16.mxu0 0
        %4751 = vmatpush2.bf16.msra.mxu0 %v4703
        %4752 = vmatprep.subr.bf16.mxu0 0
        %4753 = vmatpush2.bf16.msra.mxu0 %v4702
        %4754 = vmatprep.mubr.bf16.mxu0 %v1891
        %4755 = vmatmul.mubr.bf16.gmra.mxu0 %v1787
        %v4756 = vpop.f32.mrf.mxu0
        %v4757 = vadd.f32 0.0, %v4756
        %v4758 = vpop.f32.mrf.mxu0
        %v4759 = vpop.f32.mrf.mxu0
        %v4760 = vpop.f32.mrf.mxu0
        %4761 = vdwg.mxu0
        %v4762 = vpack.c.bf16 %v4757, %v4757
        %s4763 = scalar_lea.vmem %s5, 112
        %v4764 = vld [vmem:[%s4763] sm:$0xf]
        %v4765 = vld [vmem:[%s4763 + $0x4] sm:$0xf]
        %v4768 = vunpack.c.l.b16 %v4764
        %v4769 = vunpack.c.l.b16 %v4765
        %v4770 = vpack.c.b16 %v4769, %v4768
        %v4772 = vsel %vm2093, %v4770, 0
        %v4775 = vsel %vm2097, %v4762, 0
        %4777 = vmatprep.subr.bf16.mxu0 0
        %4778 = vmatpush1.bf16.msra.mxu0 0
        %4779 = vmatprep.subr.bf16.mxu0 0
        %4780 = vmatpush1.bf16.msra.mxu0 0
        %4781 = vmatprep.subr.bf16.mxu0 0
        %4782 = vmatpush1.bf16.msra.mxu0 0
        %4783 = vmatprep.subr.bf16.mxu0 0
        %4784 = vmatpush1.bf16.msra.mxu0 0
        %4785 = vmatprep.subr.bf16.mxu0 0
        %4786 = vmatpush1.bf16.msra.mxu0 0
        %4787 = vmatprep.subr.bf16.mxu0 0
        %4788 = vmatpush1.bf16.msra.mxu0 0
        %4789 = vmatprep.subr.bf16.mxu0 0
        %4790 = vmatpush1.bf16.msra.mxu0 0
        %4791 = vmatprep.subr.bf16.mxu0 0
        %4792 = vmatpush1.bf16.msra.mxu0 %v4775
        %4793 = vmatprep.subr.bf16.mxu0 0
        %4794 = vmatpush2.bf16.msra.mxu0 0
        %4795 = vmatprep.subr.bf16.mxu0 0
        %4796 = vmatpush2.bf16.msra.mxu0 0
        %4797 = vmatprep.subr.bf16.mxu0 0
        %4798 = vmatpush2.bf16.msra.mxu0 0
        %4799 = vmatprep.subr.bf16.mxu0 0
        %4800 = vmatpush2.bf16.msra.mxu0 0
        %4801 = vmatprep.subr.bf16.mxu0 0
        %4802 = vmatpush2.bf16.msra.mxu0 0
        %4803 = vmatprep.subr.bf16.mxu0 0
        %4804 = vmatpush2.bf16.msra.mxu0 0
        %4805 = vmatprep.subr.bf16.mxu0 0
        %4806 = vmatpush2.bf16.msra.mxu0 0
        %4807 = vmatprep.subr.bf16.mxu0 0
        %4808 = vmatpush2.bf16.msra.mxu0 0
        %4809 = vmatprep.mubr.bf16.mxu0 0
        %4810 = vmatmul.mubr.bf16.gmra.mxu0 %v4772
        %v4811 = vpop.f32.mrf.mxu0
        %v4812 = vadd.f32 0.0, %v4811
        %v4813 = vpop.f32.mrf.mxu0
        %v4814 = vpop.f32.mrf.mxu0
        %v4815 = vadd.f32 0.0, %v4814
        %v4816 = vpop.f32.mrf.mxu0
        %4817 = vdwg.mxu0
        %v4818 = vadd.f32 %v4616, %v4812
        %v4819 = vadd.f32 %v4617, %v4815
        %s4820 = scalar_lea.vmem %s4, 1500
        %v4821 = vld [vmem:[%s4820] sm:$0xf]
        %v4822 = vld [vmem:[%s4820 + $0x4] sm:$0xf]
        %v4823 = vld [vmem:[%s4820 + $0x8] sm:$0xf]
        %v4824 = vld [vmem:[%s4820 + $0xc] sm:$0xf]
        %v4825 = vld [vmem:[%s4820 + $0x10] sm:$0xf]
        %v4826 = vld [vmem:[%s4820 + $0x14] sm:$0xf]
        %v4827 = vld [vmem:[%s4820 + $0x18] sm:$0xf]
        %v4828 = vld [vmem:[%s4820 + $0x1c] sm:$0xf]
        %v4829 = vld [vmem:[%s4820 + $0x20] sm:$0xf]
        %v4830 = vld [vmem:[%s4820 + $0x24] sm:$0xf]
        %v4831 = vld [vmem:[%s4820 + $0x28] sm:$0xf]
        %v4832 = vld [vmem:[%s4820 + $0x2c] sm:$0xf]
        %v4833 = vld [vmem:[%s4820 + $0x30] sm:$0xf]
        %v4834 = vld [vmem:[%s4820 + $0x34] sm:$0xf]
        %v4835 = vld [vmem:[%s4820 + $0x38] sm:$0xf]
        %v4836 = vld [vmem:[%s4820 + $0x3c] sm:$0xf]
        %v4837 = vld [vmem:[%s4820 + $0x40] sm:$0xf]
        %v4838 = vld [vmem:[%s4820 + $0x44] sm:$0xf]
        %v4839 = vld [vmem:[%s4820 + $0x48] sm:$0xf]
        %v4840 = vld [vmem:[%s4820 + $0x4c] sm:$0xf]
        %v4841 = vld [vmem:[%s4820 + $0x50] sm:$0xf]
        %v4842 = vld [vmem:[%s4820 + $0x54] sm:$0xf]
        %v4843 = vld [vmem:[%s4820 + $0x58] sm:$0xf]
        %v4844 = vld [vmem:[%s4820 + $0x5c] sm:$0xf]
        %v4845 = vld [vmem:[%s4820 + $0x60] sm:$0x3]
        %v4871 = vunpack.c.l.b16 %v4821
        %v4872 = vunpack.c.l.b16 %v4822
        %v4873 = vunpack.c.l.b16 %v4823
        %v4874 = vunpack.c.l.b16 %v4824
        %v4875 = vunpack.c.l.b16 %v4825
        %v4876 = vunpack.c.l.b16 %v4826
        %v4877 = vunpack.c.l.b16 %v4827
        %v4878 = vunpack.c.l.b16 %v4828
        %v4879 = vunpack.c.l.b16 %v4829
        %v4880 = vunpack.c.l.b16 %v4830
        %v4881 = vunpack.c.l.b16 %v4831
        %v4882 = vunpack.c.l.b16 %v4832
        %v4883 = vunpack.c.l.b16 %v4833
        %v4884 = vunpack.c.l.b16 %v4834
        %v4885 = vunpack.c.l.b16 %v4835
        %v4886 = vunpack.c.l.b16 %v4836
        %v4887 = vunpack.c.l.b16 %v4837
        %v4888 = vunpack.c.l.b16 %v4838
        %v4889 = vunpack.c.l.b16 %v4839
        %v4890 = vunpack.c.l.b16 %v4840
        %v4891 = vunpack.c.l.b16 %v4841
        %v4892 = vunpack.c.l.b16 %v4842
        %v4893 = vunpack.c.l.b16 %v4843
        %v4894 = vunpack.c.l.b16 %v4844
        %v4895 = vunpack.c.l.b16 %v4845
        %v4896 = vpack.c.b16 %v4872, %v4871
        %v4897 = vpack.c.b16 %v4874, %v4873
        %v4898 = vpack.c.b16 %v4876, %v4875
        %v4899 = vpack.c.b16 %v4878, %v4877
        %v4900 = vpack.c.b16 %v4880, %v4879
        %v4901 = vpack.c.b16 %v4882, %v4881
        %v4902 = vpack.c.b16 %v4884, %v4883
        %v4903 = vpack.c.b16 %v4886, %v4885
        %v4904 = vpack.c.b16 %v4888, %v4887
        %v4905 = vpack.c.b16 %v4890, %v4889
        %v4906 = vpack.c.b16 %v4892, %v4891
        %v4907 = vpack.c.b16 %v4894, %v4893
        %v4908 = vpack.c.b16 %v4895, %v4895
        %v4922 = vsel %vm1893, %v4908, 0
        %4924 = vmatprep.subr.bf16.mxu0 0
        %4925 = vmatpush1.bf16.msra.mxu0 %v4903
        %4926 = vmatprep.subr.bf16.mxu0 0
        %4927 = vmatpush1.bf16.msra.mxu0 %v4902
        %4928 = vmatprep.subr.bf16.mxu0 0
        %4929 = vmatpush1.bf16.msra.mxu0 %v4901
        %4930 = vmatprep.subr.bf16.mxu0 0
        %4931 = vmatpush1.bf16.msra.mxu0 %v4900
        %4932 = vmatprep.subr.bf16.mxu0 0
        %4933 = vmatpush1.bf16.msra.mxu0 %v4899
        %4934 = vmatprep.subr.bf16.mxu0 0
        %4935 = vmatpush1.bf16.msra.mxu0 %v4898
        %4936 = vmatprep.subr.bf16.mxu0 0
        %4937 = vmatpush1.bf16.msra.mxu0 %v4897
        %4938 = vmatprep.subr.bf16.mxu0 0
        %4939 = vmatpush1.bf16.msra.mxu0 %v4896
        %4940 = vmatprep.subr.bf16.mxu0 0
        %4941 = vmatpush2.bf16.msra.mxu0 0
        %4942 = vmatprep.subr.bf16.mxu0 0
        %4943 = vmatpush2.bf16.msra.mxu0 0
        %4944 = vmatprep.subr.bf16.mxu0 0
        %4945 = vmatpush2.bf16.msra.mxu0 0
        %4946 = vmatprep.subr.bf16.mxu0 0
        %4947 = vmatpush2.bf16.msra.mxu0 %v4922
        %4948 = vmatprep.subr.bf16.mxu0 0
        %4949 = vmatpush2.bf16.msra.mxu0 %v4907
        %4950 = vmatprep.subr.bf16.mxu0 0
        %4951 = vmatpush2.bf16.msra.mxu0 %v4906
        %4952 = vmatprep.subr.bf16.mxu0 0
        %4953 = vmatpush2.bf16.msra.mxu0 %v4905
        %4954 = vmatprep.subr.bf16.mxu0 0
        %4955 = vmatpush2.bf16.msra.mxu0 %v4904
        %4956 = vmatprep.mubr.bf16.mxu0 %v1891
        %4957 = vmatmul.mubr.bf16.gmra.mxu0 %v1787
        %v4958 = vpop.f32.mrf.mxu0
        %v4959 = vadd.f32 0.0, %v4958
        %v4960 = vpop.f32.mrf.mxu0
        %v4961 = vpop.f32.mrf.mxu0
        %v4962 = vpop.f32.mrf.mxu0
        %4963 = vdwg.mxu0
        %v4964 = vpack.c.bf16 %v4959, %v4959
        %s4965 = scalar_lea.vmem %s5, 120
        %v4966 = vld [vmem:[%s4965] sm:$0xf]
        %v4967 = vld [vmem:[%s4965 + $0x4] sm:$0xf]
        %v4970 = vunpack.c.l.b16 %v4966
        %v4971 = vunpack.c.l.b16 %v4967
        %v4972 = vpack.c.b16 %v4971, %v4970
        %v4974 = vsel %vm2093, %v4972, 0
        %v4977 = vsel %vm2097, %v4964, 0
        %4979 = vmatprep.subr.bf16.mxu0 0
        %4980 = vmatpush1.bf16.msra.mxu0 0
        %4981 = vmatprep.subr.bf16.mxu0 0
        %4982 = vmatpush1.bf16.msra.mxu0 0
        %4983 = vmatprep.subr.bf16.mxu0 0
        %4984 = vmatpush1.bf16.msra.mxu0 0
        %4985 = vmatprep.subr.bf16.mxu0 0
        %4986 = vmatpush1.bf16.msra.mxu0 0
        %4987 = vmatprep.subr.bf16.mxu0 0
        %4988 = vmatpush1.bf16.msra.mxu0 0
        %4989 = vmatprep.subr.bf16.mxu0 0
        %4990 = vmatpush1.bf16.msra.mxu0 0
        %4991 = vmatprep.subr.bf16.mxu0 0
        %4992 = vmatpush1.bf16.msra.mxu0 0
        %4993 = vmatprep.subr.bf16.mxu0 0
        %4994 = vmatpush1.bf16.msra.mxu0 %v4977
        %4995 = vmatprep.subr.bf16.mxu0 0
        %4996 = vmatpush2.bf16.msra.mxu0 0
        %4997 = vmatprep.subr.bf16.mxu0 0
        %4998 = vmatpush2.bf16.msra.mxu0 0
        %4999 = vmatprep.subr.bf16.mxu0 0
        %5000 = vmatpush2.bf16.msra.mxu0 0
        %5001 = vmatprep.subr.bf16.mxu0 0
        %5002 = vmatpush2.bf16.msra.mxu0 0
        %5003 = vmatprep.subr.bf16.mxu0 0
        %5004 = vmatpush2.bf16.msra.mxu0 0
        %5005 = vmatprep.subr.bf16.mxu0 0
        %5006 = vmatpush2.bf16.msra.mxu0 0
        %5007 = vmatprep.subr.bf16.mxu0 0
        %5008 = vmatpush2.bf16.msra.mxu0 0
        %5009 = vmatprep.subr.bf16.mxu0 0
        %5010 = vmatpush2.bf16.msra.mxu0 0
        %5011 = vmatprep.mubr.bf16.mxu0 0
        %5012 = vmatmul.mubr.bf16.gmra.mxu0 %v4974
        %v5013 = vpop.f32.mrf.mxu0
        %v5014 = vadd.f32 0.0, %v5013
        %v5015 = vpop.f32.mrf.mxu0
        %v5016 = vpop.f32.mrf.mxu0
        %v5017 = vadd.f32 0.0, %v5016
        %v5018 = vpop.f32.mrf.mxu0
        %5019 = vdwg.mxu0
        %v5020 = vadd.f32 %v4818, %v5014
        %v5021 = vadd.f32 %v4819, %v5017
        %s5022 = scalar_lea.vmem %s4, 1600
        %v5023 = vld [vmem:[%s5022] sm:$0xf]
        %v5024 = vld [vmem:[%s5022 + $0x4] sm:$0xf]
        %v5025 = vld [vmem:[%s5022 + $0x8] sm:$0xf]
        %v5026 = vld [vmem:[%s5022 + $0xc] sm:$0xf]
        %v5027 = vld [vmem:[%s5022 + $0x10] sm:$0xf]
        %v5028 = vld [vmem:[%s5022 + $0x14] sm:$0xf]
        %v5029 = vld [vmem:[%s5022 + $0x18] sm:$0xf]
        %v5030 = vld [vmem:[%s5022 + $0x1c] sm:$0xf]
        %v5031 = vld [vmem:[%s5022 + $0x20] sm:$0xf]
        %v5032 = vld [vmem:[%s5022 + $0x24] sm:$0xf]
        %v5033 = vld [vmem:[%s5022 + $0x28] sm:$0xf]
        %v5034 = vld [vmem:[%s5022 + $0x2c] sm:$0xf]
        %v5035 = vld [vmem:[%s5022 + $0x30] sm:$0xf]
        %v5036 = vld [vmem:[%s5022 + $0x34] sm:$0xf]
        %v5037 = vld [vmem:[%s5022 + $0x38] sm:$0xf]
        %v5038 = vld [vmem:[%s5022 + $0x3c] sm:$0xf]
        %v5039 = vld [vmem:[%s5022 + $0x40] sm:$0xf]
        %v5040 = vld [vmem:[%s5022 + $0x44] sm:$0xf]
        %v5041 = vld [vmem:[%s5022 + $0x48] sm:$0xf]
        %v5042 = vld [vmem:[%s5022 + $0x4c] sm:$0xf]
        %v5043 = vld [vmem:[%s5022 + $0x50] sm:$0xf]
        %v5044 = vld [vmem:[%s5022 + $0x54] sm:$0xf]
        %v5045 = vld [vmem:[%s5022 + $0x58] sm:$0xf]
        %v5046 = vld [vmem:[%s5022 + $0x5c] sm:$0xf]
        %v5047 = vld [vmem:[%s5022 + $0x60] sm:$0x3]
        %v5073 = vunpack.c.l.b16 %v5023
        %v5074 = vunpack.c.l.b16 %v5024
        %v5075 = vunpack.c.l.b16 %v5025
        %v5076 = vunpack.c.l.b16 %v5026
        %v5077 = vunpack.c.l.b16 %v5027
        %v5078 = vunpack.c.l.b16 %v5028
        %v5079 = vunpack.c.l.b16 %v5029
        %v5080 = vunpack.c.l.b16 %v5030
        %v5081 = vunpack.c.l.b16 %v5031
        %v5082 = vunpack.c.l.b16 %v5032
        %v5083 = vunpack.c.l.b16 %v5033
        %v5084 = vunpack.c.l.b16 %v5034
        %v5085 = vunpack.c.l.b16 %v5035
        %v5086 = vunpack.c.l.b16 %v5036
        %v5087 = vunpack.c.l.b16 %v5037
        %v5088 = vunpack.c.l.b16 %v5038
        %v5089 = vunpack.c.l.b16 %v5039
        %v5090 = vunpack.c.l.b16 %v5040
        %v5091 = vunpack.c.l.b16 %v5041
        %v5092 = vunpack.c.l.b16 %v5042
        %v5093 = vunpack.c.l.b16 %v5043
        %v5094 = vunpack.c.l.b16 %v5044
        %v5095 = vunpack.c.l.b16 %v5045
        %v5096 = vunpack.c.l.b16 %v5046
        %v5097 = vunpack.c.l.b16 %v5047
        %v5098 = vpack.c.b16 %v5074, %v5073
        %v5099 = vpack.c.b16 %v5076, %v5075
        %v5100 = vpack.c.b16 %v5078, %v5077
        %v5101 = vpack.c.b16 %v5080, %v5079
        %v5102 = vpack.c.b16 %v5082, %v5081
        %v5103 = vpack.c.b16 %v5084, %v5083
        %v5104 = vpack.c.b16 %v5086, %v5085
        %v5105 = vpack.c.b16 %v5088, %v5087
        %v5106 = vpack.c.b16 %v5090, %v5089
        %v5107 = vpack.c.b16 %v5092, %v5091
        %v5108 = vpack.c.b16 %v5094, %v5093
        %v5109 = vpack.c.b16 %v5096, %v5095
        %v5110 = vpack.c.b16 %v5097, %v5097
        %v5124 = vsel %vm1893, %v5110, 0
        %5126 = vmatprep.subr.bf16.mxu0 0
        %5127 = vmatpush1.bf16.msra.mxu0 %v5105
        %5128 = vmatprep.subr.bf16.mxu0 0
        %5129 = vmatpush1.bf16.msra.mxu0 %v5104
        %5130 = vmatprep.subr.bf16.mxu0 0
        %5131 = vmatpush1.bf16.msra.mxu0 %v5103
        %5132 = vmatprep.subr.bf16.mxu0 0
        %5133 = vmatpush1.bf16.msra.mxu0 %v5102
        %5134 = vmatprep.subr.bf16.mxu0 0
        %5135 = vmatpush1.bf16.msra.mxu0 %v5101
        %5136 = vmatprep.subr.bf16.mxu0 0
        %5137 = vmatpush1.bf16.msra.mxu0 %v5100
        %5138 = vmatprep.subr.bf16.mxu0 0
        %5139 = vmatpush1.bf16.msra.mxu0 %v5099
        %5140 = vmatprep.subr.bf16.mxu0 0
        %5141 = vmatpush1.bf16.msra.mxu0 %v5098
        %5142 = vmatprep.subr.bf16.mxu0 0
        %5143 = vmatpush2.bf16.msra.mxu0 0
        %5144 = vmatprep.subr.bf16.mxu0 0
        %5145 = vmatpush2.bf16.msra.mxu0 0
        %5146 = vmatprep.subr.bf16.mxu0 0
        %5147 = vmatpush2.bf16.msra.mxu0 0
        %5148 = vmatprep.subr.bf16.mxu0 0
        %5149 = vmatpush2.bf16.msra.mxu0 %v5124
        %5150 = vmatprep.subr.bf16.mxu0 0
        %5151 = vmatpush2.bf16.msra.mxu0 %v5109
        %5152 = vmatprep.subr.bf16.mxu0 0
        %5153 = vmatpush2.bf16.msra.mxu0 %v5108
        %5154 = vmatprep.subr.bf16.mxu0 0
        %5155 = vmatpush2.bf16.msra.mxu0 %v5107
        %5156 = vmatprep.subr.bf16.mxu0 0
        %5157 = vmatpush2.bf16.msra.mxu0 %v5106
        %5158 = vmatprep.mubr.bf16.mxu0 %v1891
        %5159 = vmatmul.mubr.bf16.gmra.mxu0 %v1787
        %v5160 = vpop.f32.mrf.mxu0
        %v5161 = vadd.f32 0.0, %v5160
        %v5162 = vpop.f32.mrf.mxu0
        %v5163 = vpop.f32.mrf.mxu0
        %v5164 = vpop.f32.mrf.mxu0
        %5165 = vdwg.mxu0
        %v5166 = vpack.c.bf16 %v5161, %v5161
        %s5167 = scalar_lea.vmem %s5, 128
        %v5168 = vld [vmem:[%s5167] sm:$0xf]
        %v5169 = vld [vmem:[%s5167 + $0x4] sm:$0xf]
        %v5172 = vunpack.c.l.b16 %v5168
        %v5173 = vunpack.c.l.b16 %v5169
        %v5174 = vpack.c.b16 %v5173, %v5172
        %v5176 = vsel %vm2093, %v5174, 0
        %v5179 = vsel %vm2097, %v5166, 0
        %5181 = vmatprep.subr.bf16.mxu0 0
        %5182 = vmatpush1.bf16.msra.mxu0 0
        %5183 = vmatprep.subr.bf16.mxu0 0
        %5184 = vmatpush1.bf16.msra.mxu0 0
        %5185 = vmatprep.subr.bf16.mxu0 0
        %5186 = vmatpush1.bf16.msra.mxu0 0
        %5187 = vmatprep.subr.bf16.mxu0 0
        %5188 = vmatpush1.bf16.msra.mxu0 0
        %5189 = vmatprep.subr.bf16.mxu0 0
        %5190 = vmatpush1.bf16.msra.mxu0 0
        %5191 = vmatprep.subr.bf16.mxu0 0
        %5192 = vmatpush1.bf16.msra.mxu0 0
        %5193 = vmatprep.subr.bf16.mxu0 0
        %5194 = vmatpush1.bf16.msra.mxu0 0
        %5195 = vmatprep.subr.bf16.mxu0 0
        %5196 = vmatpush1.bf16.msra.mxu0 %v5179
        %5197 = vmatprep.subr.bf16.mxu0 0
        %5198 = vmatpush2.bf16.msra.mxu0 0
        %5199 = vmatprep.subr.bf16.mxu0 0
        %5200 = vmatpush2.bf16.msra.mxu0 0
        %5201 = vmatprep.subr.bf16.mxu0 0
        %5202 = vmatpush2.bf16.msra.mxu0 0
        %5203 = vmatprep.subr.bf16.mxu0 0
        %5204 = vmatpush2.bf16.msra.mxu0 0
        %5205 = vmatprep.subr.bf16.mxu0 0
        %5206 = vmatpush2.bf16.msra.mxu0 0
        %5207 = vmatprep.subr.bf16.mxu0 0
        %5208 = vmatpush2.bf16.msra.mxu0 0
        %5209 = vmatprep.subr.bf16.mxu0 0
        %5210 = vmatpush2.bf16.msra.mxu0 0
        %5211 = vmatprep.subr.bf16.mxu0 0
        %5212 = vmatpush2.bf16.msra.mxu0 0
        %5213 = vmatprep.mubr.bf16.mxu0 0
        %5214 = vmatmul.mubr.bf16.gmra.mxu0 %v5176
        %v5215 = vpop.f32.mrf.mxu0
        %v5216 = vadd.f32 0.0, %v5215
        %v5217 = vpop.f32.mrf.mxu0
        %v5218 = vpop.f32.mrf.mxu0
        %v5219 = vadd.f32 0.0, %v5218
        %v5220 = vpop.f32.mrf.mxu0
        %5221 = vdwg.mxu0
        %v5222 = vadd.f32 %v5020, %v5216
        %v5223 = vadd.f32 %v5021, %v5219
        %s5224 = scalar_lea.vmem %s4, 1700
        %v5225 = vld [vmem:[%s5224] sm:$0xf]
        %v5226 = vld [vmem:[%s5224 + $0x4] sm:$0xf]
        %v5227 = vld [vmem:[%s5224 + $0x8] sm:$0xf]
        %v5228 = vld [vmem:[%s5224 + $0xc] sm:$0xf]
        %v5229 = vld [vmem:[%s5224 + $0x10] sm:$0xf]
        %v5230 = vld [vmem:[%s5224 + $0x14] sm:$0xf]
        %v5231 = vld [vmem:[%s5224 + $0x18] sm:$0xf]
        %v5232 = vld [vmem:[%s5224 + $0x1c] sm:$0xf]
        %v5233 = vld [vmem:[%s5224 + $0x20] sm:$0xf]
        %v5234 = vld [vmem:[%s5224 + $0x24] sm:$0xf]
        %v5235 = vld [vmem:[%s5224 + $0x28] sm:$0xf]
        %v5236 = vld [vmem:[%s5224 + $0x2c] sm:$0xf]
        %v5237 = vld [vmem:[%s5224 + $0x30] sm:$0xf]
        %v5238 = vld [vmem:[%s5224 + $0x34] sm:$0xf]
        %v5239 = vld [vmem:[%s5224 + $0x38] sm:$0xf]
        %v5240 = vld [vmem:[%s5224 + $0x3c] sm:$0xf]
        %v5241 = vld [vmem:[%s5224 + $0x40] sm:$0xf]
        %v5242 = vld [vmem:[%s5224 + $0x44] sm:$0xf]
        %v5243 = vld [vmem:[%s5224 + $0x48] sm:$0xf]
        %v5244 = vld [vmem:[%s5224 + $0x4c] sm:$0xf]
        %v5245 = vld [vmem:[%s5224 + $0x50] sm:$0xf]
        %v5246 = vld [vmem:[%s5224 + $0x54] sm:$0xf]
        %v5247 = vld [vmem:[%s5224 + $0x58] sm:$0xf]
        %v5248 = vld [vmem:[%s5224 + $0x5c] sm:$0xf]
        %v5249 = vld [vmem:[%s5224 + $0x60] sm:$0x3]
        %v5275 = vunpack.c.l.b16 %v5225
        %v5276 = vunpack.c.l.b16 %v5226
        %v5277 = vunpack.c.l.b16 %v5227
        %v5278 = vunpack.c.l.b16 %v5228
        %v5279 = vunpack.c.l.b16 %v5229
        %v5280 = vunpack.c.l.b16 %v5230
        %v5281 = vunpack.c.l.b16 %v5231
        %v5282 = vunpack.c.l.b16 %v5232
        %v5283 = vunpack.c.l.b16 %v5233
        %v5284 = vunpack.c.l.b16 %v5234
        %v5285 = vunpack.c.l.b16 %v5235
        %v5286 = vunpack.c.l.b16 %v5236
        %v5287 = vunpack.c.l.b16 %v5237
        %v5288 = vunpack.c.l.b16 %v5238
        %v5289 = vunpack.c.l.b16 %v5239
        %v5290 = vunpack.c.l.b16 %v5240
        %v5291 = vunpack.c.l.b16 %v5241
        %v5292 = vunpack.c.l.b16 %v5242
        %v5293 = vunpack.c.l.b16 %v5243
        %v5294 = vunpack.c.l.b16 %v5244
        %v5295 = vunpack.c.l.b16 %v5245
        %v5296 = vunpack.c.l.b16 %v5246
        %v5297 = vunpack.c.l.b16 %v5247
        %v5298 = vunpack.c.l.b16 %v5248
        %v5299 = vunpack.c.l.b16 %v5249
        %v5300 = vpack.c.b16 %v5276, %v5275
        %v5301 = vpack.c.b16 %v5278, %v5277
        %v5302 = vpack.c.b16 %v5280, %v5279
        %v5303 = vpack.c.b16 %v5282, %v5281
        %v5304 = vpack.c.b16 %v5284, %v5283
        %v5305 = vpack.c.b16 %v5286, %v5285
        %v5306 = vpack.c.b16 %v5288, %v5287
        %v5307 = vpack.c.b16 %v5290, %v5289
        %v5308 = vpack.c.b16 %v5292, %v5291
        %v5309 = vpack.c.b16 %v5294, %v5293
        %v5310 = vpack.c.b16 %v5296, %v5295
        %v5311 = vpack.c.b16 %v5298, %v5297
        %v5312 = vpack.c.b16 %v5299, %v5299
        %v5326 = vsel %vm1893, %v5312, 0
        %5328 = vmatprep.subr.bf16.mxu0 0
        %5329 = vmatpush1.bf16.msra.mxu0 %v5307
        %5330 = vmatprep.subr.bf16.mxu0 0
        %5331 = vmatpush1.bf16.msra.mxu0 %v5306
        %5332 = vmatprep.subr.bf16.mxu0 0
        %5333 = vmatpush1.bf16.msra.mxu0 %v5305
        %5334 = vmatprep.subr.bf16.mxu0 0
        %5335 = vmatpush1.bf16.msra.mxu0 %v5304
        %5336 = vmatprep.subr.bf16.mxu0 0
        %5337 = vmatpush1.bf16.msra.mxu0 %v5303
        %5338 = vmatprep.subr.bf16.mxu0 0
        %5339 = vmatpush1.bf16.msra.mxu0 %v5302
        %5340 = vmatprep.subr.bf16.mxu0 0
        %5341 = vmatpush1.bf16.msra.mxu0 %v5301
        %5342 = vmatprep.subr.bf16.mxu0 0
        %5343 = vmatpush1.bf16.msra.mxu0 %v5300
        %5344 = vmatprep.subr.bf16.mxu0 0
        %5345 = vmatpush2.bf16.msra.mxu0 0
        %5346 = vmatprep.subr.bf16.mxu0 0
        %5347 = vmatpush2.bf16.msra.mxu0 0
        %5348 = vmatprep.subr.bf16.mxu0 0
        %5349 = vmatpush2.bf16.msra.mxu0 0
        %5350 = vmatprep.subr.bf16.mxu0 0
        %5351 = vmatpush2.bf16.msra.mxu0 %v5326
        %5352 = vmatprep.subr.bf16.mxu0 0
        %5353 = vmatpush2.bf16.msra.mxu0 %v5311
        %5354 = vmatprep.subr.bf16.mxu0 0
        %5355 = vmatpush2.bf16.msra.mxu0 %v5310
        %5356 = vmatprep.subr.bf16.mxu0 0
        %5357 = vmatpush2.bf16.msra.mxu0 %v5309
        %5358 = vmatprep.subr.bf16.mxu0 0
        %5359 = vmatpush2.bf16.msra.mxu0 %v5308
        %5360 = vmatprep.mubr.bf16.mxu0 %v1891
        %5361 = vmatmul.mubr.bf16.gmra.mxu0 %v1787
        %v5362 = vpop.f32.mrf.mxu0
        %v5363 = vadd.f32 0.0, %v5362
        %v5364 = vpop.f32.mrf.mxu0
        %v5365 = vpop.f32.mrf.mxu0
        %v5366 = vpop.f32.mrf.mxu0
        %5367 = vdwg.mxu0
        %v5368 = vpack.c.bf16 %v5363, %v5363
        %s5369 = scalar_lea.vmem %s5, 136
        %v5370 = vld [vmem:[%s5369] sm:$0xf]
        %v5371 = vld [vmem:[%s5369 + $0x4] sm:$0xf]
        %v5374 = vunpack.c.l.b16 %v5370
        %v5375 = vunpack.c.l.b16 %v5371
        %v5376 = vpack.c.b16 %v5375, %v5374
        %v5378 = vsel %vm2093, %v5376, 0
        %v5381 = vsel %vm2097, %v5368, 0
        %5383 = vmatprep.subr.bf16.mxu0 0
        %5384 = vmatpush1.bf16.msra.mxu0 0
        %5385 = vmatprep.subr.bf16.mxu0 0
        %5386 = vmatpush1.bf16.msra.mxu0 0
        %5387 = vmatprep.subr.bf16.mxu0 0
        %5388 = vmatpush1.bf16.msra.mxu0 0
        %5389 = vmatprep.subr.bf16.mxu0 0
        %5390 = vmatpush1.bf16.msra.mxu0 0
        %5391 = vmatprep.subr.bf16.mxu0 0
        %5392 = vmatpush1.bf16.msra.mxu0 0
        %5393 = vmatprep.subr.bf16.mxu0 0
        %5394 = vmatpush1.bf16.msra.mxu0 0
        %5395 = vmatprep.subr.bf16.mxu0 0
        %5396 = vmatpush1.bf16.msra.mxu0 0
        %5397 = vmatprep.subr.bf16.mxu0 0
        %5398 = vmatpush1.bf16.msra.mxu0 %v5381
        %5399 = vmatprep.subr.bf16.mxu0 0
        %5400 = vmatpush2.bf16.msra.mxu0 0
        %5401 = vmatprep.subr.bf16.mxu0 0
        %5402 = vmatpush2.bf16.msra.mxu0 0
        %5403 = vmatprep.subr.bf16.mxu0 0
        %5404 = vmatpush2.bf16.msra.mxu0 0
        %5405 = vmatprep.subr.bf16.mxu0 0
        %5406 = vmatpush2.bf16.msra.mxu0 0
        %5407 = vmatprep.subr.bf16.mxu0 0
        %5408 = vmatpush2.bf16.msra.mxu0 0
        %5409 = vmatprep.subr.bf16.mxu0 0
        %5410 = vmatpush2.bf16.msra.mxu0 0
        %5411 = vmatprep.subr.bf16.mxu0 0
        %5412 = vmatpush2.bf16.msra.mxu0 0
        %5413 = vmatprep.subr.bf16.mxu0 0
        %5414 = vmatpush2.bf16.msra.mxu0 0
        %5415 = vmatprep.mubr.bf16.mxu0 0
        %5416 = vmatmul.mubr.bf16.gmra.mxu0 %v5378
        %v5417 = vpop.f32.mrf.mxu0
        %v5418 = vadd.f32 0.0, %v5417
        %v5419 = vpop.f32.mrf.mxu0
        %v5420 = vpop.f32.mrf.mxu0
        %v5421 = vadd.f32 0.0, %v5420
        %v5422 = vpop.f32.mrf.mxu0
        %5423 = vdwg.mxu0
        %v5424 = vadd.f32 %v5222, %v5418
        %v5425 = vadd.f32 %v5223, %v5421
        %s5426 = scalar_lea.vmem %s4, 1800
        %v5427 = vld [vmem:[%s5426] sm:$0xf]
        %v5428 = vld [vmem:[%s5426 + $0x4] sm:$0xf]
        %v5429 = vld [vmem:[%s5426 + $0x8] sm:$0xf]
        %v5430 = vld [vmem:[%s5426 + $0xc] sm:$0xf]
        %v5431 = vld [vmem:[%s5426 + $0x10] sm:$0xf]
        %v5432 = vld [vmem:[%s5426 + $0x14] sm:$0xf]
        %v5433 = vld [vmem:[%s5426 + $0x18] sm:$0xf]
        %v5434 = vld [vmem:[%s5426 + $0x1c] sm:$0xf]
        %v5435 = vld [vmem:[%s5426 + $0x20] sm:$0xf]
        %v5436 = vld [vmem:[%s5426 + $0x24] sm:$0xf]
        %v5437 = vld [vmem:[%s5426 + $0x28] sm:$0xf]
        %v5438 = vld [vmem:[%s5426 + $0x2c] sm:$0xf]
        %v5439 = vld [vmem:[%s5426 + $0x30] sm:$0xf]
        %v5440 = vld [vmem:[%s5426 + $0x34] sm:$0xf]
        %v5441 = vld [vmem:[%s5426 + $0x38] sm:$0xf]
        %v5442 = vld [vmem:[%s5426 + $0x3c] sm:$0xf]
        %v5443 = vld [vmem:[%s5426 + $0x40] sm:$0xf]
        %v5444 = vld [vmem:[%s5426 + $0x44] sm:$0xf]
        %v5445 = vld [vmem:[%s5426 + $0x48] sm:$0xf]
        %v5446 = vld [vmem:[%s5426 + $0x4c] sm:$0xf]
        %v5447 = vld [vmem:[%s5426 + $0x50] sm:$0xf]
        %v5448 = vld [vmem:[%s5426 + $0x54] sm:$0xf]
        %v5449 = vld [vmem:[%s5426 + $0x58] sm:$0xf]
        %v5450 = vld [vmem:[%s5426 + $0x5c] sm:$0xf]
        %v5451 = vld [vmem:[%s5426 + $0x60] sm:$0x3]
        %v5477 = vunpack.c.l.b16 %v5427
        %v5478 = vunpack.c.l.b16 %v5428
        %v5479 = vunpack.c.l.b16 %v5429
        %v5480 = vunpack.c.l.b16 %v5430
        %v5481 = vunpack.c.l.b16 %v5431
        %v5482 = vunpack.c.l.b16 %v5432
        %v5483 = vunpack.c.l.b16 %v5433
        %v5484 = vunpack.c.l.b16 %v5434
        %v5485 = vunpack.c.l.b16 %v5435
        %v5486 = vunpack.c.l.b16 %v5436
        %v5487 = vunpack.c.l.b16 %v5437
        %v5488 = vunpack.c.l.b16 %v5438
        %v5489 = vunpack.c.l.b16 %v5439
        %v5490 = vunpack.c.l.b16 %v5440
        %v5491 = vunpack.c.l.b16 %v5441
        %v5492 = vunpack.c.l.b16 %v5442
        %v5493 = vunpack.c.l.b16 %v5443
        %v5494 = vunpack.c.l.b16 %v5444
        %v5495 = vunpack.c.l.b16 %v5445
        %v5496 = vunpack.c.l.b16 %v5446
        %v5497 = vunpack.c.l.b16 %v5447
        %v5498 = vunpack.c.l.b16 %v5448
        %v5499 = vunpack.c.l.b16 %v5449
        %v5500 = vunpack.c.l.b16 %v5450
        %v5501 = vunpack.c.l.b16 %v5451
        %v5502 = vpack.c.b16 %v5478, %v5477
        %v5503 = vpack.c.b16 %v5480, %v5479
        %v5504 = vpack.c.b16 %v5482, %v5481
        %v5505 = vpack.c.b16 %v5484, %v5483
        %v5506 = vpack.c.b16 %v5486, %v5485
        %v5507 = vpack.c.b16 %v5488, %v5487
        %v5508 = vpack.c.b16 %v5490, %v5489
        %v5509 = vpack.c.b16 %v5492, %v5491
        %v5510 = vpack.c.b16 %v5494, %v5493
        %v5511 = vpack.c.b16 %v5496, %v5495
        %v5512 = vpack.c.b16 %v5498, %v5497
        %v5513 = vpack.c.b16 %v5500, %v5499
        %v5514 = vpack.c.b16 %v5501, %v5501
        %v5528 = vsel %vm1893, %v5514, 0
        %5530 = vmatprep.subr.bf16.mxu0 0
        %5531 = vmatpush1.bf16.msra.mxu0 %v5509
        %5532 = vmatprep.subr.bf16.mxu0 0
        %5533 = vmatpush1.bf16.msra.mxu0 %v5508
        %5534 = vmatprep.subr.bf16.mxu0 0
        %5535 = vmatpush1.bf16.msra.mxu0 %v5507
        %5536 = vmatprep.subr.bf16.mxu0 0
        %5537 = vmatpush1.bf16.msra.mxu0 %v5506
        %5538 = vmatprep.subr.bf16.mxu0 0
        %5539 = vmatpush1.bf16.msra.mxu0 %v5505
        %5540 = vmatprep.subr.bf16.mxu0 0
        %5541 = vmatpush1.bf16.msra.mxu0 %v5504
        %5542 = vmatprep.subr.bf16.mxu0 0
        %5543 = vmatpush1.bf16.msra.mxu0 %v5503
        %5544 = vmatprep.subr.bf16.mxu0 0
        %5545 = vmatpush1.bf16.msra.mxu0 %v5502
        %5546 = vmatprep.subr.bf16.mxu0 0
        %5547 = vmatpush2.bf16.msra.mxu0 0
        %5548 = vmatprep.subr.bf16.mxu0 0
        %5549 = vmatpush2.bf16.msra.mxu0 0
        %5550 = vmatprep.subr.bf16.mxu0 0
        %5551 = vmatpush2.bf16.msra.mxu0 0
        %5552 = vmatprep.subr.bf16.mxu0 0
        %5553 = vmatpush2.bf16.msra.mxu0 %v5528
        %5554 = vmatprep.subr.bf16.mxu0 0
        %5555 = vmatpush2.bf16.msra.mxu0 %v5513
        %5556 = vmatprep.subr.bf16.mxu0 0
        %5557 = vmatpush2.bf16.msra.mxu0 %v5512
        %5558 = vmatprep.subr.bf16.mxu0 0
        %5559 = vmatpush2.bf16.msra.mxu0 %v5511
        %5560 = vmatprep.subr.bf16.mxu0 0
        %5561 = vmatpush2.bf16.msra.mxu0 %v5510
        %5562 = vmatprep.mubr.bf16.mxu0 %v1891
        %5563 = vmatmul.mubr.bf16.gmra.mxu0 %v1787
        %v5564 = vpop.f32.mrf.mxu0
        %v5565 = vadd.f32 0.0, %v5564
        %v5566 = vpop.f32.mrf.mxu0
        %v5567 = vpop.f32.mrf.mxu0
        %v5568 = vpop.f32.mrf.mxu0
        %5569 = vdwg.mxu0
        %v5570 = vpack.c.bf16 %v5565, %v5565
        %s5571 = scalar_lea.vmem %s5, 144
        %v5572 = vld [vmem:[%s5571] sm:$0xf]
        %v5573 = vld [vmem:[%s5571 + $0x4] sm:$0xf]
        %v5576 = vunpack.c.l.b16 %v5572
        %v5577 = vunpack.c.l.b16 %v5573
        %v5578 = vpack.c.b16 %v5577, %v5576
        %v5580 = vsel %vm2093, %v5578, 0
        %v5583 = vsel %vm2097, %v5570, 0
        %5585 = vmatprep.subr.bf16.mxu0 0
        %5586 = vmatpush1.bf16.msra.mxu0 0
        %5587 = vmatprep.subr.bf16.mxu0 0
        %5588 = vmatpush1.bf16.msra.mxu0 0
        %5589 = vmatprep.subr.bf16.mxu0 0
        %5590 = vmatpush1.bf16.msra.mxu0 0
        %5591 = vmatprep.subr.bf16.mxu0 0
        %5592 = vmatpush1.bf16.msra.mxu0 0
        %5593 = vmatprep.subr.bf16.mxu0 0
        %5594 = vmatpush1.bf16.msra.mxu0 0
        %5595 = vmatprep.subr.bf16.mxu0 0
        %5596 = vmatpush1.bf16.msra.mxu0 0
        %5597 = vmatprep.subr.bf16.mxu0 0
        %5598 = vmatpush1.bf16.msra.mxu0 0
        %5599 = vmatprep.subr.bf16.mxu0 0
        %5600 = vmatpush1.bf16.msra.mxu0 %v5583
        %5601 = vmatprep.subr.bf16.mxu0 0
        %5602 = vmatpush2.bf16.msra.mxu0 0
        %5603 = vmatprep.subr.bf16.mxu0 0
        %5604 = vmatpush2.bf16.msra.mxu0 0
        %5605 = vmatprep.subr.bf16.mxu0 0
        %5606 = vmatpush2.bf16.msra.mxu0 0
        %5607 = vmatprep.subr.bf16.mxu0 0
        %5608 = vmatpush2.bf16.msra.mxu0 0
        %5609 = vmatprep.subr.bf16.mxu0 0
        %5610 = vmatpush2.bf16.msra.mxu0 0
        %5611 = vmatprep.subr.bf16.mxu0 0
        %5612 = vmatpush2.bf16.msra.mxu0 0
        %5613 = vmatprep.subr.bf16.mxu0 0
        %5614 = vmatpush2.bf16.msra.mxu0 0
        %5615 = vmatprep.subr.bf16.mxu0 0
        %5616 = vmatpush2.bf16.msra.mxu0 0
        %5617 = vmatprep.mubr.bf16.mxu0 0
        %5618 = vmatmul.mubr.bf16.gmra.mxu0 %v5580
        %v5619 = vpop.f32.mrf.mxu0
        %v5620 = vadd.f32 0.0, %v5619
        %v5621 = vpop.f32.mrf.mxu0
        %v5622 = vpop.f32.mrf.mxu0
        %v5623 = vadd.f32 0.0, %v5622
        %v5624 = vpop.f32.mrf.mxu0
        %5625 = vdwg.mxu0
        %v5626 = vadd.f32 %v5424, %v5620
        %v5627 = vadd.f32 %v5425, %v5623
        %s5628 = scalar_lea.vmem %s4, 1900
        %v5629 = vld [vmem:[%s5628] sm:$0xf]
        %v5630 = vld [vmem:[%s5628 + $0x4] sm:$0xf]
        %v5631 = vld [vmem:[%s5628 + $0x8] sm:$0xf]
        %v5632 = vld [vmem:[%s5628 + $0xc] sm:$0xf]
        %v5633 = vld [vmem:[%s5628 + $0x10] sm:$0xf]
        %v5634 = vld [vmem:[%s5628 + $0x14] sm:$0xf]
        %v5635 = vld [vmem:[%s5628 + $0x18] sm:$0xf]
        %v5636 = vld [vmem:[%s5628 + $0x1c] sm:$0xf]
        %v5637 = vld [vmem:[%s5628 + $0x20] sm:$0xf]
        %v5638 = vld [vmem:[%s5628 + $0x24] sm:$0xf]
        %v5639 = vld [vmem:[%s5628 + $0x28] sm:$0xf]
        %v5640 = vld [vmem:[%s5628 + $0x2c] sm:$0xf]
        %v5641 = vld [vmem:[%s5628 + $0x30] sm:$0xf]
        %v5642 = vld [vmem:[%s5628 + $0x34] sm:$0xf]
        %v5643 = vld [vmem:[%s5628 + $0x38] sm:$0xf]
        %v5644 = vld [vmem:[%s5628 + $0x3c] sm:$0xf]
        %v5645 = vld [vmem:[%s5628 + $0x40] sm:$0xf]
        %v5646 = vld [vmem:[%s5628 + $0x44] sm:$0xf]
        %v5647 = vld [vmem:[%s5628 + $0x48] sm:$0xf]
        %v5648 = vld [vmem:[%s5628 + $0x4c] sm:$0xf]
        %v5649 = vld [vmem:[%s5628 + $0x50] sm:$0xf]
        %v5650 = vld [vmem:[%s5628 + $0x54] sm:$0xf]
        %v5651 = vld [vmem:[%s5628 + $0x58] sm:$0xf]
        %v5652 = vld [vmem:[%s5628 + $0x5c] sm:$0xf]
        %v5653 = vld [vmem:[%s5628 + $0x60] sm:$0x3]
        %v5679 = vunpack.c.l.b16 %v5629
        %v5680 = vunpack.c.l.b16 %v5630
        %v5681 = vunpack.c.l.b16 %v5631
        %v5682 = vunpack.c.l.b16 %v5632
        %v5683 = vunpack.c.l.b16 %v5633
        %v5684 = vunpack.c.l.b16 %v5634
        %v5685 = vunpack.c.l.b16 %v5635
        %v5686 = vunpack.c.l.b16 %v5636
        %v5687 = vunpack.c.l.b16 %v5637
        %v5688 = vunpack.c.l.b16 %v5638
        %v5689 = vunpack.c.l.b16 %v5639
        %v5690 = vunpack.c.l.b16 %v5640
        %v5691 = vunpack.c.l.b16 %v5641
        %v5692 = vunpack.c.l.b16 %v5642
        %v5693 = vunpack.c.l.b16 %v5643
        %v5694 = vunpack.c.l.b16 %v5644
        %v5695 = vunpack.c.l.b16 %v5645
        %v5696 = vunpack.c.l.b16 %v5646
        %v5697 = vunpack.c.l.b16 %v5647
        %v5698 = vunpack.c.l.b16 %v5648
        %v5699 = vunpack.c.l.b16 %v5649
        %v5700 = vunpack.c.l.b16 %v5650
        %v5701 = vunpack.c.l.b16 %v5651
        %v5702 = vunpack.c.l.b16 %v5652
        %v5703 = vunpack.c.l.b16 %v5653
        %v5704 = vpack.c.b16 %v5680, %v5679
        %v5705 = vpack.c.b16 %v5682, %v5681
        %v5706 = vpack.c.b16 %v5684, %v5683
        %v5707 = vpack.c.b16 %v5686, %v5685
        %v5708 = vpack.c.b16 %v5688, %v5687
        %v5709 = vpack.c.b16 %v5690, %v5689
        %v5710 = vpack.c.b16 %v5692, %v5691
        %v5711 = vpack.c.b16 %v5694, %v5693
        %v5712 = vpack.c.b16 %v5696, %v5695
        %v5713 = vpack.c.b16 %v5698, %v5697
        %v5714 = vpack.c.b16 %v5700, %v5699
        %v5715 = vpack.c.b16 %v5702, %v5701
        %v5716 = vpack.c.b16 %v5703, %v5703
        %v5730 = vsel %vm1893, %v5716, 0
        %5732 = vmatprep.subr.bf16.mxu0 0
        %5733 = vmatpush1.bf16.msra.mxu0 %v5711
        %5734 = vmatprep.subr.bf16.mxu0 0
        %5735 = vmatpush1.bf16.msra.mxu0 %v5710
        %5736 = vmatprep.subr.bf16.mxu0 0
        %5737 = vmatpush1.bf16.msra.mxu0 %v5709
        %5738 = vmatprep.subr.bf16.mxu0 0
        %5739 = vmatpush1.bf16.msra.mxu0 %v5708
        %5740 = vmatprep.subr.bf16.mxu0 0
        %5741 = vmatpush1.bf16.msra.mxu0 %v5707
        %5742 = vmatprep.subr.bf16.mxu0 0
        %5743 = vmatpush1.bf16.msra.mxu0 %v5706
        %5744 = vmatprep.subr.bf16.mxu0 0
        %5745 = vmatpush1.bf16.msra.mxu0 %v5705
        %5746 = vmatprep.subr.bf16.mxu0 0
        %5747 = vmatpush1.bf16.msra.mxu0 %v5704
        %5748 = vmatprep.subr.bf16.mxu0 0
        %5749 = vmatpush2.bf16.msra.mxu0 0
        %5750 = vmatprep.subr.bf16.mxu0 0
        %5751 = vmatpush2.bf16.msra.mxu0 0
        %5752 = vmatprep.subr.bf16.mxu0 0
        %5753 = vmatpush2.bf16.msra.mxu0 0
        %5754 = vmatprep.subr.bf16.mxu0 0
        %5755 = vmatpush2.bf16.msra.mxu0 %v5730
        %5756 = vmatprep.subr.bf16.mxu0 0
        %5757 = vmatpush2.bf16.msra.mxu0 %v5715
        %5758 = vmatprep.subr.bf16.mxu0 0
        %5759 = vmatpush2.bf16.msra.mxu0 %v5714
        %5760 = vmatprep.subr.bf16.mxu0 0
        %5761 = vmatpush2.bf16.msra.mxu0 %v5713
        %5762 = vmatprep.subr.bf16.mxu0 0
        %5763 = vmatpush2.bf16.msra.mxu0 %v5712
        %5764 = vmatprep.mubr.bf16.mxu0 %v1891
        %5765 = vmatmul.mubr.bf16.gmra.mxu0 %v1787
        %v5766 = vpop.f32.mrf.mxu0
        %v5767 = vadd.f32 0.0, %v5766
        %v5768 = vpop.f32.mrf.mxu0
        %v5769 = vpop.f32.mrf.mxu0
        %v5770 = vpop.f32.mrf.mxu0
        %5771 = vdwg.mxu0
        %v5772 = vpack.c.bf16 %v5767, %v5767
        %s5773 = scalar_lea.vmem %s5, 152
        %v5774 = vld [vmem:[%s5773] sm:$0xf]
        %v5775 = vld [vmem:[%s5773 + $0x4] sm:$0xf]
        %v5778 = vunpack.c.l.b16 %v5774
        %v5779 = vunpack.c.l.b16 %v5775
        %v5780 = vpack.c.b16 %v5779, %v5778
        %v5782 = vsel %vm2093, %v5780, 0
        %v5785 = vsel %vm2097, %v5772, 0
        %5787 = vmatprep.subr.bf16.mxu0 0
        %5788 = vmatpush1.bf16.msra.mxu0 0
        %5789 = vmatprep.subr.bf16.mxu0 0
        %5790 = vmatpush1.bf16.msra.mxu0 0
        %5791 = vmatprep.subr.bf16.mxu0 0
        %5792 = vmatpush1.bf16.msra.mxu0 0
        %5793 = vmatprep.subr.bf16.mxu0 0
        %5794 = vmatpush1.bf16.msra.mxu0 0
        %5795 = vmatprep.subr.bf16.mxu0 0
        %5796 = vmatpush1.bf16.msra.mxu0 0
        %5797 = vmatprep.subr.bf16.mxu0 0
        %5798 = vmatpush1.bf16.msra.mxu0 0
        %5799 = vmatprep.subr.bf16.mxu0 0
        %5800 = vmatpush1.bf16.msra.mxu0 0
        %5801 = vmatprep.subr.bf16.mxu0 0
        %5802 = vmatpush1.bf16.msra.mxu0 %v5785
        %5803 = vmatprep.subr.bf16.mxu0 0
        %5804 = vmatpush2.bf16.msra.mxu0 0
        %5805 = vmatprep.subr.bf16.mxu0 0
        %5806 = vmatpush2.bf16.msra.mxu0 0
        %5807 = vmatprep.subr.bf16.mxu0 0
        %5808 = vmatpush2.bf16.msra.mxu0 0
        %5809 = vmatprep.subr.bf16.mxu0 0
        %5810 = vmatpush2.bf16.msra.mxu0 0
        %5811 = vmatprep.subr.bf16.mxu0 0
        %5812 = vmatpush2.bf16.msra.mxu0 0
        %5813 = vmatprep.subr.bf16.mxu0 0
        %5814 = vmatpush2.bf16.msra.mxu0 0
        %5815 = vmatprep.subr.bf16.mxu0 0
        %5816 = vmatpush2.bf16.msra.mxu0 0
        %5817 = vmatprep.subr.bf16.mxu0 0
        %5818 = vmatpush2.bf16.msra.mxu0 0
        %5819 = vmatprep.mubr.bf16.mxu0 0
        %5820 = vmatmul.mubr.bf16.gmra.mxu0 %v5782
        %v5821 = vpop.f32.mrf.mxu0
        %v5822 = vadd.f32 0.0, %v5821
        %v5823 = vpop.f32.mrf.mxu0
        %v5824 = vpop.f32.mrf.mxu0
        %v5825 = vadd.f32 0.0, %v5824
        %v5826 = vpop.f32.mrf.mxu0
        %5827 = vdwg.mxu0
        %v5828 = vadd.f32 %v5626, %v5822
        %v5829 = vadd.f32 %v5627, %v5825
        %s5830 = scalar_lea.vmem %s4, 2000
        %v5831 = vld [vmem:[%s5830] sm:$0xf]
        %v5832 = vld [vmem:[%s5830 + $0x4] sm:$0xf]
        %v5833 = vld [vmem:[%s5830 + $0x8] sm:$0xf]
        %v5834 = vld [vmem:[%s5830 + $0xc] sm:$0xf]
        %v5835 = vld [vmem:[%s5830 + $0x10] sm:$0xf]
        %v5836 = vld [vmem:[%s5830 + $0x14] sm:$0xf]
        %v5837 = vld [vmem:[%s5830 + $0x18] sm:$0xf]
        %v5838 = vld [vmem:[%s5830 + $0x1c] sm:$0xf]
        %v5839 = vld [vmem:[%s5830 + $0x20] sm:$0xf]
        %v5840 = vld [vmem:[%s5830 + $0x24] sm:$0xf]
        %v5841 = vld [vmem:[%s5830 + $0x28] sm:$0xf]
        %v5842 = vld [vmem:[%s5830 + $0x2c] sm:$0xf]
        %v5843 = vld [vmem:[%s5830 + $0x30] sm:$0xf]
        %v5844 = vld [vmem:[%s5830 + $0x34] sm:$0xf]
        %v5845 = vld [vmem:[%s5830 + $0x38] sm:$0xf]
        %v5846 = vld [vmem:[%s5830 + $0x3c] sm:$0xf]
        %v5847 = vld [vmem:[%s5830 + $0x40] sm:$0xf]
        %v5848 = vld [vmem:[%s5830 + $0x44] sm:$0xf]
        %v5849 = vld [vmem:[%s5830 + $0x48] sm:$0xf]
        %v5850 = vld [vmem:[%s5830 + $0x4c] sm:$0xf]
        %v5851 = vld [vmem:[%s5830 + $0x50] sm:$0xf]
        %v5852 = vld [vmem:[%s5830 + $0x54] sm:$0xf]
        %v5853 = vld [vmem:[%s5830 + $0x58] sm:$0xf]
        %v5854 = vld [vmem:[%s5830 + $0x5c] sm:$0xf]
        %v5855 = vld [vmem:[%s5830 + $0x60] sm:$0x3]
        %v5881 = vunpack.c.l.b16 %v5831
        %v5882 = vunpack.c.l.b16 %v5832
        %v5883 = vunpack.c.l.b16 %v5833
        %v5884 = vunpack.c.l.b16 %v5834
        %v5885 = vunpack.c.l.b16 %v5835
        %v5886 = vunpack.c.l.b16 %v5836
        %v5887 = vunpack.c.l.b16 %v5837
        %v5888 = vunpack.c.l.b16 %v5838
        %v5889 = vunpack.c.l.b16 %v5839
        %v5890 = vunpack.c.l.b16 %v5840
        %v5891 = vunpack.c.l.b16 %v5841
        %v5892 = vunpack.c.l.b16 %v5842
        %v5893 = vunpack.c.l.b16 %v5843
        %v5894 = vunpack.c.l.b16 %v5844
        %v5895 = vunpack.c.l.b16 %v5845
        %v5896 = vunpack.c.l.b16 %v5846
        %v5897 = vunpack.c.l.b16 %v5847
        %v5898 = vunpack.c.l.b16 %v5848
        %v5899 = vunpack.c.l.b16 %v5849
        %v5900 = vunpack.c.l.b16 %v5850
        %v5901 = vunpack.c.l.b16 %v5851
        %v5902 = vunpack.c.l.b16 %v5852
        %v5903 = vunpack.c.l.b16 %v5853
        %v5904 = vunpack.c.l.b16 %v5854
        %v5905 = vunpack.c.l.b16 %v5855
        %v5906 = vpack.c.b16 %v5882, %v5881
        %v5907 = vpack.c.b16 %v5884, %v5883
        %v5908 = vpack.c.b16 %v5886, %v5885
        %v5909 = vpack.c.b16 %v5888, %v5887
        %v5910 = vpack.c.b16 %v5890, %v5889
        %v5911 = vpack.c.b16 %v5892, %v5891
        %v5912 = vpack.c.b16 %v5894, %v5893
        %v5913 = vpack.c.b16 %v5896, %v5895
        %v5914 = vpack.c.b16 %v5898, %v5897
        %v5915 = vpack.c.b16 %v5900, %v5899
        %v5916 = vpack.c.b16 %v5902, %v5901
        %v5917 = vpack.c.b16 %v5904, %v5903
        %v5918 = vpack.c.b16 %v5905, %v5905
        %v5932 = vsel %vm1893, %v5918, 0
        %5934 = vmatprep.subr.bf16.mxu0 0
        %5935 = vmatpush1.bf16.msra.mxu0 %v5913
        %5936 = vmatprep.subr.bf16.mxu0 0
        %5937 = vmatpush1.bf16.msra.mxu0 %v5912
        %5938 = vmatprep.subr.bf16.mxu0 0
        %5939 = vmatpush1.bf16.msra.mxu0 %v5911
        %5940 = vmatprep.subr.bf16.mxu0 0
        %5941 = vmatpush1.bf16.msra.mxu0 %v5910
        %5942 = vmatprep.subr.bf16.mxu0 0
        %5943 = vmatpush1.bf16.msra.mxu0 %v5909
        %5944 = vmatprep.subr.bf16.mxu0 0
        %5945 = vmatpush1.bf16.msra.mxu0 %v5908
        %5946 = vmatprep.subr.bf16.mxu0 0
        %5947 = vmatpush1.bf16.msra.mxu0 %v5907
        %5948 = vmatprep.subr.bf16.mxu0 0
        %5949 = vmatpush1.bf16.msra.mxu0 %v5906
        %5950 = vmatprep.subr.bf16.mxu0 0
        %5951 = vmatpush2.bf16.msra.mxu0 0
        %5952 = vmatprep.subr.bf16.mxu0 0
        %5953 = vmatpush2.bf16.msra.mxu0 0
        %5954 = vmatprep.subr.bf16.mxu0 0
        %5955 = vmatpush2.bf16.msra.mxu0 0
        %5956 = vmatprep.subr.bf16.mxu0 0
        %5957 = vmatpush2.bf16.msra.mxu0 %v5932
        %5958 = vmatprep.subr.bf16.mxu0 0
        %5959 = vmatpush2.bf16.msra.mxu0 %v5917
        %5960 = vmatprep.subr.bf16.mxu0 0
        %5961 = vmatpush2.bf16.msra.mxu0 %v5916
        %5962 = vmatprep.subr.bf16.mxu0 0
        %5963 = vmatpush2.bf16.msra.mxu0 %v5915
        %5964 = vmatprep.subr.bf16.mxu0 0
        %5965 = vmatpush2.bf16.msra.mxu0 %v5914
        %5966 = vmatprep.mubr.bf16.mxu0 %v1891
        %5967 = vmatmul.mubr.bf16.gmra.mxu0 %v1787
        %v5968 = vpop.f32.mrf.mxu0
        %v5969 = vadd.f32 0.0, %v5968
        %v5970 = vpop.f32.mrf.mxu0
        %v5971 = vpop.f32.mrf.mxu0
        %v5972 = vpop.f32.mrf.mxu0
        %5973 = vdwg.mxu0
        %v5974 = vpack.c.bf16 %v5969, %v5969
        %s5975 = scalar_lea.vmem %s5, 160
        %v5976 = vld [vmem:[%s5975] sm:$0xf]
        %v5977 = vld [vmem:[%s5975 + $0x4] sm:$0xf]
        %v5980 = vunpack.c.l.b16 %v5976
        %v5981 = vunpack.c.l.b16 %v5977
        %v5982 = vpack.c.b16 %v5981, %v5980
        %v5984 = vsel %vm2093, %v5982, 0
        %v5987 = vsel %vm2097, %v5974, 0
        %5989 = vmatprep.subr.bf16.mxu0 0
        %5990 = vmatpush1.bf16.msra.mxu0 0
        %5991 = vmatprep.subr.bf16.mxu0 0
        %5992 = vmatpush1.bf16.msra.mxu0 0
        %5993 = vmatprep.subr.bf16.mxu0 0
        %5994 = vmatpush1.bf16.msra.mxu0 0
        %5995 = vmatprep.subr.bf16.mxu0 0
        %5996 = vmatpush1.bf16.msra.mxu0 0
        %5997 = vmatprep.subr.bf16.mxu0 0
        %5998 = vmatpush1.bf16.msra.mxu0 0
        %5999 = vmatprep.subr.bf16.mxu0 0
        %6000 = vmatpush1.bf16.msra.mxu0 0
        %6001 = vmatprep.subr.bf16.mxu0 0
        %6002 = vmatpush1.bf16.msra.mxu0 0
        %6003 = vmatprep.subr.bf16.mxu0 0
        %6004 = vmatpush1.bf16.msra.mxu0 %v5987
        %6005 = vmatprep.subr.bf16.mxu0 0
        %6006 = vmatpush2.bf16.msra.mxu0 0
        %6007 = vmatprep.subr.bf16.mxu0 0
        %6008 = vmatpush2.bf16.msra.mxu0 0
        %6009 = vmatprep.subr.bf16.mxu0 0
        %6010 = vmatpush2.bf16.msra.mxu0 0
        %6011 = vmatprep.subr.bf16.mxu0 0
        %6012 = vmatpush2.bf16.msra.mxu0 0
        %6013 = vmatprep.subr.bf16.mxu0 0
        %6014 = vmatpush2.bf16.msra.mxu0 0
        %6015 = vmatprep.subr.bf16.mxu0 0
        %6016 = vmatpush2.bf16.msra.mxu0 0
        %6017 = vmatprep.subr.bf16.mxu0 0
        %6018 = vmatpush2.bf16.msra.mxu0 0
        %6019 = vmatprep.subr.bf16.mxu0 0
        %6020 = vmatpush2.bf16.msra.mxu0 0
        %6021 = vmatprep.mubr.bf16.mxu0 0
        %6022 = vmatmul.mubr.bf16.gmra.mxu0 %v5984
        %v6023 = vpop.f32.mrf.mxu0
        %v6024 = vadd.f32 0.0, %v6023
        %v6025 = vpop.f32.mrf.mxu0
        %v6026 = vpop.f32.mrf.mxu0
        %v6027 = vadd.f32 0.0, %v6026
        %v6028 = vpop.f32.mrf.mxu0
        %6029 = vdwg.mxu0
        %v6030 = vadd.f32 %v5828, %v6024
        %v6031 = vadd.f32 %v5829, %v6027
        %s6032 = scalar_lea.vmem %s4, 2100
        %v6033 = vld [vmem:[%s6032] sm:$0xf]
        %v6034 = vld [vmem:[%s6032 + $0x4] sm:$0xf]
        %v6035 = vld [vmem:[%s6032 + $0x8] sm:$0xf]
        %v6036 = vld [vmem:[%s6032 + $0xc] sm:$0xf]
        %v6037 = vld [vmem:[%s6032 + $0x10] sm:$0xf]
        %v6038 = vld [vmem:[%s6032 + $0x14] sm:$0xf]
        %v6039 = vld [vmem:[%s6032 + $0x18] sm:$0xf]
        %v6040 = vld [vmem:[%s6032 + $0x1c] sm:$0xf]
        %v6041 = vld [vmem:[%s6032 + $0x20] sm:$0xf]
        %v6042 = vld [vmem:[%s6032 + $0x24] sm:$0xf]
        %v6043 = vld [vmem:[%s6032 + $0x28] sm:$0xf]
        %v6044 = vld [vmem:[%s6032 + $0x2c] sm:$0xf]
        %v6045 = vld [vmem:[%s6032 + $0x30] sm:$0xf]
        %v6046 = vld [vmem:[%s6032 + $0x34] sm:$0xf]
        %v6047 = vld [vmem:[%s6032 + $0x38] sm:$0xf]
        %v6048 = vld [vmem:[%s6032 + $0x3c] sm:$0xf]
        %v6049 = vld [vmem:[%s6032 + $0x40] sm:$0xf]
        %v6050 = vld [vmem:[%s6032 + $0x44] sm:$0xf]
        %v6051 = vld [vmem:[%s6032 + $0x48] sm:$0xf]
        %v6052 = vld [vmem:[%s6032 + $0x4c] sm:$0xf]
        %v6053 = vld [vmem:[%s6032 + $0x50] sm:$0xf]
        %v6054 = vld [vmem:[%s6032 + $0x54] sm:$0xf]
        %v6055 = vld [vmem:[%s6032 + $0x58] sm:$0xf]
        %v6056 = vld [vmem:[%s6032 + $0x5c] sm:$0xf]
        %v6057 = vld [vmem:[%s6032 + $0x60] sm:$0x3]
        %v6083 = vunpack.c.l.b16 %v6033
        %v6084 = vunpack.c.l.b16 %v6034
        %v6085 = vunpack.c.l.b16 %v6035
        %v6086 = vunpack.c.l.b16 %v6036
        %v6087 = vunpack.c.l.b16 %v6037
        %v6088 = vunpack.c.l.b16 %v6038
        %v6089 = vunpack.c.l.b16 %v6039
        %v6090 = vunpack.c.l.b16 %v6040
        %v6091 = vunpack.c.l.b16 %v6041
        %v6092 = vunpack.c.l.b16 %v6042
        %v6093 = vunpack.c.l.b16 %v6043
        %v6094 = vunpack.c.l.b16 %v6044
        %v6095 = vunpack.c.l.b16 %v6045
        %v6096 = vunpack.c.l.b16 %v6046
        %v6097 = vunpack.c.l.b16 %v6047
        %v6098 = vunpack.c.l.b16 %v6048
        %v6099 = vunpack.c.l.b16 %v6049
        %v6100 = vunpack.c.l.b16 %v6050
        %v6101 = vunpack.c.l.b16 %v6051
        %v6102 = vunpack.c.l.b16 %v6052
        %v6103 = vunpack.c.l.b16 %v6053
        %v6104 = vunpack.c.l.b16 %v6054
        %v6105 = vunpack.c.l.b16 %v6055
        %v6106 = vunpack.c.l.b16 %v6056
        %v6107 = vunpack.c.l.b16 %v6057
        %v6108 = vpack.c.b16 %v6084, %v6083
        %v6109 = vpack.c.b16 %v6086, %v6085
        %v6110 = vpack.c.b16 %v6088, %v6087
        %v6111 = vpack.c.b16 %v6090, %v6089
        %v6112 = vpack.c.b16 %v6092, %v6091
        %v6113 = vpack.c.b16 %v6094, %v6093
        %v6114 = vpack.c.b16 %v6096, %v6095
        %v6115 = vpack.c.b16 %v6098, %v6097
        %v6116 = vpack.c.b16 %v6100, %v6099
        %v6117 = vpack.c.b16 %v6102, %v6101
        %v6118 = vpack.c.b16 %v6104, %v6103
        %v6119 = vpack.c.b16 %v6106, %v6105
        %v6120 = vpack.c.b16 %v6107, %v6107
        %v6134 = vsel %vm1893, %v6120, 0
        %6136 = vmatprep.subr.bf16.mxu0 0
        %6137 = vmatpush1.bf16.msra.mxu0 %v6115
        %6138 = vmatprep.subr.bf16.mxu0 0
        %6139 = vmatpush1.bf16.msra.mxu0 %v6114
        %6140 = vmatprep.subr.bf16.mxu0 0
        %6141 = vmatpush1.bf16.msra.mxu0 %v6113
        %6142 = vmatprep.subr.bf16.mxu0 0
        %6143 = vmatpush1.bf16.msra.mxu0 %v6112
        %6144 = vmatprep.subr.bf16.mxu0 0
        %6145 = vmatpush1.bf16.msra.mxu0 %v6111
        %6146 = vmatprep.subr.bf16.mxu0 0
        %6147 = vmatpush1.bf16.msra.mxu0 %v6110
        %6148 = vmatprep.subr.bf16.mxu0 0
        %6149 = vmatpush1.bf16.msra.mxu0 %v6109
        %6150 = vmatprep.subr.bf16.mxu0 0
        %6151 = vmatpush1.bf16.msra.mxu0 %v6108
        %6152 = vmatprep.subr.bf16.mxu0 0
        %6153 = vmatpush2.bf16.msra.mxu0 0
        %6154 = vmatprep.subr.bf16.mxu0 0
        %6155 = vmatpush2.bf16.msra.mxu0 0
        %6156 = vmatprep.subr.bf16.mxu0 0
        %6157 = vmatpush2.bf16.msra.mxu0 0
        %6158 = vmatprep.subr.bf16.mxu0 0
        %6159 = vmatpush2.bf16.msra.mxu0 %v6134
        %6160 = vmatprep.subr.bf16.mxu0 0
        %6161 = vmatpush2.bf16.msra.mxu0 %v6119
        %6162 = vmatprep.subr.bf16.mxu0 0
        %6163 = vmatpush2.bf16.msra.mxu0 %v6118
        %6164 = vmatprep.subr.bf16.mxu0 0
        %6165 = vmatpush2.bf16.msra.mxu0 %v6117
        %6166 = vmatprep.subr.bf16.mxu0 0
        %6167 = vmatpush2.bf16.msra.mxu0 %v6116
        %6168 = vmatprep.mubr.bf16.mxu0 %v1891
        %6169 = vmatmul.mubr.bf16.gmra.mxu0 %v1787
        %v6170 = vpop.f32.mrf.mxu0
        %v6171 = vadd.f32 0.0, %v6170
        %v6172 = vpop.f32.mrf.mxu0
        %v6173 = vpop.f32.mrf.mxu0
        %v6174 = vpop.f32.mrf.mxu0
        %6175 = vdwg.mxu0
        %v6176 = vpack.c.bf16 %v6171, %v6171
        %s6177 = scalar_lea.vmem %s5, 168
        %v6178 = vld [vmem:[%s6177] sm:$0xf]
        %v6179 = vld [vmem:[%s6177 + $0x4] sm:$0xf]
        %v6182 = vunpack.c.l.b16 %v6178
        %v6183 = vunpack.c.l.b16 %v6179
        %v6184 = vpack.c.b16 %v6183, %v6182
        %v6186 = vsel %vm2093, %v6184, 0
        %v6189 = vsel %vm2097, %v6176, 0
        %6191 = vmatprep.subr.bf16.mxu0 0
        %6192 = vmatpush1.bf16.msra.mxu0 0
        %6193 = vmatprep.subr.bf16.mxu0 0
        %6194 = vmatpush1.bf16.msra.mxu0 0
        %6195 = vmatprep.subr.bf16.mxu0 0
        %6196 = vmatpush1.bf16.msra.mxu0 0
        %6197 = vmatprep.subr.bf16.mxu0 0
        %6198 = vmatpush1.bf16.msra.mxu0 0
        %6199 = vmatprep.subr.bf16.mxu0 0
        %6200 = vmatpush1.bf16.msra.mxu0 0
        %6201 = vmatprep.subr.bf16.mxu0 0
        %6202 = vmatpush1.bf16.msra.mxu0 0
        %6203 = vmatprep.subr.bf16.mxu0 0
        %6204 = vmatpush1.bf16.msra.mxu0 0
        %6205 = vmatprep.subr.bf16.mxu0 0
        %6206 = vmatpush1.bf16.msra.mxu0 %v6189
        %6207 = vmatprep.subr.bf16.mxu0 0
        %6208 = vmatpush2.bf16.msra.mxu0 0
        %6209 = vmatprep.subr.bf16.mxu0 0
        %6210 = vmatpush2.bf16.msra.mxu0 0
        %6211 = vmatprep.subr.bf16.mxu0 0
        %6212 = vmatpush2.bf16.msra.mxu0 0
        %6213 = vmatprep.subr.bf16.mxu0 0
        %6214 = vmatpush2.bf16.msra.mxu0 0
        %6215 = vmatprep.subr.bf16.mxu0 0
        %6216 = vmatpush2.bf16.msra.mxu0 0
        %6217 = vmatprep.subr.bf16.mxu0 0
        %6218 = vmatpush2.bf16.msra.mxu0 0
        %6219 = vmatprep.subr.bf16.mxu0 0
        %6220 = vmatpush2.bf16.msra.mxu0 0
        %6221 = vmatprep.subr.bf16.mxu0 0
        %6222 = vmatpush2.bf16.msra.mxu0 0
        %6223 = vmatprep.mubr.bf16.mxu0 0
        %6224 = vmatmul.mubr.bf16.gmra.mxu0 %v6186
        %v6225 = vpop.f32.mrf.mxu0
        %v6226 = vadd.f32 0.0, %v6225
        %v6227 = vpop.f32.mrf.mxu0
        %v6228 = vpop.f32.mrf.mxu0
        %v6229 = vadd.f32 0.0, %v6228
        %v6230 = vpop.f32.mrf.mxu0
        %6231 = vdwg.mxu0
        %v6232 = vadd.f32 %v6030, %v6226
        %v6233 = vadd.f32 %v6031, %v6229
        %s6234 = scalar_lea.vmem %s4, 2200
        %v6235 = vld [vmem:[%s6234] sm:$0xf]
        %v6236 = vld [vmem:[%s6234 + $0x4] sm:$0xf]
        %v6237 = vld [vmem:[%s6234 + $0x8] sm:$0xf]
        %v6238 = vld [vmem:[%s6234 + $0xc] sm:$0xf]
        %v6239 = vld [vmem:[%s6234 + $0x10] sm:$0xf]
        %v6240 = vld [vmem:[%s6234 + $0x14] sm:$0xf]
        %v6241 = vld [vmem:[%s6234 + $0x18] sm:$0xf]
        %v6242 = vld [vmem:[%s6234 + $0x1c] sm:$0xf]
        %v6243 = vld [vmem:[%s6234 + $0x20] sm:$0xf]
        %v6244 = vld [vmem:[%s6234 + $0x24] sm:$0xf]
        %v6245 = vld [vmem:[%s6234 + $0x28] sm:$0xf]
        %v6246 = vld [vmem:[%s6234 + $0x2c] sm:$0xf]
        %v6247 = vld [vmem:[%s6234 + $0x30] sm:$0xf]
        %v6248 = vld [vmem:[%s6234 + $0x34] sm:$0xf]
        %v6249 = vld [vmem:[%s6234 + $0x38] sm:$0xf]
        %v6250 = vld [vmem:[%s6234 + $0x3c] sm:$0xf]
        %v6251 = vld [vmem:[%s6234 + $0x40] sm:$0xf]
        %v6252 = vld [vmem:[%s6234 + $0x44] sm:$0xf]
        %v6253 = vld [vmem:[%s6234 + $0x48] sm:$0xf]
        %v6254 = vld [vmem:[%s6234 + $0x4c] sm:$0xf]
        %v6255 = vld [vmem:[%s6234 + $0x50] sm:$0xf]
        %v6256 = vld [vmem:[%s6234 + $0x54] sm:$0xf]
        %v6257 = vld [vmem:[%s6234 + $0x58] sm:$0xf]
        %v6258 = vld [vmem:[%s6234 + $0x5c] sm:$0xf]
        %v6259 = vld [vmem:[%s6234 + $0x60] sm:$0x3]
        %v6285 = vunpack.c.l.b16 %v6235
        %v6286 = vunpack.c.l.b16 %v6236
        %v6287 = vunpack.c.l.b16 %v6237
        %v6288 = vunpack.c.l.b16 %v6238
        %v6289 = vunpack.c.l.b16 %v6239
        %v6290 = vunpack.c.l.b16 %v6240
        %v6291 = vunpack.c.l.b16 %v6241
        %v6292 = vunpack.c.l.b16 %v6242
        %v6293 = vunpack.c.l.b16 %v6243
        %v6294 = vunpack.c.l.b16 %v6244
        %v6295 = vunpack.c.l.b16 %v6245
        %v6296 = vunpack.c.l.b16 %v6246
        %v6297 = vunpack.c.l.b16 %v6247
        %v6298 = vunpack.c.l.b16 %v6248
        %v6299 = vunpack.c.l.b16 %v6249
        %v6300 = vunpack.c.l.b16 %v6250
        %v6301 = vunpack.c.l.b16 %v6251
        %v6302 = vunpack.c.l.b16 %v6252
        %v6303 = vunpack.c.l.b16 %v6253
        %v6304 = vunpack.c.l.b16 %v6254
        %v6305 = vunpack.c.l.b16 %v6255
        %v6306 = vunpack.c.l.b16 %v6256
        %v6307 = vunpack.c.l.b16 %v6257
        %v6308 = vunpack.c.l.b16 %v6258
        %v6309 = vunpack.c.l.b16 %v6259
        %v6310 = vpack.c.b16 %v6286, %v6285
        %v6311 = vpack.c.b16 %v6288, %v6287
        %v6312 = vpack.c.b16 %v6290, %v6289
        %v6313 = vpack.c.b16 %v6292, %v6291
        %v6314 = vpack.c.b16 %v6294, %v6293
        %v6315 = vpack.c.b16 %v6296, %v6295
        %v6316 = vpack.c.b16 %v6298, %v6297
        %v6317 = vpack.c.b16 %v6300, %v6299
        %v6318 = vpack.c.b16 %v6302, %v6301
        %v6319 = vpack.c.b16 %v6304, %v6303
        %v6320 = vpack.c.b16 %v6306, %v6305
        %v6321 = vpack.c.b16 %v6308, %v6307
        %v6322 = vpack.c.b16 %v6309, %v6309
        %v6336 = vsel %vm1893, %v6322, 0
        %6338 = vmatprep.subr.bf16.mxu0 0
        %6339 = vmatpush1.bf16.msra.mxu0 %v6317
        %6340 = vmatprep.subr.bf16.mxu0 0
        %6341 = vmatpush1.bf16.msra.mxu0 %v6316
        %6342 = vmatprep.subr.bf16.mxu0 0
        %6343 = vmatpush1.bf16.msra.mxu0 %v6315
        %6344 = vmatprep.subr.bf16.mxu0 0
        %6345 = vmatpush1.bf16.msra.mxu0 %v6314
        %6346 = vmatprep.subr.bf16.mxu0 0
        %6347 = vmatpush1.bf16.msra.mxu0 %v6313
        %6348 = vmatprep.subr.bf16.mxu0 0
        %6349 = vmatpush1.bf16.msra.mxu0 %v6312
        %6350 = vmatprep.subr.bf16.mxu0 0
        %6351 = vmatpush1.bf16.msra.mxu0 %v6311
        %6352 = vmatprep.subr.bf16.mxu0 0
        %6353 = vmatpush1.bf16.msra.mxu0 %v6310
        %6354 = vmatprep.subr.bf16.mxu0 0
        %6355 = vmatpush2.bf16.msra.mxu0 0
        %6356 = vmatprep.subr.bf16.mxu0 0
        %6357 = vmatpush2.bf16.msra.mxu0 0
        %6358 = vmatprep.subr.bf16.mxu0 0
        %6359 = vmatpush2.bf16.msra.mxu0 0
        %6360 = vmatprep.subr.bf16.mxu0 0
        %6361 = vmatpush2.bf16.msra.mxu0 %v6336
        %6362 = vmatprep.subr.bf16.mxu0 0
        %6363 = vmatpush2.bf16.msra.mxu0 %v6321
        %6364 = vmatprep.subr.bf16.mxu0 0
        %6365 = vmatpush2.bf16.msra.mxu0 %v6320
        %6366 = vmatprep.subr.bf16.mxu0 0
        %6367 = vmatpush2.bf16.msra.mxu0 %v6319
        %6368 = vmatprep.subr.bf16.mxu0 0
        %6369 = vmatpush2.bf16.msra.mxu0 %v6318
        %6370 = vmatprep.mubr.bf16.mxu0 %v1891
        %6371 = vmatmul.mubr.bf16.gmra.mxu0 %v1787
        %v6372 = vpop.f32.mrf.mxu0
        %v6373 = vadd.f32 0.0, %v6372
        %v6374 = vpop.f32.mrf.mxu0
        %v6375 = vpop.f32.mrf.mxu0
        %v6376 = vpop.f32.mrf.mxu0
        %6377 = vdwg.mxu0
        %v6378 = vpack.c.bf16 %v6373, %v6373
        %s6379 = scalar_lea.vmem %s5, 176
        %v6380 = vld [vmem:[%s6379] sm:$0xf]
        %v6381 = vld [vmem:[%s6379 + $0x4] sm:$0xf]
        %v6384 = vunpack.c.l.b16 %v6380
        %v6385 = vunpack.c.l.b16 %v6381
        %v6386 = vpack.c.b16 %v6385, %v6384
        %v6388 = vsel %vm2093, %v6386, 0
        %v6391 = vsel %vm2097, %v6378, 0
        %6393 = vmatprep.subr.bf16.mxu0 0
        %6394 = vmatpush1.bf16.msra.mxu0 0
        %6395 = vmatprep.subr.bf16.mxu0 0
        %6396 = vmatpush1.bf16.msra.mxu0 0
        %6397 = vmatprep.subr.bf16.mxu0 0
        %6398 = vmatpush1.bf16.msra.mxu0 0
        %6399 = vmatprep.subr.bf16.mxu0 0
        %6400 = vmatpush1.bf16.msra.mxu0 0
        %6401 = vmatprep.subr.bf16.mxu0 0
        %6402 = vmatpush1.bf16.msra.mxu0 0
        %6403 = vmatprep.subr.bf16.mxu0 0
        %6404 = vmatpush1.bf16.msra.mxu0 0
        %6405 = vmatprep.subr.bf16.mxu0 0
        %6406 = vmatpush1.bf16.msra.mxu0 0
        %6407 = vmatprep.subr.bf16.mxu0 0
        %6408 = vmatpush1.bf16.msra.mxu0 %v6391
        %6409 = vmatprep.subr.bf16.mxu0 0
        %6410 = vmatpush2.bf16.msra.mxu0 0
        %6411 = vmatprep.subr.bf16.mxu0 0
        %6412 = vmatpush2.bf16.msra.mxu0 0
        %6413 = vmatprep.subr.bf16.mxu0 0
        %6414 = vmatpush2.bf16.msra.mxu0 0
        %6415 = vmatprep.subr.bf16.mxu0 0
        %6416 = vmatpush2.bf16.msra.mxu0 0
        %6417 = vmatprep.subr.bf16.mxu0 0
        %6418 = vmatpush2.bf16.msra.mxu0 0
        %6419 = vmatprep.subr.bf16.mxu0 0
        %6420 = vmatpush2.bf16.msra.mxu0 0
        %6421 = vmatprep.subr.bf16.mxu0 0
        %6422 = vmatpush2.bf16.msra.mxu0 0
        %6423 = vmatprep.subr.bf16.mxu0 0
        %6424 = vmatpush2.bf16.msra.mxu0 0
        %6425 = vmatprep.mubr.bf16.mxu0 0
        %6426 = vmatmul.mubr.bf16.gmra.mxu0 %v6388
        %v6427 = vpop.f32.mrf.mxu0
        %v6428 = vadd.f32 0.0, %v6427
        %v6429 = vpop.f32.mrf.mxu0
        %v6430 = vpop.f32.mrf.mxu0
        %v6431 = vadd.f32 0.0, %v6430
        %v6432 = vpop.f32.mrf.mxu0
        %6433 = vdwg.mxu0
        %v6434 = vadd.f32 %v6232, %v6428
        %v6435 = vadd.f32 %v6233, %v6431
        %s6436 = scalar_lea.vmem %s4, 2300
        %v6437 = vld [vmem:[%s6436] sm:$0xf]
        %v6438 = vld [vmem:[%s6436 + $0x4] sm:$0xf]
        %v6439 = vld [vmem:[%s6436 + $0x8] sm:$0xf]
        %v6440 = vld [vmem:[%s6436 + $0xc] sm:$0xf]
        %v6441 = vld [vmem:[%s6436 + $0x10] sm:$0xf]
        %v6442 = vld [vmem:[%s6436 + $0x14] sm:$0xf]
        %v6443 = vld [vmem:[%s6436 + $0x18] sm:$0xf]
        %v6444 = vld [vmem:[%s6436 + $0x1c] sm:$0xf]
        %v6445 = vld [vmem:[%s6436 + $0x20] sm:$0xf]
        %v6446 = vld [vmem:[%s6436 + $0x24] sm:$0xf]
        %v6447 = vld [vmem:[%s6436 + $0x28] sm:$0xf]
        %v6448 = vld [vmem:[%s6436 + $0x2c] sm:$0xf]
        %v6449 = vld [vmem:[%s6436 + $0x30] sm:$0xf]
        %v6450 = vld [vmem:[%s6436 + $0x34] sm:$0xf]
        %v6451 = vld [vmem:[%s6436 + $0x38] sm:$0xf]
        %v6452 = vld [vmem:[%s6436 + $0x3c] sm:$0xf]
        %v6453 = vld [vmem:[%s6436 + $0x40] sm:$0xf]
        %v6454 = vld [vmem:[%s6436 + $0x44] sm:$0xf]
        %v6455 = vld [vmem:[%s6436 + $0x48] sm:$0xf]
        %v6456 = vld [vmem:[%s6436 + $0x4c] sm:$0xf]
        %v6457 = vld [vmem:[%s6436 + $0x50] sm:$0xf]
        %v6458 = vld [vmem:[%s6436 + $0x54] sm:$0xf]
        %v6459 = vld [vmem:[%s6436 + $0x58] sm:$0xf]
        %v6460 = vld [vmem:[%s6436 + $0x5c] sm:$0xf]
        %v6461 = vld [vmem:[%s6436 + $0x60] sm:$0x3]
        %v6487 = vunpack.c.l.b16 %v6437
        %v6488 = vunpack.c.l.b16 %v6438
        %v6489 = vunpack.c.l.b16 %v6439
        %v6490 = vunpack.c.l.b16 %v6440
        %v6491 = vunpack.c.l.b16 %v6441
        %v6492 = vunpack.c.l.b16 %v6442
        %v6493 = vunpack.c.l.b16 %v6443
        %v6494 = vunpack.c.l.b16 %v6444
        %v6495 = vunpack.c.l.b16 %v6445
        %v6496 = vunpack.c.l.b16 %v6446
        %v6497 = vunpack.c.l.b16 %v6447
        %v6498 = vunpack.c.l.b16 %v6448
        %v6499 = vunpack.c.l.b16 %v6449
        %v6500 = vunpack.c.l.b16 %v6450
        %v6501 = vunpack.c.l.b16 %v6451
        %v6502 = vunpack.c.l.b16 %v6452
        %v6503 = vunpack.c.l.b16 %v6453
        %v6504 = vunpack.c.l.b16 %v6454
        %v6505 = vunpack.c.l.b16 %v6455
        %v6506 = vunpack.c.l.b16 %v6456
        %v6507 = vunpack.c.l.b16 %v6457
        %v6508 = vunpack.c.l.b16 %v6458
        %v6509 = vunpack.c.l.b16 %v6459
        %v6510 = vunpack.c.l.b16 %v6460
        %v6511 = vunpack.c.l.b16 %v6461
        %v6512 = vpack.c.b16 %v6488, %v6487
        %v6513 = vpack.c.b16 %v6490, %v6489
        %v6514 = vpack.c.b16 %v6492, %v6491
        %v6515 = vpack.c.b16 %v6494, %v6493
        %v6516 = vpack.c.b16 %v6496, %v6495
        %v6517 = vpack.c.b16 %v6498, %v6497
        %v6518 = vpack.c.b16 %v6500, %v6499
        %v6519 = vpack.c.b16 %v6502, %v6501
        %v6520 = vpack.c.b16 %v6504, %v6503
        %v6521 = vpack.c.b16 %v6506, %v6505
        %v6522 = vpack.c.b16 %v6508, %v6507
        %v6523 = vpack.c.b16 %v6510, %v6509
        %v6524 = vpack.c.b16 %v6511, %v6511
        %v6538 = vsel %vm1893, %v6524, 0
        %6540 = vmatprep.subr.bf16.mxu0 0
        %6541 = vmatpush1.bf16.msra.mxu0 %v6519
        %6542 = vmatprep.subr.bf16.mxu0 0
        %6543 = vmatpush1.bf16.msra.mxu0 %v6518
        %6544 = vmatprep.subr.bf16.mxu0 0
        %6545 = vmatpush1.bf16.msra.mxu0 %v6517
        %6546 = vmatprep.subr.bf16.mxu0 0
        %6547 = vmatpush1.bf16.msra.mxu0 %v6516
        %6548 = vmatprep.subr.bf16.mxu0 0
        %6549 = vmatpush1.bf16.msra.mxu0 %v6515
        %6550 = vmatprep.subr.bf16.mxu0 0
        %6551 = vmatpush1.bf16.msra.mxu0 %v6514
        %6552 = vmatprep.subr.bf16.mxu0 0
        %6553 = vmatpush1.bf16.msra.mxu0 %v6513
        %6554 = vmatprep.subr.bf16.mxu0 0
        %6555 = vmatpush1.bf16.msra.mxu0 %v6512
        %6556 = vmatprep.subr.bf16.mxu0 0
        %6557 = vmatpush2.bf16.msra.mxu0 0
        %6558 = vmatprep.subr.bf16.mxu0 0
        %6559 = vmatpush2.bf16.msra.mxu0 0
        %6560 = vmatprep.subr.bf16.mxu0 0
        %6561 = vmatpush2.bf16.msra.mxu0 0
        %6562 = vmatprep.subr.bf16.mxu0 0
        %6563 = vmatpush2.bf16.msra.mxu0 %v6538
        %6564 = vmatprep.subr.bf16.mxu0 0
        %6565 = vmatpush2.bf16.msra.mxu0 %v6523
        %6566 = vmatprep.subr.bf16.mxu0 0
        %6567 = vmatpush2.bf16.msra.mxu0 %v6522
        %6568 = vmatprep.subr.bf16.mxu0 0
        %6569 = vmatpush2.bf16.msra.mxu0 %v6521
        %6570 = vmatprep.subr.bf16.mxu0 0
        %6571 = vmatpush2.bf16.msra.mxu0 %v6520
        %6572 = vmatprep.mubr.bf16.mxu0 %v1891
        %6573 = vmatmul.mubr.bf16.gmra.mxu0 %v1787
        %v6574 = vpop.f32.mrf.mxu0
        %v6575 = vadd.f32 0.0, %v6574
        %v6576 = vpop.f32.mrf.mxu0
        %v6577 = vpop.f32.mrf.mxu0
        %v6578 = vpop.f32.mrf.mxu0
        %6579 = vdwg.mxu0
        %v6580 = vpack.c.bf16 %v6575, %v6575
        %s6581 = scalar_lea.vmem %s5, 184
        %v6582 = vld [vmem:[%s6581] sm:$0xf]
        %v6583 = vld [vmem:[%s6581 + $0x4] sm:$0xf]
        %v6586 = vunpack.c.l.b16 %v6582
        %v6587 = vunpack.c.l.b16 %v6583
        %v6588 = vpack.c.b16 %v6587, %v6586
        %v6590 = vsel %vm2093, %v6588, 0
        %v6593 = vsel %vm2097, %v6580, 0
        %6595 = vmatprep.subr.bf16.mxu0 0
        %6596 = vmatpush1.bf16.msra.mxu0 0
        %6597 = vmatprep.subr.bf16.mxu0 0
        %6598 = vmatpush1.bf16.msra.mxu0 0
        %6599 = vmatprep.subr.bf16.mxu0 0
        %6600 = vmatpush1.bf16.msra.mxu0 0
        %6601 = vmatprep.subr.bf16.mxu0 0
        %6602 = vmatpush1.bf16.msra.mxu0 0
        %6603 = vmatprep.subr.bf16.mxu0 0
        %6604 = vmatpush1.bf16.msra.mxu0 0
        %6605 = vmatprep.subr.bf16.mxu0 0
        %6606 = vmatpush1.bf16.msra.mxu0 0
        %6607 = vmatprep.subr.bf16.mxu0 0
        %6608 = vmatpush1.bf16.msra.mxu0 0
        %6609 = vmatprep.subr.bf16.mxu0 0
        %6610 = vmatpush1.bf16.msra.mxu0 %v6593
        %6611 = vmatprep.subr.bf16.mxu0 0
        %6612 = vmatpush2.bf16.msra.mxu0 0
        %6613 = vmatprep.subr.bf16.mxu0 0
        %6614 = vmatpush2.bf16.msra.mxu0 0
        %6615 = vmatprep.subr.bf16.mxu0 0
        %6616 = vmatpush2.bf16.msra.mxu0 0
        %6617 = vmatprep.subr.bf16.mxu0 0
        %6618 = vmatpush2.bf16.msra.mxu0 0
        %6619 = vmatprep.subr.bf16.mxu0 0
        %6620 = vmatpush2.bf16.msra.mxu0 0
        %6621 = vmatprep.subr.bf16.mxu0 0
        %6622 = vmatpush2.bf16.msra.mxu0 0
        %6623 = vmatprep.subr.bf16.mxu0 0
        %6624 = vmatpush2.bf16.msra.mxu0 0
        %6625 = vmatprep.subr.bf16.mxu0 0
        %6626 = vmatpush2.bf16.msra.mxu0 0
        %6627 = vmatprep.mubr.bf16.mxu0 0
        %6628 = vmatmul.mubr.bf16.gmra.mxu0 %v6590
        %v6629 = vpop.f32.mrf.mxu0
        %v6630 = vadd.f32 0.0, %v6629
        %v6631 = vpop.f32.mrf.mxu0
        %v6632 = vpop.f32.mrf.mxu0
        %v6633 = vadd.f32 0.0, %v6632
        %v6634 = vpop.f32.mrf.mxu0
        %6635 = vdwg.mxu0
        %v6636 = vadd.f32 %v6434, %v6630
        %v6637 = vadd.f32 %v6435, %v6633
        %s6638 = scalar_lea.vmem %s4, 2400
        %v6639 = vld [vmem:[%s6638] sm:$0xf]
        %v6640 = vld [vmem:[%s6638 + $0x4] sm:$0xf]
        %v6641 = vld [vmem:[%s6638 + $0x8] sm:$0xf]
        %v6642 = vld [vmem:[%s6638 + $0xc] sm:$0xf]
        %v6643 = vld [vmem:[%s6638 + $0x10] sm:$0xf]
        %v6644 = vld [vmem:[%s6638 + $0x14] sm:$0xf]
        %v6645 = vld [vmem:[%s6638 + $0x18] sm:$0xf]
        %v6646 = vld [vmem:[%s6638 + $0x1c] sm:$0xf]
        %v6647 = vld [vmem:[%s6638 + $0x20] sm:$0xf]
        %v6648 = vld [vmem:[%s6638 + $0x24] sm:$0xf]
        %v6649 = vld [vmem:[%s6638 + $0x28] sm:$0xf]
        %v6650 = vld [vmem:[%s6638 + $0x2c] sm:$0xf]
        %v6651 = vld [vmem:[%s6638 + $0x30] sm:$0xf]
        %v6652 = vld [vmem:[%s6638 + $0x34] sm:$0xf]
        %v6653 = vld [vmem:[%s6638 + $0x38] sm:$0xf]
        %v6654 = vld [vmem:[%s6638 + $0x3c] sm:$0xf]
        %v6655 = vld [vmem:[%s6638 + $0x40] sm:$0xf]
        %v6656 = vld [vmem:[%s6638 + $0x44] sm:$0xf]
        %v6657 = vld [vmem:[%s6638 + $0x48] sm:$0xf]
        %v6658 = vld [vmem:[%s6638 + $0x4c] sm:$0xf]
        %v6659 = vld [vmem:[%s6638 + $0x50] sm:$0xf]
        %v6660 = vld [vmem:[%s6638 + $0x54] sm:$0xf]
        %v6661 = vld [vmem:[%s6638 + $0x58] sm:$0xf]
        %v6662 = vld [vmem:[%s6638 + $0x5c] sm:$0xf]
        %v6663 = vld [vmem:[%s6638 + $0x60] sm:$0x3]
        %v6689 = vunpack.c.l.b16 %v6639
        %v6690 = vunpack.c.l.b16 %v6640
        %v6691 = vunpack.c.l.b16 %v6641
        %v6692 = vunpack.c.l.b16 %v6642
        %v6693 = vunpack.c.l.b16 %v6643
        %v6694 = vunpack.c.l.b16 %v6644
        %v6695 = vunpack.c.l.b16 %v6645
        %v6696 = vunpack.c.l.b16 %v6646
        %v6697 = vunpack.c.l.b16 %v6647
        %v6698 = vunpack.c.l.b16 %v6648
        %v6699 = vunpack.c.l.b16 %v6649
        %v6700 = vunpack.c.l.b16 %v6650
        %v6701 = vunpack.c.l.b16 %v6651
        %v6702 = vunpack.c.l.b16 %v6652
        %v6703 = vunpack.c.l.b16 %v6653
        %v6704 = vunpack.c.l.b16 %v6654
        %v6705 = vunpack.c.l.b16 %v6655
        %v6706 = vunpack.c.l.b16 %v6656
        %v6707 = vunpack.c.l.b16 %v6657
        %v6708 = vunpack.c.l.b16 %v6658
        %v6709 = vunpack.c.l.b16 %v6659
        %v6710 = vunpack.c.l.b16 %v6660
        %v6711 = vunpack.c.l.b16 %v6661
        %v6712 = vunpack.c.l.b16 %v6662
        %v6713 = vunpack.c.l.b16 %v6663
        %v6714 = vpack.c.b16 %v6690, %v6689
        %v6715 = vpack.c.b16 %v6692, %v6691
        %v6716 = vpack.c.b16 %v6694, %v6693
        %v6717 = vpack.c.b16 %v6696, %v6695
        %v6718 = vpack.c.b16 %v6698, %v6697
        %v6719 = vpack.c.b16 %v6700, %v6699
        %v6720 = vpack.c.b16 %v6702, %v6701
        %v6721 = vpack.c.b16 %v6704, %v6703
        %v6722 = vpack.c.b16 %v6706, %v6705
        %v6723 = vpack.c.b16 %v6708, %v6707
        %v6724 = vpack.c.b16 %v6710, %v6709
        %v6725 = vpack.c.b16 %v6712, %v6711
        %v6726 = vpack.c.b16 %v6713, %v6713
        %v6740 = vsel %vm1893, %v6726, 0
        %6742 = vmatprep.subr.bf16.mxu0 0
        %6743 = vmatpush1.bf16.msra.mxu0 %v6721
        %6744 = vmatprep.subr.bf16.mxu0 0
        %6745 = vmatpush1.bf16.msra.mxu0 %v6720
        %6746 = vmatprep.subr.bf16.mxu0 0
        %6747 = vmatpush1.bf16.msra.mxu0 %v6719
        %6748 = vmatprep.subr.bf16.mxu0 0
        %6749 = vmatpush1.bf16.msra.mxu0 %v6718
        %6750 = vmatprep.subr.bf16.mxu0 0
        %6751 = vmatpush1.bf16.msra.mxu0 %v6717
        %6752 = vmatprep.subr.bf16.mxu0 0
        %6753 = vmatpush1.bf16.msra.mxu0 %v6716
        %6754 = vmatprep.subr.bf16.mxu0 0
        %6755 = vmatpush1.bf16.msra.mxu0 %v6715
        %6756 = vmatprep.subr.bf16.mxu0 0
        %6757 = vmatpush1.bf16.msra.mxu0 %v6714
        %6758 = vmatprep.subr.bf16.mxu0 0
        %6759 = vmatpush2.bf16.msra.mxu0 0
        %6760 = vmatprep.subr.bf16.mxu0 0
        %6761 = vmatpush2.bf16.msra.mxu0 0
        %6762 = vmatprep.subr.bf16.mxu0 0
        %6763 = vmatpush2.bf16.msra.mxu0 0
        %6764 = vmatprep.subr.bf16.mxu0 0
        %6765 = vmatpush2.bf16.msra.mxu0 %v6740
        %6766 = vmatprep.subr.bf16.mxu0 0
        %6767 = vmatpush2.bf16.msra.mxu0 %v6725
        %6768 = vmatprep.subr.bf16.mxu0 0
        %6769 = vmatpush2.bf16.msra.mxu0 %v6724
        %6770 = vmatprep.subr.bf16.mxu0 0
        %6771 = vmatpush2.bf16.msra.mxu0 %v6723
        %6772 = vmatprep.subr.bf16.mxu0 0
        %6773 = vmatpush2.bf16.msra.mxu0 %v6722
        %6774 = vmatprep.mubr.bf16.mxu0 %v1891
        %6775 = vmatmul.mubr.bf16.gmra.mxu0 %v1787
        %v6776 = vpop.f32.mrf.mxu0
        %v6777 = vadd.f32 0.0, %v6776
        %v6778 = vpop.f32.mrf.mxu0
        %v6779 = vpop.f32.mrf.mxu0
        %v6780 = vpop.f32.mrf.mxu0
        %6781 = vdwg.mxu0
        %v6782 = vpack.c.bf16 %v6777, %v6777
        %s6783 = scalar_lea.vmem %s5, 192
        %v6784 = vld [vmem:[%s6783] sm:$0xf]
        %v6785 = vld [vmem:[%s6783 + $0x4] sm:$0xf]
        %v6788 = vunpack.c.l.b16 %v6784
        %v6789 = vunpack.c.l.b16 %v6785
        %v6790 = vpack.c.b16 %v6789, %v6788
        %v6792 = vsel %vm2093, %v6790, 0
        %v6795 = vsel %vm2097, %v6782, 0
        %6797 = vmatprep.subr.bf16.mxu0 0
        %6798 = vmatpush1.bf16.msra.mxu0 0
        %6799 = vmatprep.subr.bf16.mxu0 0
        %6800 = vmatpush1.bf16.msra.mxu0 0
        %6801 = vmatprep.subr.bf16.mxu0 0
        %6802 = vmatpush1.bf16.msra.mxu0 0
        %6803 = vmatprep.subr.bf16.mxu0 0
        %6804 = vmatpush1.bf16.msra.mxu0 0
        %6805 = vmatprep.subr.bf16.mxu0 0
        %6806 = vmatpush1.bf16.msra.mxu0 0
        %6807 = vmatprep.subr.bf16.mxu0 0
        %6808 = vmatpush1.bf16.msra.mxu0 0
        %6809 = vmatprep.subr.bf16.mxu0 0
        %6810 = vmatpush1.bf16.msra.mxu0 0
        %6811 = vmatprep.subr.bf16.mxu0 0
        %6812 = vmatpush1.bf16.msra.mxu0 %v6795
        %6813 = vmatprep.subr.bf16.mxu0 0
        %6814 = vmatpush2.bf16.msra.mxu0 0
        %6815 = vmatprep.subr.bf16.mxu0 0
        %6816 = vmatpush2.bf16.msra.mxu0 0
        %6817 = vmatprep.subr.bf16.mxu0 0
        %6818 = vmatpush2.bf16.msra.mxu0 0
        %6819 = vmatprep.subr.bf16.mxu0 0
        %6820 = vmatpush2.bf16.msra.mxu0 0
        %6821 = vmatprep.subr.bf16.mxu0 0
        %6822 = vmatpush2.bf16.msra.mxu0 0
        %6823 = vmatprep.subr.bf16.mxu0 0
        %6824 = vmatpush2.bf16.msra.mxu0 0
        %6825 = vmatprep.subr.bf16.mxu0 0
        %6826 = vmatpush2.bf16.msra.mxu0 0
        %6827 = vmatprep.subr.bf16.mxu0 0
        %6828 = vmatpush2.bf16.msra.mxu0 0
        %6829 = vmatprep.mubr.bf16.mxu0 0
        %6830 = vmatmul.mubr.bf16.gmra.mxu0 %v6792
        %v6831 = vpop.f32.mrf.mxu0
        %v6832 = vadd.f32 0.0, %v6831
        %v6833 = vpop.f32.mrf.mxu0
        %v6834 = vpop.f32.mrf.mxu0
        %v6835 = vadd.f32 0.0, %v6834
        %v6836 = vpop.f32.mrf.mxu0
        %6837 = vdwg.mxu0
        %v6838 = vadd.f32 %v6636, %v6832
        %v6839 = vadd.f32 %v6637, %v6835
        %v6840 = vld [vmem:[%s6] sm:$0xff]
        %v6841 = vld [vmem:[%s6 + $0x8] sm:$0xff]
        %6843 = vset.pattern.permute.xlu0 0
        %6844 = vperm.xlu0 %6843, %v6840
        %v6845 = vpop.permute.xlu0 %6844
        %6848 = vset.pattern.permute.xlu0 0
        %6849 = vperm.xlu0 %6848, %v6841
        %v6850 = vpop.permute.xlu0 %6849
        %v6852 = vadd.f32 %v6838, %v6845
        %v6853 = vadd.f32 %v6839, %v6850
        %v6854 = vmax.f32 %v6852, 0.0
        %v6855 = vmax.f32 %v6853, 0.0
        %v6856 = vpack.c.bf16 %v6854, %v6854
        %v6857 = vld [vmem:[%s7] sm:$0xf]
        %v6858 = vld [vmem:[%s7 + $0x4] sm:$0xf]
        %v6859 = vld [vmem:[%s7 + $0x8] sm:$0xf]
        %v6860 = vld [vmem:[%s7 + $0xc] sm:$0xf]
        %v6861 = vld [vmem:[%s7 + $0x10] sm:$0xf]
        %v6862 = vld [vmem:[%s7 + $0x14] sm:$0xf]
        %v6863 = vld [vmem:[%s7 + $0x18] sm:$0xf]
        %v6864 = vld [vmem:[%s7 + $0x1c] sm:$0xf]
        %v6865 = vld [vmem:[%s7 + $0x20] sm:$0xf]
        %v6866 = vld [vmem:[%s7 + $0x24] sm:$0xf]
        %v6867 = vld [vmem:[%s7 + $0x28] sm:$0xf]
        %v6868 = vld [vmem:[%s7 + $0x2c] sm:$0xf]
        %v6869 = vld [vmem:[%s7 + $0x30] sm:$0x3]
        %s6870 = scalar_lea.vmem %s7, 52
        %v6871 = vld [vmem:[%s6870] sm:$0xf]
        %v6872 = vld [vmem:[%s6870 + $0x4] sm:$0xf]
        %v6873 = vld [vmem:[%s6870 + $0x8] sm:$0xf]
        %v6874 = vld [vmem:[%s6870 + $0xc] sm:$0xf]
        %v6875 = vld [vmem:[%s6870 + $0x10] sm:$0xf]
        %v6876 = vld [vmem:[%s6870 + $0x14] sm:$0xf]
        %v6877 = vld [vmem:[%s6870 + $0x18] sm:$0xf]
        %v6878 = vld [vmem:[%s6870 + $0x1c] sm:$0xf]
        %v6879 = vld [vmem:[%s6870 + $0x20] sm:$0xf]
        %v6880 = vld [vmem:[%s6870 + $0x24] sm:$0xf]
        %v6881 = vld [vmem:[%s6870 + $0x28] sm:$0xf]
        %v6882 = vld [vmem:[%s6870 + $0x2c] sm:$0xf]
        %v6883 = vld [vmem:[%s6870 + $0x30] sm:$0x3]
        %v6885 = vshrl.u32 %v6856, 16
        %v6900 = vunpack.c.l.b16 %v6871
        %v6901 = vunpack.c.l.b16 %v6872
        %v6902 = vunpack.c.l.b16 %v6873
        %v6903 = vunpack.c.l.b16 %v6874
        %v6904 = vunpack.c.l.b16 %v6875
        %v6905 = vunpack.c.l.b16 %v6876
        %v6906 = vunpack.c.l.b16 %v6877
        %v6907 = vunpack.c.l.b16 %v6878
        %v6908 = vunpack.c.l.b16 %v6879
        %v6909 = vunpack.c.l.b16 %v6880
        %v6910 = vunpack.c.l.b16 %v6881
        %v6911 = vunpack.c.l.b16 %v6882
        %v6912 = vunpack.c.l.b16 %v6883
        %v6913 = vpack.c.b16 %v6901, %v6900
        %v6914 = vpack.c.b16 %v6903, %v6902
        %v6915 = vpack.c.b16 %v6905, %v6904
        %v6916 = vpack.c.b16 %v6907, %v6906
        %v6917 = vpack.c.b16 %v6909, %v6908
        %v6918 = vpack.c.b16 %v6911, %v6910
        %v6919 = vpack.c.b16 %v6912, %v6912
        %vm6926 = vcmask 818176
        %v6928 = vsel %vm6926, %v6885, 0
        %v6931 = vsel %vm1893, %v6919, 0
        %6933 = vmatprep.subr.bf16.mxu0 0
        %6934 = vmatpush1.bf16.msra.mxu0 0
        %6935 = vmatprep.subr.bf16.mxu0 0
        %6936 = vmatpush1.bf16.msra.mxu0 %v6931
        %6937 = vmatprep.subr.bf16.mxu0 0
        %6938 = vmatpush1.bf16.msra.mxu0 %v6918
        %6939 = vmatprep.subr.bf16.mxu0 0
        %6940 = vmatpush1.bf16.msra.mxu0 %v6917
        %6941 = vmatprep.subr.bf16.mxu0 0
        %6942 = vmatpush1.bf16.msra.mxu0 %v6916
        %6943 = vmatprep.subr.bf16.mxu0 0
        %6944 = vmatpush1.bf16.msra.mxu0 %v6915
        %6945 = vmatprep.subr.bf16.mxu0 0
        %6946 = vmatpush1.bf16.msra.mxu0 %v6914
        %6947 = vmatprep.subr.bf16.mxu0 0
        %6948 = vmatpush1.bf16.msra.mxu0 %v6913
        %6949 = vmatprep.subr.bf16.mxu0 0
        %6950 = vmatpush2.bf16.msra.mxu0 0
        %6951 = vmatprep.subr.bf16.mxu0 0
        %6952 = vmatpush2.bf16.msra.mxu0 0
        %6953 = vmatprep.subr.bf16.mxu0 0
        %6954 = vmatpush2.bf16.msra.mxu0 0
        %6955 = vmatprep.subr.bf16.mxu0 0
        %6956 = vmatpush2.bf16.msra.mxu0 0
        %6957 = vmatprep.subr.bf16.mxu0 0
        %6958 = vmatpush2.bf16.msra.mxu0 0
        %6959 = vmatprep.subr.bf16.mxu0 0
        %6960 = vmatpush2.bf16.msra.mxu0 0
        %6961 = vmatprep.subr.bf16.mxu0 0
        %6962 = vmatpush2.bf16.msra.mxu0 0
        %6963 = vmatprep.subr.bf16.mxu0 0
        %6964 = vmatpush2.bf16.msra.mxu0 0
        %6965 = vmatprep.mubr.bf16.mxu0 0
        %6966 = vmatmul.mubr.bf16.gmra.mxu0 %v6928
        %v6967 = vpop.f32.mrf.mxu0
        %v6968 = vadd.f32 0.0, %v6967
        %v6969 = vpop.f32.mrf.mxu0
        %v6970 = vpop.f32.mrf.mxu0
        %v6971 = vpop.f32.mrf.mxu0
        %6972 = vdwg.mxu0
        %v6986 = vunpack.c.l.b16 %v6857
        %v6987 = vunpack.c.l.b16 %v6858
        %v6988 = vunpack.c.l.b16 %v6859
        %v6989 = vunpack.c.l.b16 %v6860
        %v6990 = vunpack.c.l.b16 %v6861
        %v6991 = vunpack.c.l.b16 %v6862
        %v6992 = vunpack.c.l.b16 %v6863
        %v6993 = vunpack.c.l.b16 %v6864
        %v6994 = vunpack.c.l.b16 %v6865
        %v6995 = vunpack.c.l.b16 %v6866
        %v6996 = vunpack.c.l.b16 %v6867
        %v6997 = vunpack.c.l.b16 %v6868
        %v6998 = vunpack.c.l.b16 %v6869
        %v6999 = vpack.c.b16 %v6987, %v6986
        %v7000 = vpack.c.b16 %v6989, %v6988
        %v7001 = vpack.c.b16 %v6991, %v6990
        %v7002 = vpack.c.b16 %v6993, %v6992
        %v7003 = vpack.c.b16 %v6995, %v6994
        %v7004 = vpack.c.b16 %v6997, %v6996
        %v7005 = vpack.c.b16 %v6998, %v6998
        %v7012 = vsel %vm6926, %v6856, 0
        %v7015 = vsel %vm1893, %v7005, 0
        %7017 = vmatprep.subr.bf16.mxu0 0
        %7018 = vmatpush1.bf16.msra.mxu0 0
        %7019 = vmatprep.subr.bf16.mxu0 0
        %7020 = vmatpush1.bf16.msra.mxu0 %v7015
        %7021 = vmatprep.subr.bf16.mxu0 0
        %7022 = vmatpush1.bf16.msra.mxu0 %v7004
        %7023 = vmatprep.subr.bf16.mxu0 0
        %7024 = vmatpush1.bf16.msra.mxu0 %v7003
        %7025 = vmatprep.subr.bf16.mxu0 0
        %7026 = vmatpush1.bf16.msra.mxu0 %v7002
        %7027 = vmatprep.subr.bf16.mxu0 0
        %7028 = vmatpush1.bf16.msra.mxu0 %v7001
        %7029 = vmatprep.subr.bf16.mxu0 0
        %7030 = vmatpush1.bf16.msra.mxu0 %v7000
        %7031 = vmatprep.subr.bf16.mxu0 0
        %7032 = vmatpush1.bf16.msra.mxu0 %v6999
        %7033 = vmatprep.subr.bf16.mxu0 0
        %7034 = vmatpush2.bf16.msra.mxu0 0
        %7035 = vmatprep.subr.bf16.mxu0 0
        %7036 = vmatpush2.bf16.msra.mxu0 0
        %7037 = vmatprep.subr.bf16.mxu0 0
        %7038 = vmatpush2.bf16.msra.mxu0 0
        %7039 = vmatprep.subr.bf16.mxu0 0
        %7040 = vmatpush2.bf16.msra.mxu0 0
        %7041 = vmatprep.subr.bf16.mxu0 0
        %7042 = vmatpush2.bf16.msra.mxu0 0
        %7043 = vmatprep.subr.bf16.mxu0 0
        %7044 = vmatpush2.bf16.msra.mxu0 0
        %7045 = vmatprep.subr.bf16.mxu0 0
        %7046 = vmatpush2.bf16.msra.mxu0 0
        %7047 = vmatprep.subr.bf16.mxu0 0
        %7048 = vmatpush2.bf16.msra.mxu0 0
        %7049 = vmatprep.mubr.bf16.mxu0 0
        %7050 = vmatmul.mubr.bf16.gmra.mxu0 %v7012
        %v7051 = vpop.f32.mrf.mxu0
        %v7052 = vadd.f32 %v6968, %v7051
        %v7053 = vpop.f32.mrf.mxu0
        %v7054 = vpop.f32.mrf.mxu0
        %v7055 = vpop.f32.mrf.mxu0
        %7056 = vdwg.mxu0
        %s7057 = scalar_lea.vmem %s7, 104
        %v7058 = vld [vmem:[%s7057] sm:$0xf]
        %v7059 = vld [vmem:[%s7057 + $0x4] sm:$0xf]
        %v7060 = vld [vmem:[%s7057 + $0x8] sm:$0xf]
        %v7061 = vld [vmem:[%s7057 + $0xc] sm:$0xf]
        %v7062 = vld [vmem:[%s7057 + $0x10] sm:$0xf]
        %v7063 = vld [vmem:[%s7057 + $0x14] sm:$0xf]
        %v7064 = vld [vmem:[%s7057 + $0x18] sm:$0xf]
        %v7065 = vld [vmem:[%s7057 + $0x1c] sm:$0xf]
        %v7066 = vld [vmem:[%s7057 + $0x20] sm:$0xf]
        %v7067 = vld [vmem:[%s7057 + $0x24] sm:$0xf]
        %v7068 = vld [vmem:[%s7057 + $0x28] sm:$0xf]
        %v7069 = vld [vmem:[%s7057 + $0x2c] sm:$0xf]
        %v7070 = vld [vmem:[%s7057 + $0x30] sm:$0x3]
        %v7072 = vrot.slane %v6856, 1
        %v7086 = vunpack.c.l.b16 %v7058
        %v7087 = vunpack.c.l.b16 %v7059
        %v7088 = vunpack.c.l.b16 %v7060
        %v7089 = vunpack.c.l.b16 %v7061
        %v7090 = vunpack.c.l.b16 %v7062
        %v7091 = vunpack.c.l.b16 %v7063
        %v7092 = vunpack.c.l.b16 %v7064
        %v7093 = vunpack.c.l.b16 %v7065
        %v7094 = vunpack.c.l.b16 %v7066
        %v7095 = vunpack.c.l.b16 %v7067
        %v7096 = vunpack.c.l.b16 %v7068
        %v7097 = vunpack.c.l.b16 %v7069
        %v7098 = vunpack.c.l.b16 %v7070
        %v7099 = vpack.c.b16 %v7087, %v7086
        %v7100 = vpack.c.b16 %v7089, %v7088
        %v7101 = vpack.c.b16 %v7091, %v7090
        %v7102 = vpack.c.b16 %v7093, %v7092
        %v7103 = vpack.c.b16 %v7095, %v7094
        %v7104 = vpack.c.b16 %v7097, %v7096
        %v7105 = vpack.c.b16 %v7098, %v7098
        %v7113 = vsel %vm6926, %v7072, 0
        %v7116 = vsel %vm1893, %v7105, 0
        %7118 = vmatprep.subr.bf16.mxu0 0
        %7119 = vmatpush1.bf16.msra.mxu0 0
        %7120 = vmatprep.subr.bf16.mxu0 0
        %7121 = vmatpush1.bf16.msra.mxu0 %v7116
        %7122 = vmatprep.subr.bf16.mxu0 0
        %7123 = vmatpush1.bf16.msra.mxu0 %v7104
        %7124 = vmatprep.subr.bf16.mxu0 0
        %7125 = vmatpush1.bf16.msra.mxu0 %v7103
        %7126 = vmatprep.subr.bf16.mxu0 0
        %7127 = vmatpush1.bf16.msra.mxu0 %v7102
        %7128 = vmatprep.subr.bf16.mxu0 0
        %7129 = vmatpush1.bf16.msra.mxu0 %v7101
        %7130 = vmatprep.subr.bf16.mxu0 0
        %7131 = vmatpush1.bf16.msra.mxu0 %v7100
        %7132 = vmatprep.subr.bf16.mxu0 0
        %7133 = vmatpush1.bf16.msra.mxu0 %v7099
        %7134 = vmatprep.subr.bf16.mxu0 0
        %7135 = vmatpush2.bf16.msra.mxu0 0
        %7136 = vmatprep.subr.bf16.mxu0 0
        %7137 = vmatpush2.bf16.msra.mxu0 0
        %7138 = vmatprep.subr.bf16.mxu0 0
        %7139 = vmatpush2.bf16.msra.mxu0 0
        %7140 = vmatprep.subr.bf16.mxu0 0
        %7141 = vmatpush2.bf16.msra.mxu0 0
        %7142 = vmatprep.subr.bf16.mxu0 0
        %7143 = vmatpush2.bf16.msra.mxu0 0
        %7144 = vmatprep.subr.bf16.mxu0 0
        %7145 = vmatpush2.bf16.msra.mxu0 0
        %7146 = vmatprep.subr.bf16.mxu0 0
        %7147 = vmatpush2.bf16.msra.mxu0 0
        %7148 = vmatprep.subr.bf16.mxu0 0
        %7149 = vmatpush2.bf16.msra.mxu0 0
        %7150 = vmatprep.mubr.bf16.mxu0 0
        %7151 = vmatmul.mubr.bf16.gmra.mxu0 %v7113
        %v7152 = vpop.f32.mrf.mxu0
        %v7153 = vadd.f32 0.0, %v7152
        %v7154 = vpop.f32.mrf.mxu0
        %v7155 = vpop.f32.mrf.mxu0
        %v7156 = vpop.f32.mrf.mxu0
        %7157 = vdwg.mxu0
        %v7158 = vadd.f32 %v7052, %v7153
        %s7159 = scalar_lea.vmem %s7, 156
        %v7160 = vld [vmem:[%s7159] sm:$0xf]
        %v7161 = vld [vmem:[%s7159 + $0x4] sm:$0xf]
        %v7162 = vld [vmem:[%s7159 + $0x8] sm:$0xf]
        %v7163 = vld [vmem:[%s7159 + $0xc] sm:$0xf]
        %v7164 = vld [vmem:[%s7159 + $0x10] sm:$0xf]
        %v7165 = vld [vmem:[%s7159 + $0x14] sm:$0xf]
        %v7166 = vld [vmem:[%s7159 + $0x18] sm:$0xf]
        %v7167 = vld [vmem:[%s7159 + $0x1c] sm:$0xf]
        %v7168 = vld [vmem:[%s7159 + $0x20] sm:$0xf]
        %v7169 = vld [vmem:[%s7159 + $0x24] sm:$0xf]
        %v7170 = vld [vmem:[%s7159 + $0x28] sm:$0xf]
        %v7171 = vld [vmem:[%s7159 + $0x2c] sm:$0xf]
        %v7172 = vld [vmem:[%s7159 + $0x30] sm:$0x3]
        %v7173 = vrot.slane %v6885, 1
        %v7187 = vunpack.c.l.b16 %v7160
        %v7188 = vunpack.c.l.b16 %v7161
        %v7189 = vunpack.c.l.b16 %v7162
        %v7190 = vunpack.c.l.b16 %v7163
        %v7191 = vunpack.c.l.b16 %v7164
        %v7192 = vunpack.c.l.b16 %v7165
        %v7193 = vunpack.c.l.b16 %v7166
        %v7194 = vunpack.c.l.b16 %v7167
        %v7195 = vunpack.c.l.b16 %v7168
        %v7196 = vunpack.c.l.b16 %v7169
        %v7197 = vunpack.c.l.b16 %v7170
        %v7198 = vunpack.c.l.b16 %v7171
        %v7199 = vunpack.c.l.b16 %v7172
        %v7200 = vpack.c.b16 %v7188, %v7187
        %v7201 = vpack.c.b16 %v7190, %v7189
        %v7202 = vpack.c.b16 %v7192, %v7191
        %v7203 = vpack.c.b16 %v7194, %v7193
        %v7204 = vpack.c.b16 %v7196, %v7195
        %v7205 = vpack.c.b16 %v7198, %v7197
        %v7206 = vpack.c.b16 %v7199, %v7199
        %v7214 = vsel %vm6926, %v7173, 0
        %v7217 = vsel %vm1893, %v7206, 0
        %7219 = vmatprep.subr.bf16.mxu0 0
        %7220 = vmatpush1.bf16.msra.mxu0 0
        %7221 = vmatprep.subr.bf16.mxu0 0
        %7222 = vmatpush1.bf16.msra.mxu0 %v7217
        %7223 = vmatprep.subr.bf16.mxu0 0
        %7224 = vmatpush1.bf16.msra.mxu0 %v7205
        %7225 = vmatprep.subr.bf16.mxu0 0
        %7226 = vmatpush1.bf16.msra.mxu0 %v7204
        %7227 = vmatprep.subr.bf16.mxu0 0
        %7228 = vmatpush1.bf16.msra.mxu0 %v7203
        %7229 = vmatprep.subr.bf16.mxu0 0
        %7230 = vmatpush1.bf16.msra.mxu0 %v7202
        %7231 = vmatprep.subr.bf16.mxu0 0
        %7232 = vmatpush1.bf16.msra.mxu0 %v7201
        %7233 = vmatprep.subr.bf16.mxu0 0
        %7234 = vmatpush1.bf16.msra.mxu0 %v7200
        %7235 = vmatprep.subr.bf16.mxu0 0
        %7236 = vmatpush2.bf16.msra.mxu0 0
        %7237 = vmatprep.subr.bf16.mxu0 0
        %7238 = vmatpush2.bf16.msra.mxu0 0
        %7239 = vmatprep.subr.bf16.mxu0 0
        %7240 = vmatpush2.bf16.msra.mxu0 0
        %7241 = vmatprep.subr.bf16.mxu0 0
        %7242 = vmatpush2.bf16.msra.mxu0 0
        %7243 = vmatprep.subr.bf16.mxu0 0
        %7244 = vmatpush2.bf16.msra.mxu0 0
        %7245 = vmatprep.subr.bf16.mxu0 0
        %7246 = vmatpush2.bf16.msra.mxu0 0
        %7247 = vmatprep.subr.bf16.mxu0 0
        %7248 = vmatpush2.bf16.msra.mxu0 0
        %7249 = vmatprep.subr.bf16.mxu0 0
        %7250 = vmatpush2.bf16.msra.mxu0 0
        %7251 = vmatprep.mubr.bf16.mxu0 0
        %7252 = vmatmul.mubr.bf16.gmra.mxu0 %v7214
        %v7253 = vpop.f32.mrf.mxu0
        %v7254 = vadd.f32 0.0, %v7253
        %v7255 = vpop.f32.mrf.mxu0
        %v7256 = vpop.f32.mrf.mxu0
        %v7257 = vpop.f32.mrf.mxu0
        %7258 = vdwg.mxu0
        %v7259 = vadd.f32 %v7158, %v7254
        %s7260 = scalar_lea.vmem %s7, 208
        %v7261 = vld [vmem:[%s7260] sm:$0xf]
        %v7262 = vld [vmem:[%s7260 + $0x4] sm:$0xf]
        %v7263 = vld [vmem:[%s7260 + $0x8] sm:$0xf]
        %v7264 = vld [vmem:[%s7260 + $0xc] sm:$0xf]
        %v7265 = vld [vmem:[%s7260 + $0x10] sm:$0xf]
        %v7266 = vld [vmem:[%s7260 + $0x14] sm:$0xf]
        %v7267 = vld [vmem:[%s7260 + $0x18] sm:$0xf]
        %v7268 = vld [vmem:[%s7260 + $0x1c] sm:$0xf]
        %v7269 = vld [vmem:[%s7260 + $0x20] sm:$0xf]
        %v7270 = vld [vmem:[%s7260 + $0x24] sm:$0xf]
        %v7271 = vld [vmem:[%s7260 + $0x28] sm:$0xf]
        %v7272 = vld [vmem:[%s7260 + $0x2c] sm:$0xf]
        %v7273 = vld [vmem:[%s7260 + $0x30] sm:$0x3]
        %v7274 = vrot.slane %v6856, 2
        %v7288 = vunpack.c.l.b16 %v7261
        %v7289 = vunpack.c.l.b16 %v7262
        %v7290 = vunpack.c.l.b16 %v7263
        %v7291 = vunpack.c.l.b16 %v7264
        %v7292 = vunpack.c.l.b16 %v7265
        %v7293 = vunpack.c.l.b16 %v7266
        %v7294 = vunpack.c.l.b16 %v7267
        %v7295 = vunpack.c.l.b16 %v7268
        %v7296 = vunpack.c.l.b16 %v7269
        %v7297 = vunpack.c.l.b16 %v7270
        %v7298 = vunpack.c.l.b16 %v7271
        %v7299 = vunpack.c.l.b16 %v7272
        %v7300 = vunpack.c.l.b16 %v7273
        %v7301 = vpack.c.b16 %v7289, %v7288
        %v7302 = vpack.c.b16 %v7291, %v7290
        %v7303 = vpack.c.b16 %v7293, %v7292
        %v7304 = vpack.c.b16 %v7295, %v7294
        %v7305 = vpack.c.b16 %v7297, %v7296
        %v7306 = vpack.c.b16 %v7299, %v7298
        %v7307 = vpack.c.b16 %v7300, %v7300
        %v7315 = vsel %vm6926, %v7274, 0
        %v7318 = vsel %vm1893, %v7307, 0
        %7320 = vmatprep.subr.bf16.mxu0 0
        %7321 = vmatpush1.bf16.msra.mxu0 0
        %7322 = vmatprep.subr.bf16.mxu0 0
        %7323 = vmatpush1.bf16.msra.mxu0 %v7318
        %7324 = vmatprep.subr.bf16.mxu0 0
        %7325 = vmatpush1.bf16.msra.mxu0 %v7306
        %7326 = vmatprep.subr.bf16.mxu0 0
        %7327 = vmatpush1.bf16.msra.mxu0 %v7305
        %7328 = vmatprep.subr.bf16.mxu0 0
        %7329 = vmatpush1.bf16.msra.mxu0 %v7304
        %7330 = vmatprep.subr.bf16.mxu0 0
        %7331 = vmatpush1.bf16.msra.mxu0 %v7303
        %7332 = vmatprep.subr.bf16.mxu0 0
        %7333 = vmatpush1.bf16.msra.mxu0 %v7302
        %7334 = vmatprep.subr.bf16.mxu0 0
        %7335 = vmatpush1.bf16.msra.mxu0 %v7301
        %7336 = vmatprep.subr.bf16.mxu0 0
        %7337 = vmatpush2.bf16.msra.mxu0 0
        %7338 = vmatprep.subr.bf16.mxu0 0
        %7339 = vmatpush2.bf16.msra.mxu0 0
        %7340 = vmatprep.subr.bf16.mxu0 0
        %7341 = vmatpush2.bf16.msra.mxu0 0
        %7342 = vmatprep.subr.bf16.mxu0 0
        %7343 = vmatpush2.bf16.msra.mxu0 0
        %7344 = vmatprep.subr.bf16.mxu0 0
        %7345 = vmatpush2.bf16.msra.mxu0 0
        %7346 = vmatprep.subr.bf16.mxu0 0
        %7347 = vmatpush2.bf16.msra.mxu0 0
        %7348 = vmatprep.subr.bf16.mxu0 0
        %7349 = vmatpush2.bf16.msra.mxu0 0
        %7350 = vmatprep.subr.bf16.mxu0 0
        %7351 = vmatpush2.bf16.msra.mxu0 0
        %7352 = vmatprep.mubr.bf16.mxu0 0
        %7353 = vmatmul.mubr.bf16.gmra.mxu0 %v7315
        %v7354 = vpop.f32.mrf.mxu0
        %v7355 = vadd.f32 0.0, %v7354
        %v7356 = vpop.f32.mrf.mxu0
        %v7357 = vpop.f32.mrf.mxu0
        %v7358 = vpop.f32.mrf.mxu0
        %7359 = vdwg.mxu0
        %v7360 = vadd.f32 %v7259, %v7355
        %s7361 = scalar_lea.vmem %s7, 260
        %v7362 = vld [vmem:[%s7361] sm:$0xf]
        %v7363 = vld [vmem:[%s7361 + $0x4] sm:$0xf]
        %v7364 = vld [vmem:[%s7361 + $0x8] sm:$0xf]
        %v7365 = vld [vmem:[%s7361 + $0xc] sm:$0xf]
        %v7366 = vld [vmem:[%s7361 + $0x10] sm:$0xf]
        %v7367 = vld [vmem:[%s7361 + $0x14] sm:$0xf]
        %v7368 = vld [vmem:[%s7361 + $0x18] sm:$0xf]
        %v7369 = vld [vmem:[%s7361 + $0x1c] sm:$0xf]
        %v7370 = vld [vmem:[%s7361 + $0x20] sm:$0xf]
        %v7371 = vld [vmem:[%s7361 + $0x24] sm:$0xf]
        %v7372 = vld [vmem:[%s7361 + $0x28] sm:$0xf]
        %v7373 = vld [vmem:[%s7361 + $0x2c] sm:$0xf]
        %v7374 = vld [vmem:[%s7361 + $0x30] sm:$0x3]
        %v7375 = vrot.slane %v6885, 2
        %v7389 = vunpack.c.l.b16 %v7362
        %v7390 = vunpack.c.l.b16 %v7363
        %v7391 = vunpack.c.l.b16 %v7364
        %v7392 = vunpack.c.l.b16 %v7365
        %v7393 = vunpack.c.l.b16 %v7366
        %v7394 = vunpack.c.l.b16 %v7367
        %v7395 = vunpack.c.l.b16 %v7368
        %v7396 = vunpack.c.l.b16 %v7369
        %v7397 = vunpack.c.l.b16 %v7370
        %v7398 = vunpack.c.l.b16 %v7371
        %v7399 = vunpack.c.l.b16 %v7372
        %v7400 = vunpack.c.l.b16 %v7373
        %v7401 = vunpack.c.l.b16 %v7374
        %v7402 = vpack.c.b16 %v7390, %v7389
        %v7403 = vpack.c.b16 %v7392, %v7391
        %v7404 = vpack.c.b16 %v7394, %v7393
        %v7405 = vpack.c.b16 %v7396, %v7395
        %v7406 = vpack.c.b16 %v7398, %v7397
        %v7407 = vpack.c.b16 %v7400, %v7399
        %v7408 = vpack.c.b16 %v7401, %v7401
        %v7416 = vsel %vm6926, %v7375, 0
        %v7419 = vsel %vm1893, %v7408, 0
        %7421 = vmatprep.subr.bf16.mxu0 0
        %7422 = vmatpush1.bf16.msra.mxu0 0
        %7423 = vmatprep.subr.bf16.mxu0 0
        %7424 = vmatpush1.bf16.msra.mxu0 %v7419
        %7425 = vmatprep.subr.bf16.mxu0 0
        %7426 = vmatpush1.bf16.msra.mxu0 %v7407
        %7427 = vmatprep.subr.bf16.mxu0 0
        %7428 = vmatpush1.bf16.msra.mxu0 %v7406
        %7429 = vmatprep.subr.bf16.mxu0 0
        %7430 = vmatpush1.bf16.msra.mxu0 %v7405
        %7431 = vmatprep.subr.bf16.mxu0 0
        %7432 = vmatpush1.bf16.msra.mxu0 %v7404
        %7433 = vmatprep.subr.bf16.mxu0 0
        %7434 = vmatpush1.bf16.msra.mxu0 %v7403
        %7435 = vmatprep.subr.bf16.mxu0 0
        %7436 = vmatpush1.bf16.msra.mxu0 %v7402
        %7437 = vmatprep.subr.bf16.mxu0 0
        %7438 = vmatpush2.bf16.msra.mxu0 0
        %7439 = vmatprep.subr.bf16.mxu0 0
        %7440 = vmatpush2.bf16.msra.mxu0 0
        %7441 = vmatprep.subr.bf16.mxu0 0
        %7442 = vmatpush2.bf16.msra.mxu0 0
        %7443 = vmatprep.subr.bf16.mxu0 0
        %7444 = vmatpush2.bf16.msra.mxu0 0
        %7445 = vmatprep.subr.bf16.mxu0 0
        %7446 = vmatpush2.bf16.msra.mxu0 0
        %7447 = vmatprep.subr.bf16.mxu0 0
        %7448 = vmatpush2.bf16.msra.mxu0 0
        %7449 = vmatprep.subr.bf16.mxu0 0
        %7450 = vmatpush2.bf16.msra.mxu0 0
        %7451 = vmatprep.subr.bf16.mxu0 0
        %7452 = vmatpush2.bf16.msra.mxu0 0
        %7453 = vmatprep.mubr.bf16.mxu0 0
        %7454 = vmatmul.mubr.bf16.gmra.mxu0 %v7416
        %v7455 = vpop.f32.mrf.mxu0
        %v7456 = vadd.f32 0.0, %v7455
        %v7457 = vpop.f32.mrf.mxu0
        %v7458 = vpop.f32.mrf.mxu0
        %v7459 = vpop.f32.mrf.mxu0
        %7460 = vdwg.mxu0
        %v7461 = vadd.f32 %v7360, %v7456
        %s7462 = scalar_lea.vmem %s7, 312
        %v7463 = vld [vmem:[%s7462] sm:$0xf]
        %v7464 = vld [vmem:[%s7462 + $0x4] sm:$0xf]
        %v7465 = vld [vmem:[%s7462 + $0x8] sm:$0xf]
        %v7466 = vld [vmem:[%s7462 + $0xc] sm:$0xf]
        %v7467 = vld [vmem:[%s7462 + $0x10] sm:$0xf]
        %v7468 = vld [vmem:[%s7462 + $0x14] sm:$0xf]
        %v7469 = vld [vmem:[%s7462 + $0x18] sm:$0xf]
        %v7470 = vld [vmem:[%s7462 + $0x1c] sm:$0xf]
        %v7471 = vld [vmem:[%s7462 + $0x20] sm:$0xf]
        %v7472 = vld [vmem:[%s7462 + $0x24] sm:$0xf]
        %v7473 = vld [vmem:[%s7462 + $0x28] sm:$0xf]
        %v7474 = vld [vmem:[%s7462 + $0x2c] sm:$0xf]
        %v7475 = vld [vmem:[%s7462 + $0x30] sm:$0x3]
        %v7476 = vrot.slane %v6856, 3
        %v7490 = vunpack.c.l.b16 %v7463
        %v7491 = vunpack.c.l.b16 %v7464
        %v7492 = vunpack.c.l.b16 %v7465
        %v7493 = vunpack.c.l.b16 %v7466
        %v7494 = vunpack.c.l.b16 %v7467
        %v7495 = vunpack.c.l.b16 %v7468
        %v7496 = vunpack.c.l.b16 %v7469
        %v7497 = vunpack.c.l.b16 %v7470
        %v7498 = vunpack.c.l.b16 %v7471
        %v7499 = vunpack.c.l.b16 %v7472
        %v7500 = vunpack.c.l.b16 %v7473
        %v7501 = vunpack.c.l.b16 %v7474
        %v7502 = vunpack.c.l.b16 %v7475
        %v7503 = vpack.c.b16 %v7491, %v7490
        %v7504 = vpack.c.b16 %v7493, %v7492
        %v7505 = vpack.c.b16 %v7495, %v7494
        %v7506 = vpack.c.b16 %v7497, %v7496
        %v7507 = vpack.c.b16 %v7499, %v7498
        %v7508 = vpack.c.b16 %v7501, %v7500
        %v7509 = vpack.c.b16 %v7502, %v7502
        %v7517 = vsel %vm6926, %v7476, 0
        %v7520 = vsel %vm1893, %v7509, 0
        %7522 = vmatprep.subr.bf16.mxu0 0
        %7523 = vmatpush1.bf16.msra.mxu0 0
        %7524 = vmatprep.subr.bf16.mxu0 0
        %7525 = vmatpush1.bf16.msra.mxu0 %v7520
        %7526 = vmatprep.subr.bf16.mxu0 0
        %7527 = vmatpush1.bf16.msra.mxu0 %v7508
        %7528 = vmatprep.subr.bf16.mxu0 0
        %7529 = vmatpush1.bf16.msra.mxu0 %v7507
        %7530 = vmatprep.subr.bf16.mxu0 0
        %7531 = vmatpush1.bf16.msra.mxu0 %v7506
        %7532 = vmatprep.subr.bf16.mxu0 0
        %7533 = vmatpush1.bf16.msra.mxu0 %v7505
        %7534 = vmatprep.subr.bf16.mxu0 0
        %7535 = vmatpush1.bf16.msra.mxu0 %v7504
        %7536 = vmatprep.subr.bf16.mxu0 0
        %7537 = vmatpush1.bf16.msra.mxu0 %v7503
        %7538 = vmatprep.subr.bf16.mxu0 0
        %7539 = vmatpush2.bf16.msra.mxu0 0
        %7540 = vmatprep.subr.bf16.mxu0 0
        %7541 = vmatpush2.bf16.msra.mxu0 0
        %7542 = vmatprep.subr.bf16.mxu0 0
        %7543 = vmatpush2.bf16.msra.mxu0 0
        %7544 = vmatprep.subr.bf16.mxu0 0
        %7545 = vmatpush2.bf16.msra.mxu0 0
        %7546 = vmatprep.subr.bf16.mxu0 0
        %7547 = vmatpush2.bf16.msra.mxu0 0
        %7548 = vmatprep.subr.bf16.mxu0 0
        %7549 = vmatpush2.bf16.msra.mxu0 0
        %7550 = vmatprep.subr.bf16.mxu0 0
        %7551 = vmatpush2.bf16.msra.mxu0 0
        %7552 = vmatprep.subr.bf16.mxu0 0
        %7553 = vmatpush2.bf16.msra.mxu0 0
        %7554 = vmatprep.mubr.bf16.mxu0 0
        %7555 = vmatmul.mubr.bf16.gmra.mxu0 %v7517
        %v7556 = vpop.f32.mrf.mxu0
        %v7557 = vadd.f32 0.0, %v7556
        %v7558 = vpop.f32.mrf.mxu0
        %v7559 = vpop.f32.mrf.mxu0
        %v7560 = vpop.f32.mrf.mxu0
        %7561 = vdwg.mxu0
        %v7562 = vadd.f32 %v7461, %v7557
        %s7563 = scalar_lea.vmem %s7, 364
        %v7564 = vld [vmem:[%s7563] sm:$0xf]
        %v7565 = vld [vmem:[%s7563 + $0x4] sm:$0xf]
        %v7566 = vld [vmem:[%s7563 + $0x8] sm:$0xf]
        %v7567 = vld [vmem:[%s7563 + $0xc] sm:$0xf]
        %v7568 = vld [vmem:[%s7563 + $0x10] sm:$0xf]
        %v7569 = vld [vmem:[%s7563 + $0x14] sm:$0xf]
        %v7570 = vld [vmem:[%s7563 + $0x18] sm:$0xf]
        %v7571 = vld [vmem:[%s7563 + $0x1c] sm:$0xf]
        %v7572 = vld [vmem:[%s7563 + $0x20] sm:$0xf]
        %v7573 = vld [vmem:[%s7563 + $0x24] sm:$0xf]
        %v7574 = vld [vmem:[%s7563 + $0x28] sm:$0xf]
        %v7575 = vld [vmem:[%s7563 + $0x2c] sm:$0xf]
        %v7576 = vld [vmem:[%s7563 + $0x30] sm:$0x3]
        %v7577 = vrot.slane %v6885, 3
        %v7591 = vunpack.c.l.b16 %v7564
        %v7592 = vunpack.c.l.b16 %v7565
        %v7593 = vunpack.c.l.b16 %v7566
        %v7594 = vunpack.c.l.b16 %v7567
        %v7595 = vunpack.c.l.b16 %v7568
        %v7596 = vunpack.c.l.b16 %v7569
        %v7597 = vunpack.c.l.b16 %v7570
        %v7598 = vunpack.c.l.b16 %v7571
        %v7599 = vunpack.c.l.b16 %v7572
        %v7600 = vunpack.c.l.b16 %v7573
        %v7601 = vunpack.c.l.b16 %v7574
        %v7602 = vunpack.c.l.b16 %v7575
        %v7603 = vunpack.c.l.b16 %v7576
        %v7604 = vpack.c.b16 %v7592, %v7591
        %v7605 = vpack.c.b16 %v7594, %v7593
        %v7606 = vpack.c.b16 %v7596, %v7595
        %v7607 = vpack.c.b16 %v7598, %v7597
        %v7608 = vpack.c.b16 %v7600, %v7599
        %v7609 = vpack.c.b16 %v7602, %v7601
        %v7610 = vpack.c.b16 %v7603, %v7603
        %v7618 = vsel %vm6926, %v7577, 0
        %v7621 = vsel %vm1893, %v7610, 0
        %7623 = vmatprep.subr.bf16.mxu0 0
        %7624 = vmatpush1.bf16.msra.mxu0 0
        %7625 = vmatprep.subr.bf16.mxu0 0
        %7626 = vmatpush1.bf16.msra.mxu0 %v7621
        %7627 = vmatprep.subr.bf16.mxu0 0
        %7628 = vmatpush1.bf16.msra.mxu0 %v7609
        %7629 = vmatprep.subr.bf16.mxu0 0
        %7630 = vmatpush1.bf16.msra.mxu0 %v7608
        %7631 = vmatprep.subr.bf16.mxu0 0
        %7632 = vmatpush1.bf16.msra.mxu0 %v7607
        %7633 = vmatprep.subr.bf16.mxu0 0
        %7634 = vmatpush1.bf16.msra.mxu0 %v7606
        %7635 = vmatprep.subr.bf16.mxu0 0
        %7636 = vmatpush1.bf16.msra.mxu0 %v7605
        %7637 = vmatprep.subr.bf16.mxu0 0
        %7638 = vmatpush1.bf16.msra.mxu0 %v7604
        %7639 = vmatprep.subr.bf16.mxu0 0
        %7640 = vmatpush2.bf16.msra.mxu0 0
        %7641 = vmatprep.subr.bf16.mxu0 0
        %7642 = vmatpush2.bf16.msra.mxu0 0
        %7643 = vmatprep.subr.bf16.mxu0 0
        %7644 = vmatpush2.bf16.msra.mxu0 0
        %7645 = vmatprep.subr.bf16.mxu0 0
        %7646 = vmatpush2.bf16.msra.mxu0 0
        %7647 = vmatprep.subr.bf16.mxu0 0
        %7648 = vmatpush2.bf16.msra.mxu0 0
        %7649 = vmatprep.subr.bf16.mxu0 0
        %7650 = vmatpush2.bf16.msra.mxu0 0
        %7651 = vmatprep.subr.bf16.mxu0 0
        %7652 = vmatpush2.bf16.msra.mxu0 0
        %7653 = vmatprep.subr.bf16.mxu0 0
        %7654 = vmatpush2.bf16.msra.mxu0 0
        %7655 = vmatprep.mubr.bf16.mxu0 0
        %7656 = vmatmul.mubr.bf16.gmra.mxu0 %v7618
        %v7657 = vpop.f32.mrf.mxu0
        %v7658 = vadd.f32 0.0, %v7657
        %v7659 = vpop.f32.mrf.mxu0
        %v7660 = vpop.f32.mrf.mxu0
        %v7661 = vpop.f32.mrf.mxu0
        %7662 = vdwg.mxu0
        %v7663 = vadd.f32 %v7562, %v7658
        %v7664 = vpack.c.bf16 %v6855, %v6855
        %s7665 = scalar_lea.vmem %s7, 416
        %v7666 = vld [vmem:[%s7665] sm:$0xf]
        %v7667 = vld [vmem:[%s7665 + $0x4] sm:$0xf]
        %v7668 = vld [vmem:[%s7665 + $0x8] sm:$0xf]
        %v7669 = vld [vmem:[%s7665 + $0xc] sm:$0xf]
        %v7670 = vld [vmem:[%s7665 + $0x10] sm:$0xf]
        %v7671 = vld [vmem:[%s7665 + $0x14] sm:$0xf]
        %v7672 = vld [vmem:[%s7665 + $0x18] sm:$0xf]
        %v7673 = vld [vmem:[%s7665 + $0x1c] sm:$0xf]
        %v7674 = vld [vmem:[%s7665 + $0x20] sm:$0xf]
        %v7675 = vld [vmem:[%s7665 + $0x24] sm:$0xf]
        %v7676 = vld [vmem:[%s7665 + $0x28] sm:$0xf]
        %v7677 = vld [vmem:[%s7665 + $0x2c] sm:$0xf]
        %v7678 = vld [vmem:[%s7665 + $0x30] sm:$0x3]
        %v7692 = vunpack.c.l.b16 %v7666
        %v7693 = vunpack.c.l.b16 %v7667
        %v7694 = vunpack.c.l.b16 %v7668
        %v7695 = vunpack.c.l.b16 %v7669
        %v7696 = vunpack.c.l.b16 %v7670
        %v7697 = vunpack.c.l.b16 %v7671
        %v7698 = vunpack.c.l.b16 %v7672
        %v7699 = vunpack.c.l.b16 %v7673
        %v7700 = vunpack.c.l.b16 %v7674
        %v7701 = vunpack.c.l.b16 %v7675
        %v7702 = vunpack.c.l.b16 %v7676
        %v7703 = vunpack.c.l.b16 %v7677
        %v7704 = vunpack.c.l.b16 %v7678
        %v7705 = vpack.c.b16 %v7693, %v7692
        %v7706 = vpack.c.b16 %v7695, %v7694
        %v7707 = vpack.c.b16 %v7697, %v7696
        %v7708 = vpack.c.b16 %v7699, %v7698
        %v7709 = vpack.c.b16 %v7701, %v7700
        %v7710 = vpack.c.b16 %v7703, %v7702
        %v7711 = vpack.c.b16 %v7704, %v7704
        %v7719 = vsel %vm6926, %v7664, 0
        %v7722 = vsel %vm1893, %v7711, 0
        %7724 = vmatprep.subr.bf16.mxu0 0
        %7725 = vmatpush1.bf16.msra.mxu0 0
        %7726 = vmatprep.subr.bf16.mxu0 0
        %7727 = vmatpush1.bf16.msra.mxu0 %v7722
        %7728 = vmatprep.subr.bf16.mxu0 0
        %7729 = vmatpush1.bf16.msra.mxu0 %v7710
        %7730 = vmatprep.subr.bf16.mxu0 0
        %7731 = vmatpush1.bf16.msra.mxu0 %v7709
        %7732 = vmatprep.subr.bf16.mxu0 0
        %7733 = vmatpush1.bf16.msra.mxu0 %v7708
        %7734 = vmatprep.subr.bf16.mxu0 0
        %7735 = vmatpush1.bf16.msra.mxu0 %v7707
        %7736 = vmatprep.subr.bf16.mxu0 0
        %7737 = vmatpush1.bf16.msra.mxu0 %v7706
        %7738 = vmatprep.subr.bf16.mxu0 0
        %7739 = vmatpush1.bf16.msra.mxu0 %v7705
        %7740 = vmatprep.subr.bf16.mxu0 0
        %7741 = vmatpush2.bf16.msra.mxu0 0
        %7742 = vmatprep.subr.bf16.mxu0 0
        %7743 = vmatpush2.bf16.msra.mxu0 0
        %7744 = vmatprep.subr.bf16.mxu0 0
        %7745 = vmatpush2.bf16.msra.mxu0 0
        %7746 = vmatprep.subr.bf16.mxu0 0
        %7747 = vmatpush2.bf16.msra.mxu0 0
        %7748 = vmatprep.subr.bf16.mxu0 0
        %7749 = vmatpush2.bf16.msra.mxu0 0
        %7750 = vmatprep.subr.bf16.mxu0 0
        %7751 = vmatpush2.bf16.msra.mxu0 0
        %7752 = vmatprep.subr.bf16.mxu0 0
        %7753 = vmatpush2.bf16.msra.mxu0 0
        %7754 = vmatprep.subr.bf16.mxu0 0
        %7755 = vmatpush2.bf16.msra.mxu0 0
        %7756 = vmatprep.mubr.bf16.mxu0 0
        %7757 = vmatmul.mubr.bf16.gmra.mxu0 %v7719
        %v7758 = vpop.f32.mrf.mxu0
        %v7759 = vadd.f32 0.0, %v7758
        %v7760 = vpop.f32.mrf.mxu0
        %v7761 = vpop.f32.mrf.mxu0
        %v7762 = vpop.f32.mrf.mxu0
        %7763 = vdwg.mxu0
        %v7764 = vadd.f32 %v7663, %v7759
        %s7765 = scalar_lea.vmem %s7, 468
        %v7766 = vld [vmem:[%s7765] sm:$0xf]
        %v7767 = vld [vmem:[%s7765 + $0x4] sm:$0xf]
        %v7768 = vld [vmem:[%s7765 + $0x8] sm:$0xf]
        %v7769 = vld [vmem:[%s7765 + $0xc] sm:$0xf]
        %v7770 = vld [vmem:[%s7765 + $0x10] sm:$0xf]
        %v7771 = vld [vmem:[%s7765 + $0x14] sm:$0xf]
        %v7772 = vld [vmem:[%s7765 + $0x18] sm:$0xf]
        %v7773 = vld [vmem:[%s7765 + $0x1c] sm:$0xf]
        %v7774 = vld [vmem:[%s7765 + $0x20] sm:$0xf]
        %v7775 = vld [vmem:[%s7765 + $0x24] sm:$0xf]
        %v7776 = vld [vmem:[%s7765 + $0x28] sm:$0xf]
        %v7777 = vld [vmem:[%s7765 + $0x2c] sm:$0xf]
        %v7778 = vld [vmem:[%s7765 + $0x30] sm:$0x3]
        %v7779 = vshrl.u32 %v7664, 16
        %v7794 = vunpack.c.l.b16 %v7766
        %v7795 = vunpack.c.l.b16 %v7767
        %v7796 = vunpack.c.l.b16 %v7768
        %v7797 = vunpack.c.l.b16 %v7769
        %v7798 = vunpack.c.l.b16 %v7770
        %v7799 = vunpack.c.l.b16 %v7771
        %v7800 = vunpack.c.l.b16 %v7772
        %v7801 = vunpack.c.l.b16 %v7773
        %v7802 = vunpack.c.l.b16 %v7774
        %v7803 = vunpack.c.l.b16 %v7775
        %v7804 = vunpack.c.l.b16 %v7776
        %v7805 = vunpack.c.l.b16 %v7777
        %v7806 = vunpack.c.l.b16 %v7778
        %v7807 = vpack.c.b16 %v7795, %v7794
        %v7808 = vpack.c.b16 %v7797, %v7796
        %v7809 = vpack.c.b16 %v7799, %v7798
        %v7810 = vpack.c.b16 %v7801, %v7800
        %v7811 = vpack.c.b16 %v7803, %v7802
        %v7812 = vpack.c.b16 %v7805, %v7804
        %v7813 = vpack.c.b16 %v7806, %v7806
        %v7821 = vsel %vm6926, %v7779, 0
        %v7824 = vsel %vm1893, %v7813, 0
        %7826 = vmatprep.subr.bf16.mxu0 0
        %7827 = vmatpush1.bf16.msra.mxu0 0
        %7828 = vmatprep.subr.bf16.mxu0 0
        %7829 = vmatpush1.bf16.msra.mxu0 %v7824
        %7830 = vmatprep.subr.bf16.mxu0 0
        %7831 = vmatpush1.bf16.msra.mxu0 %v7812
        %7832 = vmatprep.subr.bf16.mxu0 0
        %7833 = vmatpush1.bf16.msra.mxu0 %v7811
        %7834 = vmatprep.subr.bf16.mxu0 0
        %7835 = vmatpush1.bf16.msra.mxu0 %v7810
        %7836 = vmatprep.subr.bf16.mxu0 0
        %7837 = vmatpush1.bf16.msra.mxu0 %v7809
        %7838 = vmatprep.subr.bf16.mxu0 0
        %7839 = vmatpush1.bf16.msra.mxu0 %v7808
        %7840 = vmatprep.subr.bf16.mxu0 0
        %7841 = vmatpush1.bf16.msra.mxu0 %v7807
        %7842 = vmatprep.subr.bf16.mxu0 0
        %7843 = vmatpush2.bf16.msra.mxu0 0
        %7844 = vmatprep.subr.bf16.mxu0 0
        %7845 = vmatpush2.bf16.msra.mxu0 0
        %7846 = vmatprep.subr.bf16.mxu0 0
        %7847 = vmatpush2.bf16.msra.mxu0 0
        %7848 = vmatprep.subr.bf16.mxu0 0
        %7849 = vmatpush2.bf16.msra.mxu0 0
        %7850 = vmatprep.subr.bf16.mxu0 0
        %7851 = vmatpush2.bf16.msra.mxu0 0
        %7852 = vmatprep.subr.bf16.mxu0 0
        %7853 = vmatpush2.bf16.msra.mxu0 0
        %7854 = vmatprep.subr.bf16.mxu0 0
        %7855 = vmatpush2.bf16.msra.mxu0 0
        %7856 = vmatprep.subr.bf16.mxu0 0
        %7857 = vmatpush2.bf16.msra.mxu0 0
        %7858 = vmatprep.mubr.bf16.mxu0 0
        %7859 = vmatmul.mubr.bf16.gmra.mxu0 %v7821
        %v7860 = vpop.f32.mrf.mxu0
        %v7861 = vadd.f32 0.0, %v7860
        %v7862 = vpop.f32.mrf.mxu0
        %v7863 = vpop.f32.mrf.mxu0
        %v7864 = vpop.f32.mrf.mxu0
        %7865 = vdwg.mxu0
        %v7866 = vadd.f32 %v7764, %v7861
        %s7867 = scalar_lea.vmem %s7, 520
        %v7868 = vld [vmem:[%s7867] sm:$0xf]
        %v7869 = vld [vmem:[%s7867 + $0x4] sm:$0xf]
        %v7870 = vld [vmem:[%s7867 + $0x8] sm:$0xf]
        %v7871 = vld [vmem:[%s7867 + $0xc] sm:$0xf]
        %v7872 = vld [vmem:[%s7867 + $0x10] sm:$0xf]
        %v7873 = vld [vmem:[%s7867 + $0x14] sm:$0xf]
        %v7874 = vld [vmem:[%s7867 + $0x18] sm:$0xf]
        %v7875 = vld [vmem:[%s7867 + $0x1c] sm:$0xf]
        %v7876 = vld [vmem:[%s7867 + $0x20] sm:$0xf]
        %v7877 = vld [vmem:[%s7867 + $0x24] sm:$0xf]
        %v7878 = vld [vmem:[%s7867 + $0x28] sm:$0xf]
        %v7879 = vld [vmem:[%s7867 + $0x2c] sm:$0xf]
        %v7880 = vld [vmem:[%s7867 + $0x30] sm:$0x3]
        %v7882 = vrot.slane %v7664, 1
        %v7896 = vunpack.c.l.b16 %v7868
        %v7897 = vunpack.c.l.b16 %v7869
        %v7898 = vunpack.c.l.b16 %v7870
        %v7899 = vunpack.c.l.b16 %v7871
        %v7900 = vunpack.c.l.b16 %v7872
        %v7901 = vunpack.c.l.b16 %v7873
        %v7902 = vunpack.c.l.b16 %v7874
        %v7903 = vunpack.c.l.b16 %v7875
        %v7904 = vunpack.c.l.b16 %v7876
        %v7905 = vunpack.c.l.b16 %v7877
        %v7906 = vunpack.c.l.b16 %v7878
        %v7907 = vunpack.c.l.b16 %v7879
        %v7908 = vunpack.c.l.b16 %v7880
        %v7909 = vpack.c.b16 %v7897, %v7896
        %v7910 = vpack.c.b16 %v7899, %v7898
        %v7911 = vpack.c.b16 %v7901, %v7900
        %v7912 = vpack.c.b16 %v7903, %v7902
        %v7913 = vpack.c.b16 %v7905, %v7904
        %v7914 = vpack.c.b16 %v7907, %v7906
        %v7915 = vpack.c.b16 %v7908, %v7908
        %v7923 = vsel %vm6926, %v7882, 0
        %v7926 = vsel %vm1893, %v7915, 0
        %7928 = vmatprep.subr.bf16.mxu0 0
        %7929 = vmatpush1.bf16.msra.mxu0 0
        %7930 = vmatprep.subr.bf16.mxu0 0
        %7931 = vmatpush1.bf16.msra.mxu0 %v7926
        %7932 = vmatprep.subr.bf16.mxu0 0
        %7933 = vmatpush1.bf16.msra.mxu0 %v7914
        %7934 = vmatprep.subr.bf16.mxu0 0
        %7935 = vmatpush1.bf16.msra.mxu0 %v7913
        %7936 = vmatprep.subr.bf16.mxu0 0
        %7937 = vmatpush1.bf16.msra.mxu0 %v7912
        %7938 = vmatprep.subr.bf16.mxu0 0
        %7939 = vmatpush1.bf16.msra.mxu0 %v7911
        %7940 = vmatprep.subr.bf16.mxu0 0
        %7941 = vmatpush1.bf16.msra.mxu0 %v7910
        %7942 = vmatprep.subr.bf16.mxu0 0
        %7943 = vmatpush1.bf16.msra.mxu0 %v7909
        %7944 = vmatprep.subr.bf16.mxu0 0
        %7945 = vmatpush2.bf16.msra.mxu0 0
        %7946 = vmatprep.subr.bf16.mxu0 0
        %7947 = vmatpush2.bf16.msra.mxu0 0
        %7948 = vmatprep.subr.bf16.mxu0 0
        %7949 = vmatpush2.bf16.msra.mxu0 0
        %7950 = vmatprep.subr.bf16.mxu0 0
        %7951 = vmatpush2.bf16.msra.mxu0 0
        %7952 = vmatprep.subr.bf16.mxu0 0
        %7953 = vmatpush2.bf16.msra.mxu0 0
        %7954 = vmatprep.subr.bf16.mxu0 0
        %7955 = vmatpush2.bf16.msra.mxu0 0
        %7956 = vmatprep.subr.bf16.mxu0 0
        %7957 = vmatpush2.bf16.msra.mxu0 0
        %7958 = vmatprep.subr.bf16.mxu0 0
        %7959 = vmatpush2.bf16.msra.mxu0 0
        %7960 = vmatprep.mubr.bf16.mxu0 0
        %7961 = vmatmul.mubr.bf16.gmra.mxu0 %v7923
        %v7962 = vpop.f32.mrf.mxu0
        %v7963 = vadd.f32 0.0, %v7962
        %v7964 = vpop.f32.mrf.mxu0
        %v7965 = vpop.f32.mrf.mxu0
        %v7966 = vpop.f32.mrf.mxu0
        %7967 = vdwg.mxu0
        %v7968 = vadd.f32 %v7866, %v7963
        %s7969 = scalar_lea.vmem %s7, 572
        %v7970 = vld [vmem:[%s7969] sm:$0xf]
        %v7971 = vld [vmem:[%s7969 + $0x4] sm:$0xf]
        %v7972 = vld [vmem:[%s7969 + $0x8] sm:$0xf]
        %v7973 = vld [vmem:[%s7969 + $0xc] sm:$0xf]
        %v7974 = vld [vmem:[%s7969 + $0x10] sm:$0xf]
        %v7975 = vld [vmem:[%s7969 + $0x14] sm:$0xf]
        %v7976 = vld [vmem:[%s7969 + $0x18] sm:$0xf]
        %v7977 = vld [vmem:[%s7969 + $0x1c] sm:$0xf]
        %v7978 = vld [vmem:[%s7969 + $0x20] sm:$0xf]
        %v7979 = vld [vmem:[%s7969 + $0x24] sm:$0xf]
        %v7980 = vld [vmem:[%s7969 + $0x28] sm:$0xf]
        %v7981 = vld [vmem:[%s7969 + $0x2c] sm:$0xf]
        %v7982 = vld [vmem:[%s7969 + $0x30] sm:$0x3]
        %v7983 = vrot.slane %v7779, 1
        %v7997 = vunpack.c.l.b16 %v7970
        %v7998 = vunpack.c.l.b16 %v7971
        %v7999 = vunpack.c.l.b16 %v7972
        %v8000 = vunpack.c.l.b16 %v7973
        %v8001 = vunpack.c.l.b16 %v7974
        %v8002 = vunpack.c.l.b16 %v7975
        %v8003 = vunpack.c.l.b16 %v7976
        %v8004 = vunpack.c.l.b16 %v7977
        %v8005 = vunpack.c.l.b16 %v7978
        %v8006 = vunpack.c.l.b16 %v7979
        %v8007 = vunpack.c.l.b16 %v7980
        %v8008 = vunpack.c.l.b16 %v7981
        %v8009 = vunpack.c.l.b16 %v7982
        %v8010 = vpack.c.b16 %v7998, %v7997
        %v8011 = vpack.c.b16 %v8000, %v7999
        %v8012 = vpack.c.b16 %v8002, %v8001
        %v8013 = vpack.c.b16 %v8004, %v8003
        %v8014 = vpack.c.b16 %v8006, %v8005
        %v8015 = vpack.c.b16 %v8008, %v8007
        %v8016 = vpack.c.b16 %v8009, %v8009
        %v8024 = vsel %vm6926, %v7983, 0
        %v8027 = vsel %vm1893, %v8016, 0
        %8029 = vmatprep.subr.bf16.mxu0 0
        %8030 = vmatpush1.bf16.msra.mxu0 0
        %8031 = vmatprep.subr.bf16.mxu0 0
        %8032 = vmatpush1.bf16.msra.mxu0 %v8027
        %8033 = vmatprep.subr.bf16.mxu0 0
        %8034 = vmatpush1.bf16.msra.mxu0 %v8015
        %8035 = vmatprep.subr.bf16.mxu0 0
        %8036 = vmatpush1.bf16.msra.mxu0 %v8014
        %8037 = vmatprep.subr.bf16.mxu0 0
        %8038 = vmatpush1.bf16.msra.mxu0 %v8013
        %8039 = vmatprep.subr.bf16.mxu0 0
        %8040 = vmatpush1.bf16.msra.mxu0 %v8012
        %8041 = vmatprep.subr.bf16.mxu0 0
        %8042 = vmatpush1.bf16.msra.mxu0 %v8011
        %8043 = vmatprep.subr.bf16.mxu0 0
        %8044 = vmatpush1.bf16.msra.mxu0 %v8010
        %8045 = vmatprep.subr.bf16.mxu0 0
        %8046 = vmatpush2.bf16.msra.mxu0 0
        %8047 = vmatprep.subr.bf16.mxu0 0
        %8048 = vmatpush2.bf16.msra.mxu0 0
        %8049 = vmatprep.subr.bf16.mxu0 0
        %8050 = vmatpush2.bf16.msra.mxu0 0
        %8051 = vmatprep.subr.bf16.mxu0 0
        %8052 = vmatpush2.bf16.msra.mxu0 0
        %8053 = vmatprep.subr.bf16.mxu0 0
        %8054 = vmatpush2.bf16.msra.mxu0 0
        %8055 = vmatprep.subr.bf16.mxu0 0
        %8056 = vmatpush2.bf16.msra.mxu0 0
        %8057 = vmatprep.subr.bf16.mxu0 0
        %8058 = vmatpush2.bf16.msra.mxu0 0
        %8059 = vmatprep.subr.bf16.mxu0 0
        %8060 = vmatpush2.bf16.msra.mxu0 0
        %8061 = vmatprep.mubr.bf16.mxu0 0
        %8062 = vmatmul.mubr.bf16.gmra.mxu0 %v8024
        %v8063 = vpop.f32.mrf.mxu0
        %v8064 = vadd.f32 0.0, %v8063
        %v8065 = vpop.f32.mrf.mxu0
        %v8066 = vpop.f32.mrf.mxu0
        %v8067 = vpop.f32.mrf.mxu0
        %8068 = vdwg.mxu0
        %v8069 = vadd.f32 %v7968, %v8064
        %s8070 = scalar_lea.vmem %s7, 624
        %v8071 = vld [vmem:[%s8070] sm:$0xf]
        %v8072 = vld [vmem:[%s8070 + $0x4] sm:$0xf]
        %v8073 = vld [vmem:[%s8070 + $0x8] sm:$0xf]
        %v8074 = vld [vmem:[%s8070 + $0xc] sm:$0xf]
        %v8075 = vld [vmem:[%s8070 + $0x10] sm:$0xf]
        %v8076 = vld [vmem:[%s8070 + $0x14] sm:$0xf]
        %v8077 = vld [vmem:[%s8070 + $0x18] sm:$0xf]
        %v8078 = vld [vmem:[%s8070 + $0x1c] sm:$0xf]
        %v8079 = vld [vmem:[%s8070 + $0x20] sm:$0xf]
        %v8080 = vld [vmem:[%s8070 + $0x24] sm:$0xf]
        %v8081 = vld [vmem:[%s8070 + $0x28] sm:$0xf]
        %v8082 = vld [vmem:[%s8070 + $0x2c] sm:$0xf]
        %v8083 = vld [vmem:[%s8070 + $0x30] sm:$0x3]
        %v8084 = vrot.slane %v7664, 2
        %v8098 = vunpack.c.l.b16 %v8071
        %v8099 = vunpack.c.l.b16 %v8072
        %v8100 = vunpack.c.l.b16 %v8073
        %v8101 = vunpack.c.l.b16 %v8074
        %v8102 = vunpack.c.l.b16 %v8075
        %v8103 = vunpack.c.l.b16 %v8076
        %v8104 = vunpack.c.l.b16 %v8077
        %v8105 = vunpack.c.l.b16 %v8078
        %v8106 = vunpack.c.l.b16 %v8079
        %v8107 = vunpack.c.l.b16 %v8080
        %v8108 = vunpack.c.l.b16 %v8081
        %v8109 = vunpack.c.l.b16 %v8082
        %v8110 = vunpack.c.l.b16 %v8083
        %v8111 = vpack.c.b16 %v8099, %v8098
        %v8112 = vpack.c.b16 %v8101, %v8100
        %v8113 = vpack.c.b16 %v8103, %v8102
        %v8114 = vpack.c.b16 %v8105, %v8104
        %v8115 = vpack.c.b16 %v8107, %v8106
        %v8116 = vpack.c.b16 %v8109, %v8108
        %v8117 = vpack.c.b16 %v8110, %v8110
        %v8125 = vsel %vm6926, %v8084, 0
        %v8128 = vsel %vm1893, %v8117, 0
        %8130 = vmatprep.subr.bf16.mxu0 0
        %8131 = vmatpush1.bf16.msra.mxu0 0
        %8132 = vmatprep.subr.bf16.mxu0 0
        %8133 = vmatpush1.bf16.msra.mxu0 %v8128
        %8134 = vmatprep.subr.bf16.mxu0 0
        %8135 = vmatpush1.bf16.msra.mxu0 %v8116
        %8136 = vmatprep.subr.bf16.mxu0 0
        %8137 = vmatpush1.bf16.msra.mxu0 %v8115
        %8138 = vmatprep.subr.bf16.mxu0 0
        %8139 = vmatpush1.bf16.msra.mxu0 %v8114
        %8140 = vmatprep.subr.bf16.mxu0 0
        %8141 = vmatpush1.bf16.msra.mxu0 %v8113
        %8142 = vmatprep.subr.bf16.mxu0 0
        %8143 = vmatpush1.bf16.msra.mxu0 %v8112
        %8144 = vmatprep.subr.bf16.mxu0 0
        %8145 = vmatpush1.bf16.msra.mxu0 %v8111
        %8146 = vmatprep.subr.bf16.mxu0 0
        %8147 = vmatpush2.bf16.msra.mxu0 0
        %8148 = vmatprep.subr.bf16.mxu0 0
        %8149 = vmatpush2.bf16.msra.mxu0 0
        %8150 = vmatprep.subr.bf16.mxu0 0
        %8151 = vmatpush2.bf16.msra.mxu0 0
        %8152 = vmatprep.subr.bf16.mxu0 0
        %8153 = vmatpush2.bf16.msra.mxu0 0
        %8154 = vmatprep.subr.bf16.mxu0 0
        %8155 = vmatpush2.bf16.msra.mxu0 0
        %8156 = vmatprep.subr.bf16.mxu0 0
        %8157 = vmatpush2.bf16.msra.mxu0 0
        %8158 = vmatprep.subr.bf16.mxu0 0
        %8159 = vmatpush2.bf16.msra.mxu0 0
        %8160 = vmatprep.subr.bf16.mxu0 0
        %8161 = vmatpush2.bf16.msra.mxu0 0
        %8162 = vmatprep.mubr.bf16.mxu0 0
        %8163 = vmatmul.mubr.bf16.gmra.mxu0 %v8125
        %v8164 = vpop.f32.mrf.mxu0
        %v8165 = vadd.f32 0.0, %v8164
        %v8166 = vpop.f32.mrf.mxu0
        %v8167 = vpop.f32.mrf.mxu0
        %v8168 = vpop.f32.mrf.mxu0
        %8169 = vdwg.mxu0
        %v8170 = vadd.f32 %v8069, %v8165
        %s8171 = scalar_lea.vmem %s7, 676
        %v8172 = vld [vmem:[%s8171] sm:$0xf]
        %v8173 = vld [vmem:[%s8171 + $0x4] sm:$0xf]
        %v8174 = vld [vmem:[%s8171 + $0x8] sm:$0xf]
        %v8175 = vld [vmem:[%s8171 + $0xc] sm:$0xf]
        %v8176 = vld [vmem:[%s8171 + $0x10] sm:$0xf]
        %v8177 = vld [vmem:[%s8171 + $0x14] sm:$0xf]
        %v8178 = vld [vmem:[%s8171 + $0x18] sm:$0xf]
        %v8179 = vld [vmem:[%s8171 + $0x1c] sm:$0xf]
        %v8180 = vld [vmem:[%s8171 + $0x20] sm:$0xf]
        %v8181 = vld [vmem:[%s8171 + $0x24] sm:$0xf]
        %v8182 = vld [vmem:[%s8171 + $0x28] sm:$0xf]
        %v8183 = vld [vmem:[%s8171 + $0x2c] sm:$0xf]
        %v8184 = vld [vmem:[%s8171 + $0x30] sm:$0x3]
        %v8185 = vrot.slane %v7779, 2
        %v8199 = vunpack.c.l.b16 %v8172
        %v8200 = vunpack.c.l.b16 %v8173
        %v8201 = vunpack.c.l.b16 %v8174
        %v8202 = vunpack.c.l.b16 %v8175
        %v8203 = vunpack.c.l.b16 %v8176
        %v8204 = vunpack.c.l.b16 %v8177
        %v8205 = vunpack.c.l.b16 %v8178
        %v8206 = vunpack.c.l.b16 %v8179
        %v8207 = vunpack.c.l.b16 %v8180
        %v8208 = vunpack.c.l.b16 %v8181
        %v8209 = vunpack.c.l.b16 %v8182
        %v8210 = vunpack.c.l.b16 %v8183
        %v8211 = vunpack.c.l.b16 %v8184
        %v8212 = vpack.c.b16 %v8200, %v8199
        %v8213 = vpack.c.b16 %v8202, %v8201
        %v8214 = vpack.c.b16 %v8204, %v8203
        %v8215 = vpack.c.b16 %v8206, %v8205
        %v8216 = vpack.c.b16 %v8208, %v8207
        %v8217 = vpack.c.b16 %v8210, %v8209
        %v8218 = vpack.c.b16 %v8211, %v8211
        %v8226 = vsel %vm6926, %v8185, 0
        %v8229 = vsel %vm1893, %v8218, 0
        %8231 = vmatprep.subr.bf16.mxu0 0
        %8232 = vmatpush1.bf16.msra.mxu0 0
        %8233 = vmatprep.subr.bf16.mxu0 0
        %8234 = vmatpush1.bf16.msra.mxu0 %v8229
        %8235 = vmatprep.subr.bf16.mxu0 0
        %8236 = vmatpush1.bf16.msra.mxu0 %v8217
        %8237 = vmatprep.subr.bf16.mxu0 0
        %8238 = vmatpush1.bf16.msra.mxu0 %v8216
        %8239 = vmatprep.subr.bf16.mxu0 0
        %8240 = vmatpush1.bf16.msra.mxu0 %v8215
        %8241 = vmatprep.subr.bf16.mxu0 0
        %8242 = vmatpush1.bf16.msra.mxu0 %v8214
        %8243 = vmatprep.subr.bf16.mxu0 0
        %8244 = vmatpush1.bf16.msra.mxu0 %v8213
        %8245 = vmatprep.subr.bf16.mxu0 0
        %8246 = vmatpush1.bf16.msra.mxu0 %v8212
        %8247 = vmatprep.subr.bf16.mxu0 0
        %8248 = vmatpush2.bf16.msra.mxu0 0
        %8249 = vmatprep.subr.bf16.mxu0 0
        %8250 = vmatpush2.bf16.msra.mxu0 0
        %8251 = vmatprep.subr.bf16.mxu0 0
        %8252 = vmatpush2.bf16.msra.mxu0 0
        %8253 = vmatprep.subr.bf16.mxu0 0
        %8254 = vmatpush2.bf16.msra.mxu0 0
        %8255 = vmatprep.subr.bf16.mxu0 0
        %8256 = vmatpush2.bf16.msra.mxu0 0
        %8257 = vmatprep.subr.bf16.mxu0 0
        %8258 = vmatpush2.bf16.msra.mxu0 0
        %8259 = vmatprep.subr.bf16.mxu0 0
        %8260 = vmatpush2.bf16.msra.mxu0 0
        %8261 = vmatprep.subr.bf16.mxu0 0
        %8262 = vmatpush2.bf16.msra.mxu0 0
        %8263 = vmatprep.mubr.bf16.mxu0 0
        %8264 = vmatmul.mubr.bf16.gmra.mxu0 %v8226
        %v8265 = vpop.f32.mrf.mxu0
        %v8266 = vadd.f32 0.0, %v8265
        %v8267 = vpop.f32.mrf.mxu0
        %v8268 = vpop.f32.mrf.mxu0
        %v8269 = vpop.f32.mrf.mxu0
        %8270 = vdwg.mxu0
        %v8271 = vadd.f32 %v8170, %v8266
        %s8272 = scalar_lea.vmem %s7, 728
        %v8273 = vld [vmem:[%s8272] sm:$0xf]
        %v8274 = vld [vmem:[%s8272 + $0x4] sm:$0xf]
        %v8275 = vld [vmem:[%s8272 + $0x8] sm:$0xf]
        %v8276 = vld [vmem:[%s8272 + $0xc] sm:$0xf]
        %v8277 = vld [vmem:[%s8272 + $0x10] sm:$0xf]
        %v8278 = vld [vmem:[%s8272 + $0x14] sm:$0xf]
        %v8279 = vld [vmem:[%s8272 + $0x18] sm:$0xf]
        %v8280 = vld [vmem:[%s8272 + $0x1c] sm:$0xf]
        %v8281 = vld [vmem:[%s8272 + $0x20] sm:$0xf]
        %v8282 = vld [vmem:[%s8272 + $0x24] sm:$0xf]
        %v8283 = vld [vmem:[%s8272 + $0x28] sm:$0xf]
        %v8284 = vld [vmem:[%s8272 + $0x2c] sm:$0xf]
        %v8285 = vld [vmem:[%s8272 + $0x30] sm:$0x3]
        %v8286 = vrot.slane %v7664, 3
        %v8300 = vunpack.c.l.b16 %v8273
        %v8301 = vunpack.c.l.b16 %v8274
        %v8302 = vunpack.c.l.b16 %v8275
        %v8303 = vunpack.c.l.b16 %v8276
        %v8304 = vunpack.c.l.b16 %v8277
        %v8305 = vunpack.c.l.b16 %v8278
        %v8306 = vunpack.c.l.b16 %v8279
        %v8307 = vunpack.c.l.b16 %v8280
        %v8308 = vunpack.c.l.b16 %v8281
        %v8309 = vunpack.c.l.b16 %v8282
        %v8310 = vunpack.c.l.b16 %v8283
        %v8311 = vunpack.c.l.b16 %v8284
        %v8312 = vunpack.c.l.b16 %v8285
        %v8313 = vpack.c.b16 %v8301, %v8300
        %v8314 = vpack.c.b16 %v8303, %v8302
        %v8315 = vpack.c.b16 %v8305, %v8304
        %v8316 = vpack.c.b16 %v8307, %v8306
        %v8317 = vpack.c.b16 %v8309, %v8308
        %v8318 = vpack.c.b16 %v8311, %v8310
        %v8319 = vpack.c.b16 %v8312, %v8312
        %v8327 = vsel %vm6926, %v8286, 0
        %v8330 = vsel %vm1893, %v8319, 0
        %8332 = vmatprep.subr.bf16.mxu0 0
        %8333 = vmatpush1.bf16.msra.mxu0 0
        %8334 = vmatprep.subr.bf16.mxu0 0
        %8335 = vmatpush1.bf16.msra.mxu0 %v8330
        %8336 = vmatprep.subr.bf16.mxu0 0
        %8337 = vmatpush1.bf16.msra.mxu0 %v8318
        %8338 = vmatprep.subr.bf16.mxu0 0
        %8339 = vmatpush1.bf16.msra.mxu0 %v8317
        %8340 = vmatprep.subr.bf16.mxu0 0
        %8341 = vmatpush1.bf16.msra.mxu0 %v8316
        %8342 = vmatprep.subr.bf16.mxu0 0
        %8343 = vmatpush1.bf16.msra.mxu0 %v8315
        %8344 = vmatprep.subr.bf16.mxu0 0
        %8345 = vmatpush1.bf16.msra.mxu0 %v8314
        %8346 = vmatprep.subr.bf16.mxu0 0
        %8347 = vmatpush1.bf16.msra.mxu0 %v8313
        %8348 = vmatprep.subr.bf16.mxu0 0
        %8349 = vmatpush2.bf16.msra.mxu0 0
        %8350 = vmatprep.subr.bf16.mxu0 0
        %8351 = vmatpush2.bf16.msra.mxu0 0
        %8352 = vmatprep.subr.bf16.mxu0 0
        %8353 = vmatpush2.bf16.msra.mxu0 0
        %8354 = vmatprep.subr.bf16.mxu0 0
        %8355 = vmatpush2.bf16.msra.mxu0 0
        %8356 = vmatprep.subr.bf16.mxu0 0
        %8357 = vmatpush2.bf16.msra.mxu0 0
        %8358 = vmatprep.subr.bf16.mxu0 0
        %8359 = vmatpush2.bf16.msra.mxu0 0
        %8360 = vmatprep.subr.bf16.mxu0 0
        %8361 = vmatpush2.bf16.msra.mxu0 0
        %8362 = vmatprep.subr.bf16.mxu0 0
        %8363 = vmatpush2.bf16.msra.mxu0 0
        %8364 = vmatprep.mubr.bf16.mxu0 0
        %8365 = vmatmul.mubr.bf16.gmra.mxu0 %v8327
        %v8366 = vpop.f32.mrf.mxu0
        %v8367 = vadd.f32 0.0, %v8366
        %v8368 = vpop.f32.mrf.mxu0
        %v8369 = vpop.f32.mrf.mxu0
        %v8370 = vpop.f32.mrf.mxu0
        %8371 = vdwg.mxu0
        %v8372 = vadd.f32 %v8271, %v8367
        %s8373 = scalar_lea.vmem %s7, 780
        %v8374 = vld [vmem:[%s8373] sm:$0xf]
        %v8375 = vld [vmem:[%s8373 + $0x4] sm:$0xf]
        %v8376 = vld [vmem:[%s8373 + $0x8] sm:$0xf]
        %v8377 = vld [vmem:[%s8373 + $0xc] sm:$0xf]
        %v8378 = vld [vmem:[%s8373 + $0x10] sm:$0xf]
        %v8379 = vld [vmem:[%s8373 + $0x14] sm:$0xf]
        %v8380 = vld [vmem:[%s8373 + $0x18] sm:$0xf]
        %v8381 = vld [vmem:[%s8373 + $0x1c] sm:$0xf]
        %v8382 = vld [vmem:[%s8373 + $0x20] sm:$0xf]
        %v8383 = vld [vmem:[%s8373 + $0x24] sm:$0xf]
        %v8384 = vld [vmem:[%s8373 + $0x28] sm:$0xf]
        %v8385 = vld [vmem:[%s8373 + $0x2c] sm:$0xf]
        %v8386 = vld [vmem:[%s8373 + $0x30] sm:$0x3]
        %v8387 = vrot.slane %v7779, 3
        %v8401 = vunpack.c.l.b16 %v8374
        %v8402 = vunpack.c.l.b16 %v8375
        %v8403 = vunpack.c.l.b16 %v8376
        %v8404 = vunpack.c.l.b16 %v8377
        %v8405 = vunpack.c.l.b16 %v8378
        %v8406 = vunpack.c.l.b16 %v8379
        %v8407 = vunpack.c.l.b16 %v8380
        %v8408 = vunpack.c.l.b16 %v8381
        %v8409 = vunpack.c.l.b16 %v8382
        %v8410 = vunpack.c.l.b16 %v8383
        %v8411 = vunpack.c.l.b16 %v8384
        %v8412 = vunpack.c.l.b16 %v8385
        %v8413 = vunpack.c.l.b16 %v8386
        %v8414 = vpack.c.b16 %v8402, %v8401
        %v8415 = vpack.c.b16 %v8404, %v8403
        %v8416 = vpack.c.b16 %v8406, %v8405
        %v8417 = vpack.c.b16 %v8408, %v8407
        %v8418 = vpack.c.b16 %v8410, %v8409
        %v8419 = vpack.c.b16 %v8412, %v8411
        %v8420 = vpack.c.b16 %v8413, %v8413
        %v8428 = vsel %vm6926, %v8387, 0
        %v8431 = vsel %vm1893, %v8420, 0
        %8433 = vmatprep.subr.bf16.mxu0 0
        %8434 = vmatpush1.bf16.msra.mxu0 0
        %8435 = vmatprep.subr.bf16.mxu0 0
        %8436 = vmatpush1.bf16.msra.mxu0 %v8431
        %8437 = vmatprep.subr.bf16.mxu0 0
        %8438 = vmatpush1.bf16.msra.mxu0 %v8419
        %8439 = vmatprep.subr.bf16.mxu0 0
        %8440 = vmatpush1.bf16.msra.mxu0 %v8418
        %8441 = vmatprep.subr.bf16.mxu0 0
        %8442 = vmatpush1.bf16.msra.mxu0 %v8417
        %8443 = vmatprep.subr.bf16.mxu0 0
        %8444 = vmatpush1.bf16.msra.mxu0 %v8416
        %8445 = vmatprep.subr.bf16.mxu0 0
        %8446 = vmatpush1.bf16.msra.mxu0 %v8415
        %8447 = vmatprep.subr.bf16.mxu0 0
        %8448 = vmatpush1.bf16.msra.mxu0 %v8414
        %8449 = vmatprep.subr.bf16.mxu0 0
        %8450 = vmatpush2.bf16.msra.mxu0 0
        %8451 = vmatprep.subr.bf16.mxu0 0
        %8452 = vmatpush2.bf16.msra.mxu0 0
        %8453 = vmatprep.subr.bf16.mxu0 0
        %8454 = vmatpush2.bf16.msra.mxu0 0
        %8455 = vmatprep.subr.bf16.mxu0 0
        %8456 = vmatpush2.bf16.msra.mxu0 0
        %8457 = vmatprep.subr.bf16.mxu0 0
        %8458 = vmatpush2.bf16.msra.mxu0 0
        %8459 = vmatprep.subr.bf16.mxu0 0
        %8460 = vmatpush2.bf16.msra.mxu0 0
        %8461 = vmatprep.subr.bf16.mxu0 0
        %8462 = vmatpush2.bf16.msra.mxu0 0
        %8463 = vmatprep.subr.bf16.mxu0 0
        %8464 = vmatpush2.bf16.msra.mxu0 0
        %8465 = vmatprep.mubr.bf16.mxu0 0
        %8466 = vmatmul.mubr.bf16.gmra.mxu0 %v8428
        %v8467 = vpop.f32.mrf.mxu0
        %v8468 = vadd.f32 0.0, %v8467
        %v8469 = vpop.f32.mrf.mxu0
        %v8470 = vpop.f32.mrf.mxu0
        %v8471 = vpop.f32.mrf.mxu0
        %8472 = vdwg.mxu0
        %v8473 = vadd.f32 %v8372, %v8468
        %v8474 = vld [vmem:[%s8] sm:$0x1]
        %v8475 = vadd.f32 %v8473, %v8474
        %v8476 = vmax.f32 %v8475, 0.0
        %v8477 = vpack.c.bf16 %v8476, %v8476
        %v8478 = vld [vmem:[%s9] sm:$0xf]
        %v8479 = vld [vmem:[%s9 + $0x4] sm:$0xf]
        %v8480 = vld [vmem:[%s9 + $0x8] sm:$0xf]
        %v8481 = vld [vmem:[%s9 + $0xc] sm:$0xf]
        %v8482 = vld [vmem:[%s9 + $0x10] sm:$0xf]
        %v8483 = vld [vmem:[%s9 + $0x14] sm:$0xf]
        %v8484 = vld [vmem:[%s9 + $0x18] sm:$0xf]
        %v8485 = vld [vmem:[%s9 + $0x1c] sm:$0xf]
        %v8486 = vld [vmem:[%s9 + $0x20] sm:$0xf]
        %v8487 = vld [vmem:[%s9 + $0x24] sm:$0xf]
        %v8488 = vld [vmem:[%s9 + $0x28] sm:$0xf]
        %v8489 = vld [vmem:[%s9 + $0x2c] sm:$0xf]
        %v8490 = vld [vmem:[%s9 + $0x30] sm:$0xf]
        %v8491 = vld [vmem:[%s9 + $0x34] sm:$0xf]
        %v8492 = vld [vmem:[%s9 + $0x38] sm:$0xf]
        %v8493 = vld [vmem:[%s10] sm:$0x1]
        %v8509 = vunpack.c.l.b16 %v8478
        %v8510 = vunpack.c.l.b16 %v8479
        %v8511 = vunpack.c.l.b16 %v8480
        %v8512 = vunpack.c.l.b16 %v8481
        %v8513 = vunpack.c.l.b16 %v8482
        %v8514 = vunpack.c.l.b16 %v8483
        %v8515 = vunpack.c.l.b16 %v8484
        %v8516 = vunpack.c.l.b16 %v8485
        %v8517 = vunpack.c.l.b16 %v8486
        %v8518 = vunpack.c.l.b16 %v8487
        %v8519 = vunpack.c.l.b16 %v8488
        %v8520 = vunpack.c.l.b16 %v8489
        %v8521 = vunpack.c.l.b16 %v8490
        %v8522 = vunpack.c.l.b16 %v8491
        %v8523 = vunpack.c.l.b16 %v8492
        %v8524 = vpack.c.b16 %v8510, %v8509
        %v8525 = vpack.c.b16 %v8512, %v8511
        %v8526 = vpack.c.b16 %v8514, %v8513
        %v8527 = vpack.c.b16 %v8516, %v8515
        %v8528 = vpack.c.b16 %v8518, %v8517
        %v8529 = vpack.c.b16 %v8520, %v8519
        %v8530 = vpack.c.b16 %v8522, %v8521
        %v8531 = vpack.c.b16 %v8523, %v8523
        %vm8539 = vcmask 982016
        %v8541 = vsel %vm8539, %v8477, 0
        %v8544 = vsel %vm749, %v8531, 0
        %8546 = vmatprep.subr.bf16.mxu0 0
        %8547 = vmatpush1.bf16.msra.mxu0 %v8544
        %8548 = vmatprep.subr.bf16.mxu0 0
        %8549 = vmatpush1.bf16.msra.mxu0 %v8530
        %8550 = vmatprep.subr.bf16.mxu0 0
        %8551 = vmatpush1.bf16.msra.mxu0 %v8529
        %8552 = vmatprep.subr.bf16.mxu0 0
        %8553 = vmatpush1.bf16.msra.mxu0 %v8528
        %8554 = vmatprep.subr.bf16.mxu0 0
        %8555 = vmatpush1.bf16.msra.mxu0 %v8527
        %8556 = vmatprep.subr.bf16.mxu0 0
        %8557 = vmatpush1.bf16.msra.mxu0 %v8526
        %8558 = vmatprep.subr.bf16.mxu0 0
        %8559 = vmatpush1.bf16.msra.mxu0 %v8525
        %8560 = vmatprep.subr.bf16.mxu0 0
        %8561 = vmatpush1.bf16.msra.mxu0 %v8524
        %8562 = vmatprep.subr.bf16.mxu0 0
        %8563 = vmatpush2.bf16.msra.mxu0 0
        %8564 = vmatprep.subr.bf16.mxu0 0
        %8565 = vmatpush2.bf16.msra.mxu0 0
        %8566 = vmatprep.subr.bf16.mxu0 0
        %8567 = vmatpush2.bf16.msra.mxu0 0
        %8568 = vmatprep.subr.bf16.mxu0 0
        %8569 = vmatpush2.bf16.msra.mxu0 0
        %8570 = vmatprep.subr.bf16.mxu0 0
        %8571 = vmatpush2.bf16.msra.mxu0 0
        %8572 = vmatprep.subr.bf16.mxu0 0
        %8573 = vmatpush2.bf16.msra.mxu0 0
        %8574 = vmatprep.subr.bf16.mxu0 0
        %8575 = vmatpush2.bf16.msra.mxu0 0
        %8576 = vmatprep.subr.bf16.mxu0 0
        %8577 = vmatpush2.bf16.msra.mxu0 0
        %8578 = vmatprep.mubr.bf16.mxu0 0
        %8579 = vmatmul.mubr.bf16.gmra.mxu0 %v8541
        %v8580 = vpop.f32.mrf.mxu0
        %v8581 = vadd.f32 %v8493, %v8580
        %v8582 = vpop.f32.mrf.mxu0
        %v8583 = vpop.f32.mrf.mxu0
        %v8584 = vpop.f32.mrf.mxu0
        %8585 = vdwg.mxu0
        %v8586 = vmax.f32 %v8581, 0.0
        %v8587 = vpack.c.bf16 %v8586, %v8586
        %v8588 = vld [vmem:[%s11] sm:$0xf]
        %v8589 = vld [vmem:[%s11 + $0x4] sm:$0xf]
        %v8590 = vld [vmem:[%s11 + $0x8] sm:$0xf]
        %v8591 = vld [vmem:[%s11 + $0xc] sm:$0xf]
        %v8592 = vld [vmem:[%s11 + $0x10] sm:$0xf]
        %v8593 = vld [vmem:[%s11 + $0x14] sm:$0xf]
        %v8594 = vld [vmem:[%s11 + $0x18] sm:$0xf]
        %v8595 = vld [vmem:[%s11 + $0x1c] sm:$0xf]
        %v8596 = vld [vmem:[%s11 + $0x20] sm:$0xf]
        %v8597 = vld [vmem:[%s11 + $0x24] sm:$0xf]
        %v8598 = vld [vmem:[%s11 + $0x28] sm:$0x3]
        %v8599 = vld [vmem:[%s12] sm:$0x1]
        %v8611 = vunpack.c.l.b16 %v8588
        %v8612 = vunpack.c.l.b16 %v8589
        %v8613 = vunpack.c.l.b16 %v8590
        %v8614 = vunpack.c.l.b16 %v8591
        %v8615 = vunpack.c.l.b16 %v8592
        %v8616 = vunpack.c.l.b16 %v8593
        %v8617 = vunpack.c.l.b16 %v8594
        %v8618 = vunpack.c.l.b16 %v8595
        %v8619 = vunpack.c.l.b16 %v8596
        %v8620 = vunpack.c.l.b16 %v8597
        %v8621 = vunpack.c.l.b16 %v8598
        %v8622 = vpack.c.b16 %v8612, %v8611
        %v8623 = vpack.c.b16 %v8614, %v8613
        %v8624 = vpack.c.b16 %v8616, %v8615
        %v8625 = vpack.c.b16 %v8618, %v8617
        %v8626 = vpack.c.b16 %v8620, %v8619
        %v8627 = vpack.c.b16 %v8621, %v8621
        %vm8633 = vcmask 687104
        %v8635 = vsel %vm8633, %v8587, 0
        %v8638 = vsel %vm1893, %v8627, 0
        %8640 = vmatprep.subr.bf16.mxu0 0
        %8641 = vmatpush1.bf16.msra.mxu0 0
        %8642 = vmatprep.subr.bf16.mxu0 0
        %8643 = vmatpush1.bf16.msra.mxu0 0
        %8644 = vmatprep.subr.bf16.mxu0 0
        %8645 = vmatpush1.bf16.msra.mxu0 %v8638
        %8646 = vmatprep.subr.bf16.mxu0 0
        %8647 = vmatpush1.bf16.msra.mxu0 %v8626
        %8648 = vmatprep.subr.bf16.mxu0 0
        %8649 = vmatpush1.bf16.msra.mxu0 %v8625
        %8650 = vmatprep.subr.bf16.mxu0 0
        %8651 = vmatpush1.bf16.msra.mxu0 %v8624
        %8652 = vmatprep.subr.bf16.mxu0 0
        %8653 = vmatpush1.bf16.msra.mxu0 %v8623
        %8654 = vmatprep.subr.bf16.mxu0 0
        %8655 = vmatpush1.bf16.msra.mxu0 %v8622
        %8656 = vmatprep.subr.bf16.mxu0 0
        %8657 = vmatpush2.bf16.msra.mxu0 0
        %8658 = vmatprep.subr.bf16.mxu0 0
        %8659 = vmatpush2.bf16.msra.mxu0 0
        %8660 = vmatprep.subr.bf16.mxu0 0
        %8661 = vmatpush2.bf16.msra.mxu0 0
        %8662 = vmatprep.subr.bf16.mxu0 0
        %8663 = vmatpush2.bf16.msra.mxu0 0
        %8664 = vmatprep.subr.bf16.mxu0 0
        %8665 = vmatpush2.bf16.msra.mxu0 0
        %8666 = vmatprep.subr.bf16.mxu0 0
        %8667 = vmatpush2.bf16.msra.mxu0 0
        %8668 = vmatprep.subr.bf16.mxu0 0
        %8669 = vmatpush2.bf16.msra.mxu0 0
        %8670 = vmatprep.subr.bf16.mxu0 0
        %8671 = vmatpush2.bf16.msra.mxu0 0
        %8672 = vmatprep.mubr.bf16.mxu0 0
        %8673 = vmatmul.mubr.bf16.gmra.mxu0 %v8635
        %v8674 = vpop.f32.mrf.mxu0
        %v8675 = vadd.f32 %v8599, %v8674
        %v8676 = vpop.f32.mrf.mxu0
        %v8677 = vpop.f32.mrf.mxu0
        %v8678 = vpop.f32.mrf.mxu0
        %8679 = vdwg.mxu0
        %vm8680 = vcmask 73728
        %8681 = vst.msk [vmem:[%s430] sm:$0x1] %vm8680, %v8675
        %s8682 = sand.u32 %s313, 1
        %s8683 = scalar_lea.sflag [#allocation4], %s8682
        %s8684 = sand.u32 %s313, 1
        %s8685 = scalar_lea.vmem [#allocation3], %s8684
        // Predicated region
        $region73: #{lenet_forward.1} parent=71 // pred_check
          %p8686 = pneg %p323
        $region74: #{lenet_forward.1} parent=71 // pred_check_branch
          %8688 = sbr.rel (%p8686) target = $region76
        $region75: #{lenet_forward.1} parent=71 // pred_region
          %s8690 = ssub.s32 16, 16
          %8691 = vsyncadd %s8683, %s8690
          %s8692 = smul.addr %s27, 16
          %s8693 = scalar_lea.hbm %s13, %s8692
          %s8695 = sshll.u32 %s8685, 4
          %s8696 = int_to_ptr.vmem [resolvable:$true] %s8695
          %8698 = dma.vmem_to_hbm [thread:$0]  %s8696, 16, %s8693, %s8683
        $region76: #{lenet_forward.1} parent=71 // pred_fallthru
          _
      $region72: #{lenet_forward.1} parent=5 // pred_fallthru
        _
      %p8699 = scmp.le.s32.totalorder 2, %s22
      // Predicated region
      $region77: #{lenet_forward.1} parent=5 // pred_check
        %p8700 = pneg %p8699
      $region78: #{lenet_forward.1} parent=5 // pred_check_branch
        %8702 = sbr.rel (%p8700) target = $region80
      $region79: #{lenet_forward.1} parent=5 // pred_region
        %s8703 = ssub.s32 %s22, 2
        // Predicated region
        $region81: #{lenet_forward.1} parent=79 // pred_check
          %p8704 = pneg %p329
        $region82: #{lenet_forward.1} parent=79 // pred_check_branch
          %8706 = sbr.rel (%p8704) target = $region84
        $region83: #{lenet_forward.1} parent=79 // pred_region
          %s8707 = sand.u32 %s314, 1
          %s8708 = scalar_lea.sflag [#allocation4], %s8707
          %s8709 = sand.u32 %s314, 1
          %s8710 = scalar_lea.vmem [#allocation3], %s8709
          %8711 = dma.done %s8708, 16
        $region84: #{lenet_forward.1} parent=79 // pred_fallthru
          _
      $region80: #{lenet_forward.1} parent=5 // pred_fallthru
        _
    $region6: #{lenet_forward.1} parent=1 // loop_footer
      %s26 = sadd.s32 1, %s22
    $region7: #{lenet_forward.1} parent=1 // loop_footer_branch
      %21 = sbr.rel target = $region3
    $region8: #{lenet_forward.1} parent=1 // loop_exit
      _
    %8712 = vsyncpa [#allocation4], 1
    %s8713 = scalar_lea.sflag [#allocation4], 1
    %8714 = vsyncpa %s8713, 1

</llo_original>
